<compile_context>
chip_gen: v7x
topology: tpu7x:2x2x1
jax: 0.10.0
libtpu: 0.0.40
codegen_flags: <defaults>
</compile_context>

<pallas_src>
import math
from functools import partial

import jax
import jax.numpy as jnp
from jax.experimental import pallas as pl
from jax.experimental.pallas import tpu as pltpu


def make_fused_kernel(H, W):
    Wp = W + 2            # padded row width
    Rows = H * Wp         # over-computed output rows (2 junk columns per image row)

    def kernel(x_ref,
               w0_ref, b0_ref, w1_ref, b1_ref, w2_ref, b2_ref, w3_ref, b3_ref,
               w4_ref, b4_ref,
               o_ref, buf_a, buf_b):
        # Zero the VMEM activation buffers once: this is the SAME-padding border
        # (and guard rows) for every fused layer.
        buf_a[...] = jnp.zeros_like(buf_a)
        buf_b[...] = jnp.zeros_like(buf_b)

        # Rows whose in-row position >= W are "junk" (3x3 window wraps into the
        # next padded row); they are masked to zero so padding stays exact.
        col = jax.lax.broadcasted_iota(jnp.int32, (Rows, 1), 0) % Wp
        keep = col < W

        def win(ref):
            # Contiguous (Rows, C) row window at static flat offset `off`
            # (no relayout copies); cast to bf16 to feed the MXU.
            return lambda off: ref[off:off + Rows, :].astype(jnp.bfloat16)

        def conv3x3(read_win, w_ref, b_ref):
            cout = w_ref.shape[-1]
            acc = jnp.zeros((Rows, cout), jnp.float32)
            for dy in range(3):
                for dx in range(3):
                    acc = acc + jnp.dot(read_win(dy * Wp + dx), w_ref[dy, dx],
                                        preferred_element_type=jnp.float32)
            return acc + b_ref[...]            # f32 bias add

        # --- 4 hidden layers: conv + ReLU, activations stay in VMEM -------------
        src = win(x_ref)
        layer_params = ((w0_ref, b0_ref), (w1_ref, b1_ref),
                        (w2_ref, b2_ref), (w3_ref, b3_ref))
        dsts = (buf_a, buf_b, buf_a, buf_b)
        for (w_ref, b_ref), dst in zip(layer_params, dsts):
            acc = conv3x3(src, w_ref, b_ref)
            acc = jnp.maximum(acc, 0.0)        # ReLU in f32
            acc = jnp.where(keep, acc, 0.0)    # keep the padding border zero
            # Interior of the padded buffer starts at flat offset Wp + 1.
            dst[Wp + 1: Wp + 1 + Rows, :] = acc.astype(dst.dtype)
            src = win(dst)

        # --- post layer: conv + sigmoid -----------------------------------------
        acc = conv3x3(src, w4_ref, b4_ref)
        # Junk columns are finite and sliced off in the wrapper.
        o_ref[...] = jax.nn.sigmoid(acc)

    return kernel


def init_params(key, in_channel, out_channel, anchor_num, class_num):
    """Matches the PyTorch module's init(): weights ~ N(0, 0.01), biases 0,
       post-layer bias = -log((1-0.1)/0.1)."""
    keys = jax.random.split(key, 5)
    layers = []
    cin = in_channel
    for i in range(4):
        w = 0.01 * jax.random.normal(keys[i], (3, 3, cin, out_channel), jnp.float32)
        b = jnp.zeros((1, out_channel), jnp.float32)
        layers.append((w, b))
        cin = out_channel
    post_c = anchor_num * class_num
    w_post = 0.01 * jax.random.normal(keys[4], (3, 3, out_channel, post_c), jnp.float32)
    b_post = jnp.full((1, post_c), -math.log((1.0 - 0.1) / 0.1), jnp.float32)
    return {"layers": layers, "post": (w_post, b_post)}


def classification_forward(x_nchw, params, anchor_num, class_num):
    B, Cin, H, W = x_nchw.shape
    Wp = W + 2
    Rows = H * Wp
    buf_rows = (H + 3) * Wp      # +1 guard row so 3x3 windows never read OOB

    ws = [w for w, _ in params["layers"]] + [params["post"][0]]
    bs = [b for _, b in params["layers"]] + [params["post"][1]]
    Chid = ws[0].shape[-1]
    Cpost = ws[-1].shape[-1]

    # bf16 weights for the MXU; biases / accumulation / activations stay f32.
    ws = [w.astype(jnp.bfloat16) for w in ws]

    # NCHW -> NHWC (channels on lanes), SAME pad + one guard row, flatten spatial
    # so every 3x3 tap is a contiguous row window inside the kernel.
    x = jnp.transpose(x_nchw, (0, 2, 3, 1)).astype(jnp.float32)
    x = jnp.pad(x, ((0, 0), (1, 2), (1, 1), (0, 0)))
    x = x.reshape(B, buf_rows, Cin)

    operands = [x]
    in_specs = [pl.BlockSpec((None, buf_rows, Cin), lambda bi: (bi, 0, 0))]
    for w, b in zip(ws, bs):
        operands += [w, b]
        in_specs.append(pl.BlockSpec(w.shape, lambda bi: (0, 0, 0, 0)))
        in_specs.append(pl.BlockSpec(b.shape, lambda bi: (0, 0)))

    kernel = make_fused_kernel(H, W)
    out = pl.pallas_call(
        kernel,
        out_shape=jax.ShapeDtypeStruct((B, Rows, Cpost), jnp.float32),
        grid=(B,),
        in_specs=in_specs,
        out_specs=pl.BlockSpec((None, Rows, Cpost), lambda bi: (bi, 0, 0)),
        scratch_shapes=[pltpu.VMEM((buf_rows, Chid), jnp.float32),
                        pltpu.VMEM((buf_rows, Chid), jnp.float32)],
        compiler_params=pltpu.CompilerParams(dimension_semantics=("parallel",)),
    )(*operands)

    # Drop the 2 over-computed columns per image row, then factor the channel axis
    # as (anchor, class) exactly like permute(0,2,3,1).view(B, -1, classNum).
    out = out.reshape(B, H, Wp, Cpost)[:, :, :W, :]
    return out.reshape(B, H * W * anchor_num, class_num)


if __name__ == "__main__":
    # Small, module-consistent shapes.
    B, C_IN, C_OUT, H, W = 2, 32, 32, 8, 8
    ANCHOR_NUM, CLASS_NUM = 3, 16

    key = jax.random.PRNGKey(0)
    k_x, k_p = jax.random.split(key)
    x = jax.random.normal(k_x, (B, C_IN, H, W), jnp.float32)  # NCHW input
    params = init_params(k_p, C_IN, C_OUT, ANCHOR_NUM, CLASS_NUM)

    fwd = jax.jit(partial(classification_forward,
                          anchor_num=ANCHOR_NUM, class_num=CLASS_NUM))
    out = fwd(x, params)
    jax.block_until_ready(out)

    assert out.shape == (B, H * W * ANCHOR_NUM, CLASS_NUM), out.shape
    assert bool(jnp.all((out > 0.0) & (out < 1.0))), "sigmoid output out of range"
    print("KERNEL_OK")
</pallas_src>

<mosaic_0001>
module attributes {stable_mosaic.version = 11 : i64} {
  func.func @kernel(%arg0: i32, %arg1: memref<1x110x32xf32, #tpu.memory_space<vmem>>, %arg2: memref<3x3x32x32xbf16, #tpu.memory_space<vmem>>, %arg3: memref<1x32xf32, #tpu.memory_space<vmem>>, %arg4: memref<3x3x32x32xbf16, #tpu.memory_space<vmem>>, %arg5: memref<1x32xf32, #tpu.memory_space<vmem>>, %arg6: memref<3x3x32x32xbf16, #tpu.memory_space<vmem>>, %arg7: memref<1x32xf32, #tpu.memory_space<vmem>>, %arg8: memref<3x3x32x32xbf16, #tpu.memory_space<vmem>>, %arg9: memref<1x32xf32, #tpu.memory_space<vmem>>, %arg10: memref<3x3x32x48xbf16, #tpu.memory_space<vmem>>, %arg11: memref<1x48xf32, #tpu.memory_space<vmem>>, %arg12: memref<1x80x48xf32, #tpu.memory_space<vmem>>, %arg13: memref<110x32xf32, #tpu.memory_space<vmem>>, %arg14: memref<110x32xf32, #tpu.memory_space<vmem>>) attributes {dimension_semantics = [#tpu.dimension_semantics<parallel>], iteration_bounds = array<i64: 2>, scalar_prefetch = 0 : i64, scratch_operands = 2 : i64, tpu.core_type = #tpu.core_type<tc>, window_params = [{transform_indices = @transform_0, window_bounds = array<i64: 1, 110, 32>}, {pipeline_mode = #tpu.pipeline_mode<synchronous>, transform_indices = @transform_1, window_bounds = array<i64: 3, 3, 32, 32>}, {pipeline_mode = #tpu.pipeline_mode<synchronous>, transform_indices = @transform_2, window_bounds = array<i64: 1, 32>}, {pipeline_mode = #tpu.pipeline_mode<synchronous>, transform_indices = @transform_3, window_bounds = array<i64: 3, 3, 32, 32>}, {pipeline_mode = #tpu.pipeline_mode<synchronous>, transform_indices = @transform_4, window_bounds = array<i64: 1, 32>}, {pipeline_mode = #tpu.pipeline_mode<synchronous>, transform_indices = @transform_5, window_bounds = array<i64: 3, 3, 32, 32>}, {pipeline_mode = #tpu.pipeline_mode<synchronous>, transform_indices = @transform_6, window_bounds = array<i64: 1, 32>}, {pipeline_mode = #tpu.pipeline_mode<synchronous>, transform_indices = @transform_7, window_bounds = array<i64: 3, 3, 32, 32>}, {pipeline_mode = #tpu.pipeline_mode<synchronous>, transform_indices = @transform_8, window_bounds = array<i64: 1, 32>}, {pipeline_mode = #tpu.pipeline_mode<synchronous>, transform_indices = @transform_9, window_bounds = array<i64: 3, 3, 32, 48>}, {pipeline_mode = #tpu.pipeline_mode<synchronous>, transform_indices = @transform_10, window_bounds = array<i64: 1, 48>}, {transform_indices = @transform_11, window_bounds = array<i64: 1, 80, 48>}]} {
    %cst = arith.constant 0.000000e+00 : f32
    %0 = vector.broadcast %cst : f32 to vector<110x32xf32>
    %c0 = arith.constant 0 : index
    %c0_0 = arith.constant 0 : index
    %1 = vector.load %arg13[%c0, %c0_0] : memref<110x32xf32, #tpu.memory_space<vmem>>, vector<110x32xf32>
    tpu.vector_store %arg13[%c0, %c0_0], %0 {strides = array<i32>} : memref<110x32xf32, #tpu.memory_space<vmem>>, vector<110x32xf32>,
    %cst_1 = arith.constant 0.000000e+00 : f32
    %2 = vector.broadcast %cst_1 : f32 to vector<110x32xf32>
    %c0_2 = arith.constant 0 : index
    %c0_3 = arith.constant 0 : index
    %3 = vector.load %arg14[%c0_2, %c0_3] : memref<110x32xf32, #tpu.memory_space<vmem>>, vector<110x32xf32>
    tpu.vector_store %arg14[%c0_2, %c0_3], %2 {strides = array<i32>} : memref<110x32xf32, #tpu.memory_space<vmem>>, vector<110x32xf32>,
    %4 = tpu.iota {dimensions = array<i32: 0>} : vector<80x1xi32>
    %c10_i32 = arith.constant 10 : i32
    %c0_i32 = arith.constant 0 : i32
    %5 = arith.cmpi eq, %c10_i32, %c0_i32 : i32
    %c1_i32 = arith.constant 1 : i32
    %6 = arith.select %5, %c1_i32, %c10_i32 : i32
    %7 = vector.broadcast %6 : i32 to vector<80x1xi32>
    %8 = arith.remsi %4, %7 : vector<80x1xi32>
    %c0_i32_4 = arith.constant 0 : i32
    %9 = vector.broadcast %c0_i32_4 : i32 to vector<80x1xi32>
    %10 = arith.cmpi ne, %8, %9 : vector<80x1xi32>
    %c0_i32_5 = arith.constant 0 : i32
    %11 = vector.broadcast %c0_i32_5 : i32 to vector<80x1xi32>
    %12 = arith.cmpi slt, %8, %11 : vector<80x1xi32>
    %c0_i32_6 = arith.constant 0 : i32
    %13 = arith.cmpi slt, %6, %c0_i32_6 : i32
    %14 = vector.broadcast %13 : i1 to vector<80x1xi1>
    %15 = vector.broadcast %14 : vector<80x1xi1> to vector<80x1xi1>
    %16 = arith.xori %12, %15 : vector<80x1xi1>
    %17 = arith.andi %16, %10 : vector<80x1xi1>
    %18 = vector.broadcast %6 : i32 to vector<80x1xi32>
    %19 = arith.addi %8, %18 : vector<80x1xi32>
    %20 = arith.select %17, %19, %8 : vector<80x1xi1>, vector<80x1xi32>
    %c8_i32 = arith.constant 8 : i32
    %21 = vector.broadcast %c8_i32 : i32 to vector<80x1xi32>
    %22 = arith.cmpi slt, %20, %21 : vector<80x1xi32>
    %cst_7 = arith.constant 0.000000e+00 : f32
    %23 = vector.broadcast %cst_7 : f32 to vector<80x32xf32>
    %c0_8 = arith.constant 0 : index
    %c0_9 = arith.constant 0 : index
    %c0_10 = arith.constant 0 : index
    %24 = vector.load %arg1[%c0_8, %c0_9, %c0_10] : memref<1x110x32xf32, #tpu.memory_space<vmem>>, vector<1x80x32xf32>
    %25 = vector.shape_cast %24 : vector<1x80x32xf32> to vector<80x32xf32>
    %26 = arith.truncf %25 : vector<80x32xf32> to vector<80x32xbf16>
    %c0_11 = arith.constant 0 : index
    %c0_12 = arith.constant 0 : index
    %c0_13 = arith.constant 0 : index
    %c0_14 = arith.constant 0 : index
    %27 = vector.load %arg2[%c0_11, %c0_12, %c0_13, %c0_14] : memref<3x3x32x32xbf16, #tpu.memory_space<vmem>>, vector<1x1x32x32xbf16>
    %28 = vector.shape_cast %27 : vector<1x1x32x32xbf16> to vector<32x32xbf16>
    %cst_15 = arith.constant dense<0.000000e+00> : vector<80x32xf32>
    %29 = tpu.matmul %26, %28, %cst_15 {dimension_numbers = #tpu.dot_dimension_numbers<[1], [0], [0], [1], [0, 0, 1, 1], [], []>} : vector<80x32xbf16>, vector<32x32xbf16>, vector<80x32xf32> -> vector<80x32xf32>
    %30 = arith.addf %23, %29 : vector<80x32xf32>
    %c0_16 = arith.constant 0 : index
    %c1 = arith.constant 1 : index
    %c0_17 = arith.constant 0 : index
    %31 = vector.load %arg1[%c0_16, %c1, %c0_17] : memref<1x110x32xf32, #tpu.memory_space<vmem>>, vector<1x80x32xf32>
    %32 = vector.shape_cast %31 : vector<1x80x32xf32> to vector<80x32xf32>
    %33 = arith.truncf %32 : vector<80x32xf32> to vector<80x32xbf16>
    %c0_18 = arith.constant 0 : index
    %c1_19 = arith.constant 1 : index
    %c0_20 = arith.constant 0 : index
    %c0_21 = arith.constant 0 : index
    %34 = vector.load %arg2[%c0_18, %c1_19, %c0_20, %c0_21] : memref<3x3x32x32xbf16, #tpu.memory_space<vmem>>, vector<1x1x32x32xbf16>
    %35 = vector.shape_cast %34 : vector<1x1x32x32xbf16> to vector<32x32xbf16>
    %cst_22 = arith.constant dense<0.000000e+00> : vector<80x32xf32>
    %36 = tpu.matmul %33, %35, %cst_22 {dimension_numbers = #tpu.dot_dimension_numbers<[1], [0], [0], [1], [0, 0, 1, 1], [], []>} : vector<80x32xbf16>, vector<32x32xbf16>, vector<80x32xf32> -> vector<80x32xf32>
    %37 = arith.addf %30, %36 : vector<80x32xf32>
    %c0_23 = arith.constant 0 : index
    %c2 = arith.constant 2 : index
    %c0_24 = arith.constant 0 : index
    %38 = vector.load %arg1[%c0_23, %c2, %c0_24] : memref<1x110x32xf32, #tpu.memory_space<vmem>>, vector<1x80x32xf32>
    %39 = vector.shape_cast %38 : vector<1x80x32xf32> to vector<80x32xf32>
    %40 = arith.truncf %39 : vector<80x32xf32> to vector<80x32xbf16>
    %c0_25 = arith.constant 0 : index
    %c2_26 = arith.constant 2 : index
    %c0_27 = arith.constant 0 : index
    %c0_28 = arith.constant 0 : index
    %41 = vector.load %arg2[%c0_25, %c2_26, %c0_27, %c0_28] : memref<3x3x32x32xbf16, #tpu.memory_space<vmem>>, vector<1x1x32x32xbf16>
    %42 = vector.shape_cast %41 : vector<1x1x32x32xbf16> to vector<32x32xbf16>
    %cst_29 = arith.constant dense<0.000000e+00> : vector<80x32xf32>
    %43 = tpu.matmul %40, %42, %cst_29 {dimension_numbers = #tpu.dot_dimension_numbers<[1], [0], [0], [1], [0, 0, 1, 1], [], []>} : vector<80x32xbf16>, vector<32x32xbf16>, vector<80x32xf32> -> vector<80x32xf32>
    %44 = arith.addf %37, %43 : vector<80x32xf32>
    %c0_30 = arith.constant 0 : index
    %c10 = arith.constant 10 : index
    %c0_31 = arith.constant 0 : index
    %45 = vector.load %arg1[%c0_30, %c10, %c0_31] : memref<1x110x32xf32, #tpu.memory_space<vmem>>, vector<1x80x32xf32>
    %46 = vector.shape_cast %45 : vector<1x80x32xf32> to vector<80x32xf32>
    %47 = arith.truncf %46 : vector<80x32xf32> to vector<80x32xbf16>
    %c1_32 = arith.constant 1 : index
    %c0_33 = arith.constant 0 : index
    %c0_34 = arith.constant 0 : index
    %c0_35 = arith.constant 0 : index
    %48 = vector.load %arg2[%c1_32, %c0_33, %c0_34, %c0_35] : memref<3x3x32x32xbf16, #tpu.memory_space<vmem>>, vector<1x1x32x32xbf16>
    %49 = vector.shape_cast %48 : vector<1x1x32x32xbf16> to vector<32x32xbf16>
    %cst_36 = arith.constant dense<0.000000e+00> : vector<80x32xf32>
    %50 = tpu.matmul %47, %49, %cst_36 {dimension_numbers = #tpu.dot_dimension_numbers<[1], [0], [0], [1], [0, 0, 1, 1], [], []>} : vector<80x32xbf16>, vector<32x32xbf16>, vector<80x32xf32> -> vector<80x32xf32>
    %51 = arith.addf %44, %50 : vector<80x32xf32>
    %c0_37 = arith.constant 0 : index
    %c11 = arith.constant 11 : index
    %c0_38 = arith.constant 0 : index
    %52 = vector.load %arg1[%c0_37, %c11, %c0_38] : memref<1x110x32xf32, #tpu.memory_space<vmem>>, vector<1x80x32xf32>
    %53 = vector.shape_cast %52 : vector<1x80x32xf32> to vector<80x32xf32>
    %54 = arith.truncf %53 : vector<80x32xf32> to vector<80x32xbf16>
    %c1_39 = arith.constant 1 : index
    %c1_40 = arith.constant 1 : index
    %c0_41 = arith.constant 0 : index
    %c0_42 = arith.constant 0 : index
    %55 = vector.load %arg2[%c1_39, %c1_40, %c0_41, %c0_42] : memref<3x3x32x32xbf16, #tpu.memory_space<vmem>>, vector<1x1x32x32xbf16>
    %56 = vector.shape_cast %55 : vector<1x1x32x32xbf16> to vector<32x32xbf16>
    %cst_43 = arith.constant dense<0.000000e+00> : vector<80x32xf32>
    %57 = tpu.matmul %54, %56, %cst_43 {dimension_numbers = #tpu.dot_dimension_numbers<[1], [0], [0], [1], [0, 0, 1, 1], [], []>} : vector<80x32xbf16>, vector<32x32xbf16>, vector<80x32xf32> -> vector<80x32xf32>
    %58 = arith.addf %51, %57 : vector<80x32xf32>
    %c0_44 = arith.constant 0 : index
    %c12 = arith.constant 12 : index
    %c0_45 = arith.constant 0 : index
    %59 = vector.load %arg1[%c0_44, %c12, %c0_45] : memref<1x110x32xf32, #tpu.memory_space<vmem>>, vector<1x80x32xf32>
    %60 = vector.shape_cast %59 : vector<1x80x32xf32> to vector<80x32xf32>
    %61 = arith.truncf %60 : vector<80x32xf32> to vector<80x32xbf16>
    %c1_46 = arith.constant 1 : index
    %c2_47 = arith.constant 2 : index
    %c0_48 = arith.constant 0 : index
    %c0_49 = arith.constant 0 : index
    %62 = vector.load %arg2[%c1_46, %c2_47, %c0_48, %c0_49] : memref<3x3x32x32xbf16, #tpu.memory_space<vmem>>, vector<1x1x32x32xbf16>
    %63 = vector.shape_cast %62 : vector<1x1x32x32xbf16> to vector<32x32xbf16>
    %cst_50 = arith.constant dense<0.000000e+00> : vector<80x32xf32>
    %64 = tpu.matmul %61, %63, %cst_50 {dimension_numbers = #tpu.dot_dimension_numbers<[1], [0], [0], [1], [0, 0, 1, 1], [], []>} : vector<80x32xbf16>, vector<32x32xbf16>, vector<80x32xf32> -> vector<80x32xf32>
    %65 = arith.addf %58, %64 : vector<80x32xf32>
    %c0_51 = arith.constant 0 : index
    %c20 = arith.constant 20 : index
    %c0_52 = arith.constant 0 : index
    %66 = vector.load %arg1[%c0_51, %c20, %c0_52] : memref<1x110x32xf32, #tpu.memory_space<vmem>>, vector<1x80x32xf32>
    %67 = vector.shape_cast %66 : vector<1x80x32xf32> to vector<80x32xf32>
    %68 = arith.truncf %67 : vector<80x32xf32> to vector<80x32xbf16>
    %c2_53 = arith.constant 2 : index
    %c0_54 = arith.constant 0 : index
    %c0_55 = arith.constant 0 : index
    %c0_56 = arith.constant 0 : index
    %69 = vector.load %arg2[%c2_53, %c0_54, %c0_55, %c0_56] : memref<3x3x32x32xbf16, #tpu.memory_space<vmem>>, vector<1x1x32x32xbf16>
    %70 = vector.shape_cast %69 : vector<1x1x32x32xbf16> to vector<32x32xbf16>
    %cst_57 = arith.constant dense<0.000000e+00> : vector<80x32xf32>
    %71 = tpu.matmul %68, %70, %cst_57 {dimension_numbers = #tpu.dot_dimension_numbers<[1], [0], [0], [1], [0, 0, 1, 1], [], []>} : vector<80x32xbf16>, vector<32x32xbf16>, vector<80x32xf32> -> vector<80x32xf32>
    %72 = arith.addf %65, %71 : vector<80x32xf32>
    %c0_58 = arith.constant 0 : index
    %c21 = arith.constant 21 : index
    %c0_59 = arith.constant 0 : index
    %73 = vector.load %arg1[%c0_58, %c21, %c0_59] : memref<1x110x32xf32, #tpu.memory_space<vmem>>, vector<1x80x32xf32>
    %74 = vector.shape_cast %73 : vector<1x80x32xf32> to vector<80x32xf32>
    %75 = arith.truncf %74 : vector<80x32xf32> to vector<80x32xbf16>
    %c2_60 = arith.constant 2 : index
    %c1_61 = arith.constant 1 : index
    %c0_62 = arith.constant 0 : index
    %c0_63 = arith.constant 0 : index
    %76 = vector.load %arg2[%c2_60, %c1_61, %c0_62, %c0_63] : memref<3x3x32x32xbf16, #tpu.memory_space<vmem>>, vector<1x1x32x32xbf16>
    %77 = vector.shape_cast %76 : vector<1x1x32x32xbf16> to vector<32x32xbf16>
    %cst_64 = arith.constant dense<0.000000e+00> : vector<80x32xf32>
    %78 = tpu.matmul %75, %77, %cst_64 {dimension_numbers = #tpu.dot_dimension_numbers<[1], [0], [0], [1], [0, 0, 1, 1], [], []>} : vector<80x32xbf16>, vector<32x32xbf16>, vector<80x32xf32> -> vector<80x32xf32>
    %79 = arith.addf %72, %78 : vector<80x32xf32>
    %c0_65 = arith.constant 0 : index
    %c22 = arith.constant 22 : index
    %c0_66 = arith.constant 0 : index
    %80 = vector.load %arg1[%c0_65, %c22, %c0_66] : memref<1x110x32xf32, #tpu.memory_space<vmem>>, vector<1x80x32xf32>
    %81 = vector.shape_cast %80 : vector<1x80x32xf32> to vector<80x32xf32>
    %82 = arith.truncf %81 : vector<80x32xf32> to vector<80x32xbf16>
    %c2_67 = arith.constant 2 : index
    %c2_68 = arith.constant 2 : index
    %c0_69 = arith.constant 0 : index
    %c0_70 = arith.constant 0 : index
    %83 = vector.load %arg2[%c2_67, %c2_68, %c0_69, %c0_70] : memref<3x3x32x32xbf16, #tpu.memory_space<vmem>>, vector<1x1x32x32xbf16>
    %84 = vector.shape_cast %83 : vector<1x1x32x32xbf16> to vector<32x32xbf16>
    %cst_71 = arith.constant dense<0.000000e+00> : vector<80x32xf32>
    %85 = tpu.matmul %82, %84, %cst_71 {dimension_numbers = #tpu.dot_dimension_numbers<[1], [0], [0], [1], [0, 0, 1, 1], [], []>} : vector<80x32xbf16>, vector<32x32xbf16>, vector<80x32xf32> -> vector<80x32xf32>
    %86 = arith.addf %79, %85 : vector<80x32xf32>
    %c0_72 = arith.constant 0 : index
    %c0_73 = arith.constant 0 : index
    %87 = vector.load %arg3[%c0_72, %c0_73] : memref<1x32xf32, #tpu.memory_space<vmem>>, vector<1x32xf32>
    %88 = vector.broadcast %87 : vector<1x32xf32> to vector<80x32xf32>
    %89 = arith.addf %86, %88 : vector<80x32xf32>
    %cst_74 = arith.constant 0.000000e+00 : f32
    %90 = vector.broadcast %cst_74 : f32 to vector<80x32xf32>
    %91 = arith.maximumf %89, %90 : vector<80x32xf32>
    %cst_75 = arith.constant 0.000000e+00 : f32
    %92 = vector.shape_cast %22 : vector<80x1xi1> to vector<80x1xi1>
    %93 = vector.broadcast %92 : vector<80x1xi1> to vector<80x32xi1>
    %94 = vector.broadcast %cst_75 : f32 to vector<80x32xf32>
    %95 = arith.select %93, %91, %94 : vector<80x32xi1>, vector<80x32xf32>
    %c11_76 = arith.constant 11 : index
    %c0_77 = arith.constant 0 : index
    %96 = vector.load %arg13[%c11_76, %c0_77] : memref<110x32xf32, #tpu.memory_space<vmem>>, vector<80x32xf32>
    tpu.vector_store %arg13[%c11_76, %c0_77], %95 {strides = array<i32>} : memref<110x32xf32, #tpu.memory_space<vmem>>, vector<80x32xf32>,
    %cst_78 = arith.constant 0.000000e+00 : f32
    %97 = vector.broadcast %cst_78 : f32 to vector<80x32xf32>
    %c0_79 = arith.constant 0 : index
    %c0_80 = arith.constant 0 : index
    %98 = vector.load %arg13[%c0_79, %c0_80] : memref<110x32xf32, #tpu.memory_space<vmem>>, vector<80x32xf32>
    %99 = arith.truncf %98 : vector<80x32xf32> to vector<80x32xbf16>
    %c0_81 = arith.constant 0 : index
    %c0_82 = arith.constant 0 : index
    %c0_83 = arith.constant 0 : index
    %c0_84 = arith.constant 0 : index
    %100 = vector.load %arg4[%c0_81, %c0_82, %c0_83, %c0_84] : memref<3x3x32x32xbf16, #tpu.memory_space<vmem>>, vector<1x1x32x32xbf16>
    %101 = vector.shape_cast %100 : vector<1x1x32x32xbf16> to vector<32x32xbf16>
    %cst_85 = arith.constant dense<0.000000e+00> : vector<80x32xf32>
    %102 = tpu.matmul %99, %101, %cst_85 {dimension_numbers = #tpu.dot_dimension_numbers<[1], [0], [0], [1], [0, 0, 1, 1], [], []>} : vector<80x32xbf16>, vector<32x32xbf16>, vector<80x32xf32> -> vector<80x32xf32>
    %103 = arith.addf %97, %102 : vector<80x32xf32>
    %c1_86 = arith.constant 1 : index
    %c0_87 = arith.constant 0 : index
    %104 = vector.load %arg13[%c1_86, %c0_87] : memref<110x32xf32, #tpu.memory_space<vmem>>, vector<80x32xf32>
    %105 = arith.truncf %104 : vector<80x32xf32> to vector<80x32xbf16>
    %c0_88 = arith.constant 0 : index
    %c1_89 = arith.constant 1 : index
    %c0_90 = arith.constant 0 : index
    %c0_91 = arith.constant 0 : index
    %106 = vector.load %arg4[%c0_88, %c1_89, %c0_90, %c0_91] : memref<3x3x32x32xbf16, #tpu.memory_space<vmem>>, vector<1x1x32x32xbf16>
    %107 = vector.shape_cast %106 : vector<1x1x32x32xbf16> to vector<32x32xbf16>
    %cst_92 = arith.constant dense<0.000000e+00> : vector<80x32xf32>
    %108 = tpu.matmul %105, %107, %cst_92 {dimension_numbers = #tpu.dot_dimension_numbers<[1], [0], [0], [1], [0, 0, 1, 1], [], []>} : vector<80x32xbf16>, vector<32x32xbf16>, vector<80x32xf32> -> vector<80x32xf32>
    %109 = arith.addf %103, %108 : vector<80x32xf32>
    %c2_93 = arith.constant 2 : index
    %c0_94 = arith.constant 0 : index
    %110 = vector.load %arg13[%c2_93, %c0_94] : memref<110x32xf32, #tpu.memory_space<vmem>>, vector<80x32xf32>
    %111 = arith.truncf %110 : vector<80x32xf32> to vector<80x32xbf16>
    %c0_95 = arith.constant 0 : index
    %c2_96 = arith.constant 2 : index
    %c0_97 = arith.constant 0 : index
    %c0_98 = arith.constant 0 : index
    %112 = vector.load %arg4[%c0_95, %c2_96, %c0_97, %c0_98] : memref<3x3x32x32xbf16, #tpu.memory_space<vmem>>, vector<1x1x32x32xbf16>
    %113 = vector.shape_cast %112 : vector<1x1x32x32xbf16> to vector<32x32xbf16>
    %cst_99 = arith.constant dense<0.000000e+00> : vector<80x32xf32>
    %114 = tpu.matmul %111, %113, %cst_99 {dimension_numbers = #tpu.dot_dimension_numbers<[1], [0], [0], [1], [0, 0, 1, 1], [], []>} : vector<80x32xbf16>, vector<32x32xbf16>, vector<80x32xf32> -> vector<80x32xf32>
    %115 = arith.addf %109, %114 : vector<80x32xf32>
    %c10_100 = arith.constant 10 : index
    %c0_101 = arith.constant 0 : index
    %116 = vector.load %arg13[%c10_100, %c0_101] : memref<110x32xf32, #tpu.memory_space<vmem>>, vector<80x32xf32>
    %117 = arith.truncf %116 : vector<80x32xf32> to vector<80x32xbf16>
    %c1_102 = arith.constant 1 : index
    %c0_103 = arith.constant 0 : index
    %c0_104 = arith.constant 0 : index
    %c0_105 = arith.constant 0 : index
    %118 = vector.load %arg4[%c1_102, %c0_103, %c0_104, %c0_105] : memref<3x3x32x32xbf16, #tpu.memory_space<vmem>>, vector<1x1x32x32xbf16>
    %119 = vector.shape_cast %118 : vector<1x1x32x32xbf16> to vector<32x32xbf16>
    %cst_106 = arith.constant dense<0.000000e+00> : vector<80x32xf32>
    %120 = tpu.matmul %117, %119, %cst_106 {dimension_numbers = #tpu.dot_dimension_numbers<[1], [0], [0], [1], [0, 0, 1, 1], [], []>} : vector<80x32xbf16>, vector<32x32xbf16>, vector<80x32xf32> -> vector<80x32xf32>
    %121 = arith.addf %115, %120 : vector<80x32xf32>
    %c11_107 = arith.constant 11 : index
    %c0_108 = arith.constant 0 : index
    %122 = vector.load %arg13[%c11_107, %c0_108] : memref<110x32xf32, #tpu.memory_space<vmem>>, vector<80x32xf32>
    %123 = arith.truncf %122 : vector<80x32xf32> to vector<80x32xbf16>
    %c1_109 = arith.constant 1 : index
    %c1_110 = arith.constant 1 : index
    %c0_111 = arith.constant 0 : index
    %c0_112 = arith.constant 0 : index
    %124 = vector.load %arg4[%c1_109, %c1_110, %c0_111, %c0_112] : memref<3x3x32x32xbf16, #tpu.memory_space<vmem>>, vector<1x1x32x32xbf16>
    %125 = vector.shape_cast %124 : vector<1x1x32x32xbf16> to vector<32x32xbf16>
    %cst_113 = arith.constant dense<0.000000e+00> : vector<80x32xf32>
    %126 = tpu.matmul %123, %125, %cst_113 {dimension_numbers = #tpu.dot_dimension_numbers<[1], [0], [0], [1], [0, 0, 1, 1], [], []>} : vector<80x32xbf16>, vector<32x32xbf16>, vector<80x32xf32> -> vector<80x32xf32>
    %127 = arith.addf %121, %126 : vector<80x32xf32>
    %c12_114 = arith.constant 12 : index
    %c0_115 = arith.constant 0 : index
    %128 = vector.load %arg13[%c12_114, %c0_115] : memref<110x32xf32, #tpu.memory_space<vmem>>, vector<80x32xf32>
    %129 = arith.truncf %128 : vector<80x32xf32> to vector<80x32xbf16>
    %c1_116 = arith.constant 1 : index
    %c2_117 = arith.constant 2 : index
    %c0_118 = arith.constant 0 : index
    %c0_119 = arith.constant 0 : index
    %130 = vector.load %arg4[%c1_116, %c2_117, %c0_118, %c0_119] : memref<3x3x32x32xbf16, #tpu.memory_space<vmem>>, vector<1x1x32x32xbf16>
    %131 = vector.shape_cast %130 : vector<1x1x32x32xbf16> to vector<32x32xbf16>
    %cst_120 = arith.constant dense<0.000000e+00> : vector<80x32xf32>
    %132 = tpu.matmul %129, %131, %cst_120 {dimension_numbers = #tpu.dot_dimension_numbers<[1], [0], [0], [1], [0, 0, 1, 1], [], []>} : vector<80x32xbf16>, vector<32x32xbf16>, vector<80x32xf32> -> vector<80x32xf32>
    %133 = arith.addf %127, %132 : vector<80x32xf32>
    %c20_121 = arith.constant 20 : index
    %c0_122 = arith.constant 0 : index
    %134 = vector.load %arg13[%c20_121, %c0_122] : memref<110x32xf32, #tpu.memory_space<vmem>>, vector<80x32xf32>
    %135 = arith.truncf %134 : vector<80x32xf32> to vector<80x32xbf16>
    %c2_123 = arith.constant 2 : index
    %c0_124 = arith.constant 0 : index
    %c0_125 = arith.constant 0 : index
    %c0_126 = arith.constant 0 : index
    %136 = vector.load %arg4[%c2_123, %c0_124, %c0_125, %c0_126] : memref<3x3x32x32xbf16, #tpu.memory_space<vmem>>, vector<1x1x32x32xbf16>
    %137 = vector.shape_cast %136 : vector<1x1x32x32xbf16> to vector<32x32xbf16>
    %cst_127 = arith.constant dense<0.000000e+00> : vector<80x32xf32>
    %138 = tpu.matmul %135, %137, %cst_127 {dimension_numbers = #tpu.dot_dimension_numbers<[1], [0], [0], [1], [0, 0, 1, 1], [], []>} : vector<80x32xbf16>, vector<32x32xbf16>, vector<80x32xf32> -> vector<80x32xf32>
    %139 = arith.addf %133, %138 : vector<80x32xf32>
    %c21_128 = arith.constant 21 : index
    %c0_129 = arith.constant 0 : index
    %140 = vector.load %arg13[%c21_128, %c0_129] : memref<110x32xf32, #tpu.memory_space<vmem>>, vector<80x32xf32>
    %141 = arith.truncf %140 : vector<80x32xf32> to vector<80x32xbf16>
    %c2_130 = arith.constant 2 : index
    %c1_131 = arith.constant 1 : index
    %c0_132 = arith.constant 0 : index
    %c0_133 = arith.constant 0 : index
    %142 = vector.load %arg4[%c2_130, %c1_131, %c0_132, %c0_133] : memref<3x3x32x32xbf16, #tpu.memory_space<vmem>>, vector<1x1x32x32xbf16>
    %143 = vector.shape_cast %142 : vector<1x1x32x32xbf16> to vector<32x32xbf16>
    %cst_134 = arith.constant dense<0.000000e+00> : vector<80x32xf32>
    %144 = tpu.matmul %141, %143, %cst_134 {dimension_numbers = #tpu.dot_dimension_numbers<[1], [0], [0], [1], [0, 0, 1, 1], [], []>} : vector<80x32xbf16>, vector<32x32xbf16>, vector<80x32xf32> -> vector<80x32xf32>
    %145 = arith.addf %139, %144 : vector<80x32xf32>
    %c22_135 = arith.constant 22 : index
    %c0_136 = arith.constant 0 : index
    %146 = vector.load %arg13[%c22_135, %c0_136] : memref<110x32xf32, #tpu.memory_space<vmem>>, vector<80x32xf32>
    %147 = arith.truncf %146 : vector<80x32xf32> to vector<80x32xbf16>
    %c2_137 = arith.constant 2 : index
    %c2_138 = arith.constant 2 : index
    %c0_139 = arith.constant 0 : index
    %c0_140 = arith.constant 0 : index
    %148 = vector.load %arg4[%c2_137, %c2_138, %c0_139, %c0_140] : memref<3x3x32x32xbf16, #tpu.memory_space<vmem>>, vector<1x1x32x32xbf16>
    %149 = vector.shape_cast %148 : vector<1x1x32x32xbf16> to vector<32x32xbf16>
    %cst_141 = arith.constant dense<0.000000e+00> : vector<80x32xf32>
    %150 = tpu.matmul %147, %149, %cst_141 {dimension_numbers = #tpu.dot_dimension_numbers<[1], [0], [0], [1], [0, 0, 1, 1], [], []>} : vector<80x32xbf16>, vector<32x32xbf16>, vector<80x32xf32> -> vector<80x32xf32>
    %151 = arith.addf %145, %150 : vector<80x32xf32>
    %c0_142 = arith.constant 0 : index
    %c0_143 = arith.constant 0 : index
    %152 = vector.load %arg5[%c0_142, %c0_143] : memref<1x32xf32, #tpu.memory_space<vmem>>, vector<1x32xf32>
    %153 = vector.broadcast %152 : vector<1x32xf32> to vector<80x32xf32>
    %154 = arith.addf %151, %153 : vector<80x32xf32>
    %cst_144 = arith.constant 0.000000e+00 : f32
    %155 = vector.broadcast %cst_144 : f32 to vector<80x32xf32>
    %156 = arith.maximumf %154, %155 : vector<80x32xf32>
    %cst_145 = arith.constant 0.000000e+00 : f32
    %157 = vector.shape_cast %22 : vector<80x1xi1> to vector<80x1xi1>
    %158 = vector.broadcast %157 : vector<80x1xi1> to vector<80x32xi1>
    %159 = vector.broadcast %cst_145 : f32 to vector<80x32xf32>
    %160 = arith.select %158, %156, %159 : vector<80x32xi1>, vector<80x32xf32>
    %c11_146 = arith.constant 11 : index
    %c0_147 = arith.constant 0 : index
    %161 = vector.load %arg14[%c11_146, %c0_147] : memref<110x32xf32, #tpu.memory_space<vmem>>, vector<80x32xf32>
    tpu.vector_store %arg14[%c11_146, %c0_147], %160 {strides = array<i32>} : memref<110x32xf32, #tpu.memory_space<vmem>>, vector<80x32xf32>,
    %cst_148 = arith.constant 0.000000e+00 : f32
    %162 = vector.broadcast %cst_148 : f32 to vector<80x32xf32>
    %c0_149 = arith.constant 0 : index
    %c0_150 = arith.constant 0 : index
    %163 = vector.load %arg14[%c0_149, %c0_150] : memref<110x32xf32, #tpu.memory_space<vmem>>, vector<80x32xf32>
    %164 = arith.truncf %163 : vector<80x32xf32> to vector<80x32xbf16>
    %c0_151 = arith.constant 0 : index
    %c0_152 = arith.constant 0 : index
    %c0_153 = arith.constant 0 : index
    %c0_154 = arith.constant 0 : index
    %165 = vector.load %arg6[%c0_151, %c0_152, %c0_153, %c0_154] : memref<3x3x32x32xbf16, #tpu.memory_space<vmem>>, vector<1x1x32x32xbf16>
    %166 = vector.shape_cast %165 : vector<1x1x32x32xbf16> to vector<32x32xbf16>
    %cst_155 = arith.constant dense<0.000000e+00> : vector<80x32xf32>
    %167 = tpu.matmul %164, %166, %cst_155 {dimension_numbers = #tpu.dot_dimension_numbers<[1], [0], [0], [1], [0, 0, 1, 1], [], []>} : vector<80x32xbf16>, vector<32x32xbf16>, vector<80x32xf32> -> vector<80x32xf32>
    %168 = arith.addf %162, %167 : vector<80x32xf32>
    %c1_156 = arith.constant 1 : index
    %c0_157 = arith.constant 0 : index
    %169 = vector.load %arg14[%c1_156, %c0_157] : memref<110x32xf32, #tpu.memory_space<vmem>>, vector<80x32xf32>
    %170 = arith.truncf %169 : vector<80x32xf32> to vector<80x32xbf16>
    %c0_158 = arith.constant 0 : index
    %c1_159 = arith.constant 1 : index
    %c0_160 = arith.constant 0 : index
    %c0_161 = arith.constant 0 : index
    %171 = vector.load %arg6[%c0_158, %c1_159, %c0_160, %c0_161] : memref<3x3x32x32xbf16, #tpu.memory_space<vmem>>, vector<1x1x32x32xbf16>
    %172 = vector.shape_cast %171 : vector<1x1x32x32xbf16> to vector<32x32xbf16>
    %cst_162 = arith.constant dense<0.000000e+00> : vector<80x32xf32>
    %173 = tpu.matmul %170, %172, %cst_162 {dimension_numbers = #tpu.dot_dimension_numbers<[1], [0], [0], [1], [0, 0, 1, 1], [], []>} : vector<80x32xbf16>, vector<32x32xbf16>, vector<80x32xf32> -> vector<80x32xf32>
    %174 = arith.addf %168, %173 : vector<80x32xf32>
    %c2_163 = arith.constant 2 : index
    %c0_164 = arith.constant 0 : index
    %175 = vector.load %arg14[%c2_163, %c0_164] : memref<110x32xf32, #tpu.memory_space<vmem>>, vector<80x32xf32>
    %176 = arith.truncf %175 : vector<80x32xf32> to vector<80x32xbf16>
    %c0_165 = arith.constant 0 : index
    %c2_166 = arith.constant 2 : index
    %c0_167 = arith.constant 0 : index
    %c0_168 = arith.constant 0 : index
    %177 = vector.load %arg6[%c0_165, %c2_166, %c0_167, %c0_168] : memref<3x3x32x32xbf16, #tpu.memory_space<vmem>>, vector<1x1x32x32xbf16>
    %178 = vector.shape_cast %177 : vector<1x1x32x32xbf16> to vector<32x32xbf16>
    %cst_169 = arith.constant dense<0.000000e+00> : vector<80x32xf32>
    %179 = tpu.matmul %176, %178, %cst_169 {dimension_numbers = #tpu.dot_dimension_numbers<[1], [0], [0], [1], [0, 0, 1, 1], [], []>} : vector<80x32xbf16>, vector<32x32xbf16>, vector<80x32xf32> -> vector<80x32xf32>
    %180 = arith.addf %174, %179 : vector<80x32xf32>
    %c10_170 = arith.constant 10 : index
    %c0_171 = arith.constant 0 : index
    %181 = vector.load %arg14[%c10_170, %c0_171] : memref<110x32xf32, #tpu.memory_space<vmem>>, vector<80x32xf32>
    %182 = arith.truncf %181 : vector<80x32xf32> to vector<80x32xbf16>
    %c1_172 = arith.constant 1 : index
    %c0_173 = arith.constant 0 : index
    %c0_174 = arith.constant 0 : index
    %c0_175 = arith.constant 0 : index
    %183 = vector.load %arg6[%c1_172, %c0_173, %c0_174, %c0_175] : memref<3x3x32x32xbf16, #tpu.memory_space<vmem>>, vector<1x1x32x32xbf16>
    %184 = vector.shape_cast %183 : vector<1x1x32x32xbf16> to vector<32x32xbf16>
    %cst_176 = arith.constant dense<0.000000e+00> : vector<80x32xf32>
    %185 = tpu.matmul %182, %184, %cst_176 {dimension_numbers = #tpu.dot_dimension_numbers<[1], [0], [0], [1], [0, 0, 1, 1], [], []>} : vector<80x32xbf16>, vector<32x32xbf16>, vector<80x32xf32> -> vector<80x32xf32>
    %186 = arith.addf %180, %185 : vector<80x32xf32>
    %c11_177 = arith.constant 11 : index
    %c0_178 = arith.constant 0 : index
    %187 = vector.load %arg14[%c11_177, %c0_178] : memref<110x32xf32, #tpu.memory_space<vmem>>, vector<80x32xf32>
    %188 = arith.truncf %187 : vector<80x32xf32> to vector<80x32xbf16>
    %c1_179 = arith.constant 1 : index
    %c1_180 = arith.constant 1 : index
    %c0_181 = arith.constant 0 : index
    %c0_182 = arith.constant 0 : index
    %189 = vector.load %arg6[%c1_179, %c1_180, %c0_181, %c0_182] : memref<3x3x32x32xbf16, #tpu.memory_space<vmem>>, vector<1x1x32x32xbf16>
    %190 = vector.shape_cast %189 : vector<1x1x32x32xbf16> to vector<32x32xbf16>
    %cst_183 = arith.constant dense<0.000000e+00> : vector<80x32xf32>
    %191 = tpu.matmul %188, %190, %cst_183 {dimension_numbers = #tpu.dot_dimension_numbers<[1], [0], [0], [1], [0, 0, 1, 1], [], []>} : vector<80x32xbf16>, vector<32x32xbf16>, vector<80x32xf32> -> vector<80x32xf32>
    %192 = arith.addf %186, %191 : vector<80x32xf32>
    %c12_184 = arith.constant 12 : index
    %c0_185 = arith.constant 0 : index
    %193 = vector.load %arg14[%c12_184, %c0_185] : memref<110x32xf32, #tpu.memory_space<vmem>>, vector<80x32xf32>
    %194 = arith.truncf %193 : vector<80x32xf32> to vector<80x32xbf16>
    %c1_186 = arith.constant 1 : index
    %c2_187 = arith.constant 2 : index
    %c0_188 = arith.constant 0 : index
    %c0_189 = arith.constant 0 : index
    %195 = vector.load %arg6[%c1_186, %c2_187, %c0_188, %c0_189] : memref<3x3x32x32xbf16, #tpu.memory_space<vmem>>, vector<1x1x32x32xbf16>
    %196 = vector.shape_cast %195 : vector<1x1x32x32xbf16> to vector<32x32xbf16>
    %cst_190 = arith.constant dense<0.000000e+00> : vector<80x32xf32>
    %197 = tpu.matmul %194, %196, %cst_190 {dimension_numbers = #tpu.dot_dimension_numbers<[1], [0], [0], [1], [0, 0, 1, 1], [], []>} : vector<80x32xbf16>, vector<32x32xbf16>, vector<80x32xf32> -> vector<80x32xf32>
    %198 = arith.addf %192, %197 : vector<80x32xf32>
    %c20_191 = arith.constant 20 : index
    %c0_192 = arith.constant 0 : index
    %199 = vector.load %arg14[%c20_191, %c0_192] : memref<110x32xf32, #tpu.memory_space<vmem>>, vector<80x32xf32>
    %200 = arith.truncf %199 : vector<80x32xf32> to vector<80x32xbf16>
    %c2_193 = arith.constant 2 : index
    %c0_194 = arith.constant 0 : index
    %c0_195 = arith.constant 0 : index
    %c0_196 = arith.constant 0 : index
    %201 = vector.load %arg6[%c2_193, %c0_194, %c0_195, %c0_196] : memref<3x3x32x32xbf16, #tpu.memory_space<vmem>>, vector<1x1x32x32xbf16>
    %202 = vector.shape_cast %201 : vector<1x1x32x32xbf16> to vector<32x32xbf16>
    %cst_197 = arith.constant dense<0.000000e+00> : vector<80x32xf32>
    %203 = tpu.matmul %200, %202, %cst_197 {dimension_numbers = #tpu.dot_dimension_numbers<[1], [0], [0], [1], [0, 0, 1, 1], [], []>} : vector<80x32xbf16>, vector<32x32xbf16>, vector<80x32xf32> -> vector<80x32xf32>
    %204 = arith.addf %198, %203 : vector<80x32xf32>
    %c21_198 = arith.constant 21 : index
    %c0_199 = arith.constant 0 : index
    %205 = vector.load %arg14[%c21_198, %c0_199] : memref<110x32xf32, #tpu.memory_space<vmem>>, vector<80x32xf32>
    %206 = arith.truncf %205 : vector<80x32xf32> to vector<80x32xbf16>
    %c2_200 = arith.constant 2 : index
    %c1_201 = arith.constant 1 : index
    %c0_202 = arith.constant 0 : index
    %c0_203 = arith.constant 0 : index
    %207 = vector.load %arg6[%c2_200, %c1_201, %c0_202, %c0_203] : memref<3x3x32x32xbf16, #tpu.memory_space<vmem>>, vector<1x1x32x32xbf16>
    %208 = vector.shape_cast %207 : vector<1x1x32x32xbf16> to vector<32x32xbf16>
    %cst_204 = arith.constant dense<0.000000e+00> : vector<80x32xf32>
    %209 = tpu.matmul %206, %208, %cst_204 {dimension_numbers = #tpu.dot_dimension_numbers<[1], [0], [0], [1], [0, 0, 1, 1], [], []>} : vector<80x32xbf16>, vector<32x32xbf16>, vector<80x32xf32> -> vector<80x32xf32>
    %210 = arith.addf %204, %209 : vector<80x32xf32>
    %c22_205 = arith.constant 22 : index
    %c0_206 = arith.constant 0 : index
    %211 = vector.load %arg14[%c22_205, %c0_206] : memref<110x32xf32, #tpu.memory_space<vmem>>, vector<80x32xf32>
    %212 = arith.truncf %211 : vector<80x32xf32> to vector<80x32xbf16>
    %c2_207 = arith.constant 2 : index
    %c2_208 = arith.constant 2 : index
    %c0_209 = arith.constant 0 : index
    %c0_210 = arith.constant 0 : index
    %213 = vector.load %arg6[%c2_207, %c2_208, %c0_209, %c0_210] : memref<3x3x32x32xbf16, #tpu.memory_space<vmem>>, vector<1x1x32x32xbf16>
    %214 = vector.shape_cast %213 : vector<1x1x32x32xbf16> to vector<32x32xbf16>
    %cst_211 = arith.constant dense<0.000000e+00> : vector<80x32xf32>
    %215 = tpu.matmul %212, %214, %cst_211 {dimension_numbers = #tpu.dot_dimension_numbers<[1], [0], [0], [1], [0, 0, 1, 1], [], []>} : vector<80x32xbf16>, vector<32x32xbf16>, vector<80x32xf32> -> vector<80x32xf32>
    %216 = arith.addf %210, %215 : vector<80x32xf32>
    %c0_212 = arith.constant 0 : index
    %c0_213 = arith.constant 0 : index
    %217 = vector.load %arg7[%c0_212, %c0_213] : memref<1x32xf32, #tpu.memory_space<vmem>>, vector<1x32xf32>
    %218 = vector.broadcast %217 : vector<1x32xf32> to vector<80x32xf32>
    %219 = arith.addf %216, %218 : vector<80x32xf32>
    %cst_214 = arith.constant 0.000000e+00 : f32
    %220 = vector.broadcast %cst_214 : f32 to vector<80x32xf32>
    %221 = arith.maximumf %219, %220 : vector<80x32xf32>
    %cst_215 = arith.constant 0.000000e+00 : f32
    %222 = vector.shape_cast %22 : vector<80x1xi1> to vector<80x1xi1>
    %223 = vector.broadcast %222 : vector<80x1xi1> to vector<80x32xi1>
    %224 = vector.broadcast %cst_215 : f32 to vector<80x32xf32>
    %225 = arith.select %223, %221, %224 : vector<80x32xi1>, vector<80x32xf32>
    %c11_216 = arith.constant 11 : index
    %c0_217 = arith.constant 0 : index
    %226 = vector.load %arg13[%c11_216, %c0_217] : memref<110x32xf32, #tpu.memory_space<vmem>>, vector<80x32xf32>
    tpu.vector_store %arg13[%c11_216, %c0_217], %225 {strides = array<i32>} : memref<110x32xf32, #tpu.memory_space<vmem>>, vector<80x32xf32>,
    %cst_218 = arith.constant 0.000000e+00 : f32
    %227 = vector.broadcast %cst_218 : f32 to vector<80x32xf32>
    %c0_219 = arith.constant 0 : index
    %c0_220 = arith.constant 0 : index
    %228 = vector.load %arg13[%c0_219, %c0_220] : memref<110x32xf32, #tpu.memory_space<vmem>>, vector<80x32xf32>
    %229 = arith.truncf %228 : vector<80x32xf32> to vector<80x32xbf16>
    %c0_221 = arith.constant 0 : index
    %c0_222 = arith.constant 0 : index
    %c0_223 = arith.constant 0 : index
    %c0_224 = arith.constant 0 : index
    %230 = vector.load %arg8[%c0_221, %c0_222, %c0_223, %c0_224] : memref<3x3x32x32xbf16, #tpu.memory_space<vmem>>, vector<1x1x32x32xbf16>
    %231 = vector.shape_cast %230 : vector<1x1x32x32xbf16> to vector<32x32xbf16>
    %cst_225 = arith.constant dense<0.000000e+00> : vector<80x32xf32>
    %232 = tpu.matmul %229, %231, %cst_225 {dimension_numbers = #tpu.dot_dimension_numbers<[1], [0], [0], [1], [0, 0, 1, 1], [], []>} : vector<80x32xbf16>, vector<32x32xbf16>, vector<80x32xf32> -> vector<80x32xf32>
    %233 = arith.addf %227, %232 : vector<80x32xf32>
    %c1_226 = arith.constant 1 : index
    %c0_227 = arith.constant 0 : index
    %234 = vector.load %arg13[%c1_226, %c0_227] : memref<110x32xf32, #tpu.memory_space<vmem>>, vector<80x32xf32>
    %235 = arith.truncf %234 : vector<80x32xf32> to vector<80x32xbf16>
    %c0_228 = arith.constant 0 : index
    %c1_229 = arith.constant 1 : index
    %c0_230 = arith.constant 0 : index
    %c0_231 = arith.constant 0 : index
    %236 = vector.load %arg8[%c0_228, %c1_229, %c0_230, %c0_231] : memref<3x3x32x32xbf16, #tpu.memory_space<vmem>>, vector<1x1x32x32xbf16>
    %237 = vector.shape_cast %236 : vector<1x1x32x32xbf16> to vector<32x32xbf16>
    %cst_232 = arith.constant dense<0.000000e+00> : vector<80x32xf32>
    %238 = tpu.matmul %235, %237, %cst_232 {dimension_numbers = #tpu.dot_dimension_numbers<[1], [0], [0], [1], [0, 0, 1, 1], [], []>} : vector<80x32xbf16>, vector<32x32xbf16>, vector<80x32xf32> -> vector<80x32xf32>
    %239 = arith.addf %233, %238 : vector<80x32xf32>
    %c2_233 = arith.constant 2 : index
    %c0_234 = arith.constant 0 : index
    %240 = vector.load %arg13[%c2_233, %c0_234] : memref<110x32xf32, #tpu.memory_space<vmem>>, vector<80x32xf32>
    %241 = arith.truncf %240 : vector<80x32xf32> to vector<80x32xbf16>
    %c0_235 = arith.constant 0 : index
    %c2_236 = arith.constant 2 : index
    %c0_237 = arith.constant 0 : index
    %c0_238 = arith.constant 0 : index
    %242 = vector.load %arg8[%c0_235, %c2_236, %c0_237, %c0_238] : memref<3x3x32x32xbf16, #tpu.memory_space<vmem>>, vector<1x1x32x32xbf16>
    %243 = vector.shape_cast %242 : vector<1x1x32x32xbf16> to vector<32x32xbf16>
    %cst_239 = arith.constant dense<0.000000e+00> : vector<80x32xf32>
    %244 = tpu.matmul %241, %243, %cst_239 {dimension_numbers = #tpu.dot_dimension_numbers<[1], [0], [0], [1], [0, 0, 1, 1], [], []>} : vector<80x32xbf16>, vector<32x32xbf16>, vector<80x32xf32> -> vector<80x32xf32>
    %245 = arith.addf %239, %244 : vector<80x32xf32>
    %c10_240 = arith.constant 10 : index
    %c0_241 = arith.constant 0 : index
    %246 = vector.load %arg13[%c10_240, %c0_241] : memref<110x32xf32, #tpu.memory_space<vmem>>, vector<80x32xf32>
    %247 = arith.truncf %246 : vector<80x32xf32> to vector<80x32xbf16>
    %c1_242 = arith.constant 1 : index
    %c0_243 = arith.constant 0 : index
    %c0_244 = arith.constant 0 : index
    %c0_245 = arith.constant 0 : index
    %248 = vector.load %arg8[%c1_242, %c0_243, %c0_244, %c0_245] : memref<3x3x32x32xbf16, #tpu.memory_space<vmem>>, vector<1x1x32x32xbf16>
    %249 = vector.shape_cast %248 : vector<1x1x32x32xbf16> to vector<32x32xbf16>
    %cst_246 = arith.constant dense<0.000000e+00> : vector<80x32xf32>
    %250 = tpu.matmul %247, %249, %cst_246 {dimension_numbers = #tpu.dot_dimension_numbers<[1], [0], [0], [1], [0, 0, 1, 1], [], []>} : vector<80x32xbf16>, vector<32x32xbf16>, vector<80x32xf32> -> vector<80x32xf32>
    %251 = arith.addf %245, %250 : vector<80x32xf32>
    %c11_247 = arith.constant 11 : index
    %c0_248 = arith.constant 0 : index
    %252 = vector.load %arg13[%c11_247, %c0_248] : memref<110x32xf32, #tpu.memory_space<vmem>>, vector<80x32xf32>
    %253 = arith.truncf %252 : vector<80x32xf32> to vector<80x32xbf16>
    %c1_249 = arith.constant 1 : index
    %c1_250 = arith.constant 1 : index
    %c0_251 = arith.constant 0 : index
    %c0_252 = arith.constant 0 : index
    %254 = vector.load %arg8[%c1_249, %c1_250, %c0_251, %c0_252] : memref<3x3x32x32xbf16, #tpu.memory_space<vmem>>, vector<1x1x32x32xbf16>
    %255 = vector.shape_cast %254 : vector<1x1x32x32xbf16> to vector<32x32xbf16>
    %cst_253 = arith.constant dense<0.000000e+00> : vector<80x32xf32>
    %256 = tpu.matmul %253, %255, %cst_253 {dimension_numbers = #tpu.dot_dimension_numbers<[1], [0], [0], [1], [0, 0, 1, 1], [], []>} : vector<80x32xbf16>, vector<32x32xbf16>, vector<80x32xf32> -> vector<80x32xf32>
    %257 = arith.addf %251, %256 : vector<80x32xf32>
    %c12_254 = arith.constant 12 : index
    %c0_255 = arith.constant 0 : index
    %258 = vector.load %arg13[%c12_254, %c0_255] : memref<110x32xf32, #tpu.memory_space<vmem>>, vector<80x32xf32>
    %259 = arith.truncf %258 : vector<80x32xf32> to vector<80x32xbf16>
    %c1_256 = arith.constant 1 : index
    %c2_257 = arith.constant 2 : index
    %c0_258 = arith.constant 0 : index
    %c0_259 = arith.constant 0 : index
    %260 = vector.load %arg8[%c1_256, %c2_257, %c0_258, %c0_259] : memref<3x3x32x32xbf16, #tpu.memory_space<vmem>>, vector<1x1x32x32xbf16>
    %261 = vector.shape_cast %260 : vector<1x1x32x32xbf16> to vector<32x32xbf16>
    %cst_260 = arith.constant dense<0.000000e+00> : vector<80x32xf32>
    %262 = tpu.matmul %259, %261, %cst_260 {dimension_numbers = #tpu.dot_dimension_numbers<[1], [0], [0], [1], [0, 0, 1, 1], [], []>} : vector<80x32xbf16>, vector<32x32xbf16>, vector<80x32xf32> -> vector<80x32xf32>
    %263 = arith.addf %257, %262 : vector<80x32xf32>
    %c20_261 = arith.constant 20 : index
    %c0_262 = arith.constant 0 : index
    %264 = vector.load %arg13[%c20_261, %c0_262] : memref<110x32xf32, #tpu.memory_space<vmem>>, vector<80x32xf32>
    %265 = arith.truncf %264 : vector<80x32xf32> to vector<80x32xbf16>
    %c2_263 = arith.constant 2 : index
    %c0_264 = arith.constant 0 : index
    %c0_265 = arith.constant 0 : index
    %c0_266 = arith.constant 0 : index
    %266 = vector.load %arg8[%c2_263, %c0_264, %c0_265, %c0_266] : memref<3x3x32x32xbf16, #tpu.memory_space<vmem>>, vector<1x1x32x32xbf16>
    %267 = vector.shape_cast %266 : vector<1x1x32x32xbf16> to vector<32x32xbf16>
    %cst_267 = arith.constant dense<0.000000e+00> : vector<80x32xf32>
    %268 = tpu.matmul %265, %267, %cst_267 {dimension_numbers = #tpu.dot_dimension_numbers<[1], [0], [0], [1], [0, 0, 1, 1], [], []>} : vector<80x32xbf16>, vector<32x32xbf16>, vector<80x32xf32> -> vector<80x32xf32>
    %269 = arith.addf %263, %268 : vector<80x32xf32>
    %c21_268 = arith.constant 21 : index
    %c0_269 = arith.constant 0 : index
    %270 = vector.load %arg13[%c21_268, %c0_269] : memref<110x32xf32, #tpu.memory_space<vmem>>, vector<80x32xf32>
    %271 = arith.truncf %270 : vector<80x32xf32> to vector<80x32xbf16>
    %c2_270 = arith.constant 2 : index
    %c1_271 = arith.constant 1 : index
    %c0_272 = arith.constant 0 : index
    %c0_273 = arith.constant 0 : index
    %272 = vector.load %arg8[%c2_270, %c1_271, %c0_272, %c0_273] : memref<3x3x32x32xbf16, #tpu.memory_space<vmem>>, vector<1x1x32x32xbf16>
    %273 = vector.shape_cast %272 : vector<1x1x32x32xbf16> to vector<32x32xbf16>
    %cst_274 = arith.constant dense<0.000000e+00> : vector<80x32xf32>
    %274 = tpu.matmul %271, %273, %cst_274 {dimension_numbers = #tpu.dot_dimension_numbers<[1], [0], [0], [1], [0, 0, 1, 1], [], []>} : vector<80x32xbf16>, vector<32x32xbf16>, vector<80x32xf32> -> vector<80x32xf32>
    %275 = arith.addf %269, %274 : vector<80x32xf32>
    %c22_275 = arith.constant 22 : index
    %c0_276 = arith.constant 0 : index
    %276 = vector.load %arg13[%c22_275, %c0_276] : memref<110x32xf32, #tpu.memory_space<vmem>>, vector<80x32xf32>
    %277 = arith.truncf %276 : vector<80x32xf32> to vector<80x32xbf16>
    %c2_277 = arith.constant 2 : index
    %c2_278 = arith.constant 2 : index
    %c0_279 = arith.constant 0 : index
    %c0_280 = arith.constant 0 : index
    %278 = vector.load %arg8[%c2_277, %c2_278, %c0_279, %c0_280] : memref<3x3x32x32xbf16, #tpu.memory_space<vmem>>, vector<1x1x32x32xbf16>
    %279 = vector.shape_cast %278 : vector<1x1x32x32xbf16> to vector<32x32xbf16>
    %cst_281 = arith.constant dense<0.000000e+00> : vector<80x32xf32>
    %280 = tpu.matmul %277, %279, %cst_281 {dimension_numbers = #tpu.dot_dimension_numbers<[1], [0], [0], [1], [0, 0, 1, 1], [], []>} : vector<80x32xbf16>, vector<32x32xbf16>, vector<80x32xf32> -> vector<80x32xf32>
    %281 = arith.addf %275, %280 : vector<80x32xf32>
    %c0_282 = arith.constant 0 : index
    %c0_283 = arith.constant 0 : index
    %282 = vector.load %arg9[%c0_282, %c0_283] : memref<1x32xf32, #tpu.memory_space<vmem>>, vector<1x32xf32>
    %283 = vector.broadcast %282 : vector<1x32xf32> to vector<80x32xf32>
    %284 = arith.addf %281, %283 : vector<80x32xf32>
    %cst_284 = arith.constant 0.000000e+00 : f32
    %285 = vector.broadcast %cst_284 : f32 to vector<80x32xf32>
    %286 = arith.maximumf %284, %285 : vector<80x32xf32>
    %cst_285 = arith.constant 0.000000e+00 : f32
    %287 = vector.shape_cast %22 : vector<80x1xi1> to vector<80x1xi1>
    %288 = vector.broadcast %287 : vector<80x1xi1> to vector<80x32xi1>
    %289 = vector.broadcast %cst_285 : f32 to vector<80x32xf32>
    %290 = arith.select %288, %286, %289 : vector<80x32xi1>, vector<80x32xf32>
    %c11_286 = arith.constant 11 : index
    %c0_287 = arith.constant 0 : index
    %291 = vector.load %arg14[%c11_286, %c0_287] : memref<110x32xf32, #tpu.memory_space<vmem>>, vector<80x32xf32>
    tpu.vector_store %arg14[%c11_286, %c0_287], %290 {strides = array<i32>} : memref<110x32xf32, #tpu.memory_space<vmem>>, vector<80x32xf32>,
    %cst_288 = arith.constant 0.000000e+00 : f32
    %292 = vector.broadcast %cst_288 : f32 to vector<80x48xf32>
    %c0_289 = arith.constant 0 : index
    %c0_290 = arith.constant 0 : index
    %293 = vector.load %arg14[%c0_289, %c0_290] : memref<110x32xf32, #tpu.memory_space<vmem>>, vector<80x32xf32>
    %294 = arith.truncf %293 : vector<80x32xf32> to vector<80x32xbf16>
    %c0_291 = arith.constant 0 : index
    %c0_292 = arith.constant 0 : index
    %c0_293 = arith.constant 0 : index
    %c0_294 = arith.constant 0 : index
    %295 = vector.load %arg10[%c0_291, %c0_292, %c0_293, %c0_294] : memref<3x3x32x48xbf16, #tpu.memory_space<vmem>>, vector<1x1x32x48xbf16>
    %296 = vector.shape_cast %295 : vector<1x1x32x48xbf16> to vector<32x48xbf16>
    %cst_295 = arith.constant dense<0.000000e+00> : vector<80x48xf32>
    %297 = tpu.matmul %294, %296, %cst_295 {dimension_numbers = #tpu.dot_dimension_numbers<[1], [0], [0], [1], [0, 0, 1, 1], [], []>} : vector<80x32xbf16>, vector<32x48xbf16>, vector<80x48xf32> -> vector<80x48xf32>
    %298 = arith.addf %292, %297 : vector<80x48xf32>
    %c1_296 = arith.constant 1 : index
    %c0_297 = arith.constant 0 : index
    %299 = vector.load %arg14[%c1_296, %c0_297] : memref<110x32xf32, #tpu.memory_space<vmem>>, vector<80x32xf32>
    %300 = arith.truncf %299 : vector<80x32xf32> to vector<80x32xbf16>
    %c0_298 = arith.constant 0 : index
    %c1_299 = arith.constant 1 : index
    %c0_300 = arith.constant 0 : index
    %c0_301 = arith.constant 0 : index
    %301 = vector.load %arg10[%c0_298, %c1_299, %c0_300, %c0_301] : memref<3x3x32x48xbf16, #tpu.memory_space<vmem>>, vector<1x1x32x48xbf16>
    %302 = vector.shape_cast %301 : vector<1x1x32x48xbf16> to vector<32x48xbf16>
    %cst_302 = arith.constant dense<0.000000e+00> : vector<80x48xf32>
    %303 = tpu.matmul %300, %302, %cst_302 {dimension_numbers = #tpu.dot_dimension_numbers<[1], [0], [0], [1], [0, 0, 1, 1], [], []>} : vector<80x32xbf16>, vector<32x48xbf16>, vector<80x48xf32> -> vector<80x48xf32>
    %304 = arith.addf %298, %303 : vector<80x48xf32>
    %c2_303 = arith.constant 2 : index
    %c0_304 = arith.constant 0 : index
    %305 = vector.load %arg14[%c2_303, %c0_304] : memref<110x32xf32, #tpu.memory_space<vmem>>, vector<80x32xf32>
    %306 = arith.truncf %305 : vector<80x32xf32> to vector<80x32xbf16>
    %c0_305 = arith.constant 0 : index
    %c2_306 = arith.constant 2 : index
    %c0_307 = arith.constant 0 : index
    %c0_308 = arith.constant 0 : index
    %307 = vector.load %arg10[%c0_305, %c2_306, %c0_307, %c0_308] : memref<3x3x32x48xbf16, #tpu.memory_space<vmem>>, vector<1x1x32x48xbf16>
    %308 = vector.shape_cast %307 : vector<1x1x32x48xbf16> to vector<32x48xbf16>
    %cst_309 = arith.constant dense<0.000000e+00> : vector<80x48xf32>
    %309 = tpu.matmul %306, %308, %cst_309 {dimension_numbers = #tpu.dot_dimension_numbers<[1], [0], [0], [1], [0, 0, 1, 1], [], []>} : vector<80x32xbf16>, vector<32x48xbf16>, vector<80x48xf32> -> vector<80x48xf32>
    %310 = arith.addf %304, %309 : vector<80x48xf32>
    %c10_310 = arith.constant 10 : index
    %c0_311 = arith.constant 0 : index
    %311 = vector.load %arg14[%c10_310, %c0_311] : memref<110x32xf32, #tpu.memory_space<vmem>>, vector<80x32xf32>
    %312 = arith.truncf %311 : vector<80x32xf32> to vector<80x32xbf16>
    %c1_312 = arith.constant 1 : index
    %c0_313 = arith.constant 0 : index
    %c0_314 = arith.constant 0 : index
    %c0_315 = arith.constant 0 : index
    %313 = vector.load %arg10[%c1_312, %c0_313, %c0_314, %c0_315] : memref<3x3x32x48xbf16, #tpu.memory_space<vmem>>, vector<1x1x32x48xbf16>
    %314 = vector.shape_cast %313 : vector<1x1x32x48xbf16> to vector<32x48xbf16>
    %cst_316 = arith.constant dense<0.000000e+00> : vector<80x48xf32>
    %315 = tpu.matmul %312, %314, %cst_316 {dimension_numbers = #tpu.dot_dimension_numbers<[1], [0], [0], [1], [0, 0, 1, 1], [], []>} : vector<80x32xbf16>, vector<32x48xbf16>, vector<80x48xf32> -> vector<80x48xf32>
    %316 = arith.addf %310, %315 : vector<80x48xf32>
    %c11_317 = arith.constant 11 : index
    %c0_318 = arith.constant 0 : index
    %317 = vector.load %arg14[%c11_317, %c0_318] : memref<110x32xf32, #tpu.memory_space<vmem>>, vector<80x32xf32>
    %318 = arith.truncf %317 : vector<80x32xf32> to vector<80x32xbf16>
    %c1_319 = arith.constant 1 : index
    %c1_320 = arith.constant 1 : index
    %c0_321 = arith.constant 0 : index
    %c0_322 = arith.constant 0 : index
    %319 = vector.load %arg10[%c1_319, %c1_320, %c0_321, %c0_322] : memref<3x3x32x48xbf16, #tpu.memory_space<vmem>>, vector<1x1x32x48xbf16>
    %320 = vector.shape_cast %319 : vector<1x1x32x48xbf16> to vector<32x48xbf16>
    %cst_323 = arith.constant dense<0.000000e+00> : vector<80x48xf32>
    %321 = tpu.matmul %318, %320, %cst_323 {dimension_numbers = #tpu.dot_dimension_numbers<[1], [0], [0], [1], [0, 0, 1, 1], [], []>} : vector<80x32xbf16>, vector<32x48xbf16>, vector<80x48xf32> -> vector<80x48xf32>
    %322 = arith.addf %316, %321 : vector<80x48xf32>
    %c12_324 = arith.constant 12 : index
    %c0_325 = arith.constant 0 : index
    %323 = vector.load %arg14[%c12_324, %c0_325] : memref<110x32xf32, #tpu.memory_space<vmem>>, vector<80x32xf32>
    %324 = arith.truncf %323 : vector<80x32xf32> to vector<80x32xbf16>
    %c1_326 = arith.constant 1 : index
    %c2_327 = arith.constant 2 : index
    %c0_328 = arith.constant 0 : index
    %c0_329 = arith.constant 0 : index
    %325 = vector.load %arg10[%c1_326, %c2_327, %c0_328, %c0_329] : memref<3x3x32x48xbf16, #tpu.memory_space<vmem>>, vector<1x1x32x48xbf16>
    %326 = vector.shape_cast %325 : vector<1x1x32x48xbf16> to vector<32x48xbf16>
    %cst_330 = arith.constant dense<0.000000e+00> : vector<80x48xf32>
    %327 = tpu.matmul %324, %326, %cst_330 {dimension_numbers = #tpu.dot_dimension_numbers<[1], [0], [0], [1], [0, 0, 1, 1], [], []>} : vector<80x32xbf16>, vector<32x48xbf16>, vector<80x48xf32> -> vector<80x48xf32>
    %328 = arith.addf %322, %327 : vector<80x48xf32>
    %c20_331 = arith.constant 20 : index
    %c0_332 = arith.constant 0 : index
    %329 = vector.load %arg14[%c20_331, %c0_332] : memref<110x32xf32, #tpu.memory_space<vmem>>, vector<80x32xf32>
    %330 = arith.truncf %329 : vector<80x32xf32> to vector<80x32xbf16>
    %c2_333 = arith.constant 2 : index
    %c0_334 = arith.constant 0 : index
    %c0_335 = arith.constant 0 : index
    %c0_336 = arith.constant 0 : index
    %331 = vector.load %arg10[%c2_333, %c0_334, %c0_335, %c0_336] : memref<3x3x32x48xbf16, #tpu.memory_space<vmem>>, vector<1x1x32x48xbf16>
    %332 = vector.shape_cast %331 : vector<1x1x32x48xbf16> to vector<32x48xbf16>
    %cst_337 = arith.constant dense<0.000000e+00> : vector<80x48xf32>
    %333 = tpu.matmul %330, %332, %cst_337 {dimension_numbers = #tpu.dot_dimension_numbers<[1], [0], [0], [1], [0, 0, 1, 1], [], []>} : vector<80x32xbf16>, vector<32x48xbf16>, vector<80x48xf32> -> vector<80x48xf32>
    %334 = arith.addf %328, %333 : vector<80x48xf32>
    %c21_338 = arith.constant 21 : index
    %c0_339 = arith.constant 0 : index
    %335 = vector.load %arg14[%c21_338, %c0_339] : memref<110x32xf32, #tpu.memory_space<vmem>>, vector<80x32xf32>
    %336 = arith.truncf %335 : vector<80x32xf32> to vector<80x32xbf16>
    %c2_340 = arith.constant 2 : index
    %c1_341 = arith.constant 1 : index
    %c0_342 = arith.constant 0 : index
    %c0_343 = arith.constant 0 : index
    %337 = vector.load %arg10[%c2_340, %c1_341, %c0_342, %c0_343] : memref<3x3x32x48xbf16, #tpu.memory_space<vmem>>, vector<1x1x32x48xbf16>
    %338 = vector.shape_cast %337 : vector<1x1x32x48xbf16> to vector<32x48xbf16>
    %cst_344 = arith.constant dense<0.000000e+00> : vector<80x48xf32>
    %339 = tpu.matmul %336, %338, %cst_344 {dimension_numbers = #tpu.dot_dimension_numbers<[1], [0], [0], [1], [0, 0, 1, 1], [], []>} : vector<80x32xbf16>, vector<32x48xbf16>, vector<80x48xf32> -> vector<80x48xf32>
    %340 = arith.addf %334, %339 : vector<80x48xf32>
    %c22_345 = arith.constant 22 : index
    %c0_346 = arith.constant 0 : index
    %341 = vector.load %arg14[%c22_345, %c0_346] : memref<110x32xf32, #tpu.memory_space<vmem>>, vector<80x32xf32>
    %342 = arith.truncf %341 : vector<80x32xf32> to vector<80x32xbf16>
    %c2_347 = arith.constant 2 : index
    %c2_348 = arith.constant 2 : index
    %c0_349 = arith.constant 0 : index
    %c0_350 = arith.constant 0 : index
    %343 = vector.load %arg10[%c2_347, %c2_348, %c0_349, %c0_350] : memref<3x3x32x48xbf16, #tpu.memory_space<vmem>>, vector<1x1x32x48xbf16>
    %344 = vector.shape_cast %343 : vector<1x1x32x48xbf16> to vector<32x48xbf16>
    %cst_351 = arith.constant dense<0.000000e+00> : vector<80x48xf32>
    %345 = tpu.matmul %342, %344, %cst_351 {dimension_numbers = #tpu.dot_dimension_numbers<[1], [0], [0], [1], [0, 0, 1, 1], [], []>} : vector<80x32xbf16>, vector<32x48xbf16>, vector<80x48xf32> -> vector<80x48xf32>
    %346 = arith.addf %340, %345 : vector<80x48xf32>
    %c0_352 = arith.constant 0 : index
    %c0_353 = arith.constant 0 : index
    %347 = vector.load %arg11[%c0_352, %c0_353] : memref<1x48xf32, #tpu.memory_space<vmem>>, vector<1x48xf32>
    %348 = vector.broadcast %347 : vector<1x48xf32> to vector<80x48xf32>
    %349 = arith.addf %346, %348 : vector<80x48xf32>
    %350 = arith.negf %349 : vector<80x48xf32>
    %351 = math.exp %350 : vector<80x48xf32>
    %cst_354 = arith.constant 1.000000e+00 : f32
    %352 = vector.broadcast %cst_354 : f32 to vector<80x48xf32>
    %353 = arith.addf %352, %351 : vector<80x48xf32>
    %354 = arith.divf %352, %353 : vector<80x48xf32>
    %c0_355 = arith.constant 0 : index
    %c0_356 = arith.constant 0 : index
    %c0_357 = arith.constant 0 : index
    %355 = vector.load %arg12[%c0_355, %c0_356, %c0_357] : memref<1x80x48xf32, #tpu.memory_space<vmem>>, vector<1x80x48xf32>
    %356 = vector.shape_cast %355 : vector<1x80x48xf32> to vector<80x48xf32>
    %357 = vector.shape_cast %354 : vector<80x48xf32> to vector<1x80x48xf32>
    tpu.vector_store %arg12[%c0_355, %c0_356, %c0_357], %357 {strides = array<i32>} : memref<1x80x48xf32, #tpu.memory_space<vmem>>, vector<1x80x48xf32>,
    return
  }
  func.func @transform_0(%arg0: i32) -> (i32, i32, i32) {
    %c0_i32 = arith.constant 0 : i32
    %c0_i32_0 = arith.constant 0 : i32
    %c0_i32_1 = arith.constant 0 : i32
    return %arg0, %c0_i32, %c0_i32_0 : i32, i32, i32
  }
  func.func @transform_1(%arg0: i32) -> (i32, i32, i32, i32) {
    %c0_i32 = arith.constant 0 : i32
    %c0_i32_0 = arith.constant 0 : i32
    %c0_i32_1 = arith.constant 0 : i32
    %c0_i32_2 = arith.constant 0 : i32
    %c0_i32_3 = arith.constant 0 : i32
    return %c0_i32, %c0_i32_0, %c0_i32_1, %c0_i32_2 : i32, i32, i32, i32
  }
  func.func @transform_2(%arg0: i32) -> (i32, i32) {
    %c0_i32 = arith.constant 0 : i32
    %c0_i32_0 = arith.constant 0 : i32
    %c0_i32_1 = arith.constant 0 : i32
    return %c0_i32, %c0_i32_0 : i32, i32
  }
  func.func @transform_3(%arg0: i32) -> (i32, i32, i32, i32) {
    %c0_i32 = arith.constant 0 : i32
    %c0_i32_0 = arith.constant 0 : i32
    %c0_i32_1 = arith.constant 0 : i32
    %c0_i32_2 = arith.constant 0 : i32
    %c0_i32_3 = arith.constant 0 : i32
    return %c0_i32, %c0_i32_0, %c0_i32_1, %c0_i32_2 : i32, i32, i32, i32
  }
  func.func @transform_4(%arg0: i32) -> (i32, i32) {
    %c0_i32 = arith.constant 0 : i32
    %c0_i32_0 = arith.constant 0 : i32
    %c0_i32_1 = arith.constant 0 : i32
    return %c0_i32, %c0_i32_0 : i32, i32
  }
  func.func @transform_5(%arg0: i32) -> (i32, i32, i32, i32) {
    %c0_i32 = arith.constant 0 : i32
    %c0_i32_0 = arith.constant 0 : i32
    %c0_i32_1 = arith.constant 0 : i32
    %c0_i32_2 = arith.constant 0 : i32
    %c0_i32_3 = arith.constant 0 : i32
    return %c0_i32, %c0_i32_0, %c0_i32_1, %c0_i32_2 : i32, i32, i32, i32
  }
  func.func @transform_6(%arg0: i32) -> (i32, i32) {
    %c0_i32 = arith.constant 0 : i32
    %c0_i32_0 = arith.constant 0 : i32
    %c0_i32_1 = arith.constant 0 : i32
    return %c0_i32, %c0_i32_0 : i32, i32
  }
  func.func @transform_7(%arg0: i32) -> (i32, i32, i32, i32) {
    %c0_i32 = arith.constant 0 : i32
    %c0_i32_0 = arith.constant 0 : i32
    %c0_i32_1 = arith.constant 0 : i32
    %c0_i32_2 = arith.constant 0 : i32
    %c0_i32_3 = arith.constant 0 : i32
    return %c0_i32, %c0_i32_0, %c0_i32_1, %c0_i32_2 : i32, i32, i32, i32
  }
  func.func @transform_8(%arg0: i32) -> (i32, i32) {
    %c0_i32 = arith.constant 0 : i32
    %c0_i32_0 = arith.constant 0 : i32
    %c0_i32_1 = arith.constant 0 : i32
    return %c0_i32, %c0_i32_0 : i32, i32
  }
  func.func @transform_9(%arg0: i32) -> (i32, i32, i32, i32) {
    %c0_i32 = arith.constant 0 : i32
    %c0_i32_0 = arith.constant 0 : i32
    %c0_i32_1 = arith.constant 0 : i32
    %c0_i32_2 = arith.constant 0 : i32
    %c0_i32_3 = arith.constant 0 : i32
    return %c0_i32, %c0_i32_0, %c0_i32_1, %c0_i32_2 : i32, i32, i32, i32
  }
  func.func @transform_10(%arg0: i32) -> (i32, i32) {
    %c0_i32 = arith.constant 0 : i32
    %c0_i32_0 = arith.constant 0 : i32
    %c0_i32_1 = arith.constant 0 : i32
    return %c0_i32, %c0_i32_0 : i32, i32
  }
  func.func @transform_11(%arg0: i32) -> (i32, i32, i32) {
    %c0_i32 = arith.constant 0 : i32
    %c0_i32_0 = arith.constant 0 : i32
    %c0_i32_1 = arith.constant 0 : i32
    return %arg0, %c0_i32, %c0_i32_0 : i32, i32, i32
  }
}

</mosaic_0001>

<llo_original>
// kernel: classification_forward.1
$region0: #{classification_forward.1}
  #allocation0 [shape = 'u32[]', space=smem, size = 0x4, offset = 0x4, fixed_abs, tag = 'smem constant byte address 0x4 - core index']
  #allocation1 [shape = 'u32[144,128]{1,0:T(1,128)}', space=vmem, size = 0x12000, scoped, tag = 'internal scratch']
  #allocation2 [shape = 'f32[110,32]{1,0:T(8,128)}', space=vmem, size = 0xe000, scoped, tag = 'scratch operand']
  #allocation3 [shape = 'f32[110,32]{1,0:T(8,128)}', space=vmem, size = 0xe000, scoped, tag = 'scratch operand']
  %s0 = inlined_call_operand.vmem [shape: f32[2,110,32], index: 0, kind: input, shape index: {}]
  %s1 = inlined_call_operand.vmem [shape: bf16[3,3,32,32], index: 1, kind: input, shape index: {}]
  %s2 = inlined_call_operand.vmem [shape: f32[1,32], index: 2, kind: input, shape index: {}]
  %s3 = inlined_call_operand.vmem [shape: bf16[3,3,32,32], index: 3, kind: input, shape index: {}]
  %s4 = inlined_call_operand.vmem [shape: f32[1,32], index: 4, kind: input, shape index: {}]
  %s5 = inlined_call_operand.vmem [shape: bf16[3,3,32,32], index: 5, kind: input, shape index: {}]
  %s6 = inlined_call_operand.vmem [shape: f32[1,32], index: 6, kind: input, shape index: {}]
  %s7 = inlined_call_operand.vmem [shape: bf16[3,3,32,32], index: 7, kind: input, shape index: {}]
  %s8 = inlined_call_operand.vmem [shape: f32[1,32], index: 8, kind: input, shape index: {}]
  %s9 = inlined_call_operand.vmem [shape: bf16[3,3,32,48], index: 9, kind: input, shape index: {}]
  %s10 = inlined_call_operand.vmem [shape: f32[1,48], index: 10, kind: input, shape index: {}]
  %s11 = inlined_call_operand.vmem [shape: f32[2,80,48], index: 11, kind: output, shape index: {}]
  %s12 = sld [smem:[#allocation0]]
  $region77: #{classification_forward.1} parent=0
    _
  %s14 = ssub.s32 1, %s12
  %s15 = scalar_select 0, %s14, %s12
  loop: start=0, step=1, limit=4
  $region2: #{classification_forward.1} parent=0 // loop_pre_header
    _
  $region3: #{classification_forward.1} parent=0 // loop_header
    %s17 = sphi 0, %s21
    %p18 = scmp.ge.s32.totalorder %s17, 4
    %s27 = sphi 0, %s29
    %s30 = sphi 0, %s27
    %s31 = sphi 0, %s30
    %s47 = sphi 0, %s31
    %s51 = sphi 0, %s51
    %s53 = sphi 0, %s51
    %s54 = sphi 0, %s53
    %s68 = sphi 0, %s54
    %s72 = sphi 0, %s72
    %s74 = sphi 0, %s72
    %s75 = sphi 0, %s74
    %s89 = sphi 0, %s75
    %s93 = sphi 0, %s93
    %s95 = sphi 0, %s93
    %s96 = sphi 0, %s95
    %s110 = sphi 0, %s96
    %s114 = sphi 0, %s114
    %s116 = sphi 0, %s114
    %s117 = sphi 0, %s116
    %s131 = sphi 0, %s117
    %s135 = sphi 0, %s135
    %s137 = sphi 0, %s135
    %s138 = sphi 0, %s137
    %s152 = sphi 0, %s138
    %s156 = sphi 0, %s156
    %s158 = sphi 0, %s156
    %s159 = sphi 0, %s158
    %s173 = sphi 0, %s159
    %s177 = sphi 0, %s177
    %s179 = sphi 0, %s177
    %s180 = sphi 0, %s179
    %s194 = sphi 0, %s180
    %s198 = sphi 0, %s198
    %s200 = sphi 0, %s198
    %s201 = sphi 0, %s200
    %s215 = sphi 0, %s201
    %s219 = sphi 0, %s219
    %s221 = sphi 0, %s219
    %s222 = sphi 0, %s221
    %s236 = sphi 0, %s222
    %s240 = sphi 0, %s240
    %s242 = sphi 0, %s240
    %s243 = sphi 0, %s242
    %s257 = sphi 0, %s243
    %s263 = sphi 0, %s265
    %s266 = sphi 0, %s263
    %s267 = sphi 0, %s266
    %s283 = sphi 0, %s267
  $region4: #{classification_forward.1} parent=0 // loop_header_branch
    %20 = sbr.rel (%p18) target = $region8
  $region5: #{classification_forward.1} parent=0 // loop_body
    %s22 = ssub.s32 %s17, 1
    %s23 = ssub.s32 %s17, 2
    %s24 = sadd.s32 %s17, 1
    %s25 = ssub.s32 %s17, %s24
    %p26 = scmp.eq.s32.totalorder %s25, 0
    %s28 = sadd.s32 %s27, 1
    %s29 = scalar_select %p26, %s27, %s28
    %p32 = pneg %p26
    %p33 = scmp.eq.s32.totalorder %s17, 1
    %p34 = por %p32, %p33
    %p35 = scmp.ne.s32.totalorder %s27, %s30
    %p36 = scmp.eq.s32.totalorder %s17, 0
    %p37 = por %p35, %p36
    %p38 = scmp.ne.s32.totalorder %s27, %s30
    %p39 = scmp.eq.s32.totalorder %s22, 1
    %p40 = por %p38, %p39
    %p41 = scmp.ne.s32.totalorder %s30, %s31
    %p42 = scmp.eq.s32.totalorder %s22, 0
    %p43 = por %p41, %p42
    %p44 = scmp.ne.s32.totalorder %s30, %s31
    %p45 = scmp.eq.s32.totalorder %s23, 1
    %p46 = por %p44, %p45
    %p48 = scmp.ne.s32.totalorder %s31, %s47
    %p49 = scmp.eq.s32.totalorder %s23, 0
    %p50 = por %p48, %p49
    %s52 = sadd.s32 %s51, 1
    %p55 = scmp.eq.s32.totalorder %s17, 1
    %p56 = scmp.ne.s32.totalorder %s51, %s53
    %p57 = scmp.eq.s32.totalorder %s17, 0
    %p58 = por %p56, %p57
    %p59 = scmp.ne.s32.totalorder %s51, %s53
    %p60 = scmp.eq.s32.totalorder %s22, 1
    %p61 = por %p59, %p60
    %p62 = scmp.ne.s32.totalorder %s53, %s54
    %p63 = scmp.eq.s32.totalorder %s22, 0
    %p64 = por %p62, %p63
    %p65 = scmp.ne.s32.totalorder %s53, %s54
    %p66 = scmp.eq.s32.totalorder %s23, 1
    %p67 = por %p65, %p66
    %p69 = scmp.ne.s32.totalorder %s54, %s68
    %p70 = scmp.eq.s32.totalorder %s23, 0
    %p71 = por %p69, %p70
    %s73 = sadd.s32 %s72, 1
    %p76 = scmp.eq.s32.totalorder %s17, 1
    %p77 = scmp.ne.s32.totalorder %s72, %s74
    %p78 = scmp.eq.s32.totalorder %s17, 0
    %p79 = por %p77, %p78
    %p80 = scmp.ne.s32.totalorder %s72, %s74
    %p81 = scmp.eq.s32.totalorder %s22, 1
    %p82 = por %p80, %p81
    %p83 = scmp.ne.s32.totalorder %s74, %s75
    %p84 = scmp.eq.s32.totalorder %s22, 0
    %p85 = por %p83, %p84
    %p86 = scmp.ne.s32.totalorder %s74, %s75
    %p87 = scmp.eq.s32.totalorder %s23, 1
    %p88 = por %p86, %p87
    %p90 = scmp.ne.s32.totalorder %s75, %s89
    %p91 = scmp.eq.s32.totalorder %s23, 0
    %p92 = por %p90, %p91
    %s94 = sadd.s32 %s93, 1
    %p97 = scmp.eq.s32.totalorder %s17, 1
    %p98 = scmp.ne.s32.totalorder %s93, %s95
    %p99 = scmp.eq.s32.totalorder %s17, 0
    %p100 = por %p98, %p99
    %p101 = scmp.ne.s32.totalorder %s93, %s95
    %p102 = scmp.eq.s32.totalorder %s22, 1
    %p103 = por %p101, %p102
    %p104 = scmp.ne.s32.totalorder %s95, %s96
    %p105 = scmp.eq.s32.totalorder %s22, 0
    %p106 = por %p104, %p105
    %p107 = scmp.ne.s32.totalorder %s95, %s96
    %p108 = scmp.eq.s32.totalorder %s23, 1
    %p109 = por %p107, %p108
    %p111 = scmp.ne.s32.totalorder %s96, %s110
    %p112 = scmp.eq.s32.totalorder %s23, 0
    %p113 = por %p111, %p112
    %s115 = sadd.s32 %s114, 1
    %p118 = scmp.eq.s32.totalorder %s17, 1
    %p119 = scmp.ne.s32.totalorder %s114, %s116
    %p120 = scmp.eq.s32.totalorder %s17, 0
    %p121 = por %p119, %p120
    %p122 = scmp.ne.s32.totalorder %s114, %s116
    %p123 = scmp.eq.s32.totalorder %s22, 1
    %p124 = por %p122, %p123
    %p125 = scmp.ne.s32.totalorder %s116, %s117
    %p126 = scmp.eq.s32.totalorder %s22, 0
    %p127 = por %p125, %p126
    %p128 = scmp.ne.s32.totalorder %s116, %s117
    %p129 = scmp.eq.s32.totalorder %s23, 1
    %p130 = por %p128, %p129
    %p132 = scmp.ne.s32.totalorder %s117, %s131
    %p133 = scmp.eq.s32.totalorder %s23, 0
    %p134 = por %p132, %p133
    %s136 = sadd.s32 %s135, 1
    %p139 = scmp.eq.s32.totalorder %s17, 1
    %p140 = scmp.ne.s32.totalorder %s135, %s137
    %p141 = scmp.eq.s32.totalorder %s17, 0
    %p142 = por %p140, %p141
    %p143 = scmp.ne.s32.totalorder %s135, %s137
    %p144 = scmp.eq.s32.totalorder %s22, 1
    %p145 = por %p143, %p144
    %p146 = scmp.ne.s32.totalorder %s137, %s138
    %p147 = scmp.eq.s32.totalorder %s22, 0
    %p148 = por %p146, %p147
    %p149 = scmp.ne.s32.totalorder %s137, %s138
    %p150 = scmp.eq.s32.totalorder %s23, 1
    %p151 = por %p149, %p150
    %p153 = scmp.ne.s32.totalorder %s138, %s152
    %p154 = scmp.eq.s32.totalorder %s23, 0
    %p155 = por %p153, %p154
    %s157 = sadd.s32 %s156, 1
    %p160 = scmp.eq.s32.totalorder %s17, 1
    %p161 = scmp.ne.s32.totalorder %s156, %s158
    %p162 = scmp.eq.s32.totalorder %s17, 0
    %p163 = por %p161, %p162
    %p164 = scmp.ne.s32.totalorder %s156, %s158
    %p165 = scmp.eq.s32.totalorder %s22, 1
    %p166 = por %p164, %p165
    %p167 = scmp.ne.s32.totalorder %s158, %s159
    %p168 = scmp.eq.s32.totalorder %s22, 0
    %p169 = por %p167, %p168
    %p170 = scmp.ne.s32.totalorder %s158, %s159
    %p171 = scmp.eq.s32.totalorder %s23, 1
    %p172 = por %p170, %p171
    %p174 = scmp.ne.s32.totalorder %s159, %s173
    %p175 = scmp.eq.s32.totalorder %s23, 0
    %p176 = por %p174, %p175
    %s178 = sadd.s32 %s177, 1
    %p181 = scmp.eq.s32.totalorder %s17, 1
    %p182 = scmp.ne.s32.totalorder %s177, %s179
    %p183 = scmp.eq.s32.totalorder %s17, 0
    %p184 = por %p182, %p183
    %p185 = scmp.ne.s32.totalorder %s177, %s179
    %p186 = scmp.eq.s32.totalorder %s22, 1
    %p187 = por %p185, %p186
    %p188 = scmp.ne.s32.totalorder %s179, %s180
    %p189 = scmp.eq.s32.totalorder %s22, 0
    %p190 = por %p188, %p189
    %p191 = scmp.ne.s32.totalorder %s179, %s180
    %p192 = scmp.eq.s32.totalorder %s23, 1
    %p193 = por %p191, %p192
    %p195 = scmp.ne.s32.totalorder %s180, %s194
    %p196 = scmp.eq.s32.totalorder %s23, 0
    %p197 = por %p195, %p196
    %s199 = sadd.s32 %s198, 1
    %p202 = scmp.eq.s32.totalorder %s17, 1
    %p203 = scmp.ne.s32.totalorder %s198, %s200
    %p204 = scmp.eq.s32.totalorder %s17, 0
    %p205 = por %p203, %p204
    %p206 = scmp.ne.s32.totalorder %s198, %s200
    %p207 = scmp.eq.s32.totalorder %s22, 1
    %p208 = por %p206, %p207
    %p209 = scmp.ne.s32.totalorder %s200, %s201
    %p210 = scmp.eq.s32.totalorder %s22, 0
    %p211 = por %p209, %p210
    %p212 = scmp.ne.s32.totalorder %s200, %s201
    %p213 = scmp.eq.s32.totalorder %s23, 1
    %p214 = por %p212, %p213
    %p216 = scmp.ne.s32.totalorder %s201, %s215
    %p217 = scmp.eq.s32.totalorder %s23, 0
    %p218 = por %p216, %p217
    %s220 = sadd.s32 %s219, 1
    %p223 = scmp.eq.s32.totalorder %s17, 1
    %p224 = scmp.ne.s32.totalorder %s219, %s221
    %p225 = scmp.eq.s32.totalorder %s17, 0
    %p226 = por %p224, %p225
    %p227 = scmp.ne.s32.totalorder %s219, %s221
    %p228 = scmp.eq.s32.totalorder %s22, 1
    %p229 = por %p227, %p228
    %p230 = scmp.ne.s32.totalorder %s221, %s222
    %p231 = scmp.eq.s32.totalorder %s22, 0
    %p232 = por %p230, %p231
    %p233 = scmp.ne.s32.totalorder %s221, %s222
    %p234 = scmp.eq.s32.totalorder %s23, 1
    %p235 = por %p233, %p234
    %p237 = scmp.ne.s32.totalorder %s222, %s236
    %p238 = scmp.eq.s32.totalorder %s23, 0
    %p239 = por %p237, %p238
    %s241 = sadd.s32 %s240, 1
    %p244 = scmp.eq.s32.totalorder %s17, 1
    %p245 = scmp.ne.s32.totalorder %s240, %s242
    %p246 = scmp.eq.s32.totalorder %s17, 0
    %p247 = por %p245, %p246
    %p248 = scmp.ne.s32.totalorder %s240, %s242
    %p249 = scmp.eq.s32.totalorder %s22, 1
    %p250 = por %p248, %p249
    %p251 = scmp.ne.s32.totalorder %s242, %s243
    %p252 = scmp.eq.s32.totalorder %s22, 0
    %p253 = por %p251, %p252
    %p254 = scmp.ne.s32.totalorder %s242, %s243
    %p255 = scmp.eq.s32.totalorder %s23, 1
    %p256 = por %p254, %p255
    %p258 = scmp.ne.s32.totalorder %s243, %s257
    %p259 = scmp.eq.s32.totalorder %s23, 0
    %p260 = por %p258, %p259
    %s261 = ssub.s32 %s17, %s24
    %p262 = scmp.eq.s32.totalorder %s261, 0
    %s264 = sadd.s32 %s263, 1
    %s265 = scalar_select %p262, %s263, %s264
    %p268 = pneg %p262
    %p269 = scmp.eq.s32.totalorder %s17, 1
    %p270 = por %p268, %p269
    %p271 = scmp.ne.s32.totalorder %s263, %s266
    %p272 = scmp.eq.s32.totalorder %s17, 0
    %p273 = por %p271, %p272
    %p274 = scmp.ne.s32.totalorder %s263, %s266
    %p275 = scmp.eq.s32.totalorder %s22, 1
    %p276 = por %p274, %p275
    %p277 = scmp.ne.s32.totalorder %s266, %s267
    %p278 = scmp.eq.s32.totalorder %s22, 0
    %p279 = por %p277, %p278
    %p280 = scmp.ne.s32.totalorder %s266, %s267
    %p281 = scmp.eq.s32.totalorder %s23, 1
    %p282 = por %p280, %p281
    %p284 = scmp.ne.s32.totalorder %s267, %s283
    %p285 = scmp.eq.s32.totalorder %s23, 0
    %p286 = por %p284, %p285
    %p287 = scmp.le.s32.totalorder 1, %s17
    %p288 = scmp.lt.s32.totalorder %s17, 3
    %p289 = pnand %p287, %p288
    %p290 = pneg %p289
    // Predicated region
    $region9: #{classification_forward.1} parent=5 // pred_check
      _
    $region10: #{classification_forward.1} parent=5 // pred_check_branch
      %292 = sbr.rel (%p289) target = $region12
    $region11: #{classification_forward.1} parent=5 // pred_region
      %s293 = ssub.s32 %s17, 1
      // Predicated region
      $region13: #{classification_forward.1} parent=11 // pred_check
        %p294 = pneg %p64
      $region14: #{classification_forward.1} parent=11 // pred_check_branch
        %296 = sbr.rel (%p294) target = $region16
      $region15: #{classification_forward.1} parent=11 // pred_region
        _
      $region16: #{classification_forward.1} parent=11 // pred_fallthru
        _
      // Predicated region
      $region17: #{classification_forward.1} parent=11 // pred_check
        %p297 = pneg %p85
      $region18: #{classification_forward.1} parent=11 // pred_check_branch
        %299 = sbr.rel (%p297) target = $region20
      $region19: #{classification_forward.1} parent=11 // pred_region
        _
      $region20: #{classification_forward.1} parent=11 // pred_fallthru
        _
      // Predicated region
      $region21: #{classification_forward.1} parent=11 // pred_check
        %p300 = pneg %p106
      $region22: #{classification_forward.1} parent=11 // pred_check_branch
        %302 = sbr.rel (%p300) target = $region24
      $region23: #{classification_forward.1} parent=11 // pred_region
        _
      $region24: #{classification_forward.1} parent=11 // pred_fallthru
        _
      // Predicated region
      $region25: #{classification_forward.1} parent=11 // pred_check
        %p303 = pneg %p127
      $region26: #{classification_forward.1} parent=11 // pred_check_branch
        %305 = sbr.rel (%p303) target = $region28
      $region27: #{classification_forward.1} parent=11 // pred_region
        _
      $region28: #{classification_forward.1} parent=11 // pred_fallthru
        _
      // Predicated region
      $region29: #{classification_forward.1} parent=11 // pred_check
        %p306 = pneg %p148
      $region30: #{classification_forward.1} parent=11 // pred_check_branch
        %308 = sbr.rel (%p306) target = $region32
      $region31: #{classification_forward.1} parent=11 // pred_region
        _
      $region32: #{classification_forward.1} parent=11 // pred_fallthru
        _
      // Predicated region
      $region33: #{classification_forward.1} parent=11 // pred_check
        %p309 = pneg %p169
      $region34: #{classification_forward.1} parent=11 // pred_check_branch
        %311 = sbr.rel (%p309) target = $region36
      $region35: #{classification_forward.1} parent=11 // pred_region
        _
      $region36: #{classification_forward.1} parent=11 // pred_fallthru
        _
      // Predicated region
      $region37: #{classification_forward.1} parent=11 // pred_check
        %p312 = pneg %p190
      $region38: #{classification_forward.1} parent=11 // pred_check_branch
        %314 = sbr.rel (%p312) target = $region40
      $region39: #{classification_forward.1} parent=11 // pred_region
        _
      $region40: #{classification_forward.1} parent=11 // pred_fallthru
        _
      // Predicated region
      $region41: #{classification_forward.1} parent=11 // pred_check
        %p315 = pneg %p211
      $region42: #{classification_forward.1} parent=11 // pred_check_branch
        %317 = sbr.rel (%p315) target = $region44
      $region43: #{classification_forward.1} parent=11 // pred_region
        _
      $region44: #{classification_forward.1} parent=11 // pred_fallthru
        _
      // Predicated region
      $region45: #{classification_forward.1} parent=11 // pred_check
        %p318 = pneg %p232
      $region46: #{classification_forward.1} parent=11 // pred_check_branch
        %320 = sbr.rel (%p318) target = $region48
      $region47: #{classification_forward.1} parent=11 // pred_region
        _
      $region48: #{classification_forward.1} parent=11 // pred_fallthru
        _
      // Predicated region
      $region49: #{classification_forward.1} parent=11 // pred_check
        %p321 = pneg %p253
      $region50: #{classification_forward.1} parent=11 // pred_check_branch
        %323 = sbr.rel (%p321) target = $region52
      $region51: #{classification_forward.1} parent=11 // pred_region
        _
      $region52: #{classification_forward.1} parent=11 // pred_fallthru
        _
    $region12: #{classification_forward.1} parent=5 // pred_fallthru
      _
    %p324 = scmp.lt.s32.totalorder %s17, 2
    // Predicated region
    $region53: #{classification_forward.1} parent=5 // pred_check
      %p325 = pneg %p324
    $region54: #{classification_forward.1} parent=5 // pred_check_branch
      %327 = sbr.rel (%p325) target = $region56
    $region55: #{classification_forward.1} parent=5 // pred_region
      // Predicated region
      $region57: #{classification_forward.1} parent=55 // pred_check
        %p328 = pneg %p37
      $region58: #{classification_forward.1} parent=55 // pred_check_branch
        %330 = sbr.rel (%p328) target = $region60
      $region59: #{classification_forward.1} parent=55 // pred_region
        %p331 = scmp.lt.s32.totalorder %s17, 1
        %s332 = scalar_select %p331, %s17, 1
        %s333 = smul.addr %s332, 14
        %s334 = smul.addr %s333, 8
        %s335 = scalar_lea.vmem %s0, %s334
      $region60: #{classification_forward.1} parent=55 // pred_fallthru
        _
    $region56: #{classification_forward.1} parent=5 // pred_fallthru
      _
    %p336 = scmp.le.s32.totalorder 1, %s17
    %p337 = scmp.lt.s32.totalorder %s17, 3
    %p338 = pnand %p336, %p337
    %p339 = pneg %p338
    // Predicated region
    $region61: #{classification_forward.1} parent=5 // pred_check
      _
    $region62: #{classification_forward.1} parent=5 // pred_check_branch
      %341 = sbr.rel (%p338) target = $region64
    $region63: #{classification_forward.1} parent=5 // pred_region
      %s342 = ssub.s32 %s17, 1
      %p343 = scmp.lt.s32.totalorder %s22, 1
      %s344 = scalar_select %p343, %s22, 1
      %s345 = smul.addr %s344, 14
      %s346 = smul.addr %s345, 8
      %s347 = scalar_lea.vmem %s0, %s346
      %p348 = pneg %p43
      %p349 = pneg %p40
      %p350 = pneg %p64
      %p351 = pneg %p61
      %p352 = pneg %p85
      %p353 = pneg %p82
      %p354 = pneg %p106
      %p355 = pneg %p103
      %p356 = pneg %p127
      %p357 = pneg %p124
      %p358 = pneg %p148
      %p359 = pneg %p145
      %p360 = pneg %p169
      %p361 = pneg %p166
      %p362 = pneg %p190
      %p363 = pneg %p187
      %p364 = pneg %p211
      %p365 = pneg %p208
      %p366 = pneg %p232
      %p367 = pneg %p229
      %p368 = pneg %p253
      %p369 = pneg %p250
      %p370 = pneg %p279
      %p371 = pneg %p276
      %p372 = scmp.lt.s32.totalorder %s22, 1
      %s373 = scalar_select %p372, %s22, 1
      %s374 = smul.addr %s373, 10
      %s375 = smul.addr %s374, 8
      %s376 = scalar_lea.vmem %s11, %s375
      %p377 = scmp.lt.s32.totalorder %s22, 1
      %s378 = scalar_select %p377, %s22, 1
      %s379 = smul.addr %s378, 14
      %s380 = smul.addr %s379, 8
      %s381 = scalar_lea.vmem %s0, %s380
      %p382 = scmp.lt.s32.totalorder %s22, 1
      %s383 = scalar_select %p382, %s22, 1
      %s384 = smul.addr %s383, 10
      %s385 = smul.addr %s384, 8
      %s386 = scalar_lea.vmem %s11, %s385
      %vm388 = vcmask 261120
      %389 = vst.msk [vmem:[#allocation2] sm:$0xff] %vm388, 0.0
      %390 = vst.msk [vmem:[#allocation2 + $0x8] sm:$0xff] %vm388, 0.0
      %391 = vst.msk [vmem:[#allocation2 + $0x10] sm:$0xff] %vm388, 0.0
      %392 = vst.msk [vmem:[#allocation2 + $0x18] sm:$0xff] %vm388, 0.0
      %393 = vst.msk [vmem:[#allocation2 + $0x20] sm:$0xff] %vm388, 0.0
      %394 = vst.msk [vmem:[#allocation2 + $0x28] sm:$0xff] %vm388, 0.0
      %395 = vst.msk [vmem:[#allocation2 + $0x30] sm:$0xff] %vm388, 0.0
      %396 = vst.msk [vmem:[#allocation2 + $0x38] sm:$0xff] %vm388, 0.0
      %397 = vst.msk [vmem:[#allocation2 + $0x40] sm:$0xff] %vm388, 0.0
      %398 = vst.msk [vmem:[#allocation2 + $0x48] sm:$0xff] %vm388, 0.0
      %399 = vst.msk [vmem:[#allocation2 + $0x50] sm:$0xff] %vm388, 0.0
      %400 = vst.msk [vmem:[#allocation2 + $0x58] sm:$0xff] %vm388, 0.0
      %401 = vst.msk [vmem:[#allocation2 + $0x60] sm:$0xff] %vm388, 0.0
      %vm402 = vcmask 259072
      %403 = vst.msk [vmem:[#allocation2 + $0x68] sm:$0x3f] %vm402, 0.0
      %404 = vst.msk [vmem:[#allocation3] sm:$0xff] %vm388, 0.0
      %405 = vst.msk [vmem:[#allocation3 + $0x8] sm:$0xff] %vm388, 0.0
      %406 = vst.msk [vmem:[#allocation3 + $0x10] sm:$0xff] %vm388, 0.0
      %407 = vst.msk [vmem:[#allocation3 + $0x18] sm:$0xff] %vm388, 0.0
      %408 = vst.msk [vmem:[#allocation3 + $0x20] sm:$0xff] %vm388, 0.0
      %409 = vst.msk [vmem:[#allocation3 + $0x28] sm:$0xff] %vm388, 0.0
      %410 = vst.msk [vmem:[#allocation3 + $0x30] sm:$0xff] %vm388, 0.0
      %411 = vst.msk [vmem:[#allocation3 + $0x38] sm:$0xff] %vm388, 0.0
      %412 = vst.msk [vmem:[#allocation3 + $0x40] sm:$0xff] %vm388, 0.0
      %413 = vst.msk [vmem:[#allocation3 + $0x48] sm:$0xff] %vm388, 0.0
      %414 = vst.msk [vmem:[#allocation3 + $0x50] sm:$0xff] %vm388, 0.0
      %415 = vst.msk [vmem:[#allocation3 + $0x58] sm:$0xff] %vm388, 0.0
      %416 = vst.msk [vmem:[#allocation3 + $0x60] sm:$0xff] %vm388, 0.0
      %417 = vst.msk [vmem:[#allocation3 + $0x68] sm:$0x3f] %vm402, 0.0
      %v418 = vlaneseq
      %v419 = vshrl.u32 %v418, 7
      %v420 = vadd.s32 %v419, 8
      %v421 = vadd.s32 %v419, 16
      %v422 = vadd.s32 %v419, 24
      %v423 = vadd.s32 %v419, 32
      %v424 = vadd.s32 %v419, 40
      %v425 = vadd.s32 %v419, 48
      %v426 = vadd.s32 %v419, 56
      %v427 = vadd.s32 %v419, 64
      %v428 = vadd.s32 %v419, 72
      %vm429 = vcmp.lt.s32.totalorder %v419, 0
      %v430 = vsub.s32 0, %v419
      %v431 = vsel %vm429, %v430, %v419
      %v432 = vmul.u32.u64.compose %v431, 3435973837
      %v433 = vextract.low.u32 %v432
      %v434 = vextract.high.u32 %v432
      %v435 = vshrl.u32 %v434, 3
      %v436 = vmul.u32 %v435, 10
      %v437 = vsub.s32 %v431, %v436
      %v438 = vsub.s32 0, %v437
      %v439 = vsel %vm429, %v438, %v437
      %vm440 = vcmp.lt.s32.totalorder %v420, 0
      %v441 = vsub.s32 0, %v420
      %v442 = vsel %vm440, %v441, %v420
      %v443 = vmul.u32.u64.compose %v442, 3435973837
      %v444 = vextract.low.u32 %v443
      %v445 = vextract.high.u32 %v443
      %v446 = vshrl.u32 %v445, 3
      %v447 = vmul.u32 %v446, 10
      %v448 = vsub.s32 %v442, %v447
      %v449 = vsub.s32 0, %v448
      %v450 = vsel %vm440, %v449, %v448
      %vm451 = vcmp.lt.s32.totalorder %v421, 0
      %v452 = vsub.s32 0, %v421
      %v453 = vsel %vm451, %v452, %v421
      %v454 = vmul.u32.u64.compose %v453, 3435973837
      %v455 = vextract.low.u32 %v454
      %v456 = vextract.high.u32 %v454
      %v457 = vshrl.u32 %v456, 3
      %v458 = vmul.u32 %v457, 10
      %v459 = vsub.s32 %v453, %v458
      %v460 = vsub.s32 0, %v459
      %v461 = vsel %vm451, %v460, %v459
      %vm462 = vcmp.lt.s32.totalorder %v422, 0
      %v463 = vsub.s32 0, %v422
      %v464 = vsel %vm462, %v463, %v422
      %v465 = vmul.u32.u64.compose %v464, 3435973837
      %v466 = vextract.low.u32 %v465
      %v467 = vextract.high.u32 %v465
      %v468 = vshrl.u32 %v467, 3
      %v469 = vmul.u32 %v468, 10
      %v470 = vsub.s32 %v464, %v469
      %v471 = vsub.s32 0, %v470
      %v472 = vsel %vm462, %v471, %v470
      %vm473 = vcmp.lt.s32.totalorder %v423, 0
      %v474 = vsub.s32 0, %v423
      %v475 = vsel %vm473, %v474, %v423
      %v476 = vmul.u32.u64.compose %v475, 3435973837
      %v477 = vextract.low.u32 %v476
      %v478 = vextract.high.u32 %v476
      %v479 = vshrl.u32 %v478, 3
      %v480 = vmul.u32 %v479, 10
      %v481 = vsub.s32 %v475, %v480
      %v482 = vsub.s32 0, %v481
      %v483 = vsel %vm473, %v482, %v481
      %vm484 = vcmp.lt.s32.totalorder %v424, 0
      %v485 = vsub.s32 0, %v424
      %v486 = vsel %vm484, %v485, %v424
      %v487 = vmul.u32.u64.compose %v486, 3435973837
      %v488 = vextract.low.u32 %v487
      %v489 = vextract.high.u32 %v487
      %v490 = vshrl.u32 %v489, 3
      %v491 = vmul.u32 %v490, 10
      %v492 = vsub.s32 %v486, %v491
      %v493 = vsub.s32 0, %v492
      %v494 = vsel %vm484, %v493, %v492
      %vm495 = vcmp.lt.s32.totalorder %v425, 0
      %v496 = vsub.s32 0, %v425
      %v497 = vsel %vm495, %v496, %v425
      %v498 = vmul.u32.u64.compose %v497, 3435973837
      %v499 = vextract.low.u32 %v498
      %v500 = vextract.high.u32 %v498
      %v501 = vshrl.u32 %v500, 3
      %v502 = vmul.u32 %v501, 10
      %v503 = vsub.s32 %v497, %v502
      %v504 = vsub.s32 0, %v503
      %v505 = vsel %vm495, %v504, %v503
      %vm506 = vcmp.lt.s32.totalorder %v426, 0
      %v507 = vsub.s32 0, %v426
      %v508 = vsel %vm506, %v507, %v426
      %v509 = vmul.u32.u64.compose %v508, 3435973837
      %v510 = vextract.low.u32 %v509
      %v511 = vextract.high.u32 %v509
      %v512 = vshrl.u32 %v511, 3
      %v513 = vmul.u32 %v512, 10
      %v514 = vsub.s32 %v508, %v513
      %v515 = vsub.s32 0, %v514
      %v516 = vsel %vm506, %v515, %v514
      %vm517 = vcmp.lt.s32.totalorder %v427, 0
      %v518 = vsub.s32 0, %v427
      %v519 = vsel %vm517, %v518, %v427
      %v520 = vmul.u32.u64.compose %v519, 3435973837
      %v521 = vextract.low.u32 %v520
      %v522 = vextract.high.u32 %v520
      %v523 = vshrl.u32 %v522, 3
      %v524 = vmul.u32 %v523, 10
      %v525 = vsub.s32 %v519, %v524
      %v526 = vsub.s32 0, %v525
      %v527 = vsel %vm517, %v526, %v525
      %vm528 = vcmp.lt.s32.totalorder %v428, 0
      %v529 = vsub.s32 0, %v428
      %v530 = vsel %vm528, %v529, %v428
      %v531 = vmul.u32.u64.compose %v530, 3435973837
      %v532 = vextract.low.u32 %v531
      %v533 = vextract.high.u32 %v531
      %v534 = vshrl.u32 %v533, 3
      %v535 = vmul.u32 %v534, 10
      %v536 = vsub.s32 %v530, %v535
      %v537 = vsub.s32 0, %v536
      %v538 = vsel %vm528, %v537, %v536
      %vm539 = vcmp.ne.s32.totalorder %v439, 0
      %vm540 = vcmp.ne.s32.totalorder %v450, 0
      %vm541 = vcmp.ne.s32.totalorder %v461, 0
      %vm542 = vcmp.ne.s32.totalorder %v472, 0
      %vm543 = vcmp.ne.s32.totalorder %v483, 0
      %vm544 = vcmp.ne.s32.totalorder %v494, 0
      %vm545 = vcmp.ne.s32.totalorder %v505, 0
      %vm546 = vcmp.ne.s32.totalorder %v516, 0
      %vm547 = vcmp.ne.s32.totalorder %v527, 0
      %vm548 = vcmp.ne.s32.totalorder %v538, 0
      %vm549 = vcmp.lt.s32.totalorder %v439, 0
      %vm550 = vcmp.lt.s32.totalorder %v450, 0
      %vm551 = vcmp.lt.s32.totalorder %v461, 0
      %vm552 = vcmp.lt.s32.totalorder %v472, 0
      %vm553 = vcmp.lt.s32.totalorder %v483, 0
      %vm554 = vcmp.lt.s32.totalorder %v494, 0
      %vm555 = vcmp.lt.s32.totalorder %v505, 0
      %vm556 = vcmp.lt.s32.totalorder %v516, 0
      %vm557 = vcmp.lt.s32.totalorder %v527, 0
      %vm558 = vcmp.lt.s32.totalorder %v538, 0
      %vm559 = vmand %vm549, %vm539
      %vm560 = vmand %vm550, %vm540
      %vm561 = vmand %vm551, %vm541
      %vm562 = vmand %vm552, %vm542
      %vm563 = vmand %vm553, %vm543
      %vm564 = vmand %vm554, %vm544
      %vm565 = vmand %vm555, %vm545
      %vm566 = vmand %vm556, %vm546
      %vm567 = vmand %vm557, %vm547
      %vm568 = vmand %vm558, %vm548
      %v569 = vadd.s32 %v439, 10
      %v570 = vadd.s32 %v450, 10
      %v571 = vadd.s32 %v461, 10
      %v572 = vadd.s32 %v472, 10
      %v573 = vadd.s32 %v483, 10
      %v574 = vadd.s32 %v494, 10
      %v575 = vadd.s32 %v505, 10
      %v576 = vadd.s32 %v516, 10
      %v577 = vadd.s32 %v527, 10
      %v578 = vadd.s32 %v538, 10
      %v579 = vsel %vm559, %v569, %v439
      %v580 = vsel %vm560, %v570, %v450
      %v581 = vsel %vm561, %v571, %v461
      %v582 = vsel %vm562, %v572, %v472
      %v583 = vsel %vm563, %v573, %v483
      %v584 = vsel %vm564, %v574, %v494
      %v585 = vsel %vm565, %v575, %v505
      %v586 = vsel %vm566, %v576, %v516
      %v587 = vsel %vm567, %v577, %v527
      %v588 = vsel %vm568, %v578, %v538
      %vm589 = vcmp.lt.s32.totalorder %v579, 8
      %vm590 = vcmp.lt.s32.totalorder %v580, 8
      %vm591 = vcmp.lt.s32.totalorder %v581, 8
      %vm592 = vcmp.lt.s32.totalorder %v582, 8
      %vm593 = vcmp.lt.s32.totalorder %v583, 8
      %vm594 = vcmp.lt.s32.totalorder %v584, 8
      %vm595 = vcmp.lt.s32.totalorder %v585, 8
      %vm596 = vcmp.lt.s32.totalorder %v586, 8
      %vm597 = vcmp.lt.s32.totalorder %v587, 8
      %vm598 = vcmp.lt.s32.totalorder %v588, 8
      %v599 = vld [vmem:[%s381] sm:$0xff]
      %v600 = vld [vmem:[%s381 + $0x8] sm:$0xff]
      %v601 = vld [vmem:[%s381 + $0x10] sm:$0xff]
      %v602 = vld [vmem:[%s381 + $0x18] sm:$0xff]
      %v603 = vld [vmem:[%s381 + $0x20] sm:$0xff]
      %v604 = vld [vmem:[%s381 + $0x28] sm:$0xff]
      %v605 = vld [vmem:[%s381 + $0x30] sm:$0xff]
      %v606 = vld [vmem:[%s381 + $0x38] sm:$0xff]
      %v607 = vld [vmem:[%s381 + $0x40] sm:$0xff]
      %v608 = vld [vmem:[%s381 + $0x48] sm:$0xff]
      %v609 = vpack.c.bf16 %v600, %v599
      %v610 = vpack.c.bf16 %v602, %v601
      %v611 = vpack.c.bf16 %v604, %v603
      %v612 = vpack.c.bf16 %v606, %v605
      %v613 = vpack.c.bf16 %v608, %v607
      %v614 = vld [vmem:[%s1] sm:$0xf]
      %v615 = vld [vmem:[%s1 + $0x4] sm:$0xf]
      %v616 = vld [vmem:[%s1 + $0x8] sm:$0xf]
      %v617 = vld [vmem:[%s1 + $0xc] sm:$0xf]
      %v618 = vld [vmem:[%s381 + $0x1] sm:$0xff]
      %v619 = vld [vmem:[%s381 + $0x9] sm:$0xff]
      %v620 = vld [vmem:[%s381 + $0x11] sm:$0xff]
      %v621 = vld [vmem:[%s381 + $0x19] sm:$0xff]
      %v622 = vld [vmem:[%s381 + $0x21] sm:$0xff]
      %v623 = vld [vmem:[%s381 + $0x29] sm:$0xff]
      %v624 = vld [vmem:[%s381 + $0x31] sm:$0xff]
      %v625 = vld [vmem:[%s381 + $0x39] sm:$0xff]
      %v626 = vld [vmem:[%s381 + $0x41] sm:$0xff]
      %v627 = vld [vmem:[%s381 + $0x49] sm:$0xff]
      %v628 = vpack.c.bf16 %v619, %v618
      %v629 = vpack.c.bf16 %v621, %v620
      %v630 = vpack.c.bf16 %v623, %v622
      %v631 = vpack.c.bf16 %v625, %v624
      %v632 = vpack.c.bf16 %v627, %v626
      %s633 = scalar_lea.vmem %s1, 16
      %v634 = vld [vmem:[%s633] sm:$0xf]
      %v635 = vld [vmem:[%s633 + $0x4] sm:$0xf]
      %v636 = vld [vmem:[%s633 + $0x8] sm:$0xf]
      %v637 = vld [vmem:[%s633 + $0xc] sm:$0xf]
      %v642 = vunpack.c.l.b16 %v634
      %v643 = vunpack.c.l.b16 %v635
      %v644 = vunpack.c.l.b16 %v636
      %v645 = vunpack.c.l.b16 %v637
      %v646 = vpack.c.b16 %v643, %v642
      %v647 = vpack.c.b16 %v645, %v644
      %v651 = vsel %vm388, %v628, 0
      %v654 = vsel %vm388, %v629, 0
      %v657 = vsel %vm388, %v630, 0
      %v660 = vsel %vm388, %v631, 0
      %v663 = vsel %vm388, %v632, 0
      %665 = vmatprep.subr.bf16.mxu0 0
      %666 = vmatpush1.bf16.msra.mxu0 %v646
      %667 = vmatprep.subr.bf16.mxu0 0
      %668 = vmatpush1.bf16.msra.mxu0 %v647
      %669 = vmatprep.subr.bf16.mxu0 0
      %670 = vmatpush1.bf16.msra.mxu0 0
      %671 = vmatprep.subr.bf16.mxu0 0
      %672 = vmatpush1.bf16.msra.mxu0 0
      %673 = vmatprep.subr.bf16.mxu0 0
      %674 = vmatpush1.bf16.msra.mxu0 0
      %675 = vmatprep.subr.bf16.mxu0 0
      %676 = vmatpush1.bf16.msra.mxu0 0
      %677 = vmatprep.subr.bf16.mxu0 0
      %678 = vmatpush1.bf16.msra.mxu0 0
      %679 = vmatprep.subr.bf16.mxu0 0
      %680 = vmatpush1.bf16.msra.mxu0 0
      %681 = vmatprep.subr.bf16.mxu0 0
      %682 = vmatpush1.bf16.msra.mxu0 0
      %683 = vmatprep.subr.bf16.mxu0 0
      %684 = vmatpush1.bf16.msra.mxu0 0
      %685 = vmatprep.subr.bf16.mxu0 0
      %686 = vmatpush1.bf16.msra.mxu0 0
      %687 = vmatprep.subr.bf16.mxu0 0
      %688 = vmatpush1.bf16.msra.mxu0 0
      %689 = vmatprep.subr.bf16.mxu0 0
      %690 = vmatpush1.bf16.msra.mxu0 0
      %691 = vmatprep.subr.bf16.mxu0 0
      %692 = vmatpush1.bf16.msra.mxu0 0
      %693 = vmatprep.subr.bf16.mxu0 0
      %694 = vmatpush1.bf16.msra.mxu0 0
      %695 = vmatprep.subr.bf16.mxu0 0
      %696 = vmatpush1.bf16.msra.mxu0 0
      %697 = vmatprep.mubr.bf16.mxu0 0
      %698 = vmatmul.mubr.bf16.gmra.mrb[0].mxu0 %v651
      %v699 = vpop.f32.mrb[0].mxu0
      %v700 = vadd.f32 0.0, %v699
      %v701 = vpop.f32.mrb[0].mxu0
      %v702 = vpop.f32.mrb[0].mxu0
      %v703 = vadd.f32 0.0, %v702
      %v704 = vpop.f32.mrb[0].mxu0
      %705 = vmatprep.mubr.bf16.mxu0 0
      %706 = vmatmul.mubr.bf16.gmra.mrb[0].mxu0 %v654
      %v707 = vpop.f32.mrb[0].mxu0
      %v708 = vadd.f32 0.0, %v707
      %v709 = vpop.f32.mrb[0].mxu0
      %v710 = vpop.f32.mrb[0].mxu0
      %v711 = vadd.f32 0.0, %v710
      %v712 = vpop.f32.mrb[0].mxu0
      %713 = vmatprep.mubr.bf16.mxu0 0
      %714 = vmatmul.mubr.bf16.gmra.mrb[0].mxu0 %v657
      %v715 = vpop.f32.mrb[0].mxu0
      %v716 = vadd.f32 0.0, %v715
      %v717 = vpop.f32.mrb[0].mxu0
      %v718 = vpop.f32.mrb[0].mxu0
      %v719 = vadd.f32 0.0, %v718
      %v720 = vpop.f32.mrb[0].mxu0
      %721 = vmatprep.mubr.bf16.mxu0 0
      %722 = vmatmul.mubr.bf16.gmra.mrb[0].mxu0 %v660
      %v723 = vpop.f32.mrb[0].mxu0
      %v724 = vadd.f32 0.0, %v723
      %v725 = vpop.f32.mrb[0].mxu0
      %v726 = vpop.f32.mrb[0].mxu0
      %v727 = vadd.f32 0.0, %v726
      %v728 = vpop.f32.mrb[0].mxu0
      %729 = vmatprep.mubr.bf16.mxu0 0
      %730 = vmatmul.mubr.bf16.gmra.mrb[0].mxu0 %v663
      %v731 = vpop.f32.mrb[0].mxu0
      %v732 = vadd.f32 0.0, %v731
      %v733 = vpop.f32.mrb[0].mxu0
      %v734 = vpop.f32.mrb[0].mxu0
      %v735 = vadd.f32 0.0, %v734
      %v736 = vpop.f32.mrb[0].mxu0
      %737 = vdwg.mxu0
      %v742 = vunpack.c.l.b16 %v614
      %v743 = vunpack.c.l.b16 %v615
      %v744 = vunpack.c.l.b16 %v616
      %v745 = vunpack.c.l.b16 %v617
      %v746 = vpack.c.b16 %v743, %v742
      %v747 = vpack.c.b16 %v745, %v744
      %v751 = vsel %vm388, %v609, 0
      %v754 = vsel %vm388, %v610, 0
      %v757 = vsel %vm388, %v611, 0
      %v760 = vsel %vm388, %v612, 0
      %v763 = vsel %vm388, %v613, 0
      %765 = vmatprep.subr.bf16.mxu0 0
      %766 = vmatpush1.bf16.msra.mxu0 %v746
      %767 = vmatprep.subr.bf16.mxu0 0
      %768 = vmatpush1.bf16.msra.mxu0 %v747
      %769 = vmatprep.subr.bf16.mxu0 0
      %770 = vmatpush1.bf16.msra.mxu0 0
      %771 = vmatprep.subr.bf16.mxu0 0
      %772 = vmatpush1.bf16.msra.mxu0 0
      %773 = vmatprep.subr.bf16.mxu0 0
      %774 = vmatpush1.bf16.msra.mxu0 0
      %775 = vmatprep.subr.bf16.mxu0 0
      %776 = vmatpush1.bf16.msra.mxu0 0
      %777 = vmatprep.subr.bf16.mxu0 0
      %778 = vmatpush1.bf16.msra.mxu0 0
      %779 = vmatprep.subr.bf16.mxu0 0
      %780 = vmatpush1.bf16.msra.mxu0 0
      %781 = vmatprep.subr.bf16.mxu0 0
      %782 = vmatpush1.bf16.msra.mxu0 0
      %783 = vmatprep.subr.bf16.mxu0 0
      %784 = vmatpush1.bf16.msra.mxu0 0
      %785 = vmatprep.subr.bf16.mxu0 0
      %786 = vmatpush1.bf16.msra.mxu0 0
      %787 = vmatprep.subr.bf16.mxu0 0
      %788 = vmatpush1.bf16.msra.mxu0 0
      %789 = vmatprep.subr.bf16.mxu0 0
      %790 = vmatpush1.bf16.msra.mxu0 0
      %791 = vmatprep.subr.bf16.mxu0 0
      %792 = vmatpush1.bf16.msra.mxu0 0
      %793 = vmatprep.subr.bf16.mxu0 0
      %794 = vmatpush1.bf16.msra.mxu0 0
      %795 = vmatprep.subr.bf16.mxu0 0
      %796 = vmatpush1.bf16.msra.mxu0 0
      %797 = vmatprep.mubr.bf16.mxu0 0
      %798 = vmatmul.mubr.bf16.gmra.mrb[0].mxu0 %v751
      %v799 = vpop.f32.mrb[0].mxu0
      %v800 = vadd.f32 %v700, %v799
      %v801 = vpop.f32.mrb[0].mxu0
      %v802 = vpop.f32.mrb[0].mxu0
      %v803 = vadd.f32 %v703, %v802
      %v804 = vpop.f32.mrb[0].mxu0
      %805 = vmatprep.mubr.bf16.mxu0 0
      %806 = vmatmul.mubr.bf16.gmra.mrb[0].mxu0 %v754
      %v807 = vpop.f32.mrb[0].mxu0
      %v808 = vadd.f32 %v708, %v807
      %v809 = vpop.f32.mrb[0].mxu0
      %v810 = vpop.f32.mrb[0].mxu0
      %v811 = vadd.f32 %v711, %v810
      %v812 = vpop.f32.mrb[0].mxu0
      %813 = vmatprep.mubr.bf16.mxu0 0
      %814 = vmatmul.mubr.bf16.gmra.mrb[0].mxu0 %v757
      %v815 = vpop.f32.mrb[0].mxu0
      %v816 = vadd.f32 %v716, %v815
      %v817 = vpop.f32.mrb[0].mxu0
      %v818 = vpop.f32.mrb[0].mxu0
      %v819 = vadd.f32 %v719, %v818
      %v820 = vpop.f32.mrb[0].mxu0
      %821 = vmatprep.mubr.bf16.mxu0 0
      %822 = vmatmul.mubr.bf16.gmra.mrb[0].mxu0 %v760
      %v823 = vpop.f32.mrb[0].mxu0
      %v824 = vadd.f32 %v724, %v823
      %v825 = vpop.f32.mrb[0].mxu0
      %v826 = vpop.f32.mrb[0].mxu0
      %v827 = vadd.f32 %v727, %v826
      %v828 = vpop.f32.mrb[0].mxu0
      %829 = vmatprep.mubr.bf16.mxu0 0
      %830 = vmatmul.mubr.bf16.gmra.mrb[0].mxu0 %v763
      %v831 = vpop.f32.mrb[0].mxu0
      %v832 = vadd.f32 %v732, %v831
      %v833 = vpop.f32.mrb[0].mxu0
      %v834 = vpop.f32.mrb[0].mxu0
      %v835 = vadd.f32 %v735, %v834
      %v836 = vpop.f32.mrb[0].mxu0
      %837 = vdwg.mxu0
      %v838 = vld [vmem:[%s381 + $0x2] sm:$0xff]
      %v839 = vld [vmem:[%s381 + $0xa] sm:$0xff]
      %v840 = vld [vmem:[%s381 + $0x12] sm:$0xff]
      %v841 = vld [vmem:[%s381 + $0x1a] sm:$0xff]
      %v842 = vld [vmem:[%s381 + $0x22] sm:$0xff]
      %v843 = vld [vmem:[%s381 + $0x2a] sm:$0xff]
      %v844 = vld [vmem:[%s381 + $0x32] sm:$0xff]
      %v845 = vld [vmem:[%s381 + $0x3a] sm:$0xff]
      %v846 = vld [vmem:[%s381 + $0x42] sm:$0xff]
      %v847 = vld [vmem:[%s381 + $0x4a] sm:$0xff]
      %v848 = vpack.c.bf16 %v839, %v838
      %v849 = vpack.c.bf16 %v841, %v840
      %v850 = vpack.c.bf16 %v843, %v842
      %v851 = vpack.c.bf16 %v845, %v844
      %v852 = vpack.c.bf16 %v847, %v846
      %s853 = scalar_lea.vmem %s1, 32
      %v854 = vld [vmem:[%s853] sm:$0xf]
      %v855 = vld [vmem:[%s853 + $0x4] sm:$0xf]
      %v856 = vld [vmem:[%s853 + $0x8] sm:$0xf]
      %v857 = vld [vmem:[%s853 + $0xc] sm:$0xf]
      %v862 = vunpack.c.l.b16 %v854
      %v863 = vunpack.c.l.b16 %v855
      %v864 = vunpack.c.l.b16 %v856
      %v865 = vunpack.c.l.b16 %v857
      %v866 = vpack.c.b16 %v863, %v862
      %v867 = vpack.c.b16 %v865, %v864
      %v871 = vsel %vm388, %v848, 0
      %v874 = vsel %vm388, %v849, 0
      %v877 = vsel %vm388, %v850, 0
      %v880 = vsel %vm388, %v851, 0
      %v883 = vsel %vm388, %v852, 0
      %885 = vmatprep.subr.bf16.mxu0 0
      %886 = vmatpush1.bf16.msra.mxu0 %v866
      %887 = vmatprep.subr.bf16.mxu0 0
      %888 = vmatpush1.bf16.msra.mxu0 %v867
      %889 = vmatprep.subr.bf16.mxu0 0
      %890 = vmatpush1.bf16.msra.mxu0 0
      %891 = vmatprep.subr.bf16.mxu0 0
      %892 = vmatpush1.bf16.msra.mxu0 0
      %893 = vmatprep.subr.bf16.mxu0 0
      %894 = vmatpush1.bf16.msra.mxu0 0
      %895 = vmatprep.subr.bf16.mxu0 0
      %896 = vmatpush1.bf16.msra.mxu0 0
      %897 = vmatprep.subr.bf16.mxu0 0
      %898 = vmatpush1.bf16.msra.mxu0 0
      %899 = vmatprep.subr.bf16.mxu0 0
      %900 = vmatpush1.bf16.msra.mxu0 0
      %901 = vmatprep.subr.bf16.mxu0 0
      %902 = vmatpush1.bf16.msra.mxu0 0
      %903 = vmatprep.subr.bf16.mxu0 0
      %904 = vmatpush1.bf16.msra.mxu0 0
      %905 = vmatprep.subr.bf16.mxu0 0
      %906 = vmatpush1.bf16.msra.mxu0 0
      %907 = vmatprep.subr.bf16.mxu0 0
      %908 = vmatpush1.bf16.msra.mxu0 0
      %909 = vmatprep.subr.bf16.mxu0 0
      %910 = vmatpush1.bf16.msra.mxu0 0
      %911 = vmatprep.subr.bf16.mxu0 0
      %912 = vmatpush1.bf16.msra.mxu0 0
      %913 = vmatprep.subr.bf16.mxu0 0
      %914 = vmatpush1.bf16.msra.mxu0 0
      %915 = vmatprep.subr.bf16.mxu0 0
      %916 = vmatpush1.bf16.msra.mxu0 0
      %917 = vmatprep.mubr.bf16.mxu0 0
      %918 = vmatmul.mubr.bf16.gmra.mrb[0].mxu0 %v871
      %v919 = vpop.f32.mrb[0].mxu0
      %v920 = vadd.f32 0.0, %v919
      %v921 = vpop.f32.mrb[0].mxu0
      %v922 = vpop.f32.mrb[0].mxu0
      %v923 = vadd.f32 0.0, %v922
      %v924 = vpop.f32.mrb[0].mxu0
      %925 = vmatprep.mubr.bf16.mxu0 0
      %926 = vmatmul.mubr.bf16.gmra.mrb[0].mxu0 %v874
      %v927 = vpop.f32.mrb[0].mxu0
      %v928 = vadd.f32 0.0, %v927
      %v929 = vpop.f32.mrb[0].mxu0
      %v930 = vpop.f32.mrb[0].mxu0
      %v931 = vadd.f32 0.0, %v930
      %v932 = vpop.f32.mrb[0].mxu0
      %933 = vmatprep.mubr.bf16.mxu0 0
      %934 = vmatmul.mubr.bf16.gmra.mrb[0].mxu0 %v877
      %v935 = vpop.f32.mrb[0].mxu0
      %v936 = vadd.f32 0.0, %v935
      %v937 = vpop.f32.mrb[0].mxu0
      %v938 = vpop.f32.mrb[0].mxu0
      %v939 = vadd.f32 0.0, %v938
      %v940 = vpop.f32.mrb[0].mxu0
      %941 = vmatprep.mubr.bf16.mxu0 0
      %942 = vmatmul.mubr.bf16.gmra.mrb[0].mxu0 %v880
      %v943 = vpop.f32.mrb[0].mxu0
      %v944 = vadd.f32 0.0, %v943
      %v945 = vpop.f32.mrb[0].mxu0
      %v946 = vpop.f32.mrb[0].mxu0
      %v947 = vadd.f32 0.0, %v946
      %v948 = vpop.f32.mrb[0].mxu0
      %949 = vmatprep.mubr.bf16.mxu0 0
      %950 = vmatmul.mubr.bf16.gmra.mrb[0].mxu0 %v883
      %v951 = vpop.f32.mrb[0].mxu0
      %v952 = vadd.f32 0.0, %v951
      %v953 = vpop.f32.mrb[0].mxu0
      %v954 = vpop.f32.mrb[0].mxu0
      %v955 = vadd.f32 0.0, %v954
      %v956 = vpop.f32.mrb[0].mxu0
      %957 = vdwg.mxu0
      %v958 = vadd.f32 %v800, %v920
      %v959 = vadd.f32 %v803, %v923
      %v960 = vadd.f32 %v808, %v928
      %v961 = vadd.f32 %v811, %v931
      %v962 = vadd.f32 %v816, %v936
      %v963 = vadd.f32 %v819, %v939
      %v964 = vadd.f32 %v824, %v944
      %v965 = vadd.f32 %v827, %v947
      %v966 = vadd.f32 %v832, %v952
      %v967 = vadd.f32 %v835, %v955
      %v968 = vld [vmem:[%s381 + $0xa] sm:$0xff]
      %v969 = vld [vmem:[%s381 + $0x12] sm:$0xff]
      %v970 = vld [vmem:[%s381 + $0x1a] sm:$0xff]
      %v971 = vld [vmem:[%s381 + $0x22] sm:$0xff]
      %v972 = vld [vmem:[%s381 + $0x2a] sm:$0xff]
      %v973 = vld [vmem:[%s381 + $0x32] sm:$0xff]
      %v974 = vld [vmem:[%s381 + $0x3a] sm:$0xff]
      %v975 = vld [vmem:[%s381 + $0x42] sm:$0xff]
      %v976 = vld [vmem:[%s381 + $0x4a] sm:$0xff]
      %v977 = vld [vmem:[%s381 + $0x52] sm:$0xff]
      %v978 = vpack.c.bf16 %v969, %v968
      %v979 = vpack.c.bf16 %v971, %v970
      %v980 = vpack.c.bf16 %v973, %v972
      %v981 = vpack.c.bf16 %v975, %v974
      %v982 = vpack.c.bf16 %v977, %v976
      %s983 = scalar_lea.vmem %s1, 48
      %v984 = vld [vmem:[%s983] sm:$0xf]
      %v985 = vld [vmem:[%s983 + $0x4] sm:$0xf]
      %v986 = vld [vmem:[%s983 + $0x8] sm:$0xf]
      %v987 = vld [vmem:[%s983 + $0xc] sm:$0xf]
      %v992 = vunpack.c.l.b16 %v984
      %v993 = vunpack.c.l.b16 %v985
      %v994 = vunpack.c.l.b16 %v986
      %v995 = vunpack.c.l.b16 %v987
      %v996 = vpack.c.b16 %v993, %v992
      %v997 = vpack.c.b16 %v995, %v994
      %v1001 = vsel %vm388, %v978, 0
      %v1004 = vsel %vm388, %v979, 0
      %v1007 = vsel %vm388, %v980, 0
      %v1010 = vsel %vm388, %v981, 0
      %v1013 = vsel %vm388, %v982, 0
      %1015 = vmatprep.subr.bf16.mxu0 0
      %1016 = vmatpush1.bf16.msra.mxu0 %v996
      %1017 = vmatprep.subr.bf16.mxu0 0
      %1018 = vmatpush1.bf16.msra.mxu0 %v997
      %1019 = vmatprep.subr.bf16.mxu0 0
      %1020 = vmatpush1.bf16.msra.mxu0 0
      %1021 = vmatprep.subr.bf16.mxu0 0
      %1022 = vmatpush1.bf16.msra.mxu0 0
      %1023 = vmatprep.subr.bf16.mxu0 0
      %1024 = vmatpush1.bf16.msra.mxu0 0
      %1025 = vmatprep.subr.bf16.mxu0 0
      %1026 = vmatpush1.bf16.msra.mxu0 0
      %1027 = vmatprep.subr.bf16.mxu0 0
      %1028 = vmatpush1.bf16.msra.mxu0 0
      %1029 = vmatprep.subr.bf16.mxu0 0
      %1030 = vmatpush1.bf16.msra.mxu0 0
      %1031 = vmatprep.subr.bf16.mxu0 0
      %1032 = vmatpush1.bf16.msra.mxu0 0
      %1033 = vmatprep.subr.bf16.mxu0 0
      %1034 = vmatpush1.bf16.msra.mxu0 0
      %1035 = vmatprep.subr.bf16.mxu0 0
      %1036 = vmatpush1.bf16.msra.mxu0 0
      %1037 = vmatprep.subr.bf16.mxu0 0
      %1038 = vmatpush1.bf16.msra.mxu0 0
      %1039 = vmatprep.subr.bf16.mxu0 0
      %1040 = vmatpush1.bf16.msra.mxu0 0
      %1041 = vmatprep.subr.bf16.mxu0 0
      %1042 = vmatpush1.bf16.msra.mxu0 0
      %1043 = vmatprep.subr.bf16.mxu0 0
      %1044 = vmatpush1.bf16.msra.mxu0 0
      %1045 = vmatprep.subr.bf16.mxu0 0
      %1046 = vmatpush1.bf16.msra.mxu0 0
      %1047 = vmatprep.mubr.bf16.mxu0 0
      %1048 = vmatmul.mubr.bf16.gmra.mrb[0].mxu0 %v1001
      %v1049 = vpop.f32.mrb[0].mxu0
      %v1050 = vadd.f32 0.0, %v1049
      %v1051 = vpop.f32.mrb[0].mxu0
      %v1052 = vpop.f32.mrb[0].mxu0
      %v1053 = vadd.f32 0.0, %v1052
      %v1054 = vpop.f32.mrb[0].mxu0
      %1055 = vmatprep.mubr.bf16.mxu0 0
      %1056 = vmatmul.mubr.bf16.gmra.mrb[0].mxu0 %v1004
      %v1057 = vpop.f32.mrb[0].mxu0
      %v1058 = vadd.f32 0.0, %v1057
      %v1059 = vpop.f32.mrb[0].mxu0
      %v1060 = vpop.f32.mrb[0].mxu0
      %v1061 = vadd.f32 0.0, %v1060
      %v1062 = vpop.f32.mrb[0].mxu0
      %1063 = vmatprep.mubr.bf16.mxu0 0
      %1064 = vmatmul.mubr.bf16.gmra.mrb[0].mxu0 %v1007
      %v1065 = vpop.f32.mrb[0].mxu0
      %v1066 = vadd.f32 0.0, %v1065
      %v1067 = vpop.f32.mrb[0].mxu0
      %v1068 = vpop.f32.mrb[0].mxu0
      %v1069 = vadd.f32 0.0, %v1068
      %v1070 = vpop.f32.mrb[0].mxu0
      %1071 = vmatprep.mubr.bf16.mxu0 0
      %1072 = vmatmul.mubr.bf16.gmra.mrb[0].mxu0 %v1010
      %v1073 = vpop.f32.mrb[0].mxu0
      %v1074 = vadd.f32 0.0, %v1073
      %v1075 = vpop.f32.mrb[0].mxu0
      %v1076 = vpop.f32.mrb[0].mxu0
      %v1077 = vadd.f32 0.0, %v1076
      %v1078 = vpop.f32.mrb[0].mxu0
      %1079 = vmatprep.mubr.bf16.mxu0 0
      %1080 = vmatmul.mubr.bf16.gmra.mrb[0].mxu0 %v1013
      %v1081 = vpop.f32.mrb[0].mxu0
      %v1082 = vadd.f32 0.0, %v1081
      %v1083 = vpop.f32.mrb[0].mxu0
      %v1084 = vpop.f32.mrb[0].mxu0
      %v1085 = vadd.f32 0.0, %v1084
      %v1086 = vpop.f32.mrb[0].mxu0
      %1087 = vdwg.mxu0
      %v1088 = vadd.f32 %v958, %v1050
      %v1089 = vadd.f32 %v959, %v1053
      %v1090 = vadd.f32 %v960, %v1058
      %v1091 = vadd.f32 %v961, %v1061
      %v1092 = vadd.f32 %v962, %v1066
      %v1093 = vadd.f32 %v963, %v1069
      %v1094 = vadd.f32 %v964, %v1074
      %v1095 = vadd.f32 %v965, %v1077
      %v1096 = vadd.f32 %v966, %v1082
      %v1097 = vadd.f32 %v967, %v1085
      %v1098 = vld [vmem:[%s381 + $0xb] sm:$0xff]
      %v1099 = vld [vmem:[%s381 + $0x13] sm:$0xff]
      %v1100 = vld [vmem:[%s381 + $0x1b] sm:$0xff]
      %v1101 = vld [vmem:[%s381 + $0x23] sm:$0xff]
      %v1102 = vld [vmem:[%s381 + $0x2b] sm:$0xff]
      %v1103 = vld [vmem:[%s381 + $0x33] sm:$0xff]
      %v1104 = vld [vmem:[%s381 + $0x3b] sm:$0xff]
      %v1105 = vld [vmem:[%s381 + $0x43] sm:$0xff]
      %v1106 = vld [vmem:[%s381 + $0x4b] sm:$0xff]
      %v1107 = vld [vmem:[%s381 + $0x53] sm:$0xff]
      %v1108 = vpack.c.bf16 %v1099, %v1098
      %v1109 = vpack.c.bf16 %v1101, %v1100
      %v1110 = vpack.c.bf16 %v1103, %v1102
      %v1111 = vpack.c.bf16 %v1105, %v1104
      %v1112 = vpack.c.bf16 %v1107, %v1106
      %s1113 = scalar_lea.vmem %s1, 64
      %v1114 = vld [vmem:[%s1113] sm:$0xf]
      %v1115 = vld [vmem:[%s1113 + $0x4] sm:$0xf]
      %v1116 = vld [vmem:[%s1113 + $0x8] sm:$0xf]
      %v1117 = vld [vmem:[%s1113 + $0xc] sm:$0xf]
      %v1122 = vunpack.c.l.b16 %v1114
      %v1123 = vunpack.c.l.b16 %v1115
      %v1124 = vunpack.c.l.b16 %v1116
      %v1125 = vunpack.c.l.b16 %v1117
      %v1126 = vpack.c.b16 %v1123, %v1122
      %v1127 = vpack.c.b16 %v1125, %v1124
      %v1131 = vsel %vm388, %v1108, 0
      %v1134 = vsel %vm388, %v1109, 0
      %v1137 = vsel %vm388, %v1110, 0
      %v1140 = vsel %vm388, %v1111, 0
      %v1143 = vsel %vm388, %v1112, 0
      %1145 = vmatprep.subr.bf16.mxu0 0
      %1146 = vmatpush1.bf16.msra.mxu0 %v1126
      %1147 = vmatprep.subr.bf16.mxu0 0
      %1148 = vmatpush1.bf16.msra.mxu0 %v1127
      %1149 = vmatprep.subr.bf16.mxu0 0
      %1150 = vmatpush1.bf16.msra.mxu0 0
      %1151 = vmatprep.subr.bf16.mxu0 0
      %1152 = vmatpush1.bf16.msra.mxu0 0
      %1153 = vmatprep.subr.bf16.mxu0 0
      %1154 = vmatpush1.bf16.msra.mxu0 0
      %1155 = vmatprep.subr.bf16.mxu0 0
      %1156 = vmatpush1.bf16.msra.mxu0 0
      %1157 = vmatprep.subr.bf16.mxu0 0
      %1158 = vmatpush1.bf16.msra.mxu0 0
      %1159 = vmatprep.subr.bf16.mxu0 0
      %1160 = vmatpush1.bf16.msra.mxu0 0
      %1161 = vmatprep.subr.bf16.mxu0 0
      %1162 = vmatpush1.bf16.msra.mxu0 0
      %1163 = vmatprep.subr.bf16.mxu0 0
      %1164 = vmatpush1.bf16.msra.mxu0 0
      %1165 = vmatprep.subr.bf16.mxu0 0
      %1166 = vmatpush1.bf16.msra.mxu0 0
      %1167 = vmatprep.subr.bf16.mxu0 0
      %1168 = vmatpush1.bf16.msra.mxu0 0
      %1169 = vmatprep.subr.bf16.mxu0 0
      %1170 = vmatpush1.bf16.msra.mxu0 0
      %1171 = vmatprep.subr.bf16.mxu0 0
      %1172 = vmatpush1.bf16.msra.mxu0 0
      %1173 = vmatprep.subr.bf16.mxu0 0
      %1174 = vmatpush1.bf16.msra.mxu0 0
      %1175 = vmatprep.subr.bf16.mxu0 0
      %1176 = vmatpush1.bf16.msra.mxu0 0
      %1177 = vmatprep.mubr.bf16.mxu0 0
      %1178 = vmatmul.mubr.bf16.gmra.mrb[0].mxu0 %v1131
      %v1179 = vpop.f32.mrb[0].mxu0
      %v1180 = vadd.f32 0.0, %v1179
      %v1181 = vpop.f32.mrb[0].mxu0
      %v1182 = vpop.f32.mrb[0].mxu0
      %v1183 = vadd.f32 0.0, %v1182
      %v1184 = vpop.f32.mrb[0].mxu0
      %1185 = vmatprep.mubr.bf16.mxu0 0
      %1186 = vmatmul.mubr.bf16.gmra.mrb[0].mxu0 %v1134
      %v1187 = vpop.f32.mrb[0].mxu0
      %v1188 = vadd.f32 0.0, %v1187
      %v1189 = vpop.f32.mrb[0].mxu0
      %v1190 = vpop.f32.mrb[0].mxu0
      %v1191 = vadd.f32 0.0, %v1190
      %v1192 = vpop.f32.mrb[0].mxu0
      %1193 = vmatprep.mubr.bf16.mxu0 0
      %1194 = vmatmul.mubr.bf16.gmra.mrb[0].mxu0 %v1137
      %v1195 = vpop.f32.mrb[0].mxu0
      %v1196 = vadd.f32 0.0, %v1195
      %v1197 = vpop.f32.mrb[0].mxu0
      %v1198 = vpop.f32.mrb[0].mxu0
      %v1199 = vadd.f32 0.0, %v1198
      %v1200 = vpop.f32.mrb[0].mxu0
      %1201 = vmatprep.mubr.bf16.mxu0 0
      %1202 = vmatmul.mubr.bf16.gmra.mrb[0].mxu0 %v1140
      %v1203 = vpop.f32.mrb[0].mxu0
      %v1204 = vadd.f32 0.0, %v1203
      %v1205 = vpop.f32.mrb[0].mxu0
      %v1206 = vpop.f32.mrb[0].mxu0
      %v1207 = vadd.f32 0.0, %v1206
      %v1208 = vpop.f32.mrb[0].mxu0
      %1209 = vmatprep.mubr.bf16.mxu0 0
      %1210 = vmatmul.mubr.bf16.gmra.mrb[0].mxu0 %v1143
      %v1211 = vpop.f32.mrb[0].mxu0
      %v1212 = vadd.f32 0.0, %v1211
      %v1213 = vpop.f32.mrb[0].mxu0
      %v1214 = vpop.f32.mrb[0].mxu0
      %v1215 = vadd.f32 0.0, %v1214
      %v1216 = vpop.f32.mrb[0].mxu0
      %1217 = vdwg.mxu0
      %v1218 = vadd.f32 %v1088, %v1180
      %v1219 = vadd.f32 %v1089, %v1183
      %v1220 = vadd.f32 %v1090, %v1188
      %v1221 = vadd.f32 %v1091, %v1191
      %v1222 = vadd.f32 %v1092, %v1196
      %v1223 = vadd.f32 %v1093, %v1199
      %v1224 = vadd.f32 %v1094, %v1204
      %v1225 = vadd.f32 %v1095, %v1207
      %v1226 = vadd.f32 %v1096, %v1212
      %v1227 = vadd.f32 %v1097, %v1215
      %v1228 = vld [vmem:[%s381 + $0xc] sm:$0xff]
      %v1229 = vld [vmem:[%s381 + $0x14] sm:$0xff]
      %v1230 = vld [vmem:[%s381 + $0x1c] sm:$0xff]
      %v1231 = vld [vmem:[%s381 + $0x24] sm:$0xff]
      %v1232 = vld [vmem:[%s381 + $0x2c] sm:$0xff]
      %v1233 = vld [vmem:[%s381 + $0x34] sm:$0xff]
      %v1234 = vld [vmem:[%s381 + $0x3c] sm:$0xff]
      %v1235 = vld [vmem:[%s381 + $0x44] sm:$0xff]
      %v1236 = vld [vmem:[%s381 + $0x4c] sm:$0xff]
      %v1237 = vld [vmem:[%s381 + $0x54] sm:$0xff]
      %v1238 = vpack.c.bf16 %v1229, %v1228
      %v1239 = vpack.c.bf16 %v1231, %v1230
      %v1240 = vpack.c.bf16 %v1233, %v1232
      %v1241 = vpack.c.bf16 %v1235, %v1234
      %v1242 = vpack.c.bf16 %v1237, %v1236
      %s1243 = scalar_lea.vmem %s1, 80
      %v1244 = vld [vmem:[%s1243] sm:$0xf]
      %v1245 = vld [vmem:[%s1243 + $0x4] sm:$0xf]
      %v1246 = vld [vmem:[%s1243 + $0x8] sm:$0xf]
      %v1247 = vld [vmem:[%s1243 + $0xc] sm:$0xf]
      %v1252 = vunpack.c.l.b16 %v1244
      %v1253 = vunpack.c.l.b16 %v1245
      %v1254 = vunpack.c.l.b16 %v1246
      %v1255 = vunpack.c.l.b16 %v1247
      %v1256 = vpack.c.b16 %v1253, %v1252
      %v1257 = vpack.c.b16 %v1255, %v1254
      %v1261 = vsel %vm388, %v1238, 0
      %v1264 = vsel %vm388, %v1239, 0
      %v1267 = vsel %vm388, %v1240, 0
      %v1270 = vsel %vm388, %v1241, 0
      %v1273 = vsel %vm388, %v1242, 0
      %1275 = vmatprep.subr.bf16.mxu0 0
      %1276 = vmatpush1.bf16.msra.mxu0 %v1256
      %1277 = vmatprep.subr.bf16.mxu0 0
      %1278 = vmatpush1.bf16.msra.mxu0 %v1257
      %1279 = vmatprep.subr.bf16.mxu0 0
      %1280 = vmatpush1.bf16.msra.mxu0 0
      %1281 = vmatprep.subr.bf16.mxu0 0
      %1282 = vmatpush1.bf16.msra.mxu0 0
      %1283 = vmatprep.subr.bf16.mxu0 0
      %1284 = vmatpush1.bf16.msra.mxu0 0
      %1285 = vmatprep.subr.bf16.mxu0 0
      %1286 = vmatpush1.bf16.msra.mxu0 0
      %1287 = vmatprep.subr.bf16.mxu0 0
      %1288 = vmatpush1.bf16.msra.mxu0 0
      %1289 = vmatprep.subr.bf16.mxu0 0
      %1290 = vmatpush1.bf16.msra.mxu0 0
      %1291 = vmatprep.subr.bf16.mxu0 0
      %1292 = vmatpush1.bf16.msra.mxu0 0
      %1293 = vmatprep.subr.bf16.mxu0 0
      %1294 = vmatpush1.bf16.msra.mxu0 0
      %1295 = vmatprep.subr.bf16.mxu0 0
      %1296 = vmatpush1.bf16.msra.mxu0 0
      %1297 = vmatprep.subr.bf16.mxu0 0
      %1298 = vmatpush1.bf16.msra.mxu0 0
      %1299 = vmatprep.subr.bf16.mxu0 0
      %1300 = vmatpush1.bf16.msra.mxu0 0
      %1301 = vmatprep.subr.bf16.mxu0 0
      %1302 = vmatpush1.bf16.msra.mxu0 0
      %1303 = vmatprep.subr.bf16.mxu0 0
      %1304 = vmatpush1.bf16.msra.mxu0 0
      %1305 = vmatprep.subr.bf16.mxu0 0
      %1306 = vmatpush1.bf16.msra.mxu0 0
      %1307 = vmatprep.mubr.bf16.mxu0 0
      %1308 = vmatmul.mubr.bf16.gmra.mrb[0].mxu0 %v1261
      %v1309 = vpop.f32.mrb[0].mxu0
      %v1310 = vadd.f32 0.0, %v1309
      %v1311 = vpop.f32.mrb[0].mxu0
      %v1312 = vpop.f32.mrb[0].mxu0
      %v1313 = vadd.f32 0.0, %v1312
      %v1314 = vpop.f32.mrb[0].mxu0
      %1315 = vmatprep.mubr.bf16.mxu0 0
      %1316 = vmatmul.mubr.bf16.gmra.mrb[0].mxu0 %v1264
      %v1317 = vpop.f32.mrb[0].mxu0
      %v1318 = vadd.f32 0.0, %v1317
      %v1319 = vpop.f32.mrb[0].mxu0
      %v1320 = vpop.f32.mrb[0].mxu0
      %v1321 = vadd.f32 0.0, %v1320
      %v1322 = vpop.f32.mrb[0].mxu0
      %1323 = vmatprep.mubr.bf16.mxu0 0
      %1324 = vmatmul.mubr.bf16.gmra.mrb[0].mxu0 %v1267
      %v1325 = vpop.f32.mrb[0].mxu0
      %v1326 = vadd.f32 0.0, %v1325
      %v1327 = vpop.f32.mrb[0].mxu0
      %v1328 = vpop.f32.mrb[0].mxu0
      %v1329 = vadd.f32 0.0, %v1328
      %v1330 = vpop.f32.mrb[0].mxu0
      %1331 = vmatprep.mubr.bf16.mxu0 0
      %1332 = vmatmul.mubr.bf16.gmra.mrb[0].mxu0 %v1270
      %v1333 = vpop.f32.mrb[0].mxu0
      %v1334 = vadd.f32 0.0, %v1333
      %v1335 = vpop.f32.mrb[0].mxu0
      %v1336 = vpop.f32.mrb[0].mxu0
      %v1337 = vadd.f32 0.0, %v1336
      %v1338 = vpop.f32.mrb[0].mxu0
      %1339 = vmatprep.mubr.bf16.mxu0 0
      %1340 = vmatmul.mubr.bf16.gmra.mrb[0].mxu0 %v1273
      %v1341 = vpop.f32.mrb[0].mxu0
      %v1342 = vadd.f32 0.0, %v1341
      %v1343 = vpop.f32.mrb[0].mxu0
      %v1344 = vpop.f32.mrb[0].mxu0
      %v1345 = vadd.f32 0.0, %v1344
      %v1346 = vpop.f32.mrb[0].mxu0
      %1347 = vdwg.mxu0
      %v1348 = vadd.f32 %v1218, %v1310
      %v1349 = vadd.f32 %v1219, %v1313
      %v1350 = vadd.f32 %v1220, %v1318
      %v1351 = vadd.f32 %v1221, %v1321
      %v1352 = vadd.f32 %v1222, %v1326
      %v1353 = vadd.f32 %v1223, %v1329
      %v1354 = vadd.f32 %v1224, %v1334
      %v1355 = vadd.f32 %v1225, %v1337
      %v1356 = vadd.f32 %v1226, %v1342
      %v1357 = vadd.f32 %v1227, %v1345
      %v1358 = vld [vmem:[%s381 + $0x14] sm:$0xff]
      %v1359 = vld [vmem:[%s381 + $0x1c] sm:$0xff]
      %v1360 = vld [vmem:[%s381 + $0x24] sm:$0xff]
      %v1361 = vld [vmem:[%s381 + $0x2c] sm:$0xff]
      %v1362 = vld [vmem:[%s381 + $0x34] sm:$0xff]
      %v1363 = vld [vmem:[%s381 + $0x3c] sm:$0xff]
      %v1364 = vld [vmem:[%s381 + $0x44] sm:$0xff]
      %v1365 = vld [vmem:[%s381 + $0x4c] sm:$0xff]
      %v1366 = vld [vmem:[%s381 + $0x54] sm:$0xff]
      %v1367 = vld [vmem:[%s381 + $0x5c] sm:$0xff]
      %v1368 = vpack.c.bf16 %v1359, %v1358
      %v1369 = vpack.c.bf16 %v1361, %v1360
      %v1370 = vpack.c.bf16 %v1363, %v1362
      %v1371 = vpack.c.bf16 %v1365, %v1364
      %v1372 = vpack.c.bf16 %v1367, %v1366
      %s1373 = scalar_lea.vmem %s1, 96
      %v1374 = vld [vmem:[%s1373] sm:$0xf]
      %v1375 = vld [vmem:[%s1373 + $0x4] sm:$0xf]
      %v1376 = vld [vmem:[%s1373 + $0x8] sm:$0xf]
      %v1377 = vld [vmem:[%s1373 + $0xc] sm:$0xf]
      %v1382 = vunpack.c.l.b16 %v1374
      %v1383 = vunpack.c.l.b16 %v1375
      %v1384 = vunpack.c.l.b16 %v1376
      %v1385 = vunpack.c.l.b16 %v1377
      %v1386 = vpack.c.b16 %v1383, %v1382
      %v1387 = vpack.c.b16 %v1385, %v1384
      %v1391 = vsel %vm388, %v1368, 0
      %v1394 = vsel %vm388, %v1369, 0
      %v1397 = vsel %vm388, %v1370, 0
      %v1400 = vsel %vm388, %v1371, 0
      %v1403 = vsel %vm388, %v1372, 0
      %1405 = vmatprep.subr.bf16.mxu0 0
      %1406 = vmatpush1.bf16.msra.mxu0 %v1386
      %1407 = vmatprep.subr.bf16.mxu0 0
      %1408 = vmatpush1.bf16.msra.mxu0 %v1387
      %1409 = vmatprep.subr.bf16.mxu0 0
      %1410 = vmatpush1.bf16.msra.mxu0 0
      %1411 = vmatprep.subr.bf16.mxu0 0
      %1412 = vmatpush1.bf16.msra.mxu0 0
      %1413 = vmatprep.subr.bf16.mxu0 0
      %1414 = vmatpush1.bf16.msra.mxu0 0
      %1415 = vmatprep.subr.bf16.mxu0 0
      %1416 = vmatpush1.bf16.msra.mxu0 0
      %1417 = vmatprep.subr.bf16.mxu0 0
      %1418 = vmatpush1.bf16.msra.mxu0 0
      %1419 = vmatprep.subr.bf16.mxu0 0
      %1420 = vmatpush1.bf16.msra.mxu0 0
      %1421 = vmatprep.subr.bf16.mxu0 0
      %1422 = vmatpush1.bf16.msra.mxu0 0
      %1423 = vmatprep.subr.bf16.mxu0 0
      %1424 = vmatpush1.bf16.msra.mxu0 0
      %1425 = vmatprep.subr.bf16.mxu0 0
      %1426 = vmatpush1.bf16.msra.mxu0 0
      %1427 = vmatprep.subr.bf16.mxu0 0
      %1428 = vmatpush1.bf16.msra.mxu0 0
      %1429 = vmatprep.subr.bf16.mxu0 0
      %1430 = vmatpush1.bf16.msra.mxu0 0
      %1431 = vmatprep.subr.bf16.mxu0 0
      %1432 = vmatpush1.bf16.msra.mxu0 0
      %1433 = vmatprep.subr.bf16.mxu0 0
      %1434 = vmatpush1.bf16.msra.mxu0 0
      %1435 = vmatprep.subr.bf16.mxu0 0
      %1436 = vmatpush1.bf16.msra.mxu0 0
      %1437 = vmatprep.mubr.bf16.mxu0 0
      %1438 = vmatmul.mubr.bf16.gmra.mrb[0].mxu0 %v1391
      %v1439 = vpop.f32.mrb[0].mxu0
      %v1440 = vadd.f32 0.0, %v1439
      %v1441 = vpop.f32.mrb[0].mxu0
      %v1442 = vpop.f32.mrb[0].mxu0
      %v1443 = vadd.f32 0.0, %v1442
      %v1444 = vpop.f32.mrb[0].mxu0
      %1445 = vmatprep.mubr.bf16.mxu0 0
      %1446 = vmatmul.mubr.bf16.gmra.mrb[0].mxu0 %v1394
      %v1447 = vpop.f32.mrb[0].mxu0
      %v1448 = vadd.f32 0.0, %v1447
      %v1449 = vpop.f32.mrb[0].mxu0
      %v1450 = vpop.f32.mrb[0].mxu0
      %v1451 = vadd.f32 0.0, %v1450
      %v1452 = vpop.f32.mrb[0].mxu0
      %1453 = vmatprep.mubr.bf16.mxu0 0
      %1454 = vmatmul.mubr.bf16.gmra.mrb[0].mxu0 %v1397
      %v1455 = vpop.f32.mrb[0].mxu0
      %v1456 = vadd.f32 0.0, %v1455
      %v1457 = vpop.f32.mrb[0].mxu0
      %v1458 = vpop.f32.mrb[0].mxu0
      %v1459 = vadd.f32 0.0, %v1458
      %v1460 = vpop.f32.mrb[0].mxu0
      %1461 = vmatprep.mubr.bf16.mxu0 0
      %1462 = vmatmul.mubr.bf16.gmra.mrb[0].mxu0 %v1400
      %v1463 = vpop.f32.mrb[0].mxu0
      %v1464 = vadd.f32 0.0, %v1463
      %v1465 = vpop.f32.mrb[0].mxu0
      %v1466 = vpop.f32.mrb[0].mxu0
      %v1467 = vadd.f32 0.0, %v1466
      %v1468 = vpop.f32.mrb[0].mxu0
      %1469 = vmatprep.mubr.bf16.mxu0 0
      %1470 = vmatmul.mubr.bf16.gmra.mrb[0].mxu0 %v1403
      %v1471 = vpop.f32.mrb[0].mxu0
      %v1472 = vadd.f32 0.0, %v1471
      %v1473 = vpop.f32.mrb[0].mxu0
      %v1474 = vpop.f32.mrb[0].mxu0
      %v1475 = vadd.f32 0.0, %v1474
      %v1476 = vpop.f32.mrb[0].mxu0
      %1477 = vdwg.mxu0
      %v1478 = vadd.f32 %v1348, %v1440
      %v1479 = vadd.f32 %v1349, %v1443
      %v1480 = vadd.f32 %v1350, %v1448
      %v1481 = vadd.f32 %v1351, %v1451
      %v1482 = vadd.f32 %v1352, %v1456
      %v1483 = vadd.f32 %v1353, %v1459
      %v1484 = vadd.f32 %v1354, %v1464
      %v1485 = vadd.f32 %v1355, %v1467
      %v1486 = vadd.f32 %v1356, %v1472
      %v1487 = vadd.f32 %v1357, %v1475
      %v1488 = vld [vmem:[%s381 + $0x15] sm:$0xff]
      %v1489 = vld [vmem:[%s381 + $0x1d] sm:$0xff]
      %v1490 = vld [vmem:[%s381 + $0x25] sm:$0xff]
      %v1491 = vld [vmem:[%s381 + $0x2d] sm:$0xff]
      %v1492 = vld [vmem:[%s381 + $0x35] sm:$0xff]
      %v1493 = vld [vmem:[%s381 + $0x3d] sm:$0xff]
      %v1494 = vld [vmem:[%s381 + $0x45] sm:$0xff]
      %v1495 = vld [vmem:[%s381 + $0x4d] sm:$0xff]
      %v1496 = vld [vmem:[%s381 + $0x55] sm:$0xff]
      %v1497 = vld [vmem:[%s381 + $0x5d] sm:$0xff]
      %v1498 = vpack.c.bf16 %v1489, %v1488
      %v1499 = vpack.c.bf16 %v1491, %v1490
      %v1500 = vpack.c.bf16 %v1493, %v1492
      %v1501 = vpack.c.bf16 %v1495, %v1494
      %v1502 = vpack.c.bf16 %v1497, %v1496
      %s1503 = scalar_lea.vmem %s1, 112
      %v1504 = vld [vmem:[%s1503] sm:$0xf]
      %v1505 = vld [vmem:[%s1503 + $0x4] sm:$0xf]
      %v1506 = vld [vmem:[%s1503 + $0x8] sm:$0xf]
      %v1507 = vld [vmem:[%s1503 + $0xc] sm:$0xf]
      %v1512 = vunpack.c.l.b16 %v1504
      %v1513 = vunpack.c.l.b16 %v1505
      %v1514 = vunpack.c.l.b16 %v1506
      %v1515 = vunpack.c.l.b16 %v1507
      %v1516 = vpack.c.b16 %v1513, %v1512
      %v1517 = vpack.c.b16 %v1515, %v1514
      %v1521 = vsel %vm388, %v1498, 0
      %v1524 = vsel %vm388, %v1499, 0
      %v1527 = vsel %vm388, %v1500, 0
      %v1530 = vsel %vm388, %v1501, 0
      %v1533 = vsel %vm388, %v1502, 0
      %1535 = vmatprep.subr.bf16.mxu0 0
      %1536 = vmatpush1.bf16.msra.mxu0 %v1516
      %1537 = vmatprep.subr.bf16.mxu0 0
      %1538 = vmatpush1.bf16.msra.mxu0 %v1517
      %1539 = vmatprep.subr.bf16.mxu0 0
      %1540 = vmatpush1.bf16.msra.mxu0 0
      %1541 = vmatprep.subr.bf16.mxu0 0
      %1542 = vmatpush1.bf16.msra.mxu0 0
      %1543 = vmatprep.subr.bf16.mxu0 0
      %1544 = vmatpush1.bf16.msra.mxu0 0
      %1545 = vmatprep.subr.bf16.mxu0 0
      %1546 = vmatpush1.bf16.msra.mxu0 0
      %1547 = vmatprep.subr.bf16.mxu0 0
      %1548 = vmatpush1.bf16.msra.mxu0 0
      %1549 = vmatprep.subr.bf16.mxu0 0
      %1550 = vmatpush1.bf16.msra.mxu0 0
      %1551 = vmatprep.subr.bf16.mxu0 0
      %1552 = vmatpush1.bf16.msra.mxu0 0
      %1553 = vmatprep.subr.bf16.mxu0 0
      %1554 = vmatpush1.bf16.msra.mxu0 0
      %1555 = vmatprep.subr.bf16.mxu0 0
      %1556 = vmatpush1.bf16.msra.mxu0 0
      %1557 = vmatprep.subr.bf16.mxu0 0
      %1558 = vmatpush1.bf16.msra.mxu0 0
      %1559 = vmatprep.subr.bf16.mxu0 0
      %1560 = vmatpush1.bf16.msra.mxu0 0
      %1561 = vmatprep.subr.bf16.mxu0 0
      %1562 = vmatpush1.bf16.msra.mxu0 0
      %1563 = vmatprep.subr.bf16.mxu0 0
      %1564 = vmatpush1.bf16.msra.mxu0 0
      %1565 = vmatprep.subr.bf16.mxu0 0
      %1566 = vmatpush1.bf16.msra.mxu0 0
      %1567 = vmatprep.mubr.bf16.mxu0 0
      %1568 = vmatmul.mubr.bf16.gmra.mrb[0].mxu0 %v1521
      %v1569 = vpop.f32.mrb[0].mxu0
      %v1570 = vadd.f32 0.0, %v1569
      %v1571 = vpop.f32.mrb[0].mxu0
      %v1572 = vpop.f32.mrb[0].mxu0
      %v1573 = vadd.f32 0.0, %v1572
      %v1574 = vpop.f32.mrb[0].mxu0
      %1575 = vmatprep.mubr.bf16.mxu0 0
      %1576 = vmatmul.mubr.bf16.gmra.mrb[0].mxu0 %v1524
      %v1577 = vpop.f32.mrb[0].mxu0
      %v1578 = vadd.f32 0.0, %v1577
      %v1579 = vpop.f32.mrb[0].mxu0
      %v1580 = vpop.f32.mrb[0].mxu0
      %v1581 = vadd.f32 0.0, %v1580
      %v1582 = vpop.f32.mrb[0].mxu0
      %1583 = vmatprep.mubr.bf16.mxu0 0
      %1584 = vmatmul.mubr.bf16.gmra.mrb[0].mxu0 %v1527
      %v1585 = vpop.f32.mrb[0].mxu0
      %v1586 = vadd.f32 0.0, %v1585
      %v1587 = vpop.f32.mrb[0].mxu0
      %v1588 = vpop.f32.mrb[0].mxu0
      %v1589 = vadd.f32 0.0, %v1588
      %v1590 = vpop.f32.mrb[0].mxu0
      %1591 = vmatprep.mubr.bf16.mxu0 0
      %1592 = vmatmul.mubr.bf16.gmra.mrb[0].mxu0 %v1530
      %v1593 = vpop.f32.mrb[0].mxu0
      %v1594 = vadd.f32 0.0, %v1593
      %v1595 = vpop.f32.mrb[0].mxu0
      %v1596 = vpop.f32.mrb[0].mxu0
      %v1597 = vadd.f32 0.0, %v1596
      %v1598 = vpop.f32.mrb[0].mxu0
      %1599 = vmatprep.mubr.bf16.mxu0 0
      %1600 = vmatmul.mubr.bf16.gmra.mrb[0].mxu0 %v1533
      %v1601 = vpop.f32.mrb[0].mxu0
      %v1602 = vadd.f32 0.0, %v1601
      %v1603 = vpop.f32.mrb[0].mxu0
      %v1604 = vpop.f32.mrb[0].mxu0
      %v1605 = vadd.f32 0.0, %v1604
      %v1606 = vpop.f32.mrb[0].mxu0
      %1607 = vdwg.mxu0
      %v1608 = vadd.f32 %v1478, %v1570
      %v1609 = vadd.f32 %v1479, %v1573
      %v1610 = vadd.f32 %v1480, %v1578
      %v1611 = vadd.f32 %v1481, %v1581
      %v1612 = vadd.f32 %v1482, %v1586
      %v1613 = vadd.f32 %v1483, %v1589
      %v1614 = vadd.f32 %v1484, %v1594
      %v1615 = vadd.f32 %v1485, %v1597
      %v1616 = vadd.f32 %v1486, %v1602
      %v1617 = vadd.f32 %v1487, %v1605
      %v1618 = vld [vmem:[%s381 + $0x16] sm:$0xff]
      %v1619 = vld [vmem:[%s381 + $0x1e] sm:$0xff]
      %v1620 = vld [vmem:[%s381 + $0x26] sm:$0xff]
      %v1621 = vld [vmem:[%s381 + $0x2e] sm:$0xff]
      %v1622 = vld [vmem:[%s381 + $0x36] sm:$0xff]
      %v1623 = vld [vmem:[%s381 + $0x3e] sm:$0xff]
      %v1624 = vld [vmem:[%s381 + $0x46] sm:$0xff]
      %v1625 = vld [vmem:[%s381 + $0x4e] sm:$0xff]
      %v1626 = vld [vmem:[%s381 + $0x56] sm:$0xff]
      %v1627 = vld [vmem:[%s381 + $0x5e] sm:$0xff]
      %v1628 = vpack.c.bf16 %v1619, %v1618
      %v1629 = vpack.c.bf16 %v1621, %v1620
      %v1630 = vpack.c.bf16 %v1623, %v1622
      %v1631 = vpack.c.bf16 %v1625, %v1624
      %v1632 = vpack.c.bf16 %v1627, %v1626
      %s1633 = scalar_lea.vmem %s1, 128
      %v1634 = vld [vmem:[%s1633] sm:$0xf]
      %v1635 = vld [vmem:[%s1633 + $0x4] sm:$0xf]
      %v1636 = vld [vmem:[%s1633 + $0x8] sm:$0xf]
      %v1637 = vld [vmem:[%s1633 + $0xc] sm:$0xf]
      %v1642 = vunpack.c.l.b16 %v1634
      %v1643 = vunpack.c.l.b16 %v1635
      %v1644 = vunpack.c.l.b16 %v1636
      %v1645 = vunpack.c.l.b16 %v1637
      %v1646 = vpack.c.b16 %v1643, %v1642
      %v1647 = vpack.c.b16 %v1645, %v1644
      %v1651 = vsel %vm388, %v1628, 0
      %v1654 = vsel %vm388, %v1629, 0
      %v1657 = vsel %vm388, %v1630, 0
      %v1660 = vsel %vm388, %v1631, 0
      %v1663 = vsel %vm388, %v1632, 0
      %1665 = vmatprep.subr.bf16.mxu0 0
      %1666 = vmatpush1.bf16.msra.mxu0 %v1646
      %1667 = vmatprep.subr.bf16.mxu0 0
      %1668 = vmatpush1.bf16.msra.mxu0 %v1647
      %1669 = vmatprep.subr.bf16.mxu0 0
      %1670 = vmatpush1.bf16.msra.mxu0 0
      %1671 = vmatprep.subr.bf16.mxu0 0
      %1672 = vmatpush1.bf16.msra.mxu0 0
      %1673 = vmatprep.subr.bf16.mxu0 0
      %1674 = vmatpush1.bf16.msra.mxu0 0
      %1675 = vmatprep.subr.bf16.mxu0 0
      %1676 = vmatpush1.bf16.msra.mxu0 0
      %1677 = vmatprep.subr.bf16.mxu0 0
      %1678 = vmatpush1.bf16.msra.mxu0 0
      %1679 = vmatprep.subr.bf16.mxu0 0
      %1680 = vmatpush1.bf16.msra.mxu0 0
      %1681 = vmatprep.subr.bf16.mxu0 0
      %1682 = vmatpush1.bf16.msra.mxu0 0
      %1683 = vmatprep.subr.bf16.mxu0 0
      %1684 = vmatpush1.bf16.msra.mxu0 0
      %1685 = vmatprep.subr.bf16.mxu0 0
      %1686 = vmatpush1.bf16.msra.mxu0 0
      %1687 = vmatprep.subr.bf16.mxu0 0
      %1688 = vmatpush1.bf16.msra.mxu0 0
      %1689 = vmatprep.subr.bf16.mxu0 0
      %1690 = vmatpush1.bf16.msra.mxu0 0
      %1691 = vmatprep.subr.bf16.mxu0 0
      %1692 = vmatpush1.bf16.msra.mxu0 0
      %1693 = vmatprep.subr.bf16.mxu0 0
      %1694 = vmatpush1.bf16.msra.mxu0 0
      %1695 = vmatprep.subr.bf16.mxu0 0
      %1696 = vmatpush1.bf16.msra.mxu0 0
      %1697 = vmatprep.mubr.bf16.mxu0 0
      %1698 = vmatmul.mubr.bf16.gmra.mrb[0].mxu0 %v1651
      %v1699 = vpop.f32.mrb[0].mxu0
      %v1700 = vadd.f32 0.0, %v1699
      %v1701 = vpop.f32.mrb[0].mxu0
      %v1702 = vpop.f32.mrb[0].mxu0
      %v1703 = vadd.f32 0.0, %v1702
      %v1704 = vpop.f32.mrb[0].mxu0
      %1705 = vmatprep.mubr.bf16.mxu0 0
      %1706 = vmatmul.mubr.bf16.gmra.mrb[0].mxu0 %v1654
      %v1707 = vpop.f32.mrb[0].mxu0
      %v1708 = vadd.f32 0.0, %v1707
      %v1709 = vpop.f32.mrb[0].mxu0
      %v1710 = vpop.f32.mrb[0].mxu0
      %v1711 = vadd.f32 0.0, %v1710
      %v1712 = vpop.f32.mrb[0].mxu0
      %1713 = vmatprep.mubr.bf16.mxu0 0
      %1714 = vmatmul.mubr.bf16.gmra.mrb[0].mxu0 %v1657
      %v1715 = vpop.f32.mrb[0].mxu0
      %v1716 = vadd.f32 0.0, %v1715
      %v1717 = vpop.f32.mrb[0].mxu0
      %v1718 = vpop.f32.mrb[0].mxu0
      %v1719 = vadd.f32 0.0, %v1718
      %v1720 = vpop.f32.mrb[0].mxu0
      %1721 = vmatprep.mubr.bf16.mxu0 0
      %1722 = vmatmul.mubr.bf16.gmra.mrb[0].mxu0 %v1660
      %v1723 = vpop.f32.mrb[0].mxu0
      %v1724 = vadd.f32 0.0, %v1723
      %v1725 = vpop.f32.mrb[0].mxu0
      %v1726 = vpop.f32.mrb[0].mxu0
      %v1727 = vadd.f32 0.0, %v1726
      %v1728 = vpop.f32.mrb[0].mxu0
      %1729 = vmatprep.mubr.bf16.mxu0 0
      %1730 = vmatmul.mubr.bf16.gmra.mrb[0].mxu0 %v1663
      %v1731 = vpop.f32.mrb[0].mxu0
      %v1732 = vadd.f32 0.0, %v1731
      %v1733 = vpop.f32.mrb[0].mxu0
      %v1734 = vpop.f32.mrb[0].mxu0
      %v1735 = vadd.f32 0.0, %v1734
      %v1736 = vpop.f32.mrb[0].mxu0
      %1737 = vdwg.mxu0
      %v1738 = vadd.f32 %v1608, %v1700
      %v1739 = vadd.f32 %v1609, %v1703
      %v1740 = vadd.f32 %v1610, %v1708
      %v1741 = vadd.f32 %v1611, %v1711
      %v1742 = vadd.f32 %v1612, %v1716
      %v1743 = vadd.f32 %v1613, %v1719
      %v1744 = vadd.f32 %v1614, %v1724
      %v1745 = vadd.f32 %v1615, %v1727
      %v1746 = vadd.f32 %v1616, %v1732
      %v1747 = vadd.f32 %v1617, %v1735
      %v1748 = vld [vmem:[%s2] sm:$0x1]
      %v1750 = vlaneseq
      %v1751 = vshrl.u32 %v1750, 7
      %v1752 = vsub.s32 0, %v1751
      %v1753 = vrot.slane %v1748, %v1752
      %v1755 = vadd.f32 %v1738, %v1753
      %v1756 = vadd.f32 %v1739, %v1753
      %v1757 = vadd.f32 %v1740, %v1753
      %v1758 = vadd.f32 %v1741, %v1753
      %v1759 = vadd.f32 %v1742, %v1753
      %v1760 = vadd.f32 %v1743, %v1753
      %v1761 = vadd.f32 %v1744, %v1753
      %v1762 = vadd.f32 %v1745, %v1753
      %v1763 = vadd.f32 %v1746, %v1753
      %v1764 = vadd.f32 %v1747, %v1753
      %v1765 = vmax.f32 %v1755, 0.0
      %v1766 = vmax.f32 %v1756, 0.0
      %v1767 = vmax.f32 %v1757, 0.0
      %v1768 = vmax.f32 %v1758, 0.0
      %v1769 = vmax.f32 %v1759, 0.0
      %v1770 = vmax.f32 %v1760, 0.0
      %v1771 = vmax.f32 %v1761, 0.0
      %v1772 = vmax.f32 %v1762, 0.0
      %v1773 = vmax.f32 %v1763, 0.0
      %v1774 = vmax.f32 %v1764, 0.0
      %v1775 = vsel %vm589, 1, 0
      %v1776 = vsel %vm590, 1, 0
      %v1777 = vsel %vm591, 1, 0
      %v1778 = vsel %vm592, 1, 0
      %v1779 = vsel %vm593, 1, 0
      %v1780 = vsel %vm594, 1, 0
      %v1781 = vsel %vm595, 1, 0
      %v1782 = vsel %vm596, 1, 0
      %v1783 = vsel %vm597, 1, 0
      %v1784 = vsel %vm598, 1, 0
      %vm1785 = vcmp.eq.s32.totalorder %v1775, 1
      %vm1786 = vcmp.eq.s32.totalorder %v1776, 1
      %vm1787 = vcmp.eq.s32.totalorder %v1777, 1
      %vm1788 = vcmp.eq.s32.totalorder %v1778, 1
      %vm1789 = vcmp.eq.s32.totalorder %v1779, 1
      %vm1790 = vcmp.eq.s32.totalorder %v1780, 1
      %vm1791 = vcmp.eq.s32.totalorder %v1781, 1
      %vm1792 = vcmp.eq.s32.totalorder %v1782, 1
      %vm1793 = vcmp.eq.s32.totalorder %v1783, 1
      %vm1794 = vcmp.eq.s32.totalorder %v1784, 1
      %v1795 = vsel %vm1785, %v1765, 0.0
      %v1796 = vsel %vm1786, %v1766, 0.0
      %v1797 = vsel %vm1787, %v1767, 0.0
      %v1798 = vsel %vm1788, %v1768, 0.0
      %v1799 = vsel %vm1789, %v1769, 0.0
      %v1800 = vsel %vm1790, %v1770, 0.0
      %v1801 = vsel %vm1791, %v1771, 0.0
      %v1802 = vsel %vm1792, %v1772, 0.0
      %v1803 = vsel %vm1793, %v1773, 0.0
      %v1804 = vsel %vm1794, %v1774, 0.0
      %1805 = vst.msk [vmem:[#allocation2 + $0xb] sm:$0xff] %vm388, %v1795
      %1806 = vst.msk [vmem:[#allocation2 + $0x13] sm:$0xff] %vm388, %v1796
      %1807 = vst.msk [vmem:[#allocation2 + $0x1b] sm:$0xff] %vm388, %v1797
      %1808 = vst.msk [vmem:[#allocation2 + $0x23] sm:$0xff] %vm388, %v1798
      %1809 = vst.msk [vmem:[#allocation2 + $0x2b] sm:$0xff] %vm388, %v1799
      %1810 = vst.msk [vmem:[#allocation2 + $0x33] sm:$0xff] %vm388, %v1800
      %1811 = vst.msk [vmem:[#allocation2 + $0x3b] sm:$0xff] %vm388, %v1801
      %1812 = vst.msk [vmem:[#allocation2 + $0x43] sm:$0xff] %vm388, %v1802
      %1813 = vst.msk [vmem:[#allocation2 + $0x4b] sm:$0xff] %vm388, %v1803
      %1814 = vst.msk [vmem:[#allocation2 + $0x53] sm:$0xff] %vm388, %v1804
      %v1815 = vld [vmem:[#allocation2] sm:$0xff]
      %v1816 = vld [vmem:[#allocation2 + $0x8] sm:$0xff]
      %v1817 = vld [vmem:[#allocation2 + $0x10] sm:$0xff]
      %v1818 = vld [vmem:[#allocation2 + $0x18] sm:$0xff]
      %v1819 = vld [vmem:[#allocation2 + $0x20] sm:$0xff]
      %v1820 = vld [vmem:[#allocation2 + $0x28] sm:$0xff]
      %v1821 = vld [vmem:[#allocation2 + $0x30] sm:$0xff]
      %v1822 = vld [vmem:[#allocation2 + $0x38] sm:$0xff]
      %v1823 = vld [vmem:[#allocation2 + $0x40] sm:$0xff]
      %v1824 = vld [vmem:[#allocation2 + $0x48] sm:$0xff]
      %v1825 = vpack.c.bf16 %v1816, %v1815
      %v1826 = vpack.c.bf16 %v1818, %v1817
      %v1827 = vpack.c.bf16 %v1820, %v1819
      %v1828 = vpack.c.bf16 %v1822, %v1821
      %v1829 = vpack.c.bf16 %v1824, %v1823
      %v1830 = vld [vmem:[%s3] sm:$0xf]
      %v1831 = vld [vmem:[%s3 + $0x4] sm:$0xf]
      %v1832 = vld [vmem:[%s3 + $0x8] sm:$0xf]
      %v1833 = vld [vmem:[%s3 + $0xc] sm:$0xf]
      %v1834 = vld [vmem:[#allocation2 + $0x1] sm:$0xff]
      %v1835 = vld [vmem:[#allocation2 + $0x9] sm:$0xff]
      %v1836 = vld [vmem:[#allocation2 + $0x11] sm:$0xff]
      %v1837 = vld [vmem:[#allocation2 + $0x19] sm:$0xff]
      %v1838 = vld [vmem:[#allocation2 + $0x21] sm:$0xff]
      %v1839 = vld [vmem:[#allocation2 + $0x29] sm:$0xff]
      %v1840 = vld [vmem:[#allocation2 + $0x31] sm:$0xff]
      %v1841 = vld [vmem:[#allocation2 + $0x39] sm:$0xff]
      %v1842 = vld [vmem:[#allocation2 + $0x41] sm:$0xff]
      %v1843 = vld [vmem:[#allocation2 + $0x49] sm:$0xff]
      %v1844 = vpack.c.bf16 %v1835, %v1834
      %v1845 = vpack.c.bf16 %v1837, %v1836
      %v1846 = vpack.c.bf16 %v1839, %v1838
      %v1847 = vpack.c.bf16 %v1841, %v1840
      %v1848 = vpack.c.bf16 %v1843, %v1842
      %s1849 = scalar_lea.vmem %s3, 16
      %v1850 = vld [vmem:[%s1849] sm:$0xf]
      %v1851 = vld [vmem:[%s1849 + $0x4] sm:$0xf]
      %v1852 = vld [vmem:[%s1849 + $0x8] sm:$0xf]
      %v1853 = vld [vmem:[%s1849 + $0xc] sm:$0xf]
      %v1858 = vunpack.c.l.b16 %v1850
      %v1859 = vunpack.c.l.b16 %v1851
      %v1860 = vunpack.c.l.b16 %v1852
      %v1861 = vunpack.c.l.b16 %v1853
      %v1862 = vpack.c.b16 %v1859, %v1858
      %v1863 = vpack.c.b16 %v1861, %v1860
      %v1867 = vsel %vm388, %v1844, 0
      %v1870 = vsel %vm388, %v1845, 0
      %v1873 = vsel %vm388, %v1846, 0
      %v1876 = vsel %vm388, %v1847, 0
      %v1879 = vsel %vm388, %v1848, 0
      %1881 = vmatprep.subr.bf16.mxu0 0
      %1882 = vmatpush1.bf16.msra.mxu0 %v1862
      %1883 = vmatprep.subr.bf16.mxu0 0
      %1884 = vmatpush1.bf16.msra.mxu0 %v1863
      %1885 = vmatprep.subr.bf16.mxu0 0
      %1886 = vmatpush1.bf16.msra.mxu0 0
      %1887 = vmatprep.subr.bf16.mxu0 0
      %1888 = vmatpush1.bf16.msra.mxu0 0
      %1889 = vmatprep.subr.bf16.mxu0 0
      %1890 = vmatpush1.bf16.msra.mxu0 0
      %1891 = vmatprep.subr.bf16.mxu0 0
      %1892 = vmatpush1.bf16.msra.mxu0 0
      %1893 = vmatprep.subr.bf16.mxu0 0
      %1894 = vmatpush1.bf16.msra.mxu0 0
      %1895 = vmatprep.subr.bf16.mxu0 0
      %1896 = vmatpush1.bf16.msra.mxu0 0
      %1897 = vmatprep.subr.bf16.mxu0 0
      %1898 = vmatpush1.bf16.msra.mxu0 0
      %1899 = vmatprep.subr.bf16.mxu0 0
      %1900 = vmatpush1.bf16.msra.mxu0 0
      %1901 = vmatprep.subr.bf16.mxu0 0
      %1902 = vmatpush1.bf16.msra.mxu0 0
      %1903 = vmatprep.subr.bf16.mxu0 0
      %1904 = vmatpush1.bf16.msra.mxu0 0
      %1905 = vmatprep.subr.bf16.mxu0 0
      %1906 = vmatpush1.bf16.msra.mxu0 0
      %1907 = vmatprep.subr.bf16.mxu0 0
      %1908 = vmatpush1.bf16.msra.mxu0 0
      %1909 = vmatprep.subr.bf16.mxu0 0
      %1910 = vmatpush1.bf16.msra.mxu0 0
      %1911 = vmatprep.subr.bf16.mxu0 0
      %1912 = vmatpush1.bf16.msra.mxu0 0
      %1913 = vmatprep.mubr.bf16.mxu0 0
      %1914 = vmatmul.mubr.bf16.gmra.mrb[0].mxu0 %v1867
      %v1915 = vpop.f32.mrb[0].mxu0
      %v1916 = vadd.f32 0.0, %v1915
      %v1917 = vpop.f32.mrb[0].mxu0
      %v1918 = vpop.f32.mrb[0].mxu0
      %v1919 = vadd.f32 0.0, %v1918
      %v1920 = vpop.f32.mrb[0].mxu0
      %1921 = vmatprep.mubr.bf16.mxu0 0
      %1922 = vmatmul.mubr.bf16.gmra.mrb[0].mxu0 %v1870
      %v1923 = vpop.f32.mrb[0].mxu0
      %v1924 = vadd.f32 0.0, %v1923
      %v1925 = vpop.f32.mrb[0].mxu0
      %v1926 = vpop.f32.mrb[0].mxu0
      %v1927 = vadd.f32 0.0, %v1926
      %v1928 = vpop.f32.mrb[0].mxu0
      %1929 = vmatprep.mubr.bf16.mxu0 0
      %1930 = vmatmul.mubr.bf16.gmra.mrb[0].mxu0 %v1873
      %v1931 = vpop.f32.mrb[0].mxu0
      %v1932 = vadd.f32 0.0, %v1931
      %v1933 = vpop.f32.mrb[0].mxu0
      %v1934 = vpop.f32.mrb[0].mxu0
      %v1935 = vadd.f32 0.0, %v1934
      %v1936 = vpop.f32.mrb[0].mxu0
      %1937 = vmatprep.mubr.bf16.mxu0 0
      %1938 = vmatmul.mubr.bf16.gmra.mrb[0].mxu0 %v1876
      %v1939 = vpop.f32.mrb[0].mxu0
      %v1940 = vadd.f32 0.0, %v1939
      %v1941 = vpop.f32.mrb[0].mxu0
      %v1942 = vpop.f32.mrb[0].mxu0
      %v1943 = vadd.f32 0.0, %v1942
      %v1944 = vpop.f32.mrb[0].mxu0
      %1945 = vmatprep.mubr.bf16.mxu0 0
      %1946 = vmatmul.mubr.bf16.gmra.mrb[0].mxu0 %v1879
      %v1947 = vpop.f32.mrb[0].mxu0
      %v1948 = vadd.f32 0.0, %v1947
      %v1949 = vpop.f32.mrb[0].mxu0
      %v1950 = vpop.f32.mrb[0].mxu0
      %v1951 = vadd.f32 0.0, %v1950
      %v1952 = vpop.f32.mrb[0].mxu0
      %1953 = vdwg.mxu0
      %v1958 = vunpack.c.l.b16 %v1830
      %v1959 = vunpack.c.l.b16 %v1831
      %v1960 = vunpack.c.l.b16 %v1832
      %v1961 = vunpack.c.l.b16 %v1833
      %v1962 = vpack.c.b16 %v1959, %v1958
      %v1963 = vpack.c.b16 %v1961, %v1960
      %v1967 = vsel %vm388, %v1825, 0
      %v1970 = vsel %vm388, %v1826, 0
      %v1973 = vsel %vm388, %v1827, 0
      %v1976 = vsel %vm388, %v1828, 0
      %v1979 = vsel %vm388, %v1829, 0
      %1981 = vmatprep.subr.bf16.mxu0 0
      %1982 = vmatpush1.bf16.msra.mxu0 %v1962
      %1983 = vmatprep.subr.bf16.mxu0 0
      %1984 = vmatpush1.bf16.msra.mxu0 %v1963
      %1985 = vmatprep.subr.bf16.mxu0 0
      %1986 = vmatpush1.bf16.msra.mxu0 0
      %1987 = vmatprep.subr.bf16.mxu0 0
      %1988 = vmatpush1.bf16.msra.mxu0 0
      %1989 = vmatprep.subr.bf16.mxu0 0
      %1990 = vmatpush1.bf16.msra.mxu0 0
      %1991 = vmatprep.subr.bf16.mxu0 0
      %1992 = vmatpush1.bf16.msra.mxu0 0
      %1993 = vmatprep.subr.bf16.mxu0 0
      %1994 = vmatpush1.bf16.msra.mxu0 0
      %1995 = vmatprep.subr.bf16.mxu0 0
      %1996 = vmatpush1.bf16.msra.mxu0 0
      %1997 = vmatprep.subr.bf16.mxu0 0
      %1998 = vmatpush1.bf16.msra.mxu0 0
      %1999 = vmatprep.subr.bf16.mxu0 0
      %2000 = vmatpush1.bf16.msra.mxu0 0
      %2001 = vmatprep.subr.bf16.mxu0 0
      %2002 = vmatpush1.bf16.msra.mxu0 0
      %2003 = vmatprep.subr.bf16.mxu0 0
      %2004 = vmatpush1.bf16.msra.mxu0 0
      %2005 = vmatprep.subr.bf16.mxu0 0
      %2006 = vmatpush1.bf16.msra.mxu0 0
      %2007 = vmatprep.subr.bf16.mxu0 0
      %2008 = vmatpush1.bf16.msra.mxu0 0
      %2009 = vmatprep.subr.bf16.mxu0 0
      %2010 = vmatpush1.bf16.msra.mxu0 0
      %2011 = vmatprep.subr.bf16.mxu0 0
      %2012 = vmatpush1.bf16.msra.mxu0 0
      %2013 = vmatprep.mubr.bf16.mxu0 0
      %2014 = vmatmul.mubr.bf16.gmra.mrb[0].mxu0 %v1967
      %v2015 = vpop.f32.mrb[0].mxu0
      %v2016 = vadd.f32 %v1916, %v2015
      %v2017 = vpop.f32.mrb[0].mxu0
      %v2018 = vpop.f32.mrb[0].mxu0
      %v2019 = vadd.f32 %v1919, %v2018
      %v2020 = vpop.f32.mrb[0].mxu0
      %2021 = vmatprep.mubr.bf16.mxu0 0
      %2022 = vmatmul.mubr.bf16.gmra.mrb[0].mxu0 %v1970
      %v2023 = vpop.f32.mrb[0].mxu0
      %v2024 = vadd.f32 %v1924, %v2023
      %v2025 = vpop.f32.mrb[0].mxu0
      %v2026 = vpop.f32.mrb[0].mxu0
      %v2027 = vadd.f32 %v1927, %v2026
      %v2028 = vpop.f32.mrb[0].mxu0
      %2029 = vmatprep.mubr.bf16.mxu0 0
      %2030 = vmatmul.mubr.bf16.gmra.mrb[0].mxu0 %v1973
      %v2031 = vpop.f32.mrb[0].mxu0
      %v2032 = vadd.f32 %v1932, %v2031
      %v2033 = vpop.f32.mrb[0].mxu0
      %v2034 = vpop.f32.mrb[0].mxu0
      %v2035 = vadd.f32 %v1935, %v2034
      %v2036 = vpop.f32.mrb[0].mxu0
      %2037 = vmatprep.mubr.bf16.mxu0 0
      %2038 = vmatmul.mubr.bf16.gmra.mrb[0].mxu0 %v1976
      %v2039 = vpop.f32.mrb[0].mxu0
      %v2040 = vadd.f32 %v1940, %v2039
      %v2041 = vpop.f32.mrb[0].mxu0
      %v2042 = vpop.f32.mrb[0].mxu0
      %v2043 = vadd.f32 %v1943, %v2042
      %v2044 = vpop.f32.mrb[0].mxu0
      %2045 = vmatprep.mubr.bf16.mxu0 0
      %2046 = vmatmul.mubr.bf16.gmra.mrb[0].mxu0 %v1979
      %v2047 = vpop.f32.mrb[0].mxu0
      %v2048 = vadd.f32 %v1948, %v2047
      %v2049 = vpop.f32.mrb[0].mxu0
      %v2050 = vpop.f32.mrb[0].mxu0
      %v2051 = vadd.f32 %v1951, %v2050
      %v2052 = vpop.f32.mrb[0].mxu0
      %2053 = vdwg.mxu0
      %v2054 = vld [vmem:[#allocation2 + $0x2] sm:$0xff]
      %v2055 = vld [vmem:[#allocation2 + $0xa] sm:$0xff]
      %v2056 = vld [vmem:[#allocation2 + $0x12] sm:$0xff]
      %v2057 = vld [vmem:[#allocation2 + $0x1a] sm:$0xff]
      %v2058 = vld [vmem:[#allocation2 + $0x22] sm:$0xff]
      %v2059 = vld [vmem:[#allocation2 + $0x2a] sm:$0xff]
      %v2060 = vld [vmem:[#allocation2 + $0x32] sm:$0xff]
      %v2061 = vld [vmem:[#allocation2 + $0x3a] sm:$0xff]
      %v2062 = vld [vmem:[#allocation2 + $0x42] sm:$0xff]
      %v2063 = vld [vmem:[#allocation2 + $0x4a] sm:$0xff]
      %v2064 = vpack.c.bf16 %v2055, %v2054
      %v2065 = vpack.c.bf16 %v2057, %v2056
      %v2066 = vpack.c.bf16 %v2059, %v2058
      %v2067 = vpack.c.bf16 %v2061, %v2060
      %v2068 = vpack.c.bf16 %v2063, %v2062
      %s2069 = scalar_lea.vmem %s3, 32
      %v2070 = vld [vmem:[%s2069] sm:$0xf]
      %v2071 = vld [vmem:[%s2069 + $0x4] sm:$0xf]
      %v2072 = vld [vmem:[%s2069 + $0x8] sm:$0xf]
      %v2073 = vld [vmem:[%s2069 + $0xc] sm:$0xf]
      %v2078 = vunpack.c.l.b16 %v2070
      %v2079 = vunpack.c.l.b16 %v2071
      %v2080 = vunpack.c.l.b16 %v2072
      %v2081 = vunpack.c.l.b16 %v2073
      %v2082 = vpack.c.b16 %v2079, %v2078
      %v2083 = vpack.c.b16 %v2081, %v2080
      %v2087 = vsel %vm388, %v2064, 0
      %v2090 = vsel %vm388, %v2065, 0
      %v2093 = vsel %vm388, %v2066, 0
      %v2096 = vsel %vm388, %v2067, 0
      %v2099 = vsel %vm388, %v2068, 0
      %2101 = vmatprep.subr.bf16.mxu0 0
      %2102 = vmatpush1.bf16.msra.mxu0 %v2082
      %2103 = vmatprep.subr.bf16.mxu0 0
      %2104 = vmatpush1.bf16.msra.mxu0 %v2083
      %2105 = vmatprep.subr.bf16.mxu0 0
      %2106 = vmatpush1.bf16.msra.mxu0 0
      %2107 = vmatprep.subr.bf16.mxu0 0
      %2108 = vmatpush1.bf16.msra.mxu0 0
      %2109 = vmatprep.subr.bf16.mxu0 0
      %2110 = vmatpush1.bf16.msra.mxu0 0
      %2111 = vmatprep.subr.bf16.mxu0 0
      %2112 = vmatpush1.bf16.msra.mxu0 0
      %2113 = vmatprep.subr.bf16.mxu0 0
      %2114 = vmatpush1.bf16.msra.mxu0 0
      %2115 = vmatprep.subr.bf16.mxu0 0
      %2116 = vmatpush1.bf16.msra.mxu0 0
      %2117 = vmatprep.subr.bf16.mxu0 0
      %2118 = vmatpush1.bf16.msra.mxu0 0
      %2119 = vmatprep.subr.bf16.mxu0 0
      %2120 = vmatpush1.bf16.msra.mxu0 0
      %2121 = vmatprep.subr.bf16.mxu0 0
      %2122 = vmatpush1.bf16.msra.mxu0 0
      %2123 = vmatprep.subr.bf16.mxu0 0
      %2124 = vmatpush1.bf16.msra.mxu0 0
      %2125 = vmatprep.subr.bf16.mxu0 0
      %2126 = vmatpush1.bf16.msra.mxu0 0
      %2127 = vmatprep.subr.bf16.mxu0 0
      %2128 = vmatpush1.bf16.msra.mxu0 0
      %2129 = vmatprep.subr.bf16.mxu0 0
      %2130 = vmatpush1.bf16.msra.mxu0 0
      %2131 = vmatprep.subr.bf16.mxu0 0
      %2132 = vmatpush1.bf16.msra.mxu0 0
      %2133 = vmatprep.mubr.bf16.mxu0 0
      %2134 = vmatmul.mubr.bf16.gmra.mrb[0].mxu0 %v2087
      %v2135 = vpop.f32.mrb[0].mxu0
      %v2136 = vadd.f32 0.0, %v2135
      %v2137 = vpop.f32.mrb[0].mxu0
      %v2138 = vpop.f32.mrb[0].mxu0
      %v2139 = vadd.f32 0.0, %v2138
      %v2140 = vpop.f32.mrb[0].mxu0
      %2141 = vmatprep.mubr.bf16.mxu0 0
      %2142 = vmatmul.mubr.bf16.gmra.mrb[0].mxu0 %v2090
      %v2143 = vpop.f32.mrb[0].mxu0
      %v2144 = vadd.f32 0.0, %v2143
      %v2145 = vpop.f32.mrb[0].mxu0
      %v2146 = vpop.f32.mrb[0].mxu0
      %v2147 = vadd.f32 0.0, %v2146
      %v2148 = vpop.f32.mrb[0].mxu0
      %2149 = vmatprep.mubr.bf16.mxu0 0
      %2150 = vmatmul.mubr.bf16.gmra.mrb[0].mxu0 %v2093
      %v2151 = vpop.f32.mrb[0].mxu0
      %v2152 = vadd.f32 0.0, %v2151
      %v2153 = vpop.f32.mrb[0].mxu0
      %v2154 = vpop.f32.mrb[0].mxu0
      %v2155 = vadd.f32 0.0, %v2154
      %v2156 = vpop.f32.mrb[0].mxu0
      %2157 = vmatprep.mubr.bf16.mxu0 0
      %2158 = vmatmul.mubr.bf16.gmra.mrb[0].mxu0 %v2096
      %v2159 = vpop.f32.mrb[0].mxu0
      %v2160 = vadd.f32 0.0, %v2159
      %v2161 = vpop.f32.mrb[0].mxu0
      %v2162 = vpop.f32.mrb[0].mxu0
      %v2163 = vadd.f32 0.0, %v2162
      %v2164 = vpop.f32.mrb[0].mxu0
      %2165 = vmatprep.mubr.bf16.mxu0 0
      %2166 = vmatmul.mubr.bf16.gmra.mrb[0].mxu0 %v2099
      %v2167 = vpop.f32.mrb[0].mxu0
      %v2168 = vadd.f32 0.0, %v2167
      %v2169 = vpop.f32.mrb[0].mxu0
      %v2170 = vpop.f32.mrb[0].mxu0
      %v2171 = vadd.f32 0.0, %v2170
      %v2172 = vpop.f32.mrb[0].mxu0
      %2173 = vdwg.mxu0
      %v2174 = vadd.f32 %v2016, %v2136
      %v2175 = vadd.f32 %v2019, %v2139
      %v2176 = vadd.f32 %v2024, %v2144
      %v2177 = vadd.f32 %v2027, %v2147
      %v2178 = vadd.f32 %v2032, %v2152
      %v2179 = vadd.f32 %v2035, %v2155
      %v2180 = vadd.f32 %v2040, %v2160
      %v2181 = vadd.f32 %v2043, %v2163
      %v2182 = vadd.f32 %v2048, %v2168
      %v2183 = vadd.f32 %v2051, %v2171
      %v2184 = vld [vmem:[#allocation2 + $0xa] sm:$0xff]
      %v2185 = vld [vmem:[#allocation2 + $0x12] sm:$0xff]
      %v2186 = vld [vmem:[#allocation2 + $0x1a] sm:$0xff]
      %v2187 = vld [vmem:[#allocation2 + $0x22] sm:$0xff]
      %v2188 = vld [vmem:[#allocation2 + $0x2a] sm:$0xff]
      %v2189 = vld [vmem:[#allocation2 + $0x32] sm:$0xff]
      %v2190 = vld [vmem:[#allocation2 + $0x3a] sm:$0xff]
      %v2191 = vld [vmem:[#allocation2 + $0x42] sm:$0xff]
      %v2192 = vld [vmem:[#allocation2 + $0x4a] sm:$0xff]
      %v2193 = vld [vmem:[#allocation2 + $0x52] sm:$0xff]
      %v2194 = vpack.c.bf16 %v2185, %v2184
      %v2195 = vpack.c.bf16 %v2187, %v2186
      %v2196 = vpack.c.bf16 %v2189, %v2188
      %v2197 = vpack.c.bf16 %v2191, %v2190
      %v2198 = vpack.c.bf16 %v2193, %v2192
      %s2199 = scalar_lea.vmem %s3, 48
      %v2200 = vld [vmem:[%s2199] sm:$0xf]
      %v2201 = vld [vmem:[%s2199 + $0x4] sm:$0xf]
      %v2202 = vld [vmem:[%s2199 + $0x8] sm:$0xf]
      %v2203 = vld [vmem:[%s2199 + $0xc] sm:$0xf]
      %v2208 = vunpack.c.l.b16 %v2200
      %v2209 = vunpack.c.l.b16 %v2201
      %v2210 = vunpack.c.l.b16 %v2202
      %v2211 = vunpack.c.l.b16 %v2203
      %v2212 = vpack.c.b16 %v2209, %v2208
      %v2213 = vpack.c.b16 %v2211, %v2210
      %v2217 = vsel %vm388, %v2194, 0
      %v2220 = vsel %vm388, %v2195, 0
      %v2223 = vsel %vm388, %v2196, 0
      %v2226 = vsel %vm388, %v2197, 0
      %v2229 = vsel %vm388, %v2198, 0
      %2231 = vmatprep.subr.bf16.mxu0 0
      %2232 = vmatpush1.bf16.msra.mxu0 %v2212
      %2233 = vmatprep.subr.bf16.mxu0 0
      %2234 = vmatpush1.bf16.msra.mxu0 %v2213
      %2235 = vmatprep.subr.bf16.mxu0 0
      %2236 = vmatpush1.bf16.msra.mxu0 0
      %2237 = vmatprep.subr.bf16.mxu0 0
      %2238 = vmatpush1.bf16.msra.mxu0 0
      %2239 = vmatprep.subr.bf16.mxu0 0
      %2240 = vmatpush1.bf16.msra.mxu0 0
      %2241 = vmatprep.subr.bf16.mxu0 0
      %2242 = vmatpush1.bf16.msra.mxu0 0
      %2243 = vmatprep.subr.bf16.mxu0 0
      %2244 = vmatpush1.bf16.msra.mxu0 0
      %2245 = vmatprep.subr.bf16.mxu0 0
      %2246 = vmatpush1.bf16.msra.mxu0 0
      %2247 = vmatprep.subr.bf16.mxu0 0
      %2248 = vmatpush1.bf16.msra.mxu0 0
      %2249 = vmatprep.subr.bf16.mxu0 0
      %2250 = vmatpush1.bf16.msra.mxu0 0
      %2251 = vmatprep.subr.bf16.mxu0 0
      %2252 = vmatpush1.bf16.msra.mxu0 0
      %2253 = vmatprep.subr.bf16.mxu0 0
      %2254 = vmatpush1.bf16.msra.mxu0 0
      %2255 = vmatprep.subr.bf16.mxu0 0
      %2256 = vmatpush1.bf16.msra.mxu0 0
      %2257 = vmatprep.subr.bf16.mxu0 0
      %2258 = vmatpush1.bf16.msra.mxu0 0
      %2259 = vmatprep.subr.bf16.mxu0 0
      %2260 = vmatpush1.bf16.msra.mxu0 0
      %2261 = vmatprep.subr.bf16.mxu0 0
      %2262 = vmatpush1.bf16.msra.mxu0 0
      %2263 = vmatprep.mubr.bf16.mxu0 0
      %2264 = vmatmul.mubr.bf16.gmra.mrb[0].mxu0 %v2217
      %v2265 = vpop.f32.mrb[0].mxu0
      %v2266 = vadd.f32 0.0, %v2265
      %v2267 = vpop.f32.mrb[0].mxu0
      %v2268 = vpop.f32.mrb[0].mxu0
      %v2269 = vadd.f32 0.0, %v2268
      %v2270 = vpop.f32.mrb[0].mxu0
      %2271 = vmatprep.mubr.bf16.mxu0 0
      %2272 = vmatmul.mubr.bf16.gmra.mrb[0].mxu0 %v2220
      %v2273 = vpop.f32.mrb[0].mxu0
      %v2274 = vadd.f32 0.0, %v2273
      %v2275 = vpop.f32.mrb[0].mxu0
      %v2276 = vpop.f32.mrb[0].mxu0
      %v2277 = vadd.f32 0.0, %v2276
      %v2278 = vpop.f32.mrb[0].mxu0
      %2279 = vmatprep.mubr.bf16.mxu0 0
      %2280 = vmatmul.mubr.bf16.gmra.mrb[0].mxu0 %v2223
      %v2281 = vpop.f32.mrb[0].mxu0
      %v2282 = vadd.f32 0.0, %v2281
      %v2283 = vpop.f32.mrb[0].mxu0
      %v2284 = vpop.f32.mrb[0].mxu0
      %v2285 = vadd.f32 0.0, %v2284
      %v2286 = vpop.f32.mrb[0].mxu0
      %2287 = vmatprep.mubr.bf16.mxu0 0
      %2288 = vmatmul.mubr.bf16.gmra.mrb[0].mxu0 %v2226
      %v2289 = vpop.f32.mrb[0].mxu0
      %v2290 = vadd.f32 0.0, %v2289
      %v2291 = vpop.f32.mrb[0].mxu0
      %v2292 = vpop.f32.mrb[0].mxu0
      %v2293 = vadd.f32 0.0, %v2292
      %v2294 = vpop.f32.mrb[0].mxu0
      %2295 = vmatprep.mubr.bf16.mxu0 0
      %2296 = vmatmul.mubr.bf16.gmra.mrb[0].mxu0 %v2229
      %v2297 = vpop.f32.mrb[0].mxu0
      %v2298 = vadd.f32 0.0, %v2297
      %v2299 = vpop.f32.mrb[0].mxu0
      %v2300 = vpop.f32.mrb[0].mxu0
      %v2301 = vadd.f32 0.0, %v2300
      %v2302 = vpop.f32.mrb[0].mxu0
      %2303 = vdwg.mxu0
      %v2304 = vadd.f32 %v2174, %v2266
      %v2305 = vadd.f32 %v2175, %v2269
      %v2306 = vadd.f32 %v2176, %v2274
      %v2307 = vadd.f32 %v2177, %v2277
      %v2308 = vadd.f32 %v2178, %v2282
      %v2309 = vadd.f32 %v2179, %v2285
      %v2310 = vadd.f32 %v2180, %v2290
      %v2311 = vadd.f32 %v2181, %v2293
      %v2312 = vadd.f32 %v2182, %v2298
      %v2313 = vadd.f32 %v2183, %v2301
      %v2314 = vld [vmem:[#allocation2 + $0xb] sm:$0xff]
      %v2315 = vld [vmem:[#allocation2 + $0x13] sm:$0xff]
      %v2316 = vld [vmem:[#allocation2 + $0x1b] sm:$0xff]
      %v2317 = vld [vmem:[#allocation2 + $0x23] sm:$0xff]
      %v2318 = vld [vmem:[#allocation2 + $0x2b] sm:$0xff]
      %v2319 = vld [vmem:[#allocation2 + $0x33] sm:$0xff]
      %v2320 = vld [vmem:[#allocation2 + $0x3b] sm:$0xff]
      %v2321 = vld [vmem:[#allocation2 + $0x43] sm:$0xff]
      %v2322 = vld [vmem:[#allocation2 + $0x4b] sm:$0xff]
      %v2323 = vld [vmem:[#allocation2 + $0x53] sm:$0xff]
      %v2324 = vpack.c.bf16 %v2315, %v2314
      %v2325 = vpack.c.bf16 %v2317, %v2316
      %v2326 = vpack.c.bf16 %v2319, %v2318
      %v2327 = vpack.c.bf16 %v2321, %v2320
      %v2328 = vpack.c.bf16 %v2323, %v2322
      %s2329 = scalar_lea.vmem %s3, 64
      %v2330 = vld [vmem:[%s2329] sm:$0xf]
      %v2331 = vld [vmem:[%s2329 + $0x4] sm:$0xf]
      %v2332 = vld [vmem:[%s2329 + $0x8] sm:$0xf]
      %v2333 = vld [vmem:[%s2329 + $0xc] sm:$0xf]
      %v2338 = vunpack.c.l.b16 %v2330
      %v2339 = vunpack.c.l.b16 %v2331
      %v2340 = vunpack.c.l.b16 %v2332
      %v2341 = vunpack.c.l.b16 %v2333
      %v2342 = vpack.c.b16 %v2339, %v2338
      %v2343 = vpack.c.b16 %v2341, %v2340
      %v2347 = vsel %vm388, %v2324, 0
      %v2350 = vsel %vm388, %v2325, 0
      %v2353 = vsel %vm388, %v2326, 0
      %v2356 = vsel %vm388, %v2327, 0
      %v2359 = vsel %vm388, %v2328, 0
      %2361 = vmatprep.subr.bf16.mxu0 0
      %2362 = vmatpush1.bf16.msra.mxu0 %v2342
      %2363 = vmatprep.subr.bf16.mxu0 0
      %2364 = vmatpush1.bf16.msra.mxu0 %v2343
      %2365 = vmatprep.subr.bf16.mxu0 0
      %2366 = vmatpush1.bf16.msra.mxu0 0
      %2367 = vmatprep.subr.bf16.mxu0 0
      %2368 = vmatpush1.bf16.msra.mxu0 0
      %2369 = vmatprep.subr.bf16.mxu0 0
      %2370 = vmatpush1.bf16.msra.mxu0 0
      %2371 = vmatprep.subr.bf16.mxu0 0
      %2372 = vmatpush1.bf16.msra.mxu0 0
      %2373 = vmatprep.subr.bf16.mxu0 0
      %2374 = vmatpush1.bf16.msra.mxu0 0
      %2375 = vmatprep.subr.bf16.mxu0 0
      %2376 = vmatpush1.bf16.msra.mxu0 0
      %2377 = vmatprep.subr.bf16.mxu0 0
      %2378 = vmatpush1.bf16.msra.mxu0 0
      %2379 = vmatprep.subr.bf16.mxu0 0
      %2380 = vmatpush1.bf16.msra.mxu0 0
      %2381 = vmatprep.subr.bf16.mxu0 0
      %2382 = vmatpush1.bf16.msra.mxu0 0
      %2383 = vmatprep.subr.bf16.mxu0 0
      %2384 = vmatpush1.bf16.msra.mxu0 0
      %2385 = vmatprep.subr.bf16.mxu0 0
      %2386 = vmatpush1.bf16.msra.mxu0 0
      %2387 = vmatprep.subr.bf16.mxu0 0
      %2388 = vmatpush1.bf16.msra.mxu0 0
      %2389 = vmatprep.subr.bf16.mxu0 0
      %2390 = vmatpush1.bf16.msra.mxu0 0
      %2391 = vmatprep.subr.bf16.mxu0 0
      %2392 = vmatpush1.bf16.msra.mxu0 0
      %2393 = vmatprep.mubr.bf16.mxu0 0
      %2394 = vmatmul.mubr.bf16.gmra.mrb[0].mxu0 %v2347
      %v2395 = vpop.f32.mrb[0].mxu0
      %v2396 = vadd.f32 0.0, %v2395
      %v2397 = vpop.f32.mrb[0].mxu0
      %v2398 = vpop.f32.mrb[0].mxu0
      %v2399 = vadd.f32 0.0, %v2398
      %v2400 = vpop.f32.mrb[0].mxu0
      %2401 = vmatprep.mubr.bf16.mxu0 0
      %2402 = vmatmul.mubr.bf16.gmra.mrb[0].mxu0 %v2350
      %v2403 = vpop.f32.mrb[0].mxu0
      %v2404 = vadd.f32 0.0, %v2403
      %v2405 = vpop.f32.mrb[0].mxu0
      %v2406 = vpop.f32.mrb[0].mxu0
      %v2407 = vadd.f32 0.0, %v2406
      %v2408 = vpop.f32.mrb[0].mxu0
      %2409 = vmatprep.mubr.bf16.mxu0 0
      %2410 = vmatmul.mubr.bf16.gmra.mrb[0].mxu0 %v2353
      %v2411 = vpop.f32.mrb[0].mxu0
      %v2412 = vadd.f32 0.0, %v2411
      %v2413 = vpop.f32.mrb[0].mxu0
      %v2414 = vpop.f32.mrb[0].mxu0
      %v2415 = vadd.f32 0.0, %v2414
      %v2416 = vpop.f32.mrb[0].mxu0
      %2417 = vmatprep.mubr.bf16.mxu0 0
      %2418 = vmatmul.mubr.bf16.gmra.mrb[0].mxu0 %v2356
      %v2419 = vpop.f32.mrb[0].mxu0
      %v2420 = vadd.f32 0.0, %v2419
      %v2421 = vpop.f32.mrb[0].mxu0
      %v2422 = vpop.f32.mrb[0].mxu0
      %v2423 = vadd.f32 0.0, %v2422
      %v2424 = vpop.f32.mrb[0].mxu0
      %2425 = vmatprep.mubr.bf16.mxu0 0
      %2426 = vmatmul.mubr.bf16.gmra.mrb[0].mxu0 %v2359
      %v2427 = vpop.f32.mrb[0].mxu0
      %v2428 = vadd.f32 0.0, %v2427
      %v2429 = vpop.f32.mrb[0].mxu0
      %v2430 = vpop.f32.mrb[0].mxu0
      %v2431 = vadd.f32 0.0, %v2430
      %v2432 = vpop.f32.mrb[0].mxu0
      %2433 = vdwg.mxu0
      %v2434 = vadd.f32 %v2304, %v2396
      %v2435 = vadd.f32 %v2305, %v2399
      %v2436 = vadd.f32 %v2306, %v2404
      %v2437 = vadd.f32 %v2307, %v2407
      %v2438 = vadd.f32 %v2308, %v2412
      %v2439 = vadd.f32 %v2309, %v2415
      %v2440 = vadd.f32 %v2310, %v2420
      %v2441 = vadd.f32 %v2311, %v2423
      %v2442 = vadd.f32 %v2312, %v2428
      %v2443 = vadd.f32 %v2313, %v2431
      %v2444 = vld [vmem:[#allocation2 + $0xc] sm:$0xff]
      %v2445 = vld [vmem:[#allocation2 + $0x14] sm:$0xff]
      %v2446 = vld [vmem:[#allocation2 + $0x1c] sm:$0xff]
      %v2447 = vld [vmem:[#allocation2 + $0x24] sm:$0xff]
      %v2448 = vld [vmem:[#allocation2 + $0x2c] sm:$0xff]
      %v2449 = vld [vmem:[#allocation2 + $0x34] sm:$0xff]
      %v2450 = vld [vmem:[#allocation2 + $0x3c] sm:$0xff]
      %v2451 = vld [vmem:[#allocation2 + $0x44] sm:$0xff]
      %v2452 = vld [vmem:[#allocation2 + $0x4c] sm:$0xff]
      %v2453 = vld [vmem:[#allocation2 + $0x54] sm:$0xff]
      %v2454 = vpack.c.bf16 %v2445, %v2444
      %v2455 = vpack.c.bf16 %v2447, %v2446
      %v2456 = vpack.c.bf16 %v2449, %v2448
      %v2457 = vpack.c.bf16 %v2451, %v2450
      %v2458 = vpack.c.bf16 %v2453, %v2452
      %s2459 = scalar_lea.vmem %s3, 80
      %v2460 = vld [vmem:[%s2459] sm:$0xf]
      %v2461 = vld [vmem:[%s2459 + $0x4] sm:$0xf]
      %v2462 = vld [vmem:[%s2459 + $0x8] sm:$0xf]
      %v2463 = vld [vmem:[%s2459 + $0xc] sm:$0xf]
      %v2468 = vunpack.c.l.b16 %v2460
      %v2469 = vunpack.c.l.b16 %v2461
      %v2470 = vunpack.c.l.b16 %v2462
      %v2471 = vunpack.c.l.b16 %v2463
      %v2472 = vpack.c.b16 %v2469, %v2468
      %v2473 = vpack.c.b16 %v2471, %v2470
      %v2477 = vsel %vm388, %v2454, 0
      %v2480 = vsel %vm388, %v2455, 0
      %v2483 = vsel %vm388, %v2456, 0
      %v2486 = vsel %vm388, %v2457, 0
      %v2489 = vsel %vm388, %v2458, 0
      %2491 = vmatprep.subr.bf16.mxu0 0
      %2492 = vmatpush1.bf16.msra.mxu0 %v2472
      %2493 = vmatprep.subr.bf16.mxu0 0
      %2494 = vmatpush1.bf16.msra.mxu0 %v2473
      %2495 = vmatprep.subr.bf16.mxu0 0
      %2496 = vmatpush1.bf16.msra.mxu0 0
      %2497 = vmatprep.subr.bf16.mxu0 0
      %2498 = vmatpush1.bf16.msra.mxu0 0
      %2499 = vmatprep.subr.bf16.mxu0 0
      %2500 = vmatpush1.bf16.msra.mxu0 0
      %2501 = vmatprep.subr.bf16.mxu0 0
      %2502 = vmatpush1.bf16.msra.mxu0 0
      %2503 = vmatprep.subr.bf16.mxu0 0
      %2504 = vmatpush1.bf16.msra.mxu0 0
      %2505 = vmatprep.subr.bf16.mxu0 0
      %2506 = vmatpush1.bf16.msra.mxu0 0
      %2507 = vmatprep.subr.bf16.mxu0 0
      %2508 = vmatpush1.bf16.msra.mxu0 0
      %2509 = vmatprep.subr.bf16.mxu0 0
      %2510 = vmatpush1.bf16.msra.mxu0 0
      %2511 = vmatprep.subr.bf16.mxu0 0
      %2512 = vmatpush1.bf16.msra.mxu0 0
      %2513 = vmatprep.subr.bf16.mxu0 0
      %2514 = vmatpush1.bf16.msra.mxu0 0
      %2515 = vmatprep.subr.bf16.mxu0 0
      %2516 = vmatpush1.bf16.msra.mxu0 0
      %2517 = vmatprep.subr.bf16.mxu0 0
      %2518 = vmatpush1.bf16.msra.mxu0 0
      %2519 = vmatprep.subr.bf16.mxu0 0
      %2520 = vmatpush1.bf16.msra.mxu0 0
      %2521 = vmatprep.subr.bf16.mxu0 0
      %2522 = vmatpush1.bf16.msra.mxu0 0
      %2523 = vmatprep.mubr.bf16.mxu0 0
      %2524 = vmatmul.mubr.bf16.gmra.mrb[0].mxu0 %v2477
      %v2525 = vpop.f32.mrb[0].mxu0
      %v2526 = vadd.f32 0.0, %v2525
      %v2527 = vpop.f32.mrb[0].mxu0
      %v2528 = vpop.f32.mrb[0].mxu0
      %v2529 = vadd.f32 0.0, %v2528
      %v2530 = vpop.f32.mrb[0].mxu0
      %2531 = vmatprep.mubr.bf16.mxu0 0
      %2532 = vmatmul.mubr.bf16.gmra.mrb[0].mxu0 %v2480
      %v2533 = vpop.f32.mrb[0].mxu0
      %v2534 = vadd.f32 0.0, %v2533
      %v2535 = vpop.f32.mrb[0].mxu0
      %v2536 = vpop.f32.mrb[0].mxu0
      %v2537 = vadd.f32 0.0, %v2536
      %v2538 = vpop.f32.mrb[0].mxu0
      %2539 = vmatprep.mubr.bf16.mxu0 0
      %2540 = vmatmul.mubr.bf16.gmra.mrb[0].mxu0 %v2483
      %v2541 = vpop.f32.mrb[0].mxu0
      %v2542 = vadd.f32 0.0, %v2541
      %v2543 = vpop.f32.mrb[0].mxu0
      %v2544 = vpop.f32.mrb[0].mxu0
      %v2545 = vadd.f32 0.0, %v2544
      %v2546 = vpop.f32.mrb[0].mxu0
      %2547 = vmatprep.mubr.bf16.mxu0 0
      %2548 = vmatmul.mubr.bf16.gmra.mrb[0].mxu0 %v2486
      %v2549 = vpop.f32.mrb[0].mxu0
      %v2550 = vadd.f32 0.0, %v2549
      %v2551 = vpop.f32.mrb[0].mxu0
      %v2552 = vpop.f32.mrb[0].mxu0
      %v2553 = vadd.f32 0.0, %v2552
      %v2554 = vpop.f32.mrb[0].mxu0
      %2555 = vmatprep.mubr.bf16.mxu0 0
      %2556 = vmatmul.mubr.bf16.gmra.mrb[0].mxu0 %v2489
      %v2557 = vpop.f32.mrb[0].mxu0
      %v2558 = vadd.f32 0.0, %v2557
      %v2559 = vpop.f32.mrb[0].mxu0
      %v2560 = vpop.f32.mrb[0].mxu0
      %v2561 = vadd.f32 0.0, %v2560
      %v2562 = vpop.f32.mrb[0].mxu0
      %2563 = vdwg.mxu0
      %v2564 = vadd.f32 %v2434, %v2526
      %v2565 = vadd.f32 %v2435, %v2529
      %v2566 = vadd.f32 %v2436, %v2534
      %v2567 = vadd.f32 %v2437, %v2537
      %v2568 = vadd.f32 %v2438, %v2542
      %v2569 = vadd.f32 %v2439, %v2545
      %v2570 = vadd.f32 %v2440, %v2550
      %v2571 = vadd.f32 %v2441, %v2553
      %v2572 = vadd.f32 %v2442, %v2558
      %v2573 = vadd.f32 %v2443, %v2561
      %v2574 = vld [vmem:[#allocation2 + $0x14] sm:$0xff]
      %v2575 = vld [vmem:[#allocation2 + $0x1c] sm:$0xff]
      %v2576 = vld [vmem:[#allocation2 + $0x24] sm:$0xff]
      %v2577 = vld [vmem:[#allocation2 + $0x2c] sm:$0xff]
      %v2578 = vld [vmem:[#allocation2 + $0x34] sm:$0xff]
      %v2579 = vld [vmem:[#allocation2 + $0x3c] sm:$0xff]
      %v2580 = vld [vmem:[#allocation2 + $0x44] sm:$0xff]
      %v2581 = vld [vmem:[#allocation2 + $0x4c] sm:$0xff]
      %v2582 = vld [vmem:[#allocation2 + $0x54] sm:$0xff]
      %v2583 = vld [vmem:[#allocation2 + $0x5c] sm:$0xff]
      %v2584 = vpack.c.bf16 %v2575, %v2574
      %v2585 = vpack.c.bf16 %v2577, %v2576
      %v2586 = vpack.c.bf16 %v2579, %v2578
      %v2587 = vpack.c.bf16 %v2581, %v2580
      %v2588 = vpack.c.bf16 %v2583, %v2582
      %s2589 = scalar_lea.vmem %s3, 96
      %v2590 = vld [vmem:[%s2589] sm:$0xf]
      %v2591 = vld [vmem:[%s2589 + $0x4] sm:$0xf]
      %v2592 = vld [vmem:[%s2589 + $0x8] sm:$0xf]
      %v2593 = vld [vmem:[%s2589 + $0xc] sm:$0xf]
      %v2598 = vunpack.c.l.b16 %v2590
      %v2599 = vunpack.c.l.b16 %v2591
      %v2600 = vunpack.c.l.b16 %v2592
      %v2601 = vunpack.c.l.b16 %v2593
      %v2602 = vpack.c.b16 %v2599, %v2598
      %v2603 = vpack.c.b16 %v2601, %v2600
      %v2607 = vsel %vm388, %v2584, 0
      %v2610 = vsel %vm388, %v2585, 0
      %v2613 = vsel %vm388, %v2586, 0
      %v2616 = vsel %vm388, %v2587, 0
      %v2619 = vsel %vm388, %v2588, 0
      %2621 = vmatprep.subr.bf16.mxu0 0
      %2622 = vmatpush1.bf16.msra.mxu0 %v2602
      %2623 = vmatprep.subr.bf16.mxu0 0
      %2624 = vmatpush1.bf16.msra.mxu0 %v2603
      %2625 = vmatprep.subr.bf16.mxu0 0
      %2626 = vmatpush1.bf16.msra.mxu0 0
      %2627 = vmatprep.subr.bf16.mxu0 0
      %2628 = vmatpush1.bf16.msra.mxu0 0
      %2629 = vmatprep.subr.bf16.mxu0 0
      %2630 = vmatpush1.bf16.msra.mxu0 0
      %2631 = vmatprep.subr.bf16.mxu0 0
      %2632 = vmatpush1.bf16.msra.mxu0 0
      %2633 = vmatprep.subr.bf16.mxu0 0
      %2634 = vmatpush1.bf16.msra.mxu0 0
      %2635 = vmatprep.subr.bf16.mxu0 0
      %2636 = vmatpush1.bf16.msra.mxu0 0
      %2637 = vmatprep.subr.bf16.mxu0 0
      %2638 = vmatpush1.bf16.msra.mxu0 0
      %2639 = vmatprep.subr.bf16.mxu0 0
      %2640 = vmatpush1.bf16.msra.mxu0 0
      %2641 = vmatprep.subr.bf16.mxu0 0
      %2642 = vmatpush1.bf16.msra.mxu0 0
      %2643 = vmatprep.subr.bf16.mxu0 0
      %2644 = vmatpush1.bf16.msra.mxu0 0
      %2645 = vmatprep.subr.bf16.mxu0 0
      %2646 = vmatpush1.bf16.msra.mxu0 0
      %2647 = vmatprep.subr.bf16.mxu0 0
      %2648 = vmatpush1.bf16.msra.mxu0 0
      %2649 = vmatprep.subr.bf16.mxu0 0
      %2650 = vmatpush1.bf16.msra.mxu0 0
      %2651 = vmatprep.subr.bf16.mxu0 0
      %2652 = vmatpush1.bf16.msra.mxu0 0
      %2653 = vmatprep.mubr.bf16.mxu0 0
      %2654 = vmatmul.mubr.bf16.gmra.mrb[0].mxu0 %v2607
      %v2655 = vpop.f32.mrb[0].mxu0
      %v2656 = vadd.f32 0.0, %v2655
      %v2657 = vpop.f32.mrb[0].mxu0
      %v2658 = vpop.f32.mrb[0].mxu0
      %v2659 = vadd.f32 0.0, %v2658
      %v2660 = vpop.f32.mrb[0].mxu0
      %2661 = vmatprep.mubr.bf16.mxu0 0
      %2662 = vmatmul.mubr.bf16.gmra.mrb[0].mxu0 %v2610
      %v2663 = vpop.f32.mrb[0].mxu0
      %v2664 = vadd.f32 0.0, %v2663
      %v2665 = vpop.f32.mrb[0].mxu0
      %v2666 = vpop.f32.mrb[0].mxu0
      %v2667 = vadd.f32 0.0, %v2666
      %v2668 = vpop.f32.mrb[0].mxu0
      %2669 = vmatprep.mubr.bf16.mxu0 0
      %2670 = vmatmul.mubr.bf16.gmra.mrb[0].mxu0 %v2613
      %v2671 = vpop.f32.mrb[0].mxu0
      %v2672 = vadd.f32 0.0, %v2671
      %v2673 = vpop.f32.mrb[0].mxu0
      %v2674 = vpop.f32.mrb[0].mxu0
      %v2675 = vadd.f32 0.0, %v2674
      %v2676 = vpop.f32.mrb[0].mxu0
      %2677 = vmatprep.mubr.bf16.mxu0 0
      %2678 = vmatmul.mubr.bf16.gmra.mrb[0].mxu0 %v2616
      %v2679 = vpop.f32.mrb[0].mxu0
      %v2680 = vadd.f32 0.0, %v2679
      %v2681 = vpop.f32.mrb[0].mxu0
      %v2682 = vpop.f32.mrb[0].mxu0
      %v2683 = vadd.f32 0.0, %v2682
      %v2684 = vpop.f32.mrb[0].mxu0
      %2685 = vmatprep.mubr.bf16.mxu0 0
      %2686 = vmatmul.mubr.bf16.gmra.mrb[0].mxu0 %v2619
      %v2687 = vpop.f32.mrb[0].mxu0
      %v2688 = vadd.f32 0.0, %v2687
      %v2689 = vpop.f32.mrb[0].mxu0
      %v2690 = vpop.f32.mrb[0].mxu0
      %v2691 = vadd.f32 0.0, %v2690
      %v2692 = vpop.f32.mrb[0].mxu0
      %2693 = vdwg.mxu0
      %v2694 = vadd.f32 %v2564, %v2656
      %v2695 = vadd.f32 %v2565, %v2659
      %v2696 = vadd.f32 %v2566, %v2664
      %v2697 = vadd.f32 %v2567, %v2667
      %v2698 = vadd.f32 %v2568, %v2672
      %v2699 = vadd.f32 %v2569, %v2675
      %v2700 = vadd.f32 %v2570, %v2680
      %v2701 = vadd.f32 %v2571, %v2683
      %v2702 = vadd.f32 %v2572, %v2688
      %v2703 = vadd.f32 %v2573, %v2691
      %v2704 = vld [vmem:[#allocation2 + $0x15] sm:$0xff]
      %v2705 = vld [vmem:[#allocation2 + $0x1d] sm:$0xff]
      %v2706 = vld [vmem:[#allocation2 + $0x25] sm:$0xff]
      %v2707 = vld [vmem:[#allocation2 + $0x2d] sm:$0xff]
      %v2708 = vld [vmem:[#allocation2 + $0x35] sm:$0xff]
      %v2709 = vld [vmem:[#allocation2 + $0x3d] sm:$0xff]
      %v2710 = vld [vmem:[#allocation2 + $0x45] sm:$0xff]
      %v2711 = vld [vmem:[#allocation2 + $0x4d] sm:$0xff]
      %v2712 = vld [vmem:[#allocation2 + $0x55] sm:$0xff]
      %v2713 = vld [vmem:[#allocation2 + $0x5d] sm:$0xff]
      %v2714 = vpack.c.bf16 %v2705, %v2704
      %v2715 = vpack.c.bf16 %v2707, %v2706
      %v2716 = vpack.c.bf16 %v2709, %v2708
      %v2717 = vpack.c.bf16 %v2711, %v2710
      %v2718 = vpack.c.bf16 %v2713, %v2712
      %s2719 = scalar_lea.vmem %s3, 112
      %v2720 = vld [vmem:[%s2719] sm:$0xf]
      %v2721 = vld [vmem:[%s2719 + $0x4] sm:$0xf]
      %v2722 = vld [vmem:[%s2719 + $0x8] sm:$0xf]
      %v2723 = vld [vmem:[%s2719 + $0xc] sm:$0xf]
      %v2728 = vunpack.c.l.b16 %v2720
      %v2729 = vunpack.c.l.b16 %v2721
      %v2730 = vunpack.c.l.b16 %v2722
      %v2731 = vunpack.c.l.b16 %v2723
      %v2732 = vpack.c.b16 %v2729, %v2728
      %v2733 = vpack.c.b16 %v2731, %v2730
      %v2737 = vsel %vm388, %v2714, 0
      %v2740 = vsel %vm388, %v2715, 0
      %v2743 = vsel %vm388, %v2716, 0
      %v2746 = vsel %vm388, %v2717, 0
      %v2749 = vsel %vm388, %v2718, 0
      %2751 = vmatprep.subr.bf16.mxu0 0
      %2752 = vmatpush1.bf16.msra.mxu0 %v2732
      %2753 = vmatprep.subr.bf16.mxu0 0
      %2754 = vmatpush1.bf16.msra.mxu0 %v2733
      %2755 = vmatprep.subr.bf16.mxu0 0
      %2756 = vmatpush1.bf16.msra.mxu0 0
      %2757 = vmatprep.subr.bf16.mxu0 0
      %2758 = vmatpush1.bf16.msra.mxu0 0
      %2759 = vmatprep.subr.bf16.mxu0 0
      %2760 = vmatpush1.bf16.msra.mxu0 0
      %2761 = vmatprep.subr.bf16.mxu0 0
      %2762 = vmatpush1.bf16.msra.mxu0 0
      %2763 = vmatprep.subr.bf16.mxu0 0
      %2764 = vmatpush1.bf16.msra.mxu0 0
      %2765 = vmatprep.subr.bf16.mxu0 0
      %2766 = vmatpush1.bf16.msra.mxu0 0
      %2767 = vmatprep.subr.bf16.mxu0 0
      %2768 = vmatpush1.bf16.msra.mxu0 0
      %2769 = vmatprep.subr.bf16.mxu0 0
      %2770 = vmatpush1.bf16.msra.mxu0 0
      %2771 = vmatprep.subr.bf16.mxu0 0
      %2772 = vmatpush1.bf16.msra.mxu0 0
      %2773 = vmatprep.subr.bf16.mxu0 0
      %2774 = vmatpush1.bf16.msra.mxu0 0
      %2775 = vmatprep.subr.bf16.mxu0 0
      %2776 = vmatpush1.bf16.msra.mxu0 0
      %2777 = vmatprep.subr.bf16.mxu0 0
      %2778 = vmatpush1.bf16.msra.mxu0 0
      %2779 = vmatprep.subr.bf16.mxu0 0
      %2780 = vmatpush1.bf16.msra.mxu0 0
      %2781 = vmatprep.subr.bf16.mxu0 0
      %2782 = vmatpush1.bf16.msra.mxu0 0
      %2783 = vmatprep.mubr.bf16.mxu0 0
      %2784 = vmatmul.mubr.bf16.gmra.mrb[0].mxu0 %v2737
      %v2785 = vpop.f32.mrb[0].mxu0
      %v2786 = vadd.f32 0.0, %v2785
      %v2787 = vpop.f32.mrb[0].mxu0
      %v2788 = vpop.f32.mrb[0].mxu0
      %v2789 = vadd.f32 0.0, %v2788
      %v2790 = vpop.f32.mrb[0].mxu0
      %2791 = vmatprep.mubr.bf16.mxu0 0
      %2792 = vmatmul.mubr.bf16.gmra.mrb[0].mxu0 %v2740
      %v2793 = vpop.f32.mrb[0].mxu0
      %v2794 = vadd.f32 0.0, %v2793
      %v2795 = vpop.f32.mrb[0].mxu0
      %v2796 = vpop.f32.mrb[0].mxu0
      %v2797 = vadd.f32 0.0, %v2796
      %v2798 = vpop.f32.mrb[0].mxu0
      %2799 = vmatprep.mubr.bf16.mxu0 0
      %2800 = vmatmul.mubr.bf16.gmra.mrb[0].mxu0 %v2743
      %v2801 = vpop.f32.mrb[0].mxu0
      %v2802 = vadd.f32 0.0, %v2801
      %v2803 = vpop.f32.mrb[0].mxu0
      %v2804 = vpop.f32.mrb[0].mxu0
      %v2805 = vadd.f32 0.0, %v2804
      %v2806 = vpop.f32.mrb[0].mxu0
      %2807 = vmatprep.mubr.bf16.mxu0 0
      %2808 = vmatmul.mubr.bf16.gmra.mrb[0].mxu0 %v2746
      %v2809 = vpop.f32.mrb[0].mxu0
      %v2810 = vadd.f32 0.0, %v2809
      %v2811 = vpop.f32.mrb[0].mxu0
      %v2812 = vpop.f32.mrb[0].mxu0
      %v2813 = vadd.f32 0.0, %v2812
      %v2814 = vpop.f32.mrb[0].mxu0
      %2815 = vmatprep.mubr.bf16.mxu0 0
      %2816 = vmatmul.mubr.bf16.gmra.mrb[0].mxu0 %v2749
      %v2817 = vpop.f32.mrb[0].mxu0
      %v2818 = vadd.f32 0.0, %v2817
      %v2819 = vpop.f32.mrb[0].mxu0
      %v2820 = vpop.f32.mrb[0].mxu0
      %v2821 = vadd.f32 0.0, %v2820
      %v2822 = vpop.f32.mrb[0].mxu0
      %2823 = vdwg.mxu0
      %v2824 = vadd.f32 %v2694, %v2786
      %v2825 = vadd.f32 %v2695, %v2789
      %v2826 = vadd.f32 %v2696, %v2794
      %v2827 = vadd.f32 %v2697, %v2797
      %v2828 = vadd.f32 %v2698, %v2802
      %v2829 = vadd.f32 %v2699, %v2805
      %v2830 = vadd.f32 %v2700, %v2810
      %v2831 = vadd.f32 %v2701, %v2813
      %v2832 = vadd.f32 %v2702, %v2818
      %v2833 = vadd.f32 %v2703, %v2821
      %v2834 = vld [vmem:[#allocation2 + $0x16] sm:$0xff]
      %v2835 = vld [vmem:[#allocation2 + $0x1e] sm:$0xff]
      %v2836 = vld [vmem:[#allocation2 + $0x26] sm:$0xff]
      %v2837 = vld [vmem:[#allocation2 + $0x2e] sm:$0xff]
      %v2838 = vld [vmem:[#allocation2 + $0x36] sm:$0xff]
      %v2839 = vld [vmem:[#allocation2 + $0x3e] sm:$0xff]
      %v2840 = vld [vmem:[#allocation2 + $0x46] sm:$0xff]
      %v2841 = vld [vmem:[#allocation2 + $0x4e] sm:$0xff]
      %v2842 = vld [vmem:[#allocation2 + $0x56] sm:$0xff]
      %v2843 = vld [vmem:[#allocation2 + $0x5e] sm:$0xff]
      %v2844 = vpack.c.bf16 %v2835, %v2834
      %v2845 = vpack.c.bf16 %v2837, %v2836
      %v2846 = vpack.c.bf16 %v2839, %v2838
      %v2847 = vpack.c.bf16 %v2841, %v2840
      %v2848 = vpack.c.bf16 %v2843, %v2842
      %s2849 = scalar_lea.vmem %s3, 128
      %v2850 = vld [vmem:[%s2849] sm:$0xf]
      %v2851 = vld [vmem:[%s2849 + $0x4] sm:$0xf]
      %v2852 = vld [vmem:[%s2849 + $0x8] sm:$0xf]
      %v2853 = vld [vmem:[%s2849 + $0xc] sm:$0xf]
      %v2858 = vunpack.c.l.b16 %v2850
      %v2859 = vunpack.c.l.b16 %v2851
      %v2860 = vunpack.c.l.b16 %v2852
      %v2861 = vunpack.c.l.b16 %v2853
      %v2862 = vpack.c.b16 %v2859, %v2858
      %v2863 = vpack.c.b16 %v2861, %v2860
      %v2867 = vsel %vm388, %v2844, 0
      %v2870 = vsel %vm388, %v2845, 0
      %v2873 = vsel %vm388, %v2846, 0
      %v2876 = vsel %vm388, %v2847, 0
      %v2879 = vsel %vm388, %v2848, 0
      %2881 = vmatprep.subr.bf16.mxu0 0
      %2882 = vmatpush1.bf16.msra.mxu0 %v2862
      %2883 = vmatprep.subr.bf16.mxu0 0
      %2884 = vmatpush1.bf16.msra.mxu0 %v2863
      %2885 = vmatprep.subr.bf16.mxu0 0
      %2886 = vmatpush1.bf16.msra.mxu0 0
      %2887 = vmatprep.subr.bf16.mxu0 0
      %2888 = vmatpush1.bf16.msra.mxu0 0
      %2889 = vmatprep.subr.bf16.mxu0 0
      %2890 = vmatpush1.bf16.msra.mxu0 0
      %2891 = vmatprep.subr.bf16.mxu0 0
      %2892 = vmatpush1.bf16.msra.mxu0 0
      %2893 = vmatprep.subr.bf16.mxu0 0
      %2894 = vmatpush1.bf16.msra.mxu0 0
      %2895 = vmatprep.subr.bf16.mxu0 0
      %2896 = vmatpush1.bf16.msra.mxu0 0
      %2897 = vmatprep.subr.bf16.mxu0 0
      %2898 = vmatpush1.bf16.msra.mxu0 0
      %2899 = vmatprep.subr.bf16.mxu0 0
      %2900 = vmatpush1.bf16.msra.mxu0 0
      %2901 = vmatprep.subr.bf16.mxu0 0
      %2902 = vmatpush1.bf16.msra.mxu0 0
      %2903 = vmatprep.subr.bf16.mxu0 0
      %2904 = vmatpush1.bf16.msra.mxu0 0
      %2905 = vmatprep.subr.bf16.mxu0 0
      %2906 = vmatpush1.bf16.msra.mxu0 0
      %2907 = vmatprep.subr.bf16.mxu0 0
      %2908 = vmatpush1.bf16.msra.mxu0 0
      %2909 = vmatprep.subr.bf16.mxu0 0
      %2910 = vmatpush1.bf16.msra.mxu0 0
      %2911 = vmatprep.subr.bf16.mxu0 0
      %2912 = vmatpush1.bf16.msra.mxu0 0
      %2913 = vmatprep.mubr.bf16.mxu0 0
      %2914 = vmatmul.mubr.bf16.gmra.mrb[0].mxu0 %v2867
      %v2915 = vpop.f32.mrb[0].mxu0
      %v2916 = vadd.f32 0.0, %v2915
      %v2917 = vpop.f32.mrb[0].mxu0
      %v2918 = vpop.f32.mrb[0].mxu0
      %v2919 = vadd.f32 0.0, %v2918
      %v2920 = vpop.f32.mrb[0].mxu0
      %2921 = vmatprep.mubr.bf16.mxu0 0
      %2922 = vmatmul.mubr.bf16.gmra.mrb[0].mxu0 %v2870
      %v2923 = vpop.f32.mrb[0].mxu0
      %v2924 = vadd.f32 0.0, %v2923
      %v2925 = vpop.f32.mrb[0].mxu0
      %v2926 = vpop.f32.mrb[0].mxu0
      %v2927 = vadd.f32 0.0, %v2926
      %v2928 = vpop.f32.mrb[0].mxu0
      %2929 = vmatprep.mubr.bf16.mxu0 0
      %2930 = vmatmul.mubr.bf16.gmra.mrb[0].mxu0 %v2873
      %v2931 = vpop.f32.mrb[0].mxu0
      %v2932 = vadd.f32 0.0, %v2931
      %v2933 = vpop.f32.mrb[0].mxu0
      %v2934 = vpop.f32.mrb[0].mxu0
      %v2935 = vadd.f32 0.0, %v2934
      %v2936 = vpop.f32.mrb[0].mxu0
      %2937 = vmatprep.mubr.bf16.mxu0 0
      %2938 = vmatmul.mubr.bf16.gmra.mrb[0].mxu0 %v2876
      %v2939 = vpop.f32.mrb[0].mxu0
      %v2940 = vadd.f32 0.0, %v2939
      %v2941 = vpop.f32.mrb[0].mxu0
      %v2942 = vpop.f32.mrb[0].mxu0
      %v2943 = vadd.f32 0.0, %v2942
      %v2944 = vpop.f32.mrb[0].mxu0
      %2945 = vmatprep.mubr.bf16.mxu0 0
      %2946 = vmatmul.mubr.bf16.gmra.mrb[0].mxu0 %v2879
      %v2947 = vpop.f32.mrb[0].mxu0
      %v2948 = vadd.f32 0.0, %v2947
      %v2949 = vpop.f32.mrb[0].mxu0
      %v2950 = vpop.f32.mrb[0].mxu0
      %v2951 = vadd.f32 0.0, %v2950
      %v2952 = vpop.f32.mrb[0].mxu0
      %2953 = vdwg.mxu0
      %v2954 = vadd.f32 %v2824, %v2916
      %v2955 = vadd.f32 %v2825, %v2919
      %v2956 = vadd.f32 %v2826, %v2924
      %v2957 = vadd.f32 %v2827, %v2927
      %v2958 = vadd.f32 %v2828, %v2932
      %v2959 = vadd.f32 %v2829, %v2935
      %v2960 = vadd.f32 %v2830, %v2940
      %v2961 = vadd.f32 %v2831, %v2943
      %v2962 = vadd.f32 %v2832, %v2948
      %v2963 = vadd.f32 %v2833, %v2951
      %v2964 = vld [vmem:[%s4] sm:$0x1]
      %v2966 = vlaneseq
      %v2967 = vshrl.u32 %v2966, 7
      %v2968 = vsub.s32 0, %v2967
      %v2969 = vrot.slane %v2964, %v2968
      %v2971 = vadd.f32 %v2954, %v2969
      %v2972 = vadd.f32 %v2955, %v2969
      %v2973 = vadd.f32 %v2956, %v2969
      %v2974 = vadd.f32 %v2957, %v2969
      %v2975 = vadd.f32 %v2958, %v2969
      %v2976 = vadd.f32 %v2959, %v2969
      %v2977 = vadd.f32 %v2960, %v2969
      %v2978 = vadd.f32 %v2961, %v2969
      %v2979 = vadd.f32 %v2962, %v2969
      %v2980 = vadd.f32 %v2963, %v2969
      %v2981 = vmax.f32 %v2971, 0.0
      %v2982 = vmax.f32 %v2972, 0.0
      %v2983 = vmax.f32 %v2973, 0.0
      %v2984 = vmax.f32 %v2974, 0.0
      %v2985 = vmax.f32 %v2975, 0.0
      %v2986 = vmax.f32 %v2976, 0.0
      %v2987 = vmax.f32 %v2977, 0.0
      %v2988 = vmax.f32 %v2978, 0.0
      %v2989 = vmax.f32 %v2979, 0.0
      %v2990 = vmax.f32 %v2980, 0.0
      %v2991 = vsel %vm1785, %v2981, 0.0
      %v2992 = vsel %vm1786, %v2982, 0.0
      %v2993 = vsel %vm1787, %v2983, 0.0
      %v2994 = vsel %vm1788, %v2984, 0.0
      %v2995 = vsel %vm1789, %v2985, 0.0
      %v2996 = vsel %vm1790, %v2986, 0.0
      %v2997 = vsel %vm1791, %v2987, 0.0
      %v2998 = vsel %vm1792, %v2988, 0.0
      %v2999 = vsel %vm1793, %v2989, 0.0
      %v3000 = vsel %vm1794, %v2990, 0.0
      %3001 = vst.msk [vmem:[#allocation3 + $0xb] sm:$0xff] %vm388, %v2991
      %3002 = vst.msk [vmem:[#allocation3 + $0x13] sm:$0xff] %vm388, %v2992
      %3003 = vst.msk [vmem:[#allocation3 + $0x1b] sm:$0xff] %vm388, %v2993
      %3004 = vst.msk [vmem:[#allocation3 + $0x23] sm:$0xff] %vm388, %v2994
      %3005 = vst.msk [vmem:[#allocation3 + $0x2b] sm:$0xff] %vm388, %v2995
      %3006 = vst.msk [vmem:[#allocation3 + $0x33] sm:$0xff] %vm388, %v2996
      %3007 = vst.msk [vmem:[#allocation3 + $0x3b] sm:$0xff] %vm388, %v2997
      %3008 = vst.msk [vmem:[#allocation3 + $0x43] sm:$0xff] %vm388, %v2998
      %3009 = vst.msk [vmem:[#allocation3 + $0x4b] sm:$0xff] %vm388, %v2999
      %3010 = vst.msk [vmem:[#allocation3 + $0x53] sm:$0xff] %vm388, %v3000
      %v3011 = vld [vmem:[#allocation3] sm:$0xff]
      %v3012 = vld [vmem:[#allocation3 + $0x8] sm:$0xff]
      %v3013 = vld [vmem:[#allocation3 + $0x10] sm:$0xff]
      %v3014 = vld [vmem:[#allocation3 + $0x18] sm:$0xff]
      %v3015 = vld [vmem:[#allocation3 + $0x20] sm:$0xff]
      %v3016 = vld [vmem:[#allocation3 + $0x28] sm:$0xff]
      %v3017 = vld [vmem:[#allocation3 + $0x30] sm:$0xff]
      %v3018 = vld [vmem:[#allocation3 + $0x38] sm:$0xff]
      %v3019 = vld [vmem:[#allocation3 + $0x40] sm:$0xff]
      %v3020 = vld [vmem:[#allocation3 + $0x48] sm:$0xff]
      %v3021 = vpack.c.bf16 %v3012, %v3011
      %v3022 = vpack.c.bf16 %v3014, %v3013
      %v3023 = vpack.c.bf16 %v3016, %v3015
      %v3024 = vpack.c.bf16 %v3018, %v3017
      %v3025 = vpack.c.bf16 %v3020, %v3019
      %v3026 = vld [vmem:[%s5] sm:$0xf]
      %v3027 = vld [vmem:[%s5 + $0x4] sm:$0xf]
      %v3028 = vld [vmem:[%s5 + $0x8] sm:$0xf]
      %v3029 = vld [vmem:[%s5 + $0xc] sm:$0xf]
      %v3030 = vld [vmem:[#allocation3 + $0x1] sm:$0xff]
      %v3031 = vld [vmem:[#allocation3 + $0x9] sm:$0xff]
      %v3032 = vld [vmem:[#allocation3 + $0x11] sm:$0xff]
      %v3033 = vld [vmem:[#allocation3 + $0x19] sm:$0xff]
      %v3034 = vld [vmem:[#allocation3 + $0x21] sm:$0xff]
      %v3035 = vld [vmem:[#allocation3 + $0x29] sm:$0xff]
      %v3036 = vld [vmem:[#allocation3 + $0x31] sm:$0xff]
      %v3037 = vld [vmem:[#allocation3 + $0x39] sm:$0xff]
      %v3038 = vld [vmem:[#allocation3 + $0x41] sm:$0xff]
      %v3039 = vld [vmem:[#allocation3 + $0x49] sm:$0xff]
      %v3040 = vpack.c.bf16 %v3031, %v3030
      %v3041 = vpack.c.bf16 %v3033, %v3032
      %v3042 = vpack.c.bf16 %v3035, %v3034
      %v3043 = vpack.c.bf16 %v3037, %v3036
      %v3044 = vpack.c.bf16 %v3039, %v3038
      %s3045 = scalar_lea.vmem %s5, 16
      %v3046 = vld [vmem:[%s3045] sm:$0xf]
      %v3047 = vld [vmem:[%s3045 + $0x4] sm:$0xf]
      %v3048 = vld [vmem:[%s3045 + $0x8] sm:$0xf]
      %v3049 = vld [vmem:[%s3045 + $0xc] sm:$0xf]
      %v3054 = vunpack.c.l.b16 %v3046
      %v3055 = vunpack.c.l.b16 %v3047
      %v3056 = vunpack.c.l.b16 %v3048
      %v3057 = vunpack.c.l.b16 %v3049
      %v3058 = vpack.c.b16 %v3055, %v3054
      %v3059 = vpack.c.b16 %v3057, %v3056
      %v3063 = vsel %vm388, %v3040, 0
      %v3066 = vsel %vm388, %v3041, 0
      %v3069 = vsel %vm388, %v3042, 0
      %v3072 = vsel %vm388, %v3043, 0
      %v3075 = vsel %vm388, %v3044, 0
      %3077 = vmatprep.subr.bf16.mxu0 0
      %3078 = vmatpush1.bf16.msra.mxu0 %v3058
      %3079 = vmatprep.subr.bf16.mxu0 0
      %3080 = vmatpush1.bf16.msra.mxu0 %v3059
      %3081 = vmatprep.subr.bf16.mxu0 0
      %3082 = vmatpush1.bf16.msra.mxu0 0
      %3083 = vmatprep.subr.bf16.mxu0 0
      %3084 = vmatpush1.bf16.msra.mxu0 0
      %3085 = vmatprep.subr.bf16.mxu0 0
      %3086 = vmatpush1.bf16.msra.mxu0 0
      %3087 = vmatprep.subr.bf16.mxu0 0
      %3088 = vmatpush1.bf16.msra.mxu0 0
      %3089 = vmatprep.subr.bf16.mxu0 0
      %3090 = vmatpush1.bf16.msra.mxu0 0
      %3091 = vmatprep.subr.bf16.mxu0 0
      %3092 = vmatpush1.bf16.msra.mxu0 0
      %3093 = vmatprep.subr.bf16.mxu0 0
      %3094 = vmatpush1.bf16.msra.mxu0 0
      %3095 = vmatprep.subr.bf16.mxu0 0
      %3096 = vmatpush1.bf16.msra.mxu0 0
      %3097 = vmatprep.subr.bf16.mxu0 0
      %3098 = vmatpush1.bf16.msra.mxu0 0
      %3099 = vmatprep.subr.bf16.mxu0 0
      %3100 = vmatpush1.bf16.msra.mxu0 0
      %3101 = vmatprep.subr.bf16.mxu0 0
      %3102 = vmatpush1.bf16.msra.mxu0 0
      %3103 = vmatprep.subr.bf16.mxu0 0
      %3104 = vmatpush1.bf16.msra.mxu0 0
      %3105 = vmatprep.subr.bf16.mxu0 0
      %3106 = vmatpush1.bf16.msra.mxu0 0
      %3107 = vmatprep.subr.bf16.mxu0 0
      %3108 = vmatpush1.bf16.msra.mxu0 0
      %3109 = vmatprep.mubr.bf16.mxu0 0
      %3110 = vmatmul.mubr.bf16.gmra.mrb[0].mxu0 %v3063
      %v3111 = vpop.f32.mrb[0].mxu0
      %v3112 = vadd.f32 0.0, %v3111
      %v3113 = vpop.f32.mrb[0].mxu0
      %v3114 = vpop.f32.mrb[0].mxu0
      %v3115 = vadd.f32 0.0, %v3114
      %v3116 = vpop.f32.mrb[0].mxu0
      %3117 = vmatprep.mubr.bf16.mxu0 0
      %3118 = vmatmul.mubr.bf16.gmra.mrb[0].mxu0 %v3066
      %v3119 = vpop.f32.mrb[0].mxu0
      %v3120 = vadd.f32 0.0, %v3119
      %v3121 = vpop.f32.mrb[0].mxu0
      %v3122 = vpop.f32.mrb[0].mxu0
      %v3123 = vadd.f32 0.0, %v3122
      %v3124 = vpop.f32.mrb[0].mxu0
      %3125 = vmatprep.mubr.bf16.mxu0 0
      %3126 = vmatmul.mubr.bf16.gmra.mrb[0].mxu0 %v3069
      %v3127 = vpop.f32.mrb[0].mxu0
      %v3128 = vadd.f32 0.0, %v3127
      %v3129 = vpop.f32.mrb[0].mxu0
      %v3130 = vpop.f32.mrb[0].mxu0
      %v3131 = vadd.f32 0.0, %v3130
      %v3132 = vpop.f32.mrb[0].mxu0
      %3133 = vmatprep.mubr.bf16.mxu0 0
      %3134 = vmatmul.mubr.bf16.gmra.mrb[0].mxu0 %v3072
      %v3135 = vpop.f32.mrb[0].mxu0
      %v3136 = vadd.f32 0.0, %v3135
      %v3137 = vpop.f32.mrb[0].mxu0
      %v3138 = vpop.f32.mrb[0].mxu0
      %v3139 = vadd.f32 0.0, %v3138
      %v3140 = vpop.f32.mrb[0].mxu0
      %3141 = vmatprep.mubr.bf16.mxu0 0
      %3142 = vmatmul.mubr.bf16.gmra.mrb[0].mxu0 %v3075
      %v3143 = vpop.f32.mrb[0].mxu0
      %v3144 = vadd.f32 0.0, %v3143
      %v3145 = vpop.f32.mrb[0].mxu0
      %v3146 = vpop.f32.mrb[0].mxu0
      %v3147 = vadd.f32 0.0, %v3146
      %v3148 = vpop.f32.mrb[0].mxu0
      %3149 = vdwg.mxu0
      %v3154 = vunpack.c.l.b16 %v3026
      %v3155 = vunpack.c.l.b16 %v3027
      %v3156 = vunpack.c.l.b16 %v3028
      %v3157 = vunpack.c.l.b16 %v3029
      %v3158 = vpack.c.b16 %v3155, %v3154
      %v3159 = vpack.c.b16 %v3157, %v3156
      %v3163 = vsel %vm388, %v3021, 0
      %v3166 = vsel %vm388, %v3022, 0
      %v3169 = vsel %vm388, %v3023, 0
      %v3172 = vsel %vm388, %v3024, 0
      %v3175 = vsel %vm388, %v3025, 0
      %3177 = vmatprep.subr.bf16.mxu0 0
      %3178 = vmatpush1.bf16.msra.mxu0 %v3158
      %3179 = vmatprep.subr.bf16.mxu0 0
      %3180 = vmatpush1.bf16.msra.mxu0 %v3159
      %3181 = vmatprep.subr.bf16.mxu0 0
      %3182 = vmatpush1.bf16.msra.mxu0 0
      %3183 = vmatprep.subr.bf16.mxu0 0
      %3184 = vmatpush1.bf16.msra.mxu0 0
      %3185 = vmatprep.subr.bf16.mxu0 0
      %3186 = vmatpush1.bf16.msra.mxu0 0
      %3187 = vmatprep.subr.bf16.mxu0 0
      %3188 = vmatpush1.bf16.msra.mxu0 0
      %3189 = vmatprep.subr.bf16.mxu0 0
      %3190 = vmatpush1.bf16.msra.mxu0 0
      %3191 = vmatprep.subr.bf16.mxu0 0
      %3192 = vmatpush1.bf16.msra.mxu0 0
      %3193 = vmatprep.subr.bf16.mxu0 0
      %3194 = vmatpush1.bf16.msra.mxu0 0
      %3195 = vmatprep.subr.bf16.mxu0 0
      %3196 = vmatpush1.bf16.msra.mxu0 0
      %3197 = vmatprep.subr.bf16.mxu0 0
      %3198 = vmatpush1.bf16.msra.mxu0 0
      %3199 = vmatprep.subr.bf16.mxu0 0
      %3200 = vmatpush1.bf16.msra.mxu0 0
      %3201 = vmatprep.subr.bf16.mxu0 0
      %3202 = vmatpush1.bf16.msra.mxu0 0
      %3203 = vmatprep.subr.bf16.mxu0 0
      %3204 = vmatpush1.bf16.msra.mxu0 0
      %3205 = vmatprep.subr.bf16.mxu0 0
      %3206 = vmatpush1.bf16.msra.mxu0 0
      %3207 = vmatprep.subr.bf16.mxu0 0
      %3208 = vmatpush1.bf16.msra.mxu0 0
      %3209 = vmatprep.mubr.bf16.mxu0 0
      %3210 = vmatmul.mubr.bf16.gmra.mrb[0].mxu0 %v3163
      %v3211 = vpop.f32.mrb[0].mxu0
      %v3212 = vadd.f32 %v3112, %v3211
      %v3213 = vpop.f32.mrb[0].mxu0
      %v3214 = vpop.f32.mrb[0].mxu0
      %v3215 = vadd.f32 %v3115, %v3214
      %v3216 = vpop.f32.mrb[0].mxu0
      %3217 = vmatprep.mubr.bf16.mxu0 0
      %3218 = vmatmul.mubr.bf16.gmra.mrb[0].mxu0 %v3166
      %v3219 = vpop.f32.mrb[0].mxu0
      %v3220 = vadd.f32 %v3120, %v3219
      %v3221 = vpop.f32.mrb[0].mxu0
      %v3222 = vpop.f32.mrb[0].mxu0
      %v3223 = vadd.f32 %v3123, %v3222
      %v3224 = vpop.f32.mrb[0].mxu0
      %3225 = vmatprep.mubr.bf16.mxu0 0
      %3226 = vmatmul.mubr.bf16.gmra.mrb[0].mxu0 %v3169
      %v3227 = vpop.f32.mrb[0].mxu0
      %v3228 = vadd.f32 %v3128, %v3227
      %v3229 = vpop.f32.mrb[0].mxu0
      %v3230 = vpop.f32.mrb[0].mxu0
      %v3231 = vadd.f32 %v3131, %v3230
      %v3232 = vpop.f32.mrb[0].mxu0
      %3233 = vmatprep.mubr.bf16.mxu0 0
      %3234 = vmatmul.mubr.bf16.gmra.mrb[0].mxu0 %v3172
      %v3235 = vpop.f32.mrb[0].mxu0
      %v3236 = vadd.f32 %v3136, %v3235
      %v3237 = vpop.f32.mrb[0].mxu0
      %v3238 = vpop.f32.mrb[0].mxu0
      %v3239 = vadd.f32 %v3139, %v3238
      %v3240 = vpop.f32.mrb[0].mxu0
      %3241 = vmatprep.mubr.bf16.mxu0 0
      %3242 = vmatmul.mubr.bf16.gmra.mrb[0].mxu0 %v3175
      %v3243 = vpop.f32.mrb[0].mxu0
      %v3244 = vadd.f32 %v3144, %v3243
      %v3245 = vpop.f32.mrb[0].mxu0
      %v3246 = vpop.f32.mrb[0].mxu0
      %v3247 = vadd.f32 %v3147, %v3246
      %v3248 = vpop.f32.mrb[0].mxu0
      %3249 = vdwg.mxu0
      %v3250 = vld [vmem:[#allocation3 + $0x2] sm:$0xff]
      %v3251 = vld [vmem:[#allocation3 + $0xa] sm:$0xff]
      %v3252 = vld [vmem:[#allocation3 + $0x12] sm:$0xff]
      %v3253 = vld [vmem:[#allocation3 + $0x1a] sm:$0xff]
      %v3254 = vld [vmem:[#allocation3 + $0x22] sm:$0xff]
      %v3255 = vld [vmem:[#allocation3 + $0x2a] sm:$0xff]
      %v3256 = vld [vmem:[#allocation3 + $0x32] sm:$0xff]
      %v3257 = vld [vmem:[#allocation3 + $0x3a] sm:$0xff]
      %v3258 = vld [vmem:[#allocation3 + $0x42] sm:$0xff]
      %v3259 = vld [vmem:[#allocation3 + $0x4a] sm:$0xff]
      %v3260 = vpack.c.bf16 %v3251, %v3250
      %v3261 = vpack.c.bf16 %v3253, %v3252
      %v3262 = vpack.c.bf16 %v3255, %v3254
      %v3263 = vpack.c.bf16 %v3257, %v3256
      %v3264 = vpack.c.bf16 %v3259, %v3258
      %s3265 = scalar_lea.vmem %s5, 32
      %v3266 = vld [vmem:[%s3265] sm:$0xf]
      %v3267 = vld [vmem:[%s3265 + $0x4] sm:$0xf]
      %v3268 = vld [vmem:[%s3265 + $0x8] sm:$0xf]
      %v3269 = vld [vmem:[%s3265 + $0xc] sm:$0xf]
      %v3274 = vunpack.c.l.b16 %v3266
      %v3275 = vunpack.c.l.b16 %v3267
      %v3276 = vunpack.c.l.b16 %v3268
      %v3277 = vunpack.c.l.b16 %v3269
      %v3278 = vpack.c.b16 %v3275, %v3274
      %v3279 = vpack.c.b16 %v3277, %v3276
      %v3283 = vsel %vm388, %v3260, 0
      %v3286 = vsel %vm388, %v3261, 0
      %v3289 = vsel %vm388, %v3262, 0
      %v3292 = vsel %vm388, %v3263, 0
      %v3295 = vsel %vm388, %v3264, 0
      %3297 = vmatprep.subr.bf16.mxu0 0
      %3298 = vmatpush1.bf16.msra.mxu0 %v3278
      %3299 = vmatprep.subr.bf16.mxu0 0
      %3300 = vmatpush1.bf16.msra.mxu0 %v3279
      %3301 = vmatprep.subr.bf16.mxu0 0
      %3302 = vmatpush1.bf16.msra.mxu0 0
      %3303 = vmatprep.subr.bf16.mxu0 0
      %3304 = vmatpush1.bf16.msra.mxu0 0
      %3305 = vmatprep.subr.bf16.mxu0 0
      %3306 = vmatpush1.bf16.msra.mxu0 0
      %3307 = vmatprep.subr.bf16.mxu0 0
      %3308 = vmatpush1.bf16.msra.mxu0 0
      %3309 = vmatprep.subr.bf16.mxu0 0
      %3310 = vmatpush1.bf16.msra.mxu0 0
      %3311 = vmatprep.subr.bf16.mxu0 0
      %3312 = vmatpush1.bf16.msra.mxu0 0
      %3313 = vmatprep.subr.bf16.mxu0 0
      %3314 = vmatpush1.bf16.msra.mxu0 0
      %3315 = vmatprep.subr.bf16.mxu0 0
      %3316 = vmatpush1.bf16.msra.mxu0 0
      %3317 = vmatprep.subr.bf16.mxu0 0
      %3318 = vmatpush1.bf16.msra.mxu0 0
      %3319 = vmatprep.subr.bf16.mxu0 0
      %3320 = vmatpush1.bf16.msra.mxu0 0
      %3321 = vmatprep.subr.bf16.mxu0 0
      %3322 = vmatpush1.bf16.msra.mxu0 0
      %3323 = vmatprep.subr.bf16.mxu0 0
      %3324 = vmatpush1.bf16.msra.mxu0 0
      %3325 = vmatprep.subr.bf16.mxu0 0
      %3326 = vmatpush1.bf16.msra.mxu0 0
      %3327 = vmatprep.subr.bf16.mxu0 0
      %3328 = vmatpush1.bf16.msra.mxu0 0
      %3329 = vmatprep.mubr.bf16.mxu0 0
      %3330 = vmatmul.mubr.bf16.gmra.mrb[0].mxu0 %v3283
      %v3331 = vpop.f32.mrb[0].mxu0
      %v3332 = vadd.f32 0.0, %v3331
      %v3333 = vpop.f32.mrb[0].mxu0
      %v3334 = vpop.f32.mrb[0].mxu0
      %v3335 = vadd.f32 0.0, %v3334
      %v3336 = vpop.f32.mrb[0].mxu0
      %3337 = vmatprep.mubr.bf16.mxu0 0
      %3338 = vmatmul.mubr.bf16.gmra.mrb[0].mxu0 %v3286
      %v3339 = vpop.f32.mrb[0].mxu0
      %v3340 = vadd.f32 0.0, %v3339
      %v3341 = vpop.f32.mrb[0].mxu0
      %v3342 = vpop.f32.mrb[0].mxu0
      %v3343 = vadd.f32 0.0, %v3342
      %v3344 = vpop.f32.mrb[0].mxu0
      %3345 = vmatprep.mubr.bf16.mxu0 0
      %3346 = vmatmul.mubr.bf16.gmra.mrb[0].mxu0 %v3289
      %v3347 = vpop.f32.mrb[0].mxu0
      %v3348 = vadd.f32 0.0, %v3347
      %v3349 = vpop.f32.mrb[0].mxu0
      %v3350 = vpop.f32.mrb[0].mxu0
      %v3351 = vadd.f32 0.0, %v3350
      %v3352 = vpop.f32.mrb[0].mxu0
      %3353 = vmatprep.mubr.bf16.mxu0 0
      %3354 = vmatmul.mubr.bf16.gmra.mrb[0].mxu0 %v3292
      %v3355 = vpop.f32.mrb[0].mxu0
      %v3356 = vadd.f32 0.0, %v3355
      %v3357 = vpop.f32.mrb[0].mxu0
      %v3358 = vpop.f32.mrb[0].mxu0
      %v3359 = vadd.f32 0.0, %v3358
      %v3360 = vpop.f32.mrb[0].mxu0
      %3361 = vmatprep.mubr.bf16.mxu0 0
      %3362 = vmatmul.mubr.bf16.gmra.mrb[0].mxu0 %v3295
      %v3363 = vpop.f32.mrb[0].mxu0
      %v3364 = vadd.f32 0.0, %v3363
      %v3365 = vpop.f32.mrb[0].mxu0
      %v3366 = vpop.f32.mrb[0].mxu0
      %v3367 = vadd.f32 0.0, %v3366
      %v3368 = vpop.f32.mrb[0].mxu0
      %3369 = vdwg.mxu0
      %v3370 = vadd.f32 %v3212, %v3332
      %v3371 = vadd.f32 %v3215, %v3335
      %v3372 = vadd.f32 %v3220, %v3340
      %v3373 = vadd.f32 %v3223, %v3343
      %v3374 = vadd.f32 %v3228, %v3348
      %v3375 = vadd.f32 %v3231, %v3351
      %v3376 = vadd.f32 %v3236, %v3356
      %v3377 = vadd.f32 %v3239, %v3359
      %v3378 = vadd.f32 %v3244, %v3364
      %v3379 = vadd.f32 %v3247, %v3367
      %v3380 = vld [vmem:[#allocation3 + $0xa] sm:$0xff]
      %v3381 = vld [vmem:[#allocation3 + $0x12] sm:$0xff]
      %v3382 = vld [vmem:[#allocation3 + $0x1a] sm:$0xff]
      %v3383 = vld [vmem:[#allocation3 + $0x22] sm:$0xff]
      %v3384 = vld [vmem:[#allocation3 + $0x2a] sm:$0xff]
      %v3385 = vld [vmem:[#allocation3 + $0x32] sm:$0xff]
      %v3386 = vld [vmem:[#allocation3 + $0x3a] sm:$0xff]
      %v3387 = vld [vmem:[#allocation3 + $0x42] sm:$0xff]
      %v3388 = vld [vmem:[#allocation3 + $0x4a] sm:$0xff]
      %v3389 = vld [vmem:[#allocation3 + $0x52] sm:$0xff]
      %v3390 = vpack.c.bf16 %v3381, %v3380
      %v3391 = vpack.c.bf16 %v3383, %v3382
      %v3392 = vpack.c.bf16 %v3385, %v3384
      %v3393 = vpack.c.bf16 %v3387, %v3386
      %v3394 = vpack.c.bf16 %v3389, %v3388
      %s3395 = scalar_lea.vmem %s5, 48
      %v3396 = vld [vmem:[%s3395] sm:$0xf]
      %v3397 = vld [vmem:[%s3395 + $0x4] sm:$0xf]
      %v3398 = vld [vmem:[%s3395 + $0x8] sm:$0xf]
      %v3399 = vld [vmem:[%s3395 + $0xc] sm:$0xf]
      %v3404 = vunpack.c.l.b16 %v3396
      %v3405 = vunpack.c.l.b16 %v3397
      %v3406 = vunpack.c.l.b16 %v3398
      %v3407 = vunpack.c.l.b16 %v3399
      %v3408 = vpack.c.b16 %v3405, %v3404
      %v3409 = vpack.c.b16 %v3407, %v3406
      %v3413 = vsel %vm388, %v3390, 0
      %v3416 = vsel %vm388, %v3391, 0
      %v3419 = vsel %vm388, %v3392, 0
      %v3422 = vsel %vm388, %v3393, 0
      %v3425 = vsel %vm388, %v3394, 0
      %3427 = vmatprep.subr.bf16.mxu0 0
      %3428 = vmatpush1.bf16.msra.mxu0 %v3408
      %3429 = vmatprep.subr.bf16.mxu0 0
      %3430 = vmatpush1.bf16.msra.mxu0 %v3409
      %3431 = vmatprep.subr.bf16.mxu0 0
      %3432 = vmatpush1.bf16.msra.mxu0 0
      %3433 = vmatprep.subr.bf16.mxu0 0
      %3434 = vmatpush1.bf16.msra.mxu0 0
      %3435 = vmatprep.subr.bf16.mxu0 0
      %3436 = vmatpush1.bf16.msra.mxu0 0
      %3437 = vmatprep.subr.bf16.mxu0 0
      %3438 = vmatpush1.bf16.msra.mxu0 0
      %3439 = vmatprep.subr.bf16.mxu0 0
      %3440 = vmatpush1.bf16.msra.mxu0 0
      %3441 = vmatprep.subr.bf16.mxu0 0
      %3442 = vmatpush1.bf16.msra.mxu0 0
      %3443 = vmatprep.subr.bf16.mxu0 0
      %3444 = vmatpush1.bf16.msra.mxu0 0
      %3445 = vmatprep.subr.bf16.mxu0 0
      %3446 = vmatpush1.bf16.msra.mxu0 0
      %3447 = vmatprep.subr.bf16.mxu0 0
      %3448 = vmatpush1.bf16.msra.mxu0 0
      %3449 = vmatprep.subr.bf16.mxu0 0
      %3450 = vmatpush1.bf16.msra.mxu0 0
      %3451 = vmatprep.subr.bf16.mxu0 0
      %3452 = vmatpush1.bf16.msra.mxu0 0
      %3453 = vmatprep.subr.bf16.mxu0 0
      %3454 = vmatpush1.bf16.msra.mxu0 0
      %3455 = vmatprep.subr.bf16.mxu0 0
      %3456 = vmatpush1.bf16.msra.mxu0 0
      %3457 = vmatprep.subr.bf16.mxu0 0
      %3458 = vmatpush1.bf16.msra.mxu0 0
      %3459 = vmatprep.mubr.bf16.mxu0 0
      %3460 = vmatmul.mubr.bf16.gmra.mrb[0].mxu0 %v3413
      %v3461 = vpop.f32.mrb[0].mxu0
      %v3462 = vadd.f32 0.0, %v3461
      %v3463 = vpop.f32.mrb[0].mxu0
      %v3464 = vpop.f32.mrb[0].mxu0
      %v3465 = vadd.f32 0.0, %v3464
      %v3466 = vpop.f32.mrb[0].mxu0
      %3467 = vmatprep.mubr.bf16.mxu0 0
      %3468 = vmatmul.mubr.bf16.gmra.mrb[0].mxu0 %v3416
      %v3469 = vpop.f32.mrb[0].mxu0
      %v3470 = vadd.f32 0.0, %v3469
      %v3471 = vpop.f32.mrb[0].mxu0
      %v3472 = vpop.f32.mrb[0].mxu0
      %v3473 = vadd.f32 0.0, %v3472
      %v3474 = vpop.f32.mrb[0].mxu0
      %3475 = vmatprep.mubr.bf16.mxu0 0
      %3476 = vmatmul.mubr.bf16.gmra.mrb[0].mxu0 %v3419
      %v3477 = vpop.f32.mrb[0].mxu0
      %v3478 = vadd.f32 0.0, %v3477
      %v3479 = vpop.f32.mrb[0].mxu0
      %v3480 = vpop.f32.mrb[0].mxu0
      %v3481 = vadd.f32 0.0, %v3480
      %v3482 = vpop.f32.mrb[0].mxu0
      %3483 = vmatprep.mubr.bf16.mxu0 0
      %3484 = vmatmul.mubr.bf16.gmra.mrb[0].mxu0 %v3422
      %v3485 = vpop.f32.mrb[0].mxu0
      %v3486 = vadd.f32 0.0, %v3485
      %v3487 = vpop.f32.mrb[0].mxu0
      %v3488 = vpop.f32.mrb[0].mxu0
      %v3489 = vadd.f32 0.0, %v3488
      %v3490 = vpop.f32.mrb[0].mxu0
      %3491 = vmatprep.mubr.bf16.mxu0 0
      %3492 = vmatmul.mubr.bf16.gmra.mrb[0].mxu0 %v3425
      %v3493 = vpop.f32.mrb[0].mxu0
      %v3494 = vadd.f32 0.0, %v3493
      %v3495 = vpop.f32.mrb[0].mxu0
      %v3496 = vpop.f32.mrb[0].mxu0
      %v3497 = vadd.f32 0.0, %v3496
      %v3498 = vpop.f32.mrb[0].mxu0
      %3499 = vdwg.mxu0
      %v3500 = vadd.f32 %v3370, %v3462
      %v3501 = vadd.f32 %v3371, %v3465
      %v3502 = vadd.f32 %v3372, %v3470
      %v3503 = vadd.f32 %v3373, %v3473
      %v3504 = vadd.f32 %v3374, %v3478
      %v3505 = vadd.f32 %v3375, %v3481
      %v3506 = vadd.f32 %v3376, %v3486
      %v3507 = vadd.f32 %v3377, %v3489
      %v3508 = vadd.f32 %v3378, %v3494
      %v3509 = vadd.f32 %v3379, %v3497
      %v3510 = vld [vmem:[#allocation3 + $0xb] sm:$0xff]
      %v3511 = vld [vmem:[#allocation3 + $0x13] sm:$0xff]
      %v3512 = vld [vmem:[#allocation3 + $0x1b] sm:$0xff]
      %v3513 = vld [vmem:[#allocation3 + $0x23] sm:$0xff]
      %v3514 = vld [vmem:[#allocation3 + $0x2b] sm:$0xff]
      %v3515 = vld [vmem:[#allocation3 + $0x33] sm:$0xff]
      %v3516 = vld [vmem:[#allocation3 + $0x3b] sm:$0xff]
      %v3517 = vld [vmem:[#allocation3 + $0x43] sm:$0xff]
      %v3518 = vld [vmem:[#allocation3 + $0x4b] sm:$0xff]
      %v3519 = vld [vmem:[#allocation3 + $0x53] sm:$0xff]
      %v3520 = vpack.c.bf16 %v3511, %v3510
      %v3521 = vpack.c.bf16 %v3513, %v3512
      %v3522 = vpack.c.bf16 %v3515, %v3514
      %v3523 = vpack.c.bf16 %v3517, %v3516
      %v3524 = vpack.c.bf16 %v3519, %v3518
      %s3525 = scalar_lea.vmem %s5, 64
      %v3526 = vld [vmem:[%s3525] sm:$0xf]
      %v3527 = vld [vmem:[%s3525 + $0x4] sm:$0xf]
      %v3528 = vld [vmem:[%s3525 + $0x8] sm:$0xf]
      %v3529 = vld [vmem:[%s3525 + $0xc] sm:$0xf]
      %v3534 = vunpack.c.l.b16 %v3526
      %v3535 = vunpack.c.l.b16 %v3527
      %v3536 = vunpack.c.l.b16 %v3528
      %v3537 = vunpack.c.l.b16 %v3529
      %v3538 = vpack.c.b16 %v3535, %v3534
      %v3539 = vpack.c.b16 %v3537, %v3536
      %v3543 = vsel %vm388, %v3520, 0
      %v3546 = vsel %vm388, %v3521, 0
      %v3549 = vsel %vm388, %v3522, 0
      %v3552 = vsel %vm388, %v3523, 0
      %v3555 = vsel %vm388, %v3524, 0
      %3557 = vmatprep.subr.bf16.mxu0 0
      %3558 = vmatpush1.bf16.msra.mxu0 %v3538
      %3559 = vmatprep.subr.bf16.mxu0 0
      %3560 = vmatpush1.bf16.msra.mxu0 %v3539
      %3561 = vmatprep.subr.bf16.mxu0 0
      %3562 = vmatpush1.bf16.msra.mxu0 0
      %3563 = vmatprep.subr.bf16.mxu0 0
      %3564 = vmatpush1.bf16.msra.mxu0 0
      %3565 = vmatprep.subr.bf16.mxu0 0
      %3566 = vmatpush1.bf16.msra.mxu0 0
      %3567 = vmatprep.subr.bf16.mxu0 0
      %3568 = vmatpush1.bf16.msra.mxu0 0
      %3569 = vmatprep.subr.bf16.mxu0 0
      %3570 = vmatpush1.bf16.msra.mxu0 0
      %3571 = vmatprep.subr.bf16.mxu0 0
      %3572 = vmatpush1.bf16.msra.mxu0 0
      %3573 = vmatprep.subr.bf16.mxu0 0
      %3574 = vmatpush1.bf16.msra.mxu0 0
      %3575 = vmatprep.subr.bf16.mxu0 0
      %3576 = vmatpush1.bf16.msra.mxu0 0
      %3577 = vmatprep.subr.bf16.mxu0 0
      %3578 = vmatpush1.bf16.msra.mxu0 0
      %3579 = vmatprep.subr.bf16.mxu0 0
      %3580 = vmatpush1.bf16.msra.mxu0 0
      %3581 = vmatprep.subr.bf16.mxu0 0
      %3582 = vmatpush1.bf16.msra.mxu0 0
      %3583 = vmatprep.subr.bf16.mxu0 0
      %3584 = vmatpush1.bf16.msra.mxu0 0
      %3585 = vmatprep.subr.bf16.mxu0 0
      %3586 = vmatpush1.bf16.msra.mxu0 0
      %3587 = vmatprep.subr.bf16.mxu0 0
      %3588 = vmatpush1.bf16.msra.mxu0 0
      %3589 = vmatprep.mubr.bf16.mxu0 0
      %3590 = vmatmul.mubr.bf16.gmra.mrb[0].mxu0 %v3543
      %v3591 = vpop.f32.mrb[0].mxu0
      %v3592 = vadd.f32 0.0, %v3591
      %v3593 = vpop.f32.mrb[0].mxu0
      %v3594 = vpop.f32.mrb[0].mxu0
      %v3595 = vadd.f32 0.0, %v3594
      %v3596 = vpop.f32.mrb[0].mxu0
      %3597 = vmatprep.mubr.bf16.mxu0 0
      %3598 = vmatmul.mubr.bf16.gmra.mrb[0].mxu0 %v3546
      %v3599 = vpop.f32.mrb[0].mxu0
      %v3600 = vadd.f32 0.0, %v3599
      %v3601 = vpop.f32.mrb[0].mxu0
      %v3602 = vpop.f32.mrb[0].mxu0
      %v3603 = vadd.f32 0.0, %v3602
      %v3604 = vpop.f32.mrb[0].mxu0
      %3605 = vmatprep.mubr.bf16.mxu0 0
      %3606 = vmatmul.mubr.bf16.gmra.mrb[0].mxu0 %v3549
      %v3607 = vpop.f32.mrb[0].mxu0
      %v3608 = vadd.f32 0.0, %v3607
      %v3609 = vpop.f32.mrb[0].mxu0
      %v3610 = vpop.f32.mrb[0].mxu0
      %v3611 = vadd.f32 0.0, %v3610
      %v3612 = vpop.f32.mrb[0].mxu0
      %3613 = vmatprep.mubr.bf16.mxu0 0
      %3614 = vmatmul.mubr.bf16.gmra.mrb[0].mxu0 %v3552
      %v3615 = vpop.f32.mrb[0].mxu0
      %v3616 = vadd.f32 0.0, %v3615
      %v3617 = vpop.f32.mrb[0].mxu0
      %v3618 = vpop.f32.mrb[0].mxu0
      %v3619 = vadd.f32 0.0, %v3618
      %v3620 = vpop.f32.mrb[0].mxu0
      %3621 = vmatprep.mubr.bf16.mxu0 0
      %3622 = vmatmul.mubr.bf16.gmra.mrb[0].mxu0 %v3555
      %v3623 = vpop.f32.mrb[0].mxu0
      %v3624 = vadd.f32 0.0, %v3623
      %v3625 = vpop.f32.mrb[0].mxu0
      %v3626 = vpop.f32.mrb[0].mxu0
      %v3627 = vadd.f32 0.0, %v3626
      %v3628 = vpop.f32.mrb[0].mxu0
      %3629 = vdwg.mxu0
      %v3630 = vadd.f32 %v3500, %v3592
      %v3631 = vadd.f32 %v3501, %v3595
      %v3632 = vadd.f32 %v3502, %v3600
      %v3633 = vadd.f32 %v3503, %v3603
      %v3634 = vadd.f32 %v3504, %v3608
      %v3635 = vadd.f32 %v3505, %v3611
      %v3636 = vadd.f32 %v3506, %v3616
      %v3637 = vadd.f32 %v3507, %v3619
      %v3638 = vadd.f32 %v3508, %v3624
      %v3639 = vadd.f32 %v3509, %v3627
      %v3640 = vld [vmem:[#allocation3 + $0xc] sm:$0xff]
      %v3641 = vld [vmem:[#allocation3 + $0x14] sm:$0xff]
      %v3642 = vld [vmem:[#allocation3 + $0x1c] sm:$0xff]
      %v3643 = vld [vmem:[#allocation3 + $0x24] sm:$0xff]
      %v3644 = vld [vmem:[#allocation3 + $0x2c] sm:$0xff]
      %v3645 = vld [vmem:[#allocation3 + $0x34] sm:$0xff]
      %v3646 = vld [vmem:[#allocation3 + $0x3c] sm:$0xff]
      %v3647 = vld [vmem:[#allocation3 + $0x44] sm:$0xff]
      %v3648 = vld [vmem:[#allocation3 + $0x4c] sm:$0xff]
      %v3649 = vld [vmem:[#allocation3 + $0x54] sm:$0xff]
      %v3650 = vpack.c.bf16 %v3641, %v3640
      %v3651 = vpack.c.bf16 %v3643, %v3642
      %v3652 = vpack.c.bf16 %v3645, %v3644
      %v3653 = vpack.c.bf16 %v3647, %v3646
      %v3654 = vpack.c.bf16 %v3649, %v3648
      %s3655 = scalar_lea.vmem %s5, 80
      %v3656 = vld [vmem:[%s3655] sm:$0xf]
      %v3657 = vld [vmem:[%s3655 + $0x4] sm:$0xf]
      %v3658 = vld [vmem:[%s3655 + $0x8] sm:$0xf]
      %v3659 = vld [vmem:[%s3655 + $0xc] sm:$0xf]
      %v3664 = vunpack.c.l.b16 %v3656
      %v3665 = vunpack.c.l.b16 %v3657
      %v3666 = vunpack.c.l.b16 %v3658
      %v3667 = vunpack.c.l.b16 %v3659
      %v3668 = vpack.c.b16 %v3665, %v3664
      %v3669 = vpack.c.b16 %v3667, %v3666
      %v3673 = vsel %vm388, %v3650, 0
      %v3676 = vsel %vm388, %v3651, 0
      %v3679 = vsel %vm388, %v3652, 0
      %v3682 = vsel %vm388, %v3653, 0
      %v3685 = vsel %vm388, %v3654, 0
      %3687 = vmatprep.subr.bf16.mxu0 0
      %3688 = vmatpush1.bf16.msra.mxu0 %v3668
      %3689 = vmatprep.subr.bf16.mxu0 0
      %3690 = vmatpush1.bf16.msra.mxu0 %v3669
      %3691 = vmatprep.subr.bf16.mxu0 0
      %3692 = vmatpush1.bf16.msra.mxu0 0
      %3693 = vmatprep.subr.bf16.mxu0 0
      %3694 = vmatpush1.bf16.msra.mxu0 0
      %3695 = vmatprep.subr.bf16.mxu0 0
      %3696 = vmatpush1.bf16.msra.mxu0 0
      %3697 = vmatprep.subr.bf16.mxu0 0
      %3698 = vmatpush1.bf16.msra.mxu0 0
      %3699 = vmatprep.subr.bf16.mxu0 0
      %3700 = vmatpush1.bf16.msra.mxu0 0
      %3701 = vmatprep.subr.bf16.mxu0 0
      %3702 = vmatpush1.bf16.msra.mxu0 0
      %3703 = vmatprep.subr.bf16.mxu0 0
      %3704 = vmatpush1.bf16.msra.mxu0 0
      %3705 = vmatprep.subr.bf16.mxu0 0
      %3706 = vmatpush1.bf16.msra.mxu0 0
      %3707 = vmatprep.subr.bf16.mxu0 0
      %3708 = vmatpush1.bf16.msra.mxu0 0
      %3709 = vmatprep.subr.bf16.mxu0 0
      %3710 = vmatpush1.bf16.msra.mxu0 0
      %3711 = vmatprep.subr.bf16.mxu0 0
      %3712 = vmatpush1.bf16.msra.mxu0 0
      %3713 = vmatprep.subr.bf16.mxu0 0
      %3714 = vmatpush1.bf16.msra.mxu0 0
      %3715 = vmatprep.subr.bf16.mxu0 0
      %3716 = vmatpush1.bf16.msra.mxu0 0
      %3717 = vmatprep.subr.bf16.mxu0 0
      %3718 = vmatpush1.bf16.msra.mxu0 0
      %3719 = vmatprep.mubr.bf16.mxu0 0
      %3720 = vmatmul.mubr.bf16.gmra.mrb[0].mxu0 %v3673
      %v3721 = vpop.f32.mrb[0].mxu0
      %v3722 = vadd.f32 0.0, %v3721
      %v3723 = vpop.f32.mrb[0].mxu0
      %v3724 = vpop.f32.mrb[0].mxu0
      %v3725 = vadd.f32 0.0, %v3724
      %v3726 = vpop.f32.mrb[0].mxu0
      %3727 = vmatprep.mubr.bf16.mxu0 0
      %3728 = vmatmul.mubr.bf16.gmra.mrb[0].mxu0 %v3676
      %v3729 = vpop.f32.mrb[0].mxu0
      %v3730 = vadd.f32 0.0, %v3729
      %v3731 = vpop.f32.mrb[0].mxu0
      %v3732 = vpop.f32.mrb[0].mxu0
      %v3733 = vadd.f32 0.0, %v3732
      %v3734 = vpop.f32.mrb[0].mxu0
      %3735 = vmatprep.mubr.bf16.mxu0 0
      %3736 = vmatmul.mubr.bf16.gmra.mrb[0].mxu0 %v3679
      %v3737 = vpop.f32.mrb[0].mxu0
      %v3738 = vadd.f32 0.0, %v3737
      %v3739 = vpop.f32.mrb[0].mxu0
      %v3740 = vpop.f32.mrb[0].mxu0
      %v3741 = vadd.f32 0.0, %v3740
      %v3742 = vpop.f32.mrb[0].mxu0
      %3743 = vmatprep.mubr.bf16.mxu0 0
      %3744 = vmatmul.mubr.bf16.gmra.mrb[0].mxu0 %v3682
      %v3745 = vpop.f32.mrb[0].mxu0
      %v3746 = vadd.f32 0.0, %v3745
      %v3747 = vpop.f32.mrb[0].mxu0
      %v3748 = vpop.f32.mrb[0].mxu0
      %v3749 = vadd.f32 0.0, %v3748
      %v3750 = vpop.f32.mrb[0].mxu0
      %3751 = vmatprep.mubr.bf16.mxu0 0
      %3752 = vmatmul.mubr.bf16.gmra.mrb[0].mxu0 %v3685
      %v3753 = vpop.f32.mrb[0].mxu0
      %v3754 = vadd.f32 0.0, %v3753
      %v3755 = vpop.f32.mrb[0].mxu0
      %v3756 = vpop.f32.mrb[0].mxu0
      %v3757 = vadd.f32 0.0, %v3756
      %v3758 = vpop.f32.mrb[0].mxu0
      %3759 = vdwg.mxu0
      %v3760 = vadd.f32 %v3630, %v3722
      %v3761 = vadd.f32 %v3631, %v3725
      %v3762 = vadd.f32 %v3632, %v3730
      %v3763 = vadd.f32 %v3633, %v3733
      %v3764 = vadd.f32 %v3634, %v3738
      %v3765 = vadd.f32 %v3635, %v3741
      %v3766 = vadd.f32 %v3636, %v3746
      %v3767 = vadd.f32 %v3637, %v3749
      %v3768 = vadd.f32 %v3638, %v3754
      %v3769 = vadd.f32 %v3639, %v3757
      %v3770 = vld [vmem:[#allocation3 + $0x14] sm:$0xff]
      %v3771 = vld [vmem:[#allocation3 + $0x1c] sm:$0xff]
      %v3772 = vld [vmem:[#allocation3 + $0x24] sm:$0xff]
      %v3773 = vld [vmem:[#allocation3 + $0x2c] sm:$0xff]
      %v3774 = vld [vmem:[#allocation3 + $0x34] sm:$0xff]
      %v3775 = vld [vmem:[#allocation3 + $0x3c] sm:$0xff]
      %v3776 = vld [vmem:[#allocation3 + $0x44] sm:$0xff]
      %v3777 = vld [vmem:[#allocation3 + $0x4c] sm:$0xff]
      %v3778 = vld [vmem:[#allocation3 + $0x54] sm:$0xff]
      %v3779 = vld [vmem:[#allocation3 + $0x5c] sm:$0xff]
      %v3780 = vpack.c.bf16 %v3771, %v3770
      %v3781 = vpack.c.bf16 %v3773, %v3772
      %v3782 = vpack.c.bf16 %v3775, %v3774
      %v3783 = vpack.c.bf16 %v3777, %v3776
      %v3784 = vpack.c.bf16 %v3779, %v3778
      %s3785 = scalar_lea.vmem %s5, 96
      %v3786 = vld [vmem:[%s3785] sm:$0xf]
      %v3787 = vld [vmem:[%s3785 + $0x4] sm:$0xf]
      %v3788 = vld [vmem:[%s3785 + $0x8] sm:$0xf]
      %v3789 = vld [vmem:[%s3785 + $0xc] sm:$0xf]
      %v3794 = vunpack.c.l.b16 %v3786
      %v3795 = vunpack.c.l.b16 %v3787
      %v3796 = vunpack.c.l.b16 %v3788
      %v3797 = vunpack.c.l.b16 %v3789
      %v3798 = vpack.c.b16 %v3795, %v3794
      %v3799 = vpack.c.b16 %v3797, %v3796
      %v3803 = vsel %vm388, %v3780, 0
      %v3806 = vsel %vm388, %v3781, 0
      %v3809 = vsel %vm388, %v3782, 0
      %v3812 = vsel %vm388, %v3783, 0
      %v3815 = vsel %vm388, %v3784, 0
      %3817 = vmatprep.subr.bf16.mxu0 0
      %3818 = vmatpush1.bf16.msra.mxu0 %v3798
      %3819 = vmatprep.subr.bf16.mxu0 0
      %3820 = vmatpush1.bf16.msra.mxu0 %v3799
      %3821 = vmatprep.subr.bf16.mxu0 0
      %3822 = vmatpush1.bf16.msra.mxu0 0
      %3823 = vmatprep.subr.bf16.mxu0 0
      %3824 = vmatpush1.bf16.msra.mxu0 0
      %3825 = vmatprep.subr.bf16.mxu0 0
      %3826 = vmatpush1.bf16.msra.mxu0 0
      %3827 = vmatprep.subr.bf16.mxu0 0
      %3828 = vmatpush1.bf16.msra.mxu0 0
      %3829 = vmatprep.subr.bf16.mxu0 0
      %3830 = vmatpush1.bf16.msra.mxu0 0
      %3831 = vmatprep.subr.bf16.mxu0 0
      %3832 = vmatpush1.bf16.msra.mxu0 0
      %3833 = vmatprep.subr.bf16.mxu0 0
      %3834 = vmatpush1.bf16.msra.mxu0 0
      %3835 = vmatprep.subr.bf16.mxu0 0
      %3836 = vmatpush1.bf16.msra.mxu0 0
      %3837 = vmatprep.subr.bf16.mxu0 0
      %3838 = vmatpush1.bf16.msra.mxu0 0
      %3839 = vmatprep.subr.bf16.mxu0 0
      %3840 = vmatpush1.bf16.msra.mxu0 0
      %3841 = vmatprep.subr.bf16.mxu0 0
      %3842 = vmatpush1.bf16.msra.mxu0 0
      %3843 = vmatprep.subr.bf16.mxu0 0
      %3844 = vmatpush1.bf16.msra.mxu0 0
      %3845 = vmatprep.subr.bf16.mxu0 0
      %3846 = vmatpush1.bf16.msra.mxu0 0
      %3847 = vmatprep.subr.bf16.mxu0 0
      %3848 = vmatpush1.bf16.msra.mxu0 0
      %3849 = vmatprep.mubr.bf16.mxu0 0
      %3850 = vmatmul.mubr.bf16.gmra.mrb[0].mxu0 %v3803
      %v3851 = vpop.f32.mrb[0].mxu0
      %v3852 = vadd.f32 0.0, %v3851
      %v3853 = vpop.f32.mrb[0].mxu0
      %v3854 = vpop.f32.mrb[0].mxu0
      %v3855 = vadd.f32 0.0, %v3854
      %v3856 = vpop.f32.mrb[0].mxu0
      %3857 = vmatprep.mubr.bf16.mxu0 0
      %3858 = vmatmul.mubr.bf16.gmra.mrb[0].mxu0 %v3806
      %v3859 = vpop.f32.mrb[0].mxu0
      %v3860 = vadd.f32 0.0, %v3859
      %v3861 = vpop.f32.mrb[0].mxu0
      %v3862 = vpop.f32.mrb[0].mxu0
      %v3863 = vadd.f32 0.0, %v3862
      %v3864 = vpop.f32.mrb[0].mxu0
      %3865 = vmatprep.mubr.bf16.mxu0 0
      %3866 = vmatmul.mubr.bf16.gmra.mrb[0].mxu0 %v3809
      %v3867 = vpop.f32.mrb[0].mxu0
      %v3868 = vadd.f32 0.0, %v3867
      %v3869 = vpop.f32.mrb[0].mxu0
      %v3870 = vpop.f32.mrb[0].mxu0
      %v3871 = vadd.f32 0.0, %v3870
      %v3872 = vpop.f32.mrb[0].mxu0
      %3873 = vmatprep.mubr.bf16.mxu0 0
      %3874 = vmatmul.mubr.bf16.gmra.mrb[0].mxu0 %v3812
      %v3875 = vpop.f32.mrb[0].mxu0
      %v3876 = vadd.f32 0.0, %v3875
      %v3877 = vpop.f32.mrb[0].mxu0
      %v3878 = vpop.f32.mrb[0].mxu0
      %v3879 = vadd.f32 0.0, %v3878
      %v3880 = vpop.f32.mrb[0].mxu0
      %3881 = vmatprep.mubr.bf16.mxu0 0
      %3882 = vmatmul.mubr.bf16.gmra.mrb[0].mxu0 %v3815
      %v3883 = vpop.f32.mrb[0].mxu0
      %v3884 = vadd.f32 0.0, %v3883
      %v3885 = vpop.f32.mrb[0].mxu0
      %v3886 = vpop.f32.mrb[0].mxu0
      %v3887 = vadd.f32 0.0, %v3886
      %v3888 = vpop.f32.mrb[0].mxu0
      %3889 = vdwg.mxu0
      %v3890 = vadd.f32 %v3760, %v3852
      %v3891 = vadd.f32 %v3761, %v3855
      %v3892 = vadd.f32 %v3762, %v3860
      %v3893 = vadd.f32 %v3763, %v3863
      %v3894 = vadd.f32 %v3764, %v3868
      %v3895 = vadd.f32 %v3765, %v3871
      %v3896 = vadd.f32 %v3766, %v3876
      %v3897 = vadd.f32 %v3767, %v3879
      %v3898 = vadd.f32 %v3768, %v3884
      %v3899 = vadd.f32 %v3769, %v3887
      %v3900 = vld [vmem:[#allocation3 + $0x15] sm:$0xff]
      %v3901 = vld [vmem:[#allocation3 + $0x1d] sm:$0xff]
      %v3902 = vld [vmem:[#allocation3 + $0x25] sm:$0xff]
      %v3903 = vld [vmem:[#allocation3 + $0x2d] sm:$0xff]
      %v3904 = vld [vmem:[#allocation3 + $0x35] sm:$0xff]
      %v3905 = vld [vmem:[#allocation3 + $0x3d] sm:$0xff]
      %v3906 = vld [vmem:[#allocation3 + $0x45] sm:$0xff]
      %v3907 = vld [vmem:[#allocation3 + $0x4d] sm:$0xff]
      %v3908 = vld [vmem:[#allocation3 + $0x55] sm:$0xff]
      %v3909 = vld [vmem:[#allocation3 + $0x5d] sm:$0xff]
      %v3910 = vpack.c.bf16 %v3901, %v3900
      %v3911 = vpack.c.bf16 %v3903, %v3902
      %v3912 = vpack.c.bf16 %v3905, %v3904
      %v3913 = vpack.c.bf16 %v3907, %v3906
      %v3914 = vpack.c.bf16 %v3909, %v3908
      %s3915 = scalar_lea.vmem %s5, 112
      %v3916 = vld [vmem:[%s3915] sm:$0xf]
      %v3917 = vld [vmem:[%s3915 + $0x4] sm:$0xf]
      %v3918 = vld [vmem:[%s3915 + $0x8] sm:$0xf]
      %v3919 = vld [vmem:[%s3915 + $0xc] sm:$0xf]
      %v3924 = vunpack.c.l.b16 %v3916
      %v3925 = vunpack.c.l.b16 %v3917
      %v3926 = vunpack.c.l.b16 %v3918
      %v3927 = vunpack.c.l.b16 %v3919
      %v3928 = vpack.c.b16 %v3925, %v3924
      %v3929 = vpack.c.b16 %v3927, %v3926
      %v3933 = vsel %vm388, %v3910, 0
      %v3936 = vsel %vm388, %v3911, 0
      %v3939 = vsel %vm388, %v3912, 0
      %v3942 = vsel %vm388, %v3913, 0
      %v3945 = vsel %vm388, %v3914, 0
      %3947 = vmatprep.subr.bf16.mxu0 0
      %3948 = vmatpush1.bf16.msra.mxu0 %v3928
      %3949 = vmatprep.subr.bf16.mxu0 0
      %3950 = vmatpush1.bf16.msra.mxu0 %v3929
      %3951 = vmatprep.subr.bf16.mxu0 0
      %3952 = vmatpush1.bf16.msra.mxu0 0
      %3953 = vmatprep.subr.bf16.mxu0 0
      %3954 = vmatpush1.bf16.msra.mxu0 0
      %3955 = vmatprep.subr.bf16.mxu0 0
      %3956 = vmatpush1.bf16.msra.mxu0 0
      %3957 = vmatprep.subr.bf16.mxu0 0
      %3958 = vmatpush1.bf16.msra.mxu0 0
      %3959 = vmatprep.subr.bf16.mxu0 0
      %3960 = vmatpush1.bf16.msra.mxu0 0
      %3961 = vmatprep.subr.bf16.mxu0 0
      %3962 = vmatpush1.bf16.msra.mxu0 0
      %3963 = vmatprep.subr.bf16.mxu0 0
      %3964 = vmatpush1.bf16.msra.mxu0 0
      %3965 = vmatprep.subr.bf16.mxu0 0
      %3966 = vmatpush1.bf16.msra.mxu0 0
      %3967 = vmatprep.subr.bf16.mxu0 0
      %3968 = vmatpush1.bf16.msra.mxu0 0
      %3969 = vmatprep.subr.bf16.mxu0 0
      %3970 = vmatpush1.bf16.msra.mxu0 0
      %3971 = vmatprep.subr.bf16.mxu0 0
      %3972 = vmatpush1.bf16.msra.mxu0 0
      %3973 = vmatprep.subr.bf16.mxu0 0
      %3974 = vmatpush1.bf16.msra.mxu0 0
      %3975 = vmatprep.subr.bf16.mxu0 0
      %3976 = vmatpush1.bf16.msra.mxu0 0
      %3977 = vmatprep.subr.bf16.mxu0 0
      %3978 = vmatpush1.bf16.msra.mxu0 0
      %3979 = vmatprep.mubr.bf16.mxu0 0
      %3980 = vmatmul.mubr.bf16.gmra.mrb[0].mxu0 %v3933
      %v3981 = vpop.f32.mrb[0].mxu0
      %v3982 = vadd.f32 0.0, %v3981
      %v3983 = vpop.f32.mrb[0].mxu0
      %v3984 = vpop.f32.mrb[0].mxu0
      %v3985 = vadd.f32 0.0, %v3984
      %v3986 = vpop.f32.mrb[0].mxu0
      %3987 = vmatprep.mubr.bf16.mxu0 0
      %3988 = vmatmul.mubr.bf16.gmra.mrb[0].mxu0 %v3936
      %v3989 = vpop.f32.mrb[0].mxu0
      %v3990 = vadd.f32 0.0, %v3989
      %v3991 = vpop.f32.mrb[0].mxu0
      %v3992 = vpop.f32.mrb[0].mxu0
      %v3993 = vadd.f32 0.0, %v3992
      %v3994 = vpop.f32.mrb[0].mxu0
      %3995 = vmatprep.mubr.bf16.mxu0 0
      %3996 = vmatmul.mubr.bf16.gmra.mrb[0].mxu0 %v3939
      %v3997 = vpop.f32.mrb[0].mxu0
      %v3998 = vadd.f32 0.0, %v3997
      %v3999 = vpop.f32.mrb[0].mxu0
      %v4000 = vpop.f32.mrb[0].mxu0
      %v4001 = vadd.f32 0.0, %v4000
      %v4002 = vpop.f32.mrb[0].mxu0
      %4003 = vmatprep.mubr.bf16.mxu0 0
      %4004 = vmatmul.mubr.bf16.gmra.mrb[0].mxu0 %v3942
      %v4005 = vpop.f32.mrb[0].mxu0
      %v4006 = vadd.f32 0.0, %v4005
      %v4007 = vpop.f32.mrb[0].mxu0
      %v4008 = vpop.f32.mrb[0].mxu0
      %v4009 = vadd.f32 0.0, %v4008
      %v4010 = vpop.f32.mrb[0].mxu0
      %4011 = vmatprep.mubr.bf16.mxu0 0
      %4012 = vmatmul.mubr.bf16.gmra.mrb[0].mxu0 %v3945
      %v4013 = vpop.f32.mrb[0].mxu0
      %v4014 = vadd.f32 0.0, %v4013
      %v4015 = vpop.f32.mrb[0].mxu0
      %v4016 = vpop.f32.mrb[0].mxu0
      %v4017 = vadd.f32 0.0, %v4016
      %v4018 = vpop.f32.mrb[0].mxu0
      %4019 = vdwg.mxu0
      %v4020 = vadd.f32 %v3890, %v3982
      %v4021 = vadd.f32 %v3891, %v3985
      %v4022 = vadd.f32 %v3892, %v3990
      %v4023 = vadd.f32 %v3893, %v3993
      %v4024 = vadd.f32 %v3894, %v3998
      %v4025 = vadd.f32 %v3895, %v4001
      %v4026 = vadd.f32 %v3896, %v4006
      %v4027 = vadd.f32 %v3897, %v4009
      %v4028 = vadd.f32 %v3898, %v4014
      %v4029 = vadd.f32 %v3899, %v4017
      %v4030 = vld [vmem:[#allocation3 + $0x16] sm:$0xff]
      %v4031 = vld [vmem:[#allocation3 + $0x1e] sm:$0xff]
      %v4032 = vld [vmem:[#allocation3 + $0x26] sm:$0xff]
      %v4033 = vld [vmem:[#allocation3 + $0x2e] sm:$0xff]
      %v4034 = vld [vmem:[#allocation3 + $0x36] sm:$0xff]
      %v4035 = vld [vmem:[#allocation3 + $0x3e] sm:$0xff]
      %v4036 = vld [vmem:[#allocation3 + $0x46] sm:$0xff]
      %v4037 = vld [vmem:[#allocation3 + $0x4e] sm:$0xff]
      %v4038 = vld [vmem:[#allocation3 + $0x56] sm:$0xff]
      %v4039 = vld [vmem:[#allocation3 + $0x5e] sm:$0xff]
      %v4040 = vpack.c.bf16 %v4031, %v4030
      %v4041 = vpack.c.bf16 %v4033, %v4032
      %v4042 = vpack.c.bf16 %v4035, %v4034
      %v4043 = vpack.c.bf16 %v4037, %v4036
      %v4044 = vpack.c.bf16 %v4039, %v4038
      %s4045 = scalar_lea.vmem %s5, 128
      %v4046 = vld [vmem:[%s4045] sm:$0xf]
      %v4047 = vld [vmem:[%s4045 + $0x4] sm:$0xf]
      %v4048 = vld [vmem:[%s4045 + $0x8] sm:$0xf]
      %v4049 = vld [vmem:[%s4045 + $0xc] sm:$0xf]
      %v4054 = vunpack.c.l.b16 %v4046
      %v4055 = vunpack.c.l.b16 %v4047
      %v4056 = vunpack.c.l.b16 %v4048
      %v4057 = vunpack.c.l.b16 %v4049
      %v4058 = vpack.c.b16 %v4055, %v4054
      %v4059 = vpack.c.b16 %v4057, %v4056
      %v4063 = vsel %vm388, %v4040, 0
      %v4066 = vsel %vm388, %v4041, 0
      %v4069 = vsel %vm388, %v4042, 0
      %v4072 = vsel %vm388, %v4043, 0
      %v4075 = vsel %vm388, %v4044, 0
      %4077 = vmatprep.subr.bf16.mxu0 0
      %4078 = vmatpush1.bf16.msra.mxu0 %v4058
      %4079 = vmatprep.subr.bf16.mxu0 0
      %4080 = vmatpush1.bf16.msra.mxu0 %v4059
      %4081 = vmatprep.subr.bf16.mxu0 0
      %4082 = vmatpush1.bf16.msra.mxu0 0
      %4083 = vmatprep.subr.bf16.mxu0 0
      %4084 = vmatpush1.bf16.msra.mxu0 0
      %4085 = vmatprep.subr.bf16.mxu0 0
      %4086 = vmatpush1.bf16.msra.mxu0 0
      %4087 = vmatprep.subr.bf16.mxu0 0
      %4088 = vmatpush1.bf16.msra.mxu0 0
      %4089 = vmatprep.subr.bf16.mxu0 0
      %4090 = vmatpush1.bf16.msra.mxu0 0
      %4091 = vmatprep.subr.bf16.mxu0 0
      %4092 = vmatpush1.bf16.msra.mxu0 0
      %4093 = vmatprep.subr.bf16.mxu0 0
      %4094 = vmatpush1.bf16.msra.mxu0 0
      %4095 = vmatprep.subr.bf16.mxu0 0
      %4096 = vmatpush1.bf16.msra.mxu0 0
      %4097 = vmatprep.subr.bf16.mxu0 0
      %4098 = vmatpush1.bf16.msra.mxu0 0
      %4099 = vmatprep.subr.bf16.mxu0 0
      %4100 = vmatpush1.bf16.msra.mxu0 0
      %4101 = vmatprep.subr.bf16.mxu0 0
      %4102 = vmatpush1.bf16.msra.mxu0 0
      %4103 = vmatprep.subr.bf16.mxu0 0
      %4104 = vmatpush1.bf16.msra.mxu0 0
      %4105 = vmatprep.subr.bf16.mxu0 0
      %4106 = vmatpush1.bf16.msra.mxu0 0
      %4107 = vmatprep.subr.bf16.mxu0 0
      %4108 = vmatpush1.bf16.msra.mxu0 0
      %4109 = vmatprep.mubr.bf16.mxu0 0
      %4110 = vmatmul.mubr.bf16.gmra.mrb[0].mxu0 %v4063
      %v4111 = vpop.f32.mrb[0].mxu0
      %v4112 = vadd.f32 0.0, %v4111
      %v4113 = vpop.f32.mrb[0].mxu0
      %v4114 = vpop.f32.mrb[0].mxu0
      %v4115 = vadd.f32 0.0, %v4114
      %v4116 = vpop.f32.mrb[0].mxu0
      %4117 = vmatprep.mubr.bf16.mxu0 0
      %4118 = vmatmul.mubr.bf16.gmra.mrb[0].mxu0 %v4066
      %v4119 = vpop.f32.mrb[0].mxu0
      %v4120 = vadd.f32 0.0, %v4119
      %v4121 = vpop.f32.mrb[0].mxu0
      %v4122 = vpop.f32.mrb[0].mxu0
      %v4123 = vadd.f32 0.0, %v4122
      %v4124 = vpop.f32.mrb[0].mxu0
      %4125 = vmatprep.mubr.bf16.mxu0 0
      %4126 = vmatmul.mubr.bf16.gmra.mrb[0].mxu0 %v4069
      %v4127 = vpop.f32.mrb[0].mxu0
      %v4128 = vadd.f32 0.0, %v4127
      %v4129 = vpop.f32.mrb[0].mxu0
      %v4130 = vpop.f32.mrb[0].mxu0
      %v4131 = vadd.f32 0.0, %v4130
      %v4132 = vpop.f32.mrb[0].mxu0
      %4133 = vmatprep.mubr.bf16.mxu0 0
      %4134 = vmatmul.mubr.bf16.gmra.mrb[0].mxu0 %v4072
      %v4135 = vpop.f32.mrb[0].mxu0
      %v4136 = vadd.f32 0.0, %v4135
      %v4137 = vpop.f32.mrb[0].mxu0
      %v4138 = vpop.f32.mrb[0].mxu0
      %v4139 = vadd.f32 0.0, %v4138
      %v4140 = vpop.f32.mrb[0].mxu0
      %4141 = vmatprep.mubr.bf16.mxu0 0
      %4142 = vmatmul.mubr.bf16.gmra.mrb[0].mxu0 %v4075
      %v4143 = vpop.f32.mrb[0].mxu0
      %v4144 = vadd.f32 0.0, %v4143
      %v4145 = vpop.f32.mrb[0].mxu0
      %v4146 = vpop.f32.mrb[0].mxu0
      %v4147 = vadd.f32 0.0, %v4146
      %v4148 = vpop.f32.mrb[0].mxu0
      %4149 = vdwg.mxu0
      %v4150 = vadd.f32 %v4020, %v4112
      %v4151 = vadd.f32 %v4021, %v4115
      %v4152 = vadd.f32 %v4022, %v4120
      %v4153 = vadd.f32 %v4023, %v4123
      %v4154 = vadd.f32 %v4024, %v4128
      %v4155 = vadd.f32 %v4025, %v4131
      %v4156 = vadd.f32 %v4026, %v4136
      %v4157 = vadd.f32 %v4027, %v4139
      %v4158 = vadd.f32 %v4028, %v4144
      %v4159 = vadd.f32 %v4029, %v4147
      %v4160 = vld [vmem:[%s6] sm:$0x1]
      %v4162 = vlaneseq
      %v4163 = vshrl.u32 %v4162, 7
      %v4164 = vsub.s32 0, %v4163
      %v4165 = vrot.slane %v4160, %v4164
      %v4167 = vadd.f32 %v4150, %v4165
      %v4168 = vadd.f32 %v4151, %v4165
      %v4169 = vadd.f32 %v4152, %v4165
      %v4170 = vadd.f32 %v4153, %v4165
      %v4171 = vadd.f32 %v4154, %v4165
      %v4172 = vadd.f32 %v4155, %v4165
      %v4173 = vadd.f32 %v4156, %v4165
      %v4174 = vadd.f32 %v4157, %v4165
      %v4175 = vadd.f32 %v4158, %v4165
      %v4176 = vadd.f32 %v4159, %v4165
      %v4177 = vmax.f32 %v4167, 0.0
      %v4178 = vmax.f32 %v4168, 0.0
      %v4179 = vmax.f32 %v4169, 0.0
      %v4180 = vmax.f32 %v4170, 0.0
      %v4181 = vmax.f32 %v4171, 0.0
      %v4182 = vmax.f32 %v4172, 0.0
      %v4183 = vmax.f32 %v4173, 0.0
      %v4184 = vmax.f32 %v4174, 0.0
      %v4185 = vmax.f32 %v4175, 0.0
      %v4186 = vmax.f32 %v4176, 0.0
      %v4187 = vsel %vm1785, %v4177, 0.0
      %v4188 = vsel %vm1786, %v4178, 0.0
      %v4189 = vsel %vm1787, %v4179, 0.0
      %v4190 = vsel %vm1788, %v4180, 0.0
      %v4191 = vsel %vm1789, %v4181, 0.0
      %v4192 = vsel %vm1790, %v4182, 0.0
      %v4193 = vsel %vm1791, %v4183, 0.0
      %v4194 = vsel %vm1792, %v4184, 0.0
      %v4195 = vsel %vm1793, %v4185, 0.0
      %v4196 = vsel %vm1794, %v4186, 0.0
      %4197 = vst.msk [vmem:[#allocation2 + $0xb] sm:$0xff] %vm388, %v4187
      %4198 = vst.msk [vmem:[#allocation2 + $0x13] sm:$0xff] %vm388, %v4188
      %4199 = vst.msk [vmem:[#allocation2 + $0x1b] sm:$0xff] %vm388, %v4189
      %4200 = vst.msk [vmem:[#allocation2 + $0x23] sm:$0xff] %vm388, %v4190
      %4201 = vst.msk [vmem:[#allocation2 + $0x2b] sm:$0xff] %vm388, %v4191
      %4202 = vst.msk [vmem:[#allocation2 + $0x33] sm:$0xff] %vm388, %v4192
      %4203 = vst.msk [vmem:[#allocation2 + $0x3b] sm:$0xff] %vm388, %v4193
      %4204 = vst.msk [vmem:[#allocation2 + $0x43] sm:$0xff] %vm388, %v4194
      %4205 = vst.msk [vmem:[#allocation2 + $0x4b] sm:$0xff] %vm388, %v4195
      %4206 = vst.msk [vmem:[#allocation2 + $0x53] sm:$0xff] %vm388, %v4196
      %v4207 = vld [vmem:[#allocation2] sm:$0xff]
      %v4208 = vld [vmem:[#allocation2 + $0x8] sm:$0xff]
      %v4209 = vld [vmem:[#allocation2 + $0x10] sm:$0xff]
      %v4210 = vld [vmem:[#allocation2 + $0x18] sm:$0xff]
      %v4211 = vld [vmem:[#allocation2 + $0x20] sm:$0xff]
      %v4212 = vld [vmem:[#allocation2 + $0x28] sm:$0xff]
      %v4213 = vld [vmem:[#allocation2 + $0x30] sm:$0xff]
      %v4214 = vld [vmem:[#allocation2 + $0x38] sm:$0xff]
      %v4215 = vld [vmem:[#allocation2 + $0x40] sm:$0xff]
      %v4216 = vld [vmem:[#allocation2 + $0x48] sm:$0xff]
      %v4217 = vpack.c.bf16 %v4208, %v4207
      %v4218 = vpack.c.bf16 %v4210, %v4209
      %v4219 = vpack.c.bf16 %v4212, %v4211
      %v4220 = vpack.c.bf16 %v4214, %v4213
      %v4221 = vpack.c.bf16 %v4216, %v4215
      %v4222 = vld [vmem:[%s7] sm:$0xf]
      %v4223 = vld [vmem:[%s7 + $0x4] sm:$0xf]
      %v4224 = vld [vmem:[%s7 + $0x8] sm:$0xf]
      %v4225 = vld [vmem:[%s7 + $0xc] sm:$0xf]
      %v4226 = vld [vmem:[#allocation2 + $0x1] sm:$0xff]
      %v4227 = vld [vmem:[#allocation2 + $0x9] sm:$0xff]
      %v4228 = vld [vmem:[#allocation2 + $0x11] sm:$0xff]
      %v4229 = vld [vmem:[#allocation2 + $0x19] sm:$0xff]
      %v4230 = vld [vmem:[#allocation2 + $0x21] sm:$0xff]
      %v4231 = vld [vmem:[#allocation2 + $0x29] sm:$0xff]
      %v4232 = vld [vmem:[#allocation2 + $0x31] sm:$0xff]
      %v4233 = vld [vmem:[#allocation2 + $0x39] sm:$0xff]
      %v4234 = vld [vmem:[#allocation2 + $0x41] sm:$0xff]
      %v4235 = vld [vmem:[#allocation2 + $0x49] sm:$0xff]
      %v4236 = vpack.c.bf16 %v4227, %v4226
      %v4237 = vpack.c.bf16 %v4229, %v4228
      %v4238 = vpack.c.bf16 %v4231, %v4230
      %v4239 = vpack.c.bf16 %v4233, %v4232
      %v4240 = vpack.c.bf16 %v4235, %v4234
      %s4241 = scalar_lea.vmem %s7, 16
      %v4242 = vld [vmem:[%s4241] sm:$0xf]
      %v4243 = vld [vmem:[%s4241 + $0x4] sm:$0xf]
      %v4244 = vld [vmem:[%s4241 + $0x8] sm:$0xf]
      %v4245 = vld [vmem:[%s4241 + $0xc] sm:$0xf]
      %v4250 = vunpack.c.l.b16 %v4242
      %v4251 = vunpack.c.l.b16 %v4243
      %v4252 = vunpack.c.l.b16 %v4244
      %v4253 = vunpack.c.l.b16 %v4245
      %v4254 = vpack.c.b16 %v4251, %v4250
      %v4255 = vpack.c.b16 %v4253, %v4252
      %v4259 = vsel %vm388, %v4236, 0
      %v4262 = vsel %vm388, %v4237, 0
      %v4265 = vsel %vm388, %v4238, 0
      %v4268 = vsel %vm388, %v4239, 0
      %v4271 = vsel %vm388, %v4240, 0
      %4273 = vmatprep.subr.bf16.mxu0 0
      %4274 = vmatpush1.bf16.msra.mxu0 %v4254
      %4275 = vmatprep.subr.bf16.mxu0 0
      %4276 = vmatpush1.bf16.msra.mxu0 %v4255
      %4277 = vmatprep.subr.bf16.mxu0 0
      %4278 = vmatpush1.bf16.msra.mxu0 0
      %4279 = vmatprep.subr.bf16.mxu0 0
      %4280 = vmatpush1.bf16.msra.mxu0 0
      %4281 = vmatprep.subr.bf16.mxu0 0
      %4282 = vmatpush1.bf16.msra.mxu0 0
      %4283 = vmatprep.subr.bf16.mxu0 0
      %4284 = vmatpush1.bf16.msra.mxu0 0
      %4285 = vmatprep.subr.bf16.mxu0 0
      %4286 = vmatpush1.bf16.msra.mxu0 0
      %4287 = vmatprep.subr.bf16.mxu0 0
      %4288 = vmatpush1.bf16.msra.mxu0 0
      %4289 = vmatprep.subr.bf16.mxu0 0
      %4290 = vmatpush1.bf16.msra.mxu0 0
      %4291 = vmatprep.subr.bf16.mxu0 0
      %4292 = vmatpush1.bf16.msra.mxu0 0
      %4293 = vmatprep.subr.bf16.mxu0 0
      %4294 = vmatpush1.bf16.msra.mxu0 0
      %4295 = vmatprep.subr.bf16.mxu0 0
      %4296 = vmatpush1.bf16.msra.mxu0 0
      %4297 = vmatprep.subr.bf16.mxu0 0
      %4298 = vmatpush1.bf16.msra.mxu0 0
      %4299 = vmatprep.subr.bf16.mxu0 0
      %4300 = vmatpush1.bf16.msra.mxu0 0
      %4301 = vmatprep.subr.bf16.mxu0 0
      %4302 = vmatpush1.bf16.msra.mxu0 0
      %4303 = vmatprep.subr.bf16.mxu0 0
      %4304 = vmatpush1.bf16.msra.mxu0 0
      %4305 = vmatprep.mubr.bf16.mxu0 0
      %4306 = vmatmul.mubr.bf16.gmra.mrb[0].mxu0 %v4259
      %v4307 = vpop.f32.mrb[0].mxu0
      %v4308 = vadd.f32 0.0, %v4307
      %v4309 = vpop.f32.mrb[0].mxu0
      %v4310 = vpop.f32.mrb[0].mxu0
      %v4311 = vadd.f32 0.0, %v4310
      %v4312 = vpop.f32.mrb[0].mxu0
      %4313 = vmatprep.mubr.bf16.mxu0 0
      %4314 = vmatmul.mubr.bf16.gmra.mrb[0].mxu0 %v4262
      %v4315 = vpop.f32.mrb[0].mxu0
      %v4316 = vadd.f32 0.0, %v4315
      %v4317 = vpop.f32.mrb[0].mxu0
      %v4318 = vpop.f32.mrb[0].mxu0
      %v4319 = vadd.f32 0.0, %v4318
      %v4320 = vpop.f32.mrb[0].mxu0
      %4321 = vmatprep.mubr.bf16.mxu0 0
      %4322 = vmatmul.mubr.bf16.gmra.mrb[0].mxu0 %v4265
      %v4323 = vpop.f32.mrb[0].mxu0
      %v4324 = vadd.f32 0.0, %v4323
      %v4325 = vpop.f32.mrb[0].mxu0
      %v4326 = vpop.f32.mrb[0].mxu0
      %v4327 = vadd.f32 0.0, %v4326
      %v4328 = vpop.f32.mrb[0].mxu0
      %4329 = vmatprep.mubr.bf16.mxu0 0
      %4330 = vmatmul.mubr.bf16.gmra.mrb[0].mxu0 %v4268
      %v4331 = vpop.f32.mrb[0].mxu0
      %v4332 = vadd.f32 0.0, %v4331
      %v4333 = vpop.f32.mrb[0].mxu0
      %v4334 = vpop.f32.mrb[0].mxu0
      %v4335 = vadd.f32 0.0, %v4334
      %v4336 = vpop.f32.mrb[0].mxu0
      %4337 = vmatprep.mubr.bf16.mxu0 0
      %4338 = vmatmul.mubr.bf16.gmra.mrb[0].mxu0 %v4271
      %v4339 = vpop.f32.mrb[0].mxu0
      %v4340 = vadd.f32 0.0, %v4339
      %v4341 = vpop.f32.mrb[0].mxu0
      %v4342 = vpop.f32.mrb[0].mxu0
      %v4343 = vadd.f32 0.0, %v4342
      %v4344 = vpop.f32.mrb[0].mxu0
      %4345 = vdwg.mxu0
      %v4350 = vunpack.c.l.b16 %v4222
      %v4351 = vunpack.c.l.b16 %v4223
      %v4352 = vunpack.c.l.b16 %v4224
      %v4353 = vunpack.c.l.b16 %v4225
      %v4354 = vpack.c.b16 %v4351, %v4350
      %v4355 = vpack.c.b16 %v4353, %v4352
      %v4359 = vsel %vm388, %v4217, 0
      %v4362 = vsel %vm388, %v4218, 0
      %v4365 = vsel %vm388, %v4219, 0
      %v4368 = vsel %vm388, %v4220, 0
      %v4371 = vsel %vm388, %v4221, 0
      %4373 = vmatprep.subr.bf16.mxu0 0
      %4374 = vmatpush1.bf16.msra.mxu0 %v4354
      %4375 = vmatprep.subr.bf16.mxu0 0
      %4376 = vmatpush1.bf16.msra.mxu0 %v4355
      %4377 = vmatprep.subr.bf16.mxu0 0
      %4378 = vmatpush1.bf16.msra.mxu0 0
      %4379 = vmatprep.subr.bf16.mxu0 0
      %4380 = vmatpush1.bf16.msra.mxu0 0
      %4381 = vmatprep.subr.bf16.mxu0 0
      %4382 = vmatpush1.bf16.msra.mxu0 0
      %4383 = vmatprep.subr.bf16.mxu0 0
      %4384 = vmatpush1.bf16.msra.mxu0 0
      %4385 = vmatprep.subr.bf16.mxu0 0
      %4386 = vmatpush1.bf16.msra.mxu0 0
      %4387 = vmatprep.subr.bf16.mxu0 0
      %4388 = vmatpush1.bf16.msra.mxu0 0
      %4389 = vmatprep.subr.bf16.mxu0 0
      %4390 = vmatpush1.bf16.msra.mxu0 0
      %4391 = vmatprep.subr.bf16.mxu0 0
      %4392 = vmatpush1.bf16.msra.mxu0 0
      %4393 = vmatprep.subr.bf16.mxu0 0
      %4394 = vmatpush1.bf16.msra.mxu0 0
      %4395 = vmatprep.subr.bf16.mxu0 0
      %4396 = vmatpush1.bf16.msra.mxu0 0
      %4397 = vmatprep.subr.bf16.mxu0 0
      %4398 = vmatpush1.bf16.msra.mxu0 0
      %4399 = vmatprep.subr.bf16.mxu0 0
      %4400 = vmatpush1.bf16.msra.mxu0 0
      %4401 = vmatprep.subr.bf16.mxu0 0
      %4402 = vmatpush1.bf16.msra.mxu0 0
      %4403 = vmatprep.subr.bf16.mxu0 0
      %4404 = vmatpush1.bf16.msra.mxu0 0
      %4405 = vmatprep.mubr.bf16.mxu0 0
      %4406 = vmatmul.mubr.bf16.gmra.mrb[0].mxu0 %v4359
      %v4407 = vpop.f32.mrb[0].mxu0
      %v4408 = vadd.f32 %v4308, %v4407
      %v4409 = vpop.f32.mrb[0].mxu0
      %v4410 = vpop.f32.mrb[0].mxu0
      %v4411 = vadd.f32 %v4311, %v4410
      %v4412 = vpop.f32.mrb[0].mxu0
      %4413 = vmatprep.mubr.bf16.mxu0 0
      %4414 = vmatmul.mubr.bf16.gmra.mrb[0].mxu0 %v4362
      %v4415 = vpop.f32.mrb[0].mxu0
      %v4416 = vadd.f32 %v4316, %v4415
      %v4417 = vpop.f32.mrb[0].mxu0
      %v4418 = vpop.f32.mrb[0].mxu0
      %v4419 = vadd.f32 %v4319, %v4418
      %v4420 = vpop.f32.mrb[0].mxu0
      %4421 = vmatprep.mubr.bf16.mxu0 0
      %4422 = vmatmul.mubr.bf16.gmra.mrb[0].mxu0 %v4365
      %v4423 = vpop.f32.mrb[0].mxu0
      %v4424 = vadd.f32 %v4324, %v4423
      %v4425 = vpop.f32.mrb[0].mxu0
      %v4426 = vpop.f32.mrb[0].mxu0
      %v4427 = vadd.f32 %v4327, %v4426
      %v4428 = vpop.f32.mrb[0].mxu0
      %4429 = vmatprep.mubr.bf16.mxu0 0
      %4430 = vmatmul.mubr.bf16.gmra.mrb[0].mxu0 %v4368
      %v4431 = vpop.f32.mrb[0].mxu0
      %v4432 = vadd.f32 %v4332, %v4431
      %v4433 = vpop.f32.mrb[0].mxu0
      %v4434 = vpop.f32.mrb[0].mxu0
      %v4435 = vadd.f32 %v4335, %v4434
      %v4436 = vpop.f32.mrb[0].mxu0
      %4437 = vmatprep.mubr.bf16.mxu0 0
      %4438 = vmatmul.mubr.bf16.gmra.mrb[0].mxu0 %v4371
      %v4439 = vpop.f32.mrb[0].mxu0
      %v4440 = vadd.f32 %v4340, %v4439
      %v4441 = vpop.f32.mrb[0].mxu0
      %v4442 = vpop.f32.mrb[0].mxu0
      %v4443 = vadd.f32 %v4343, %v4442
      %v4444 = vpop.f32.mrb[0].mxu0
      %4445 = vdwg.mxu0
      %v4446 = vld [vmem:[#allocation2 + $0x2] sm:$0xff]
      %v4447 = vld [vmem:[#allocation2 + $0xa] sm:$0xff]
      %v4448 = vld [vmem:[#allocation2 + $0x12] sm:$0xff]
      %v4449 = vld [vmem:[#allocation2 + $0x1a] sm:$0xff]
      %v4450 = vld [vmem:[#allocation2 + $0x22] sm:$0xff]
      %v4451 = vld [vmem:[#allocation2 + $0x2a] sm:$0xff]
      %v4452 = vld [vmem:[#allocation2 + $0x32] sm:$0xff]
      %v4453 = vld [vmem:[#allocation2 + $0x3a] sm:$0xff]
      %v4454 = vld [vmem:[#allocation2 + $0x42] sm:$0xff]
      %v4455 = vld [vmem:[#allocation2 + $0x4a] sm:$0xff]
      %v4456 = vpack.c.bf16 %v4447, %v4446
      %v4457 = vpack.c.bf16 %v4449, %v4448
      %v4458 = vpack.c.bf16 %v4451, %v4450
      %v4459 = vpack.c.bf16 %v4453, %v4452
      %v4460 = vpack.c.bf16 %v4455, %v4454
      %s4461 = scalar_lea.vmem %s7, 32
      %v4462 = vld [vmem:[%s4461] sm:$0xf]
      %v4463 = vld [vmem:[%s4461 + $0x4] sm:$0xf]
      %v4464 = vld [vmem:[%s4461 + $0x8] sm:$0xf]
      %v4465 = vld [vmem:[%s4461 + $0xc] sm:$0xf]
      %v4470 = vunpack.c.l.b16 %v4462
      %v4471 = vunpack.c.l.b16 %v4463
      %v4472 = vunpack.c.l.b16 %v4464
      %v4473 = vunpack.c.l.b16 %v4465
      %v4474 = vpack.c.b16 %v4471, %v4470
      %v4475 = vpack.c.b16 %v4473, %v4472
      %v4479 = vsel %vm388, %v4456, 0
      %v4482 = vsel %vm388, %v4457, 0
      %v4485 = vsel %vm388, %v4458, 0
      %v4488 = vsel %vm388, %v4459, 0
      %v4491 = vsel %vm388, %v4460, 0
      %4493 = vmatprep.subr.bf16.mxu0 0
      %4494 = vmatpush1.bf16.msra.mxu0 %v4474
      %4495 = vmatprep.subr.bf16.mxu0 0
      %4496 = vmatpush1.bf16.msra.mxu0 %v4475
      %4497 = vmatprep.subr.bf16.mxu0 0
      %4498 = vmatpush1.bf16.msra.mxu0 0
      %4499 = vmatprep.subr.bf16.mxu0 0
      %4500 = vmatpush1.bf16.msra.mxu0 0
      %4501 = vmatprep.subr.bf16.mxu0 0
      %4502 = vmatpush1.bf16.msra.mxu0 0
      %4503 = vmatprep.subr.bf16.mxu0 0
      %4504 = vmatpush1.bf16.msra.mxu0 0
      %4505 = vmatprep.subr.bf16.mxu0 0
      %4506 = vmatpush1.bf16.msra.mxu0 0
      %4507 = vmatprep.subr.bf16.mxu0 0
      %4508 = vmatpush1.bf16.msra.mxu0 0
      %4509 = vmatprep.subr.bf16.mxu0 0
      %4510 = vmatpush1.bf16.msra.mxu0 0
      %4511 = vmatprep.subr.bf16.mxu0 0
      %4512 = vmatpush1.bf16.msra.mxu0 0
      %4513 = vmatprep.subr.bf16.mxu0 0
      %4514 = vmatpush1.bf16.msra.mxu0 0
      %4515 = vmatprep.subr.bf16.mxu0 0
      %4516 = vmatpush1.bf16.msra.mxu0 0
      %4517 = vmatprep.subr.bf16.mxu0 0
      %4518 = vmatpush1.bf16.msra.mxu0 0
      %4519 = vmatprep.subr.bf16.mxu0 0
      %4520 = vmatpush1.bf16.msra.mxu0 0
      %4521 = vmatprep.subr.bf16.mxu0 0
      %4522 = vmatpush1.bf16.msra.mxu0 0
      %4523 = vmatprep.subr.bf16.mxu0 0
      %4524 = vmatpush1.bf16.msra.mxu0 0
      %4525 = vmatprep.mubr.bf16.mxu0 0
      %4526 = vmatmul.mubr.bf16.gmra.mrb[0].mxu0 %v4479
      %v4527 = vpop.f32.mrb[0].mxu0
      %v4528 = vadd.f32 0.0, %v4527
      %v4529 = vpop.f32.mrb[0].mxu0
      %v4530 = vpop.f32.mrb[0].mxu0
      %v4531 = vadd.f32 0.0, %v4530
      %v4532 = vpop.f32.mrb[0].mxu0
      %4533 = vmatprep.mubr.bf16.mxu0 0
      %4534 = vmatmul.mubr.bf16.gmra.mrb[0].mxu0 %v4482
      %v4535 = vpop.f32.mrb[0].mxu0
      %v4536 = vadd.f32 0.0, %v4535
      %v4537 = vpop.f32.mrb[0].mxu0
      %v4538 = vpop.f32.mrb[0].mxu0
      %v4539 = vadd.f32 0.0, %v4538
      %v4540 = vpop.f32.mrb[0].mxu0
      %4541 = vmatprep.mubr.bf16.mxu0 0
      %4542 = vmatmul.mubr.bf16.gmra.mrb[0].mxu0 %v4485
      %v4543 = vpop.f32.mrb[0].mxu0
      %v4544 = vadd.f32 0.0, %v4543
      %v4545 = vpop.f32.mrb[0].mxu0
      %v4546 = vpop.f32.mrb[0].mxu0
      %v4547 = vadd.f32 0.0, %v4546
      %v4548 = vpop.f32.mrb[0].mxu0
      %4549 = vmatprep.mubr.bf16.mxu0 0
      %4550 = vmatmul.mubr.bf16.gmra.mrb[0].mxu0 %v4488
      %v4551 = vpop.f32.mrb[0].mxu0
      %v4552 = vadd.f32 0.0, %v4551
      %v4553 = vpop.f32.mrb[0].mxu0
      %v4554 = vpop.f32.mrb[0].mxu0
      %v4555 = vadd.f32 0.0, %v4554
      %v4556 = vpop.f32.mrb[0].mxu0
      %4557 = vmatprep.mubr.bf16.mxu0 0
      %4558 = vmatmul.mubr.bf16.gmra.mrb[0].mxu0 %v4491
      %v4559 = vpop.f32.mrb[0].mxu0
      %v4560 = vadd.f32 0.0, %v4559
      %v4561 = vpop.f32.mrb[0].mxu0
      %v4562 = vpop.f32.mrb[0].mxu0
      %v4563 = vadd.f32 0.0, %v4562
      %v4564 = vpop.f32.mrb[0].mxu0
      %4565 = vdwg.mxu0
      %v4566 = vadd.f32 %v4408, %v4528
      %v4567 = vadd.f32 %v4411, %v4531
      %v4568 = vadd.f32 %v4416, %v4536
      %v4569 = vadd.f32 %v4419, %v4539
      %v4570 = vadd.f32 %v4424, %v4544
      %v4571 = vadd.f32 %v4427, %v4547
      %v4572 = vadd.f32 %v4432, %v4552
      %v4573 = vadd.f32 %v4435, %v4555
      %v4574 = vadd.f32 %v4440, %v4560
      %v4575 = vadd.f32 %v4443, %v4563
      %v4576 = vld [vmem:[#allocation2 + $0xa] sm:$0xff]
      %v4577 = vld [vmem:[#allocation2 + $0x12] sm:$0xff]
      %v4578 = vld [vmem:[#allocation2 + $0x1a] sm:$0xff]
      %v4579 = vld [vmem:[#allocation2 + $0x22] sm:$0xff]
      %v4580 = vld [vmem:[#allocation2 + $0x2a] sm:$0xff]
      %v4581 = vld [vmem:[#allocation2 + $0x32] sm:$0xff]
      %v4582 = vld [vmem:[#allocation2 + $0x3a] sm:$0xff]
      %v4583 = vld [vmem:[#allocation2 + $0x42] sm:$0xff]
      %v4584 = vld [vmem:[#allocation2 + $0x4a] sm:$0xff]
      %v4585 = vld [vmem:[#allocation2 + $0x52] sm:$0xff]
      %v4586 = vpack.c.bf16 %v4577, %v4576
      %v4587 = vpack.c.bf16 %v4579, %v4578
      %v4588 = vpack.c.bf16 %v4581, %v4580
      %v4589 = vpack.c.bf16 %v4583, %v4582
      %v4590 = vpack.c.bf16 %v4585, %v4584
      %s4591 = scalar_lea.vmem %s7, 48
      %v4592 = vld [vmem:[%s4591] sm:$0xf]
      %v4593 = vld [vmem:[%s4591 + $0x4] sm:$0xf]
      %v4594 = vld [vmem:[%s4591 + $0x8] sm:$0xf]
      %v4595 = vld [vmem:[%s4591 + $0xc] sm:$0xf]
      %v4600 = vunpack.c.l.b16 %v4592
      %v4601 = vunpack.c.l.b16 %v4593
      %v4602 = vunpack.c.l.b16 %v4594
      %v4603 = vunpack.c.l.b16 %v4595
      %v4604 = vpack.c.b16 %v4601, %v4600
      %v4605 = vpack.c.b16 %v4603, %v4602
      %v4609 = vsel %vm388, %v4586, 0
      %v4612 = vsel %vm388, %v4587, 0
      %v4615 = vsel %vm388, %v4588, 0
      %v4618 = vsel %vm388, %v4589, 0
      %v4621 = vsel %vm388, %v4590, 0
      %4623 = vmatprep.subr.bf16.mxu0 0
      %4624 = vmatpush1.bf16.msra.mxu0 %v4604
      %4625 = vmatprep.subr.bf16.mxu0 0
      %4626 = vmatpush1.bf16.msra.mxu0 %v4605
      %4627 = vmatprep.subr.bf16.mxu0 0
      %4628 = vmatpush1.bf16.msra.mxu0 0
      %4629 = vmatprep.subr.bf16.mxu0 0
      %4630 = vmatpush1.bf16.msra.mxu0 0
      %4631 = vmatprep.subr.bf16.mxu0 0
      %4632 = vmatpush1.bf16.msra.mxu0 0
      %4633 = vmatprep.subr.bf16.mxu0 0
      %4634 = vmatpush1.bf16.msra.mxu0 0
      %4635 = vmatprep.subr.bf16.mxu0 0
      %4636 = vmatpush1.bf16.msra.mxu0 0
      %4637 = vmatprep.subr.bf16.mxu0 0
      %4638 = vmatpush1.bf16.msra.mxu0 0
      %4639 = vmatprep.subr.bf16.mxu0 0
      %4640 = vmatpush1.bf16.msra.mxu0 0
      %4641 = vmatprep.subr.bf16.mxu0 0
      %4642 = vmatpush1.bf16.msra.mxu0 0
      %4643 = vmatprep.subr.bf16.mxu0 0
      %4644 = vmatpush1.bf16.msra.mxu0 0
      %4645 = vmatprep.subr.bf16.mxu0 0
      %4646 = vmatpush1.bf16.msra.mxu0 0
      %4647 = vmatprep.subr.bf16.mxu0 0
      %4648 = vmatpush1.bf16.msra.mxu0 0
      %4649 = vmatprep.subr.bf16.mxu0 0
      %4650 = vmatpush1.bf16.msra.mxu0 0
      %4651 = vmatprep.subr.bf16.mxu0 0
      %4652 = vmatpush1.bf16.msra.mxu0 0
      %4653 = vmatprep.subr.bf16.mxu0 0
      %4654 = vmatpush1.bf16.msra.mxu0 0
      %4655 = vmatprep.mubr.bf16.mxu0 0
      %4656 = vmatmul.mubr.bf16.gmra.mrb[0].mxu0 %v4609
      %v4657 = vpop.f32.mrb[0].mxu0
      %v4658 = vadd.f32 0.0, %v4657
      %v4659 = vpop.f32.mrb[0].mxu0
      %v4660 = vpop.f32.mrb[0].mxu0
      %v4661 = vadd.f32 0.0, %v4660
      %v4662 = vpop.f32.mrb[0].mxu0
      %4663 = vmatprep.mubr.bf16.mxu0 0
      %4664 = vmatmul.mubr.bf16.gmra.mrb[0].mxu0 %v4612
      %v4665 = vpop.f32.mrb[0].mxu0
      %v4666 = vadd.f32 0.0, %v4665
      %v4667 = vpop.f32.mrb[0].mxu0
      %v4668 = vpop.f32.mrb[0].mxu0
      %v4669 = vadd.f32 0.0, %v4668
      %v4670 = vpop.f32.mrb[0].mxu0
      %4671 = vmatprep.mubr.bf16.mxu0 0
      %4672 = vmatmul.mubr.bf16.gmra.mrb[0].mxu0 %v4615
      %v4673 = vpop.f32.mrb[0].mxu0
      %v4674 = vadd.f32 0.0, %v4673
      %v4675 = vpop.f32.mrb[0].mxu0
      %v4676 = vpop.f32.mrb[0].mxu0
      %v4677 = vadd.f32 0.0, %v4676
      %v4678 = vpop.f32.mrb[0].mxu0
      %4679 = vmatprep.mubr.bf16.mxu0 0
      %4680 = vmatmul.mubr.bf16.gmra.mrb[0].mxu0 %v4618
      %v4681 = vpop.f32.mrb[0].mxu0
      %v4682 = vadd.f32 0.0, %v4681
      %v4683 = vpop.f32.mrb[0].mxu0
      %v4684 = vpop.f32.mrb[0].mxu0
      %v4685 = vadd.f32 0.0, %v4684
      %v4686 = vpop.f32.mrb[0].mxu0
      %4687 = vmatprep.mubr.bf16.mxu0 0
      %4688 = vmatmul.mubr.bf16.gmra.mrb[0].mxu0 %v4621
      %v4689 = vpop.f32.mrb[0].mxu0
      %v4690 = vadd.f32 0.0, %v4689
      %v4691 = vpop.f32.mrb[0].mxu0
      %v4692 = vpop.f32.mrb[0].mxu0
      %v4693 = vadd.f32 0.0, %v4692
      %v4694 = vpop.f32.mrb[0].mxu0
      %4695 = vdwg.mxu0
      %v4696 = vadd.f32 %v4566, %v4658
      %v4697 = vadd.f32 %v4567, %v4661
      %v4698 = vadd.f32 %v4568, %v4666
      %v4699 = vadd.f32 %v4569, %v4669
      %v4700 = vadd.f32 %v4570, %v4674
      %v4701 = vadd.f32 %v4571, %v4677
      %v4702 = vadd.f32 %v4572, %v4682
      %v4703 = vadd.f32 %v4573, %v4685
      %v4704 = vadd.f32 %v4574, %v4690
      %v4705 = vadd.f32 %v4575, %v4693
      %v4706 = vld [vmem:[#allocation2 + $0xb] sm:$0xff]
      %v4707 = vld [vmem:[#allocation2 + $0x13] sm:$0xff]
      %v4708 = vld [vmem:[#allocation2 + $0x1b] sm:$0xff]
      %v4709 = vld [vmem:[#allocation2 + $0x23] sm:$0xff]
      %v4710 = vld [vmem:[#allocation2 + $0x2b] sm:$0xff]
      %v4711 = vld [vmem:[#allocation2 + $0x33] sm:$0xff]
      %v4712 = vld [vmem:[#allocation2 + $0x3b] sm:$0xff]
      %v4713 = vld [vmem:[#allocation2 + $0x43] sm:$0xff]
      %v4714 = vld [vmem:[#allocation2 + $0x4b] sm:$0xff]
      %v4715 = vld [vmem:[#allocation2 + $0x53] sm:$0xff]
      %v4716 = vpack.c.bf16 %v4707, %v4706
      %v4717 = vpack.c.bf16 %v4709, %v4708
      %v4718 = vpack.c.bf16 %v4711, %v4710
      %v4719 = vpack.c.bf16 %v4713, %v4712
      %v4720 = vpack.c.bf16 %v4715, %v4714
      %s4721 = scalar_lea.vmem %s7, 64
      %v4722 = vld [vmem:[%s4721] sm:$0xf]
      %v4723 = vld [vmem:[%s4721 + $0x4] sm:$0xf]
      %v4724 = vld [vmem:[%s4721 + $0x8] sm:$0xf]
      %v4725 = vld [vmem:[%s4721 + $0xc] sm:$0xf]
      %v4730 = vunpack.c.l.b16 %v4722
      %v4731 = vunpack.c.l.b16 %v4723
      %v4732 = vunpack.c.l.b16 %v4724
      %v4733 = vunpack.c.l.b16 %v4725
      %v4734 = vpack.c.b16 %v4731, %v4730
      %v4735 = vpack.c.b16 %v4733, %v4732
      %v4739 = vsel %vm388, %v4716, 0
      %v4742 = vsel %vm388, %v4717, 0
      %v4745 = vsel %vm388, %v4718, 0
      %v4748 = vsel %vm388, %v4719, 0
      %v4751 = vsel %vm388, %v4720, 0
      %4753 = vmatprep.subr.bf16.mxu0 0
      %4754 = vmatpush1.bf16.msra.mxu0 %v4734
      %4755 = vmatprep.subr.bf16.mxu0 0
      %4756 = vmatpush1.bf16.msra.mxu0 %v4735
      %4757 = vmatprep.subr.bf16.mxu0 0
      %4758 = vmatpush1.bf16.msra.mxu0 0
      %4759 = vmatprep.subr.bf16.mxu0 0
      %4760 = vmatpush1.bf16.msra.mxu0 0
      %4761 = vmatprep.subr.bf16.mxu0 0
      %4762 = vmatpush1.bf16.msra.mxu0 0
      %4763 = vmatprep.subr.bf16.mxu0 0
      %4764 = vmatpush1.bf16.msra.mxu0 0
      %4765 = vmatprep.subr.bf16.mxu0 0
      %4766 = vmatpush1.bf16.msra.mxu0 0
      %4767 = vmatprep.subr.bf16.mxu0 0
      %4768 = vmatpush1.bf16.msra.mxu0 0
      %4769 = vmatprep.subr.bf16.mxu0 0
      %4770 = vmatpush1.bf16.msra.mxu0 0
      %4771 = vmatprep.subr.bf16.mxu0 0
      %4772 = vmatpush1.bf16.msra.mxu0 0
      %4773 = vmatprep.subr.bf16.mxu0 0
      %4774 = vmatpush1.bf16.msra.mxu0 0
      %4775 = vmatprep.subr.bf16.mxu0 0
      %4776 = vmatpush1.bf16.msra.mxu0 0
      %4777 = vmatprep.subr.bf16.mxu0 0
      %4778 = vmatpush1.bf16.msra.mxu0 0
      %4779 = vmatprep.subr.bf16.mxu0 0
      %4780 = vmatpush1.bf16.msra.mxu0 0
      %4781 = vmatprep.subr.bf16.mxu0 0
      %4782 = vmatpush1.bf16.msra.mxu0 0
      %4783 = vmatprep.subr.bf16.mxu0 0
      %4784 = vmatpush1.bf16.msra.mxu0 0
      %4785 = vmatprep.mubr.bf16.mxu0 0
      %4786 = vmatmul.mubr.bf16.gmra.mrb[0].mxu0 %v4739
      %v4787 = vpop.f32.mrb[0].mxu0
      %v4788 = vadd.f32 0.0, %v4787
      %v4789 = vpop.f32.mrb[0].mxu0
      %v4790 = vpop.f32.mrb[0].mxu0
      %v4791 = vadd.f32 0.0, %v4790
      %v4792 = vpop.f32.mrb[0].mxu0
      %4793 = vmatprep.mubr.bf16.mxu0 0
      %4794 = vmatmul.mubr.bf16.gmra.mrb[0].mxu0 %v4742
      %v4795 = vpop.f32.mrb[0].mxu0
      %v4796 = vadd.f32 0.0, %v4795
      %v4797 = vpop.f32.mrb[0].mxu0
      %v4798 = vpop.f32.mrb[0].mxu0
      %v4799 = vadd.f32 0.0, %v4798
      %v4800 = vpop.f32.mrb[0].mxu0
      %4801 = vmatprep.mubr.bf16.mxu0 0
      %4802 = vmatmul.mubr.bf16.gmra.mrb[0].mxu0 %v4745
      %v4803 = vpop.f32.mrb[0].mxu0
      %v4804 = vadd.f32 0.0, %v4803
      %v4805 = vpop.f32.mrb[0].mxu0
      %v4806 = vpop.f32.mrb[0].mxu0
      %v4807 = vadd.f32 0.0, %v4806
      %v4808 = vpop.f32.mrb[0].mxu0
      %4809 = vmatprep.mubr.bf16.mxu0 0
      %4810 = vmatmul.mubr.bf16.gmra.mrb[0].mxu0 %v4748
      %v4811 = vpop.f32.mrb[0].mxu0
      %v4812 = vadd.f32 0.0, %v4811
      %v4813 = vpop.f32.mrb[0].mxu0
      %v4814 = vpop.f32.mrb[0].mxu0
      %v4815 = vadd.f32 0.0, %v4814
      %v4816 = vpop.f32.mrb[0].mxu0
      %4817 = vmatprep.mubr.bf16.mxu0 0
      %4818 = vmatmul.mubr.bf16.gmra.mrb[0].mxu0 %v4751
      %v4819 = vpop.f32.mrb[0].mxu0
      %v4820 = vadd.f32 0.0, %v4819
      %v4821 = vpop.f32.mrb[0].mxu0
      %v4822 = vpop.f32.mrb[0].mxu0
      %v4823 = vadd.f32 0.0, %v4822
      %v4824 = vpop.f32.mrb[0].mxu0
      %4825 = vdwg.mxu0
      %v4826 = vadd.f32 %v4696, %v4788
      %v4827 = vadd.f32 %v4697, %v4791
      %v4828 = vadd.f32 %v4698, %v4796
      %v4829 = vadd.f32 %v4699, %v4799
      %v4830 = vadd.f32 %v4700, %v4804
      %v4831 = vadd.f32 %v4701, %v4807
      %v4832 = vadd.f32 %v4702, %v4812
      %v4833 = vadd.f32 %v4703, %v4815
      %v4834 = vadd.f32 %v4704, %v4820
      %v4835 = vadd.f32 %v4705, %v4823
      %v4836 = vld [vmem:[#allocation2 + $0xc] sm:$0xff]
      %v4837 = vld [vmem:[#allocation2 + $0x14] sm:$0xff]
      %v4838 = vld [vmem:[#allocation2 + $0x1c] sm:$0xff]
      %v4839 = vld [vmem:[#allocation2 + $0x24] sm:$0xff]
      %v4840 = vld [vmem:[#allocation2 + $0x2c] sm:$0xff]
      %v4841 = vld [vmem:[#allocation2 + $0x34] sm:$0xff]
      %v4842 = vld [vmem:[#allocation2 + $0x3c] sm:$0xff]
      %v4843 = vld [vmem:[#allocation2 + $0x44] sm:$0xff]
      %v4844 = vld [vmem:[#allocation2 + $0x4c] sm:$0xff]
      %v4845 = vld [vmem:[#allocation2 + $0x54] sm:$0xff]
      %v4846 = vpack.c.bf16 %v4837, %v4836
      %v4847 = vpack.c.bf16 %v4839, %v4838
      %v4848 = vpack.c.bf16 %v4841, %v4840
      %v4849 = vpack.c.bf16 %v4843, %v4842
      %v4850 = vpack.c.bf16 %v4845, %v4844
      %s4851 = scalar_lea.vmem %s7, 80
      %v4852 = vld [vmem:[%s4851] sm:$0xf]
      %v4853 = vld [vmem:[%s4851 + $0x4] sm:$0xf]
      %v4854 = vld [vmem:[%s4851 + $0x8] sm:$0xf]
      %v4855 = vld [vmem:[%s4851 + $0xc] sm:$0xf]
      %v4860 = vunpack.c.l.b16 %v4852
      %v4861 = vunpack.c.l.b16 %v4853
      %v4862 = vunpack.c.l.b16 %v4854
      %v4863 = vunpack.c.l.b16 %v4855
      %v4864 = vpack.c.b16 %v4861, %v4860
      %v4865 = vpack.c.b16 %v4863, %v4862
      %v4869 = vsel %vm388, %v4846, 0
      %v4872 = vsel %vm388, %v4847, 0
      %v4875 = vsel %vm388, %v4848, 0
      %v4878 = vsel %vm388, %v4849, 0
      %v4881 = vsel %vm388, %v4850, 0
      %4883 = vmatprep.subr.bf16.mxu0 0
      %4884 = vmatpush1.bf16.msra.mxu0 %v4864
      %4885 = vmatprep.subr.bf16.mxu0 0
      %4886 = vmatpush1.bf16.msra.mxu0 %v4865
      %4887 = vmatprep.subr.bf16.mxu0 0
      %4888 = vmatpush1.bf16.msra.mxu0 0
      %4889 = vmatprep.subr.bf16.mxu0 0
      %4890 = vmatpush1.bf16.msra.mxu0 0
      %4891 = vmatprep.subr.bf16.mxu0 0
      %4892 = vmatpush1.bf16.msra.mxu0 0
      %4893 = vmatprep.subr.bf16.mxu0 0
      %4894 = vmatpush1.bf16.msra.mxu0 0
      %4895 = vmatprep.subr.bf16.mxu0 0
      %4896 = vmatpush1.bf16.msra.mxu0 0
      %4897 = vmatprep.subr.bf16.mxu0 0
      %4898 = vmatpush1.bf16.msra.mxu0 0
      %4899 = vmatprep.subr.bf16.mxu0 0
      %4900 = vmatpush1.bf16.msra.mxu0 0
      %4901 = vmatprep.subr.bf16.mxu0 0
      %4902 = vmatpush1.bf16.msra.mxu0 0
      %4903 = vmatprep.subr.bf16.mxu0 0
      %4904 = vmatpush1.bf16.msra.mxu0 0
      %4905 = vmatprep.subr.bf16.mxu0 0
      %4906 = vmatpush1.bf16.msra.mxu0 0
      %4907 = vmatprep.subr.bf16.mxu0 0
      %4908 = vmatpush1.bf16.msra.mxu0 0
      %4909 = vmatprep.subr.bf16.mxu0 0
      %4910 = vmatpush1.bf16.msra.mxu0 0
      %4911 = vmatprep.subr.bf16.mxu0 0
      %4912 = vmatpush1.bf16.msra.mxu0 0
      %4913 = vmatprep.subr.bf16.mxu0 0
      %4914 = vmatpush1.bf16.msra.mxu0 0
      %4915 = vmatprep.mubr.bf16.mxu0 0
      %4916 = vmatmul.mubr.bf16.gmra.mrb[0].mxu0 %v4869
      %v4917 = vpop.f32.mrb[0].mxu0
      %v4918 = vadd.f32 0.0, %v4917
      %v4919 = vpop.f32.mrb[0].mxu0
      %v4920 = vpop.f32.mrb[0].mxu0
      %v4921 = vadd.f32 0.0, %v4920
      %v4922 = vpop.f32.mrb[0].mxu0
      %4923 = vmatprep.mubr.bf16.mxu0 0
      %4924 = vmatmul.mubr.bf16.gmra.mrb[0].mxu0 %v4872
      %v4925 = vpop.f32.mrb[0].mxu0
      %v4926 = vadd.f32 0.0, %v4925
      %v4927 = vpop.f32.mrb[0].mxu0
      %v4928 = vpop.f32.mrb[0].mxu0
      %v4929 = vadd.f32 0.0, %v4928
      %v4930 = vpop.f32.mrb[0].mxu0
      %4931 = vmatprep.mubr.bf16.mxu0 0
      %4932 = vmatmul.mubr.bf16.gmra.mrb[0].mxu0 %v4875
      %v4933 = vpop.f32.mrb[0].mxu0
      %v4934 = vadd.f32 0.0, %v4933
      %v4935 = vpop.f32.mrb[0].mxu0
      %v4936 = vpop.f32.mrb[0].mxu0
      %v4937 = vadd.f32 0.0, %v4936
      %v4938 = vpop.f32.mrb[0].mxu0
      %4939 = vmatprep.mubr.bf16.mxu0 0
      %4940 = vmatmul.mubr.bf16.gmra.mrb[0].mxu0 %v4878
      %v4941 = vpop.f32.mrb[0].mxu0
      %v4942 = vadd.f32 0.0, %v4941
      %v4943 = vpop.f32.mrb[0].mxu0
      %v4944 = vpop.f32.mrb[0].mxu0
      %v4945 = vadd.f32 0.0, %v4944
      %v4946 = vpop.f32.mrb[0].mxu0
      %4947 = vmatprep.mubr.bf16.mxu0 0
      %4948 = vmatmul.mubr.bf16.gmra.mrb[0].mxu0 %v4881
      %v4949 = vpop.f32.mrb[0].mxu0
      %v4950 = vadd.f32 0.0, %v4949
      %v4951 = vpop.f32.mrb[0].mxu0
      %v4952 = vpop.f32.mrb[0].mxu0
      %v4953 = vadd.f32 0.0, %v4952
      %v4954 = vpop.f32.mrb[0].mxu0
      %4955 = vdwg.mxu0
      %v4956 = vadd.f32 %v4826, %v4918
      %v4957 = vadd.f32 %v4827, %v4921
      %v4958 = vadd.f32 %v4828, %v4926
      %v4959 = vadd.f32 %v4829, %v4929
      %v4960 = vadd.f32 %v4830, %v4934
      %v4961 = vadd.f32 %v4831, %v4937
      %v4962 = vadd.f32 %v4832, %v4942
      %v4963 = vadd.f32 %v4833, %v4945
      %v4964 = vadd.f32 %v4834, %v4950
      %v4965 = vadd.f32 %v4835, %v4953
      %v4966 = vld [vmem:[#allocation2 + $0x14] sm:$0xff]
      %v4967 = vld [vmem:[#allocation2 + $0x1c] sm:$0xff]
      %v4968 = vld [vmem:[#allocation2 + $0x24] sm:$0xff]
      %v4969 = vld [vmem:[#allocation2 + $0x2c] sm:$0xff]
      %v4970 = vld [vmem:[#allocation2 + $0x34] sm:$0xff]
      %v4971 = vld [vmem:[#allocation2 + $0x3c] sm:$0xff]
      %v4972 = vld [vmem:[#allocation2 + $0x44] sm:$0xff]
      %v4973 = vld [vmem:[#allocation2 + $0x4c] sm:$0xff]
      %v4974 = vld [vmem:[#allocation2 + $0x54] sm:$0xff]
      %v4975 = vld [vmem:[#allocation2 + $0x5c] sm:$0xff]
      %v4976 = vpack.c.bf16 %v4967, %v4966
      %v4977 = vpack.c.bf16 %v4969, %v4968
      %v4978 = vpack.c.bf16 %v4971, %v4970
      %v4979 = vpack.c.bf16 %v4973, %v4972
      %v4980 = vpack.c.bf16 %v4975, %v4974
      %s4981 = scalar_lea.vmem %s7, 96
      %v4982 = vld [vmem:[%s4981] sm:$0xf]
      %v4983 = vld [vmem:[%s4981 + $0x4] sm:$0xf]
      %v4984 = vld [vmem:[%s4981 + $0x8] sm:$0xf]
      %v4985 = vld [vmem:[%s4981 + $0xc] sm:$0xf]
      %v4990 = vunpack.c.l.b16 %v4982
      %v4991 = vunpack.c.l.b16 %v4983
      %v4992 = vunpack.c.l.b16 %v4984
      %v4993 = vunpack.c.l.b16 %v4985
      %v4994 = vpack.c.b16 %v4991, %v4990
      %v4995 = vpack.c.b16 %v4993, %v4992
      %v4999 = vsel %vm388, %v4976, 0
      %v5002 = vsel %vm388, %v4977, 0
      %v5005 = vsel %vm388, %v4978, 0
      %v5008 = vsel %vm388, %v4979, 0
      %v5011 = vsel %vm388, %v4980, 0
      %5013 = vmatprep.subr.bf16.mxu0 0
      %5014 = vmatpush1.bf16.msra.mxu0 %v4994
      %5015 = vmatprep.subr.bf16.mxu0 0
      %5016 = vmatpush1.bf16.msra.mxu0 %v4995
      %5017 = vmatprep.subr.bf16.mxu0 0
      %5018 = vmatpush1.bf16.msra.mxu0 0
      %5019 = vmatprep.subr.bf16.mxu0 0
      %5020 = vmatpush1.bf16.msra.mxu0 0
      %5021 = vmatprep.subr.bf16.mxu0 0
      %5022 = vmatpush1.bf16.msra.mxu0 0
      %5023 = vmatprep.subr.bf16.mxu0 0
      %5024 = vmatpush1.bf16.msra.mxu0 0
      %5025 = vmatprep.subr.bf16.mxu0 0
      %5026 = vmatpush1.bf16.msra.mxu0 0
      %5027 = vmatprep.subr.bf16.mxu0 0
      %5028 = vmatpush1.bf16.msra.mxu0 0
      %5029 = vmatprep.subr.bf16.mxu0 0
      %5030 = vmatpush1.bf16.msra.mxu0 0
      %5031 = vmatprep.subr.bf16.mxu0 0
      %5032 = vmatpush1.bf16.msra.mxu0 0
      %5033 = vmatprep.subr.bf16.mxu0 0
      %5034 = vmatpush1.bf16.msra.mxu0 0
      %5035 = vmatprep.subr.bf16.mxu0 0
      %5036 = vmatpush1.bf16.msra.mxu0 0
      %5037 = vmatprep.subr.bf16.mxu0 0
      %5038 = vmatpush1.bf16.msra.mxu0 0
      %5039 = vmatprep.subr.bf16.mxu0 0
      %5040 = vmatpush1.bf16.msra.mxu0 0
      %5041 = vmatprep.subr.bf16.mxu0 0
      %5042 = vmatpush1.bf16.msra.mxu0 0
      %5043 = vmatprep.subr.bf16.mxu0 0
      %5044 = vmatpush1.bf16.msra.mxu0 0
      %5045 = vmatprep.mubr.bf16.mxu0 0
      %5046 = vmatmul.mubr.bf16.gmra.mrb[0].mxu0 %v4999
      %v5047 = vpop.f32.mrb[0].mxu0
      %v5048 = vadd.f32 0.0, %v5047
      %v5049 = vpop.f32.mrb[0].mxu0
      %v5050 = vpop.f32.mrb[0].mxu0
      %v5051 = vadd.f32 0.0, %v5050
      %v5052 = vpop.f32.mrb[0].mxu0
      %5053 = vmatprep.mubr.bf16.mxu0 0
      %5054 = vmatmul.mubr.bf16.gmra.mrb[0].mxu0 %v5002
      %v5055 = vpop.f32.mrb[0].mxu0
      %v5056 = vadd.f32 0.0, %v5055
      %v5057 = vpop.f32.mrb[0].mxu0
      %v5058 = vpop.f32.mrb[0].mxu0
      %v5059 = vadd.f32 0.0, %v5058
      %v5060 = vpop.f32.mrb[0].mxu0
      %5061 = vmatprep.mubr.bf16.mxu0 0
      %5062 = vmatmul.mubr.bf16.gmra.mrb[0].mxu0 %v5005
      %v5063 = vpop.f32.mrb[0].mxu0
      %v5064 = vadd.f32 0.0, %v5063
      %v5065 = vpop.f32.mrb[0].mxu0
      %v5066 = vpop.f32.mrb[0].mxu0
      %v5067 = vadd.f32 0.0, %v5066
      %v5068 = vpop.f32.mrb[0].mxu0
      %5069 = vmatprep.mubr.bf16.mxu0 0
      %5070 = vmatmul.mubr.bf16.gmra.mrb[0].mxu0 %v5008
      %v5071 = vpop.f32.mrb[0].mxu0
      %v5072 = vadd.f32 0.0, %v5071
      %v5073 = vpop.f32.mrb[0].mxu0
      %v5074 = vpop.f32.mrb[0].mxu0
      %v5075 = vadd.f32 0.0, %v5074
      %v5076 = vpop.f32.mrb[0].mxu0
      %5077 = vmatprep.mubr.bf16.mxu0 0
      %5078 = vmatmul.mubr.bf16.gmra.mrb[0].mxu0 %v5011
      %v5079 = vpop.f32.mrb[0].mxu0
      %v5080 = vadd.f32 0.0, %v5079
      %v5081 = vpop.f32.mrb[0].mxu0
      %v5082 = vpop.f32.mrb[0].mxu0
      %v5083 = vadd.f32 0.0, %v5082
      %v5084 = vpop.f32.mrb[0].mxu0
      %5085 = vdwg.mxu0
      %v5086 = vadd.f32 %v4956, %v5048
      %v5087 = vadd.f32 %v4957, %v5051
      %v5088 = vadd.f32 %v4958, %v5056
      %v5089 = vadd.f32 %v4959, %v5059
      %v5090 = vadd.f32 %v4960, %v5064
      %v5091 = vadd.f32 %v4961, %v5067
      %v5092 = vadd.f32 %v4962, %v5072
      %v5093 = vadd.f32 %v4963, %v5075
      %v5094 = vadd.f32 %v4964, %v5080
      %v5095 = vadd.f32 %v4965, %v5083
      %v5096 = vld [vmem:[#allocation2 + $0x15] sm:$0xff]
      %v5097 = vld [vmem:[#allocation2 + $0x1d] sm:$0xff]
      %v5098 = vld [vmem:[#allocation2 + $0x25] sm:$0xff]
      %v5099 = vld [vmem:[#allocation2 + $0x2d] sm:$0xff]
      %v5100 = vld [vmem:[#allocation2 + $0x35] sm:$0xff]
      %v5101 = vld [vmem:[#allocation2 + $0x3d] sm:$0xff]
      %v5102 = vld [vmem:[#allocation2 + $0x45] sm:$0xff]
      %v5103 = vld [vmem:[#allocation2 + $0x4d] sm:$0xff]
      %v5104 = vld [vmem:[#allocation2 + $0x55] sm:$0xff]
      %v5105 = vld [vmem:[#allocation2 + $0x5d] sm:$0xff]
      %v5106 = vpack.c.bf16 %v5097, %v5096
      %v5107 = vpack.c.bf16 %v5099, %v5098
      %v5108 = vpack.c.bf16 %v5101, %v5100
      %v5109 = vpack.c.bf16 %v5103, %v5102
      %v5110 = vpack.c.bf16 %v5105, %v5104
      %s5111 = scalar_lea.vmem %s7, 112
      %v5112 = vld [vmem:[%s5111] sm:$0xf]
      %v5113 = vld [vmem:[%s5111 + $0x4] sm:$0xf]
      %v5114 = vld [vmem:[%s5111 + $0x8] sm:$0xf]
      %v5115 = vld [vmem:[%s5111 + $0xc] sm:$0xf]
      %v5120 = vunpack.c.l.b16 %v5112
      %v5121 = vunpack.c.l.b16 %v5113
      %v5122 = vunpack.c.l.b16 %v5114
      %v5123 = vunpack.c.l.b16 %v5115
      %v5124 = vpack.c.b16 %v5121, %v5120
      %v5125 = vpack.c.b16 %v5123, %v5122
      %v5129 = vsel %vm388, %v5106, 0
      %v5132 = vsel %vm388, %v5107, 0
      %v5135 = vsel %vm388, %v5108, 0
      %v5138 = vsel %vm388, %v5109, 0
      %v5141 = vsel %vm388, %v5110, 0
      %5143 = vmatprep.subr.bf16.mxu0 0
      %5144 = vmatpush1.bf16.msra.mxu0 %v5124
      %5145 = vmatprep.subr.bf16.mxu0 0
      %5146 = vmatpush1.bf16.msra.mxu0 %v5125
      %5147 = vmatprep.subr.bf16.mxu0 0
      %5148 = vmatpush1.bf16.msra.mxu0 0
      %5149 = vmatprep.subr.bf16.mxu0 0
      %5150 = vmatpush1.bf16.msra.mxu0 0
      %5151 = vmatprep.subr.bf16.mxu0 0
      %5152 = vmatpush1.bf16.msra.mxu0 0
      %5153 = vmatprep.subr.bf16.mxu0 0
      %5154 = vmatpush1.bf16.msra.mxu0 0
      %5155 = vmatprep.subr.bf16.mxu0 0
      %5156 = vmatpush1.bf16.msra.mxu0 0
      %5157 = vmatprep.subr.bf16.mxu0 0
      %5158 = vmatpush1.bf16.msra.mxu0 0
      %5159 = vmatprep.subr.bf16.mxu0 0
      %5160 = vmatpush1.bf16.msra.mxu0 0
      %5161 = vmatprep.subr.bf16.mxu0 0
      %5162 = vmatpush1.bf16.msra.mxu0 0
      %5163 = vmatprep.subr.bf16.mxu0 0
      %5164 = vmatpush1.bf16.msra.mxu0 0
      %5165 = vmatprep.subr.bf16.mxu0 0
      %5166 = vmatpush1.bf16.msra.mxu0 0
      %5167 = vmatprep.subr.bf16.mxu0 0
      %5168 = vmatpush1.bf16.msra.mxu0 0
      %5169 = vmatprep.subr.bf16.mxu0 0
      %5170 = vmatpush1.bf16.msra.mxu0 0
      %5171 = vmatprep.subr.bf16.mxu0 0
      %5172 = vmatpush1.bf16.msra.mxu0 0
      %5173 = vmatprep.subr.bf16.mxu0 0
      %5174 = vmatpush1.bf16.msra.mxu0 0
      %5175 = vmatprep.mubr.bf16.mxu0 0
      %5176 = vmatmul.mubr.bf16.gmra.mrb[0].mxu0 %v5129
      %v5177 = vpop.f32.mrb[0].mxu0
      %v5178 = vadd.f32 0.0, %v5177
      %v5179 = vpop.f32.mrb[0].mxu0
      %v5180 = vpop.f32.mrb[0].mxu0
      %v5181 = vadd.f32 0.0, %v5180
      %v5182 = vpop.f32.mrb[0].mxu0
      %5183 = vmatprep.mubr.bf16.mxu0 0
      %5184 = vmatmul.mubr.bf16.gmra.mrb[0].mxu0 %v5132
      %v5185 = vpop.f32.mrb[0].mxu0
      %v5186 = vadd.f32 0.0, %v5185
      %v5187 = vpop.f32.mrb[0].mxu0
      %v5188 = vpop.f32.mrb[0].mxu0
      %v5189 = vadd.f32 0.0, %v5188
      %v5190 = vpop.f32.mrb[0].mxu0
      %5191 = vmatprep.mubr.bf16.mxu0 0
      %5192 = vmatmul.mubr.bf16.gmra.mrb[0].mxu0 %v5135
      %v5193 = vpop.f32.mrb[0].mxu0
      %v5194 = vadd.f32 0.0, %v5193
      %v5195 = vpop.f32.mrb[0].mxu0
      %v5196 = vpop.f32.mrb[0].mxu0
      %v5197 = vadd.f32 0.0, %v5196
      %v5198 = vpop.f32.mrb[0].mxu0
      %5199 = vmatprep.mubr.bf16.mxu0 0
      %5200 = vmatmul.mubr.bf16.gmra.mrb[0].mxu0 %v5138
      %v5201 = vpop.f32.mrb[0].mxu0
      %v5202 = vadd.f32 0.0, %v5201
      %v5203 = vpop.f32.mrb[0].mxu0
      %v5204 = vpop.f32.mrb[0].mxu0
      %v5205 = vadd.f32 0.0, %v5204
      %v5206 = vpop.f32.mrb[0].mxu0
      %5207 = vmatprep.mubr.bf16.mxu0 0
      %5208 = vmatmul.mubr.bf16.gmra.mrb[0].mxu0 %v5141
      %v5209 = vpop.f32.mrb[0].mxu0
      %v5210 = vadd.f32 0.0, %v5209
      %v5211 = vpop.f32.mrb[0].mxu0
      %v5212 = vpop.f32.mrb[0].mxu0
      %v5213 = vadd.f32 0.0, %v5212
      %v5214 = vpop.f32.mrb[0].mxu0
      %5215 = vdwg.mxu0
      %v5216 = vadd.f32 %v5086, %v5178
      %v5217 = vadd.f32 %v5087, %v5181
      %v5218 = vadd.f32 %v5088, %v5186
      %v5219 = vadd.f32 %v5089, %v5189
      %v5220 = vadd.f32 %v5090, %v5194
      %v5221 = vadd.f32 %v5091, %v5197
      %v5222 = vadd.f32 %v5092, %v5202
      %v5223 = vadd.f32 %v5093, %v5205
      %v5224 = vadd.f32 %v5094, %v5210
      %v5225 = vadd.f32 %v5095, %v5213
      %v5226 = vld [vmem:[#allocation2 + $0x16] sm:$0xff]
      %v5227 = vld [vmem:[#allocation2 + $0x1e] sm:$0xff]
      %v5228 = vld [vmem:[#allocation2 + $0x26] sm:$0xff]
      %v5229 = vld [vmem:[#allocation2 + $0x2e] sm:$0xff]
      %v5230 = vld [vmem:[#allocation2 + $0x36] sm:$0xff]
      %v5231 = vld [vmem:[#allocation2 + $0x3e] sm:$0xff]
      %v5232 = vld [vmem:[#allocation2 + $0x46] sm:$0xff]
      %v5233 = vld [vmem:[#allocation2 + $0x4e] sm:$0xff]
      %v5234 = vld [vmem:[#allocation2 + $0x56] sm:$0xff]
      %v5235 = vld [vmem:[#allocation2 + $0x5e] sm:$0xff]
      %v5236 = vpack.c.bf16 %v5227, %v5226
      %v5237 = vpack.c.bf16 %v5229, %v5228
      %v5238 = vpack.c.bf16 %v5231, %v5230
      %v5239 = vpack.c.bf16 %v5233, %v5232
      %v5240 = vpack.c.bf16 %v5235, %v5234
      %s5241 = scalar_lea.vmem %s7, 128
      %v5242 = vld [vmem:[%s5241] sm:$0xf]
      %v5243 = vld [vmem:[%s5241 + $0x4] sm:$0xf]
      %v5244 = vld [vmem:[%s5241 + $0x8] sm:$0xf]
      %v5245 = vld [vmem:[%s5241 + $0xc] sm:$0xf]
      %v5250 = vunpack.c.l.b16 %v5242
      %v5251 = vunpack.c.l.b16 %v5243
      %v5252 = vunpack.c.l.b16 %v5244
      %v5253 = vunpack.c.l.b16 %v5245
      %v5254 = vpack.c.b16 %v5251, %v5250
      %v5255 = vpack.c.b16 %v5253, %v5252
      %v5259 = vsel %vm388, %v5236, 0
      %v5262 = vsel %vm388, %v5237, 0
      %v5265 = vsel %vm388, %v5238, 0
      %v5268 = vsel %vm388, %v5239, 0
      %v5271 = vsel %vm388, %v5240, 0
      %5273 = vmatprep.subr.bf16.mxu0 0
      %5274 = vmatpush1.bf16.msra.mxu0 %v5254
      %5275 = vmatprep.subr.bf16.mxu0 0
      %5276 = vmatpush1.bf16.msra.mxu0 %v5255
      %5277 = vmatprep.subr.bf16.mxu0 0
      %5278 = vmatpush1.bf16.msra.mxu0 0
      %5279 = vmatprep.subr.bf16.mxu0 0
      %5280 = vmatpush1.bf16.msra.mxu0 0
      %5281 = vmatprep.subr.bf16.mxu0 0
      %5282 = vmatpush1.bf16.msra.mxu0 0
      %5283 = vmatprep.subr.bf16.mxu0 0
      %5284 = vmatpush1.bf16.msra.mxu0 0
      %5285 = vmatprep.subr.bf16.mxu0 0
      %5286 = vmatpush1.bf16.msra.mxu0 0
      %5287 = vmatprep.subr.bf16.mxu0 0
      %5288 = vmatpush1.bf16.msra.mxu0 0
      %5289 = vmatprep.subr.bf16.mxu0 0
      %5290 = vmatpush1.bf16.msra.mxu0 0
      %5291 = vmatprep.subr.bf16.mxu0 0
      %5292 = vmatpush1.bf16.msra.mxu0 0
      %5293 = vmatprep.subr.bf16.mxu0 0
      %5294 = vmatpush1.bf16.msra.mxu0 0
      %5295 = vmatprep.subr.bf16.mxu0 0
      %5296 = vmatpush1.bf16.msra.mxu0 0
      %5297 = vmatprep.subr.bf16.mxu0 0
      %5298 = vmatpush1.bf16.msra.mxu0 0
      %5299 = vmatprep.subr.bf16.mxu0 0
      %5300 = vmatpush1.bf16.msra.mxu0 0
      %5301 = vmatprep.subr.bf16.mxu0 0
      %5302 = vmatpush1.bf16.msra.mxu0 0
      %5303 = vmatprep.subr.bf16.mxu0 0
      %5304 = vmatpush1.bf16.msra.mxu0 0
      %5305 = vmatprep.mubr.bf16.mxu0 0
      %5306 = vmatmul.mubr.bf16.gmra.mrb[0].mxu0 %v5259
      %v5307 = vpop.f32.mrb[0].mxu0
      %v5308 = vadd.f32 0.0, %v5307
      %v5309 = vpop.f32.mrb[0].mxu0
      %v5310 = vpop.f32.mrb[0].mxu0
      %v5311 = vadd.f32 0.0, %v5310
      %v5312 = vpop.f32.mrb[0].mxu0
      %5313 = vmatprep.mubr.bf16.mxu0 0
      %5314 = vmatmul.mubr.bf16.gmra.mrb[0].mxu0 %v5262
      %v5315 = vpop.f32.mrb[0].mxu0
      %v5316 = vadd.f32 0.0, %v5315
      %v5317 = vpop.f32.mrb[0].mxu0
      %v5318 = vpop.f32.mrb[0].mxu0
      %v5319 = vadd.f32 0.0, %v5318
      %v5320 = vpop.f32.mrb[0].mxu0
      %5321 = vmatprep.mubr.bf16.mxu0 0
      %5322 = vmatmul.mubr.bf16.gmra.mrb[0].mxu0 %v5265
      %v5323 = vpop.f32.mrb[0].mxu0
      %v5324 = vadd.f32 0.0, %v5323
      %v5325 = vpop.f32.mrb[0].mxu0
      %v5326 = vpop.f32.mrb[0].mxu0
      %v5327 = vadd.f32 0.0, %v5326
      %v5328 = vpop.f32.mrb[0].mxu0
      %5329 = vmatprep.mubr.bf16.mxu0 0
      %5330 = vmatmul.mubr.bf16.gmra.mrb[0].mxu0 %v5268
      %v5331 = vpop.f32.mrb[0].mxu0
      %v5332 = vadd.f32 0.0, %v5331
      %v5333 = vpop.f32.mrb[0].mxu0
      %v5334 = vpop.f32.mrb[0].mxu0
      %v5335 = vadd.f32 0.0, %v5334
      %v5336 = vpop.f32.mrb[0].mxu0
      %5337 = vmatprep.mubr.bf16.mxu0 0
      %5338 = vmatmul.mubr.bf16.gmra.mrb[0].mxu0 %v5271
      %v5339 = vpop.f32.mrb[0].mxu0
      %v5340 = vadd.f32 0.0, %v5339
      %v5341 = vpop.f32.mrb[0].mxu0
      %v5342 = vpop.f32.mrb[0].mxu0
      %v5343 = vadd.f32 0.0, %v5342
      %v5344 = vpop.f32.mrb[0].mxu0
      %5345 = vdwg.mxu0
      %v5346 = vadd.f32 %v5216, %v5308
      %v5347 = vadd.f32 %v5217, %v5311
      %v5348 = vadd.f32 %v5218, %v5316
      %v5349 = vadd.f32 %v5219, %v5319
      %v5350 = vadd.f32 %v5220, %v5324
      %v5351 = vadd.f32 %v5221, %v5327
      %v5352 = vadd.f32 %v5222, %v5332
      %v5353 = vadd.f32 %v5223, %v5335
      %v5354 = vadd.f32 %v5224, %v5340
      %v5355 = vadd.f32 %v5225, %v5343
      %v5356 = vld [vmem:[%s8] sm:$0x1]
      %v5358 = vlaneseq
      %v5359 = vshrl.u32 %v5358, 7
      %v5360 = vsub.s32 0, %v5359
      %v5361 = vrot.slane %v5356, %v5360
      %v5363 = vadd.f32 %v5346, %v5361
      %v5364 = vadd.f32 %v5347, %v5361
      %v5365 = vadd.f32 %v5348, %v5361
      %v5366 = vadd.f32 %v5349, %v5361
      %v5367 = vadd.f32 %v5350, %v5361
      %v5368 = vadd.f32 %v5351, %v5361
      %v5369 = vadd.f32 %v5352, %v5361
      %v5370 = vadd.f32 %v5353, %v5361
      %v5371 = vadd.f32 %v5354, %v5361
      %v5372 = vadd.f32 %v5355, %v5361
      %v5373 = vmax.f32 %v5363, 0.0
      %v5374 = vmax.f32 %v5364, 0.0
      %v5375 = vmax.f32 %v5365, 0.0
      %v5376 = vmax.f32 %v5366, 0.0
      %v5377 = vmax.f32 %v5367, 0.0
      %v5378 = vmax.f32 %v5368, 0.0
      %v5379 = vmax.f32 %v5369, 0.0
      %v5380 = vmax.f32 %v5370, 0.0
      %v5381 = vmax.f32 %v5371, 0.0
      %v5382 = vmax.f32 %v5372, 0.0
      %v5383 = vsel %vm1785, %v5373, 0.0
      %v5384 = vsel %vm1786, %v5374, 0.0
      %v5385 = vsel %vm1787, %v5375, 0.0
      %v5386 = vsel %vm1788, %v5376, 0.0
      %v5387 = vsel %vm1789, %v5377, 0.0
      %v5388 = vsel %vm1790, %v5378, 0.0
      %v5389 = vsel %vm1791, %v5379, 0.0
      %v5390 = vsel %vm1792, %v5380, 0.0
      %v5391 = vsel %vm1793, %v5381, 0.0
      %v5392 = vsel %vm1794, %v5382, 0.0
      %5393 = vst.msk [vmem:[#allocation3 + $0xb] sm:$0xff] %vm388, %v5383
      %5394 = vst.msk [vmem:[#allocation3 + $0x13] sm:$0xff] %vm388, %v5384
      %5395 = vst.msk [vmem:[#allocation3 + $0x1b] sm:$0xff] %vm388, %v5385
      %5396 = vst.msk [vmem:[#allocation3 + $0x23] sm:$0xff] %vm388, %v5386
      %5397 = vst.msk [vmem:[#allocation3 + $0x2b] sm:$0xff] %vm388, %v5387
      %5398 = vst.msk [vmem:[#allocation3 + $0x33] sm:$0xff] %vm388, %v5388
      %5399 = vst.msk [vmem:[#allocation3 + $0x3b] sm:$0xff] %vm388, %v5389
      %5400 = vst.msk [vmem:[#allocation3 + $0x43] sm:$0xff] %vm388, %v5390
      %5401 = vst.msk [vmem:[#allocation3 + $0x4b] sm:$0xff] %vm388, %v5391
      %5402 = vst.msk [vmem:[#allocation3 + $0x53] sm:$0xff] %vm388, %v5392
      %v5403 = vld [vmem:[#allocation3] sm:$0xff]
      %v5404 = vld [vmem:[#allocation3 + $0x8] sm:$0xff]
      %v5405 = vld [vmem:[#allocation3 + $0x10] sm:$0xff]
      %v5406 = vld [vmem:[#allocation3 + $0x18] sm:$0xff]
      %v5407 = vld [vmem:[#allocation3 + $0x20] sm:$0xff]
      %v5408 = vld [vmem:[#allocation3 + $0x28] sm:$0xff]
      %v5409 = vld [vmem:[#allocation3 + $0x30] sm:$0xff]
      %v5410 = vld [vmem:[#allocation3 + $0x38] sm:$0xff]
      %v5411 = vld [vmem:[#allocation3 + $0x40] sm:$0xff]
      %v5412 = vld [vmem:[#allocation3 + $0x48] sm:$0xff]
      %v5413 = vpack.c.bf16 %v5404, %v5403
      %v5414 = vpack.c.bf16 %v5406, %v5405
      %v5415 = vpack.c.bf16 %v5408, %v5407
      %v5416 = vpack.c.bf16 %v5410, %v5409
      %v5417 = vpack.c.bf16 %v5412, %v5411
      %v5418 = vld [vmem:[%s9] sm:$0xf]
      %v5419 = vld [vmem:[%s9 + $0x4] sm:$0xf]
      %v5420 = vld [vmem:[%s9 + $0x8] sm:$0xf]
      %v5421 = vld [vmem:[%s9 + $0xc] sm:$0xf]
      %v5422 = vld [vmem:[#allocation3 + $0x1] sm:$0xff]
      %v5423 = vld [vmem:[#allocation3 + $0x9] sm:$0xff]
      %v5424 = vld [vmem:[#allocation3 + $0x11] sm:$0xff]
      %v5425 = vld [vmem:[#allocation3 + $0x19] sm:$0xff]
      %v5426 = vld [vmem:[#allocation3 + $0x21] sm:$0xff]
      %v5427 = vld [vmem:[#allocation3 + $0x29] sm:$0xff]
      %v5428 = vld [vmem:[#allocation3 + $0x31] sm:$0xff]
      %v5429 = vld [vmem:[#allocation3 + $0x39] sm:$0xff]
      %v5430 = vld [vmem:[#allocation3 + $0x41] sm:$0xff]
      %v5431 = vld [vmem:[#allocation3 + $0x49] sm:$0xff]
      %v5432 = vpack.c.bf16 %v5423, %v5422
      %v5433 = vpack.c.bf16 %v5425, %v5424
      %v5434 = vpack.c.bf16 %v5427, %v5426
      %v5435 = vpack.c.bf16 %v5429, %v5428
      %v5436 = vpack.c.bf16 %v5431, %v5430
      %s5437 = scalar_lea.vmem %s9, 16
      %v5438 = vld [vmem:[%s5437] sm:$0xf]
      %v5439 = vld [vmem:[%s5437 + $0x4] sm:$0xf]
      %v5440 = vld [vmem:[%s5437 + $0x8] sm:$0xf]
      %v5441 = vld [vmem:[%s5437 + $0xc] sm:$0xf]
      %v5446 = vunpack.c.l.b16 %v5438
      %v5447 = vunpack.c.l.b16 %v5439
      %v5448 = vunpack.c.l.b16 %v5440
      %v5449 = vunpack.c.l.b16 %v5441
      %v5450 = vpack.c.b16 %v5447, %v5446
      %v5451 = vpack.c.b16 %v5449, %v5448
      %v5455 = vsel %vm388, %v5432, 0
      %v5458 = vsel %vm388, %v5433, 0
      %v5461 = vsel %vm388, %v5434, 0
      %v5464 = vsel %vm388, %v5435, 0
      %v5467 = vsel %vm388, %v5436, 0
      %5469 = vmatprep.subr.bf16.mxu0 0
      %5470 = vmatpush1.bf16.msra.mxu0 %v5450
      %5471 = vmatprep.subr.bf16.mxu0 0
      %5472 = vmatpush1.bf16.msra.mxu0 %v5451
      %5473 = vmatprep.subr.bf16.mxu0 0
      %5474 = vmatpush1.bf16.msra.mxu0 0
      %5475 = vmatprep.subr.bf16.mxu0 0
      %5476 = vmatpush1.bf16.msra.mxu0 0
      %5477 = vmatprep.subr.bf16.mxu0 0
      %5478 = vmatpush1.bf16.msra.mxu0 0
      %5479 = vmatprep.subr.bf16.mxu0 0
      %5480 = vmatpush1.bf16.msra.mxu0 0
      %5481 = vmatprep.subr.bf16.mxu0 0
      %5482 = vmatpush1.bf16.msra.mxu0 0
      %5483 = vmatprep.subr.bf16.mxu0 0
      %5484 = vmatpush1.bf16.msra.mxu0 0
      %5485 = vmatprep.subr.bf16.mxu0 0
      %5486 = vmatpush1.bf16.msra.mxu0 0
      %5487 = vmatprep.subr.bf16.mxu0 0
      %5488 = vmatpush1.bf16.msra.mxu0 0
      %5489 = vmatprep.subr.bf16.mxu0 0
      %5490 = vmatpush1.bf16.msra.mxu0 0
      %5491 = vmatprep.subr.bf16.mxu0 0
      %5492 = vmatpush1.bf16.msra.mxu0 0
      %5493 = vmatprep.subr.bf16.mxu0 0
      %5494 = vmatpush1.bf16.msra.mxu0 0
      %5495 = vmatprep.subr.bf16.mxu0 0
      %5496 = vmatpush1.bf16.msra.mxu0 0
      %5497 = vmatprep.subr.bf16.mxu0 0
      %5498 = vmatpush1.bf16.msra.mxu0 0
      %5499 = vmatprep.subr.bf16.mxu0 0
      %5500 = vmatpush1.bf16.msra.mxu0 0
      %5501 = vmatprep.mubr.bf16.mxu0 0
      %5502 = vmatmul.mubr.bf16.gmra.mrb[0].mxu0 %v5455
      %v5503 = vpop.f32.mrb[0].mxu0
      %v5504 = vadd.f32 0.0, %v5503
      %v5505 = vpop.f32.mrb[0].mxu0
      %v5506 = vpop.f32.mrb[0].mxu0
      %v5507 = vadd.f32 0.0, %v5506
      %v5508 = vpop.f32.mrb[0].mxu0
      %5509 = vmatprep.mubr.bf16.mxu0 0
      %5510 = vmatmul.mubr.bf16.gmra.mrb[0].mxu0 %v5458
      %v5511 = vpop.f32.mrb[0].mxu0
      %v5512 = vadd.f32 0.0, %v5511
      %v5513 = vpop.f32.mrb[0].mxu0
      %v5514 = vpop.f32.mrb[0].mxu0
      %v5515 = vadd.f32 0.0, %v5514
      %v5516 = vpop.f32.mrb[0].mxu0
      %5517 = vmatprep.mubr.bf16.mxu0 0
      %5518 = vmatmul.mubr.bf16.gmra.mrb[0].mxu0 %v5461
      %v5519 = vpop.f32.mrb[0].mxu0
      %v5520 = vadd.f32 0.0, %v5519
      %v5521 = vpop.f32.mrb[0].mxu0
      %v5522 = vpop.f32.mrb[0].mxu0
      %v5523 = vadd.f32 0.0, %v5522
      %v5524 = vpop.f32.mrb[0].mxu0
      %5525 = vmatprep.mubr.bf16.mxu0 0
      %5526 = vmatmul.mubr.bf16.gmra.mrb[0].mxu0 %v5464
      %v5527 = vpop.f32.mrb[0].mxu0
      %v5528 = vadd.f32 0.0, %v5527
      %v5529 = vpop.f32.mrb[0].mxu0
      %v5530 = vpop.f32.mrb[0].mxu0
      %v5531 = vadd.f32 0.0, %v5530
      %v5532 = vpop.f32.mrb[0].mxu0
      %5533 = vmatprep.mubr.bf16.mxu0 0
      %5534 = vmatmul.mubr.bf16.gmra.mrb[0].mxu0 %v5467
      %v5535 = vpop.f32.mrb[0].mxu0
      %v5536 = vadd.f32 0.0, %v5535
      %v5537 = vpop.f32.mrb[0].mxu0
      %v5538 = vpop.f32.mrb[0].mxu0
      %v5539 = vadd.f32 0.0, %v5538
      %v5540 = vpop.f32.mrb[0].mxu0
      %5541 = vdwg.mxu0
      %v5546 = vunpack.c.l.b16 %v5418
      %v5547 = vunpack.c.l.b16 %v5419
      %v5548 = vunpack.c.l.b16 %v5420
      %v5549 = vunpack.c.l.b16 %v5421
      %v5550 = vpack.c.b16 %v5547, %v5546
      %v5551 = vpack.c.b16 %v5549, %v5548
      %v5555 = vsel %vm388, %v5413, 0
      %v5558 = vsel %vm388, %v5414, 0
      %v5561 = vsel %vm388, %v5415, 0
      %v5564 = vsel %vm388, %v5416, 0
      %v5567 = vsel %vm388, %v5417, 0
      %5569 = vmatprep.subr.bf16.mxu0 0
      %5570 = vmatpush1.bf16.msra.mxu0 %v5550
      %5571 = vmatprep.subr.bf16.mxu0 0
      %5572 = vmatpush1.bf16.msra.mxu0 %v5551
      %5573 = vmatprep.subr.bf16.mxu0 0
      %5574 = vmatpush1.bf16.msra.mxu0 0
      %5575 = vmatprep.subr.bf16.mxu0 0
      %5576 = vmatpush1.bf16.msra.mxu0 0
      %5577 = vmatprep.subr.bf16.mxu0 0
      %5578 = vmatpush1.bf16.msra.mxu0 0
      %5579 = vmatprep.subr.bf16.mxu0 0
      %5580 = vmatpush1.bf16.msra.mxu0 0
      %5581 = vmatprep.subr.bf16.mxu0 0
      %5582 = vmatpush1.bf16.msra.mxu0 0
      %5583 = vmatprep.subr.bf16.mxu0 0
      %5584 = vmatpush1.bf16.msra.mxu0 0
      %5585 = vmatprep.subr.bf16.mxu0 0
      %5586 = vmatpush1.bf16.msra.mxu0 0
      %5587 = vmatprep.subr.bf16.mxu0 0
      %5588 = vmatpush1.bf16.msra.mxu0 0
      %5589 = vmatprep.subr.bf16.mxu0 0
      %5590 = vmatpush1.bf16.msra.mxu0 0
      %5591 = vmatprep.subr.bf16.mxu0 0
      %5592 = vmatpush1.bf16.msra.mxu0 0
      %5593 = vmatprep.subr.bf16.mxu0 0
      %5594 = vmatpush1.bf16.msra.mxu0 0
      %5595 = vmatprep.subr.bf16.mxu0 0
      %5596 = vmatpush1.bf16.msra.mxu0 0
      %5597 = vmatprep.subr.bf16.mxu0 0
      %5598 = vmatpush1.bf16.msra.mxu0 0
      %5599 = vmatprep.subr.bf16.mxu0 0
      %5600 = vmatpush1.bf16.msra.mxu0 0
      %5601 = vmatprep.mubr.bf16.mxu0 0
      %5602 = vmatmul.mubr.bf16.gmra.mrb[0].mxu0 %v5555
      %v5603 = vpop.f32.mrb[0].mxu0
      %v5604 = vadd.f32 %v5504, %v5603
      %v5605 = vpop.f32.mrb[0].mxu0
      %v5606 = vpop.f32.mrb[0].mxu0
      %v5607 = vadd.f32 %v5507, %v5606
      %v5608 = vpop.f32.mrb[0].mxu0
      %5609 = vmatprep.mubr.bf16.mxu0 0
      %5610 = vmatmul.mubr.bf16.gmra.mrb[0].mxu0 %v5558
      %v5611 = vpop.f32.mrb[0].mxu0
      %v5612 = vadd.f32 %v5512, %v5611
      %v5613 = vpop.f32.mrb[0].mxu0
      %v5614 = vpop.f32.mrb[0].mxu0
      %v5615 = vadd.f32 %v5515, %v5614
      %v5616 = vpop.f32.mrb[0].mxu0
      %5617 = vmatprep.mubr.bf16.mxu0 0
      %5618 = vmatmul.mubr.bf16.gmra.mrb[0].mxu0 %v5561
      %v5619 = vpop.f32.mrb[0].mxu0
      %v5620 = vadd.f32 %v5520, %v5619
      %v5621 = vpop.f32.mrb[0].mxu0
      %v5622 = vpop.f32.mrb[0].mxu0
      %v5623 = vadd.f32 %v5523, %v5622
      %v5624 = vpop.f32.mrb[0].mxu0
      %5625 = vmatprep.mubr.bf16.mxu0 0
      %5626 = vmatmul.mubr.bf16.gmra.mrb[0].mxu0 %v5564
      %v5627 = vpop.f32.mrb[0].mxu0
      %v5628 = vadd.f32 %v5528, %v5627
      %v5629 = vpop.f32.mrb[0].mxu0
      %v5630 = vpop.f32.mrb[0].mxu0
      %v5631 = vadd.f32 %v5531, %v5630
      %v5632 = vpop.f32.mrb[0].mxu0
      %5633 = vmatprep.mubr.bf16.mxu0 0
      %5634 = vmatmul.mubr.bf16.gmra.mrb[0].mxu0 %v5567
      %v5635 = vpop.f32.mrb[0].mxu0
      %v5636 = vadd.f32 %v5536, %v5635
      %v5637 = vpop.f32.mrb[0].mxu0
      %v5638 = vpop.f32.mrb[0].mxu0
      %v5639 = vadd.f32 %v5539, %v5638
      %v5640 = vpop.f32.mrb[0].mxu0
      %5641 = vdwg.mxu0
      %v5642 = vld [vmem:[#allocation3 + $0x2] sm:$0xff]
      %v5643 = vld [vmem:[#allocation3 + $0xa] sm:$0xff]
      %v5644 = vld [vmem:[#allocation3 + $0x12] sm:$0xff]
      %v5645 = vld [vmem:[#allocation3 + $0x1a] sm:$0xff]
      %v5646 = vld [vmem:[#allocation3 + $0x22] sm:$0xff]
      %v5647 = vld [vmem:[#allocation3 + $0x2a] sm:$0xff]
      %v5648 = vld [vmem:[#allocation3 + $0x32] sm:$0xff]
      %v5649 = vld [vmem:[#allocation3 + $0x3a] sm:$0xff]
      %v5650 = vld [vmem:[#allocation3 + $0x42] sm:$0xff]
      %v5651 = vld [vmem:[#allocation3 + $0x4a] sm:$0xff]
      %v5652 = vpack.c.bf16 %v5643, %v5642
      %v5653 = vpack.c.bf16 %v5645, %v5644
      %v5654 = vpack.c.bf16 %v5647, %v5646
      %v5655 = vpack.c.bf16 %v5649, %v5648
      %v5656 = vpack.c.bf16 %v5651, %v5650
      %s5657 = scalar_lea.vmem %s9, 32
      %v5658 = vld [vmem:[%s5657] sm:$0xf]
      %v5659 = vld [vmem:[%s5657 + $0x4] sm:$0xf]
      %v5660 = vld [vmem:[%s5657 + $0x8] sm:$0xf]
      %v5661 = vld [vmem:[%s5657 + $0xc] sm:$0xf]
      %v5666 = vunpack.c.l.b16 %v5658
      %v5667 = vunpack.c.l.b16 %v5659
      %v5668 = vunpack.c.l.b16 %v5660
      %v5669 = vunpack.c.l.b16 %v5661
      %v5670 = vpack.c.b16 %v5667, %v5666
      %v5671 = vpack.c.b16 %v5669, %v5668
      %v5675 = vsel %vm388, %v5652, 0
      %v5678 = vsel %vm388, %v5653, 0
      %v5681 = vsel %vm388, %v5654, 0
      %v5684 = vsel %vm388, %v5655, 0
      %v5687 = vsel %vm388, %v5656, 0
      %5689 = vmatprep.subr.bf16.mxu0 0
      %5690 = vmatpush1.bf16.msra.mxu0 %v5670
      %5691 = vmatprep.subr.bf16.mxu0 0
      %5692 = vmatpush1.bf16.msra.mxu0 %v5671
      %5693 = vmatprep.subr.bf16.mxu0 0
      %5694 = vmatpush1.bf16.msra.mxu0 0
      %5695 = vmatprep.subr.bf16.mxu0 0
      %5696 = vmatpush1.bf16.msra.mxu0 0
      %5697 = vmatprep.subr.bf16.mxu0 0
      %5698 = vmatpush1.bf16.msra.mxu0 0
      %5699 = vmatprep.subr.bf16.mxu0 0
      %5700 = vmatpush1.bf16.msra.mxu0 0
      %5701 = vmatprep.subr.bf16.mxu0 0
      %5702 = vmatpush1.bf16.msra.mxu0 0
      %5703 = vmatprep.subr.bf16.mxu0 0
      %5704 = vmatpush1.bf16.msra.mxu0 0
      %5705 = vmatprep.subr.bf16.mxu0 0
      %5706 = vmatpush1.bf16.msra.mxu0 0
      %5707 = vmatprep.subr.bf16.mxu0 0
      %5708 = vmatpush1.bf16.msra.mxu0 0
      %5709 = vmatprep.subr.bf16.mxu0 0
      %5710 = vmatpush1.bf16.msra.mxu0 0
      %5711 = vmatprep.subr.bf16.mxu0 0
      %5712 = vmatpush1.bf16.msra.mxu0 0
      %5713 = vmatprep.subr.bf16.mxu0 0
      %5714 = vmatpush1.bf16.msra.mxu0 0
      %5715 = vmatprep.subr.bf16.mxu0 0
      %5716 = vmatpush1.bf16.msra.mxu0 0
      %5717 = vmatprep.subr.bf16.mxu0 0
      %5718 = vmatpush1.bf16.msra.mxu0 0
      %5719 = vmatprep.subr.bf16.mxu0 0
      %5720 = vmatpush1.bf16.msra.mxu0 0
      %5721 = vmatprep.mubr.bf16.mxu0 0
      %5722 = vmatmul.mubr.bf16.gmra.mrb[0].mxu0 %v5675
      %v5723 = vpop.f32.mrb[0].mxu0
      %v5724 = vadd.f32 0.0, %v5723
      %v5725 = vpop.f32.mrb[0].mxu0
      %v5726 = vpop.f32.mrb[0].mxu0
      %v5727 = vadd.f32 0.0, %v5726
      %v5728 = vpop.f32.mrb[0].mxu0
      %5729 = vmatprep.mubr.bf16.mxu0 0
      %5730 = vmatmul.mubr.bf16.gmra.mrb[0].mxu0 %v5678
      %v5731 = vpop.f32.mrb[0].mxu0
      %v5732 = vadd.f32 0.0, %v5731
      %v5733 = vpop.f32.mrb[0].mxu0
      %v5734 = vpop.f32.mrb[0].mxu0
      %v5735 = vadd.f32 0.0, %v5734
      %v5736 = vpop.f32.mrb[0].mxu0
      %5737 = vmatprep.mubr.bf16.mxu0 0
      %5738 = vmatmul.mubr.bf16.gmra.mrb[0].mxu0 %v5681
      %v5739 = vpop.f32.mrb[0].mxu0
      %v5740 = vadd.f32 0.0, %v5739
      %v5741 = vpop.f32.mrb[0].mxu0
      %v5742 = vpop.f32.mrb[0].mxu0
      %v5743 = vadd.f32 0.0, %v5742
      %v5744 = vpop.f32.mrb[0].mxu0
      %5745 = vmatprep.mubr.bf16.mxu0 0
      %5746 = vmatmul.mubr.bf16.gmra.mrb[0].mxu0 %v5684
      %v5747 = vpop.f32.mrb[0].mxu0
      %v5748 = vadd.f32 0.0, %v5747
      %v5749 = vpop.f32.mrb[0].mxu0
      %v5750 = vpop.f32.mrb[0].mxu0
      %v5751 = vadd.f32 0.0, %v5750
      %v5752 = vpop.f32.mrb[0].mxu0
      %5753 = vmatprep.mubr.bf16.mxu0 0
      %5754 = vmatmul.mubr.bf16.gmra.mrb[0].mxu0 %v5687
      %v5755 = vpop.f32.mrb[0].mxu0
      %v5756 = vadd.f32 0.0, %v5755
      %v5757 = vpop.f32.mrb[0].mxu0
      %v5758 = vpop.f32.mrb[0].mxu0
      %v5759 = vadd.f32 0.0, %v5758
      %v5760 = vpop.f32.mrb[0].mxu0
      %5761 = vdwg.mxu0
      %v5762 = vadd.f32 %v5604, %v5724
      %v5763 = vadd.f32 %v5607, %v5727
      %v5764 = vadd.f32 %v5612, %v5732
      %v5765 = vadd.f32 %v5615, %v5735
      %v5766 = vadd.f32 %v5620, %v5740
      %v5767 = vadd.f32 %v5623, %v5743
      %v5768 = vadd.f32 %v5628, %v5748
      %v5769 = vadd.f32 %v5631, %v5751
      %v5770 = vadd.f32 %v5636, %v5756
      %v5771 = vadd.f32 %v5639, %v5759
      %v5772 = vld [vmem:[#allocation3 + $0xa] sm:$0xff]
      %v5773 = vld [vmem:[#allocation3 + $0x12] sm:$0xff]
      %v5774 = vld [vmem:[#allocation3 + $0x1a] sm:$0xff]
      %v5775 = vld [vmem:[#allocation3 + $0x22] sm:$0xff]
      %v5776 = vld [vmem:[#allocation3 + $0x2a] sm:$0xff]
      %v5777 = vld [vmem:[#allocation3 + $0x32] sm:$0xff]
      %v5778 = vld [vmem:[#allocation3 + $0x3a] sm:$0xff]
      %v5779 = vld [vmem:[#allocation3 + $0x42] sm:$0xff]
      %v5780 = vld [vmem:[#allocation3 + $0x4a] sm:$0xff]
      %v5781 = vld [vmem:[#allocation3 + $0x52] sm:$0xff]
      %v5782 = vpack.c.bf16 %v5773, %v5772
      %v5783 = vpack.c.bf16 %v5775, %v5774
      %v5784 = vpack.c.bf16 %v5777, %v5776
      %v5785 = vpack.c.bf16 %v5779, %v5778
      %v5786 = vpack.c.bf16 %v5781, %v5780
      %s5787 = scalar_lea.vmem %s9, 48
      %v5788 = vld [vmem:[%s5787] sm:$0xf]
      %v5789 = vld [vmem:[%s5787 + $0x4] sm:$0xf]
      %v5790 = vld [vmem:[%s5787 + $0x8] sm:$0xf]
      %v5791 = vld [vmem:[%s5787 + $0xc] sm:$0xf]
      %v5796 = vunpack.c.l.b16 %v5788
      %v5797 = vunpack.c.l.b16 %v5789
      %v5798 = vunpack.c.l.b16 %v5790
      %v5799 = vunpack.c.l.b16 %v5791
      %v5800 = vpack.c.b16 %v5797, %v5796
      %v5801 = vpack.c.b16 %v5799, %v5798
      %v5805 = vsel %vm388, %v5782, 0
      %v5808 = vsel %vm388, %v5783, 0
      %v5811 = vsel %vm388, %v5784, 0
      %v5814 = vsel %vm388, %v5785, 0
      %v5817 = vsel %vm388, %v5786, 0
      %5819 = vmatprep.subr.bf16.mxu0 0
      %5820 = vmatpush1.bf16.msra.mxu0 %v5800
      %5821 = vmatprep.subr.bf16.mxu0 0
      %5822 = vmatpush1.bf16.msra.mxu0 %v5801
      %5823 = vmatprep.subr.bf16.mxu0 0
      %5824 = vmatpush1.bf16.msra.mxu0 0
      %5825 = vmatprep.subr.bf16.mxu0 0
      %5826 = vmatpush1.bf16.msra.mxu0 0
      %5827 = vmatprep.subr.bf16.mxu0 0
      %5828 = vmatpush1.bf16.msra.mxu0 0
      %5829 = vmatprep.subr.bf16.mxu0 0
      %5830 = vmatpush1.bf16.msra.mxu0 0
      %5831 = vmatprep.subr.bf16.mxu0 0
      %5832 = vmatpush1.bf16.msra.mxu0 0
      %5833 = vmatprep.subr.bf16.mxu0 0
      %5834 = vmatpush1.bf16.msra.mxu0 0
      %5835 = vmatprep.subr.bf16.mxu0 0
      %5836 = vmatpush1.bf16.msra.mxu0 0
      %5837 = vmatprep.subr.bf16.mxu0 0
      %5838 = vmatpush1.bf16.msra.mxu0 0
      %5839 = vmatprep.subr.bf16.mxu0 0
      %5840 = vmatpush1.bf16.msra.mxu0 0
      %5841 = vmatprep.subr.bf16.mxu0 0
      %5842 = vmatpush1.bf16.msra.mxu0 0
      %5843 = vmatprep.subr.bf16.mxu0 0
      %5844 = vmatpush1.bf16.msra.mxu0 0
      %5845 = vmatprep.subr.bf16.mxu0 0
      %5846 = vmatpush1.bf16.msra.mxu0 0
      %5847 = vmatprep.subr.bf16.mxu0 0
      %5848 = vmatpush1.bf16.msra.mxu0 0
      %5849 = vmatprep.subr.bf16.mxu0 0
      %5850 = vmatpush1.bf16.msra.mxu0 0
      %5851 = vmatprep.mubr.bf16.mxu0 0
      %5852 = vmatmul.mubr.bf16.gmra.mrb[0].mxu0 %v5805
      %v5853 = vpop.f32.mrb[0].mxu0
      %v5854 = vadd.f32 0.0, %v5853
      %v5855 = vpop.f32.mrb[0].mxu0
      %v5856 = vpop.f32.mrb[0].mxu0
      %v5857 = vadd.f32 0.0, %v5856
      %v5858 = vpop.f32.mrb[0].mxu0
      %5859 = vmatprep.mubr.bf16.mxu0 0
      %5860 = vmatmul.mubr.bf16.gmra.mrb[0].mxu0 %v5808
      %v5861 = vpop.f32.mrb[0].mxu0
      %v5862 = vadd.f32 0.0, %v5861
      %v5863 = vpop.f32.mrb[0].mxu0
      %v5864 = vpop.f32.mrb[0].mxu0
      %v5865 = vadd.f32 0.0, %v5864
      %v5866 = vpop.f32.mrb[0].mxu0
      %5867 = vmatprep.mubr.bf16.mxu0 0
      %5868 = vmatmul.mubr.bf16.gmra.mrb[0].mxu0 %v5811
      %v5869 = vpop.f32.mrb[0].mxu0
      %v5870 = vadd.f32 0.0, %v5869
      %v5871 = vpop.f32.mrb[0].mxu0
      %v5872 = vpop.f32.mrb[0].mxu0
      %v5873 = vadd.f32 0.0, %v5872
      %v5874 = vpop.f32.mrb[0].mxu0
      %5875 = vmatprep.mubr.bf16.mxu0 0
      %5876 = vmatmul.mubr.bf16.gmra.mrb[0].mxu0 %v5814
      %v5877 = vpop.f32.mrb[0].mxu0
      %v5878 = vadd.f32 0.0, %v5877
      %v5879 = vpop.f32.mrb[0].mxu0
      %v5880 = vpop.f32.mrb[0].mxu0
      %v5881 = vadd.f32 0.0, %v5880
      %v5882 = vpop.f32.mrb[0].mxu0
      %5883 = vmatprep.mubr.bf16.mxu0 0
      %5884 = vmatmul.mubr.bf16.gmra.mrb[0].mxu0 %v5817
      %v5885 = vpop.f32.mrb[0].mxu0
      %v5886 = vadd.f32 0.0, %v5885
      %v5887 = vpop.f32.mrb[0].mxu0
      %v5888 = vpop.f32.mrb[0].mxu0
      %v5889 = vadd.f32 0.0, %v5888
      %v5890 = vpop.f32.mrb[0].mxu0
      %5891 = vdwg.mxu0
      %v5892 = vadd.f32 %v5762, %v5854
      %v5893 = vadd.f32 %v5763, %v5857
      %v5894 = vadd.f32 %v5764, %v5862
      %v5895 = vadd.f32 %v5765, %v5865
      %v5896 = vadd.f32 %v5766, %v5870
      %v5897 = vadd.f32 %v5767, %v5873
      %v5898 = vadd.f32 %v5768, %v5878
      %v5899 = vadd.f32 %v5769, %v5881
      %v5900 = vadd.f32 %v5770, %v5886
      %v5901 = vadd.f32 %v5771, %v5889
      %v5902 = vld [vmem:[#allocation3 + $0xb] sm:$0xff]
      %v5903 = vld [vmem:[#allocation3 + $0x13] sm:$0xff]
      %v5904 = vld [vmem:[#allocation3 + $0x1b] sm:$0xff]
      %v5905 = vld [vmem:[#allocation3 + $0x23] sm:$0xff]
      %v5906 = vld [vmem:[#allocation3 + $0x2b] sm:$0xff]
      %v5907 = vld [vmem:[#allocation3 + $0x33] sm:$0xff]
      %v5908 = vld [vmem:[#allocation3 + $0x3b] sm:$0xff]
      %v5909 = vld [vmem:[#allocation3 + $0x43] sm:$0xff]
      %v5910 = vld [vmem:[#allocation3 + $0x4b] sm:$0xff]
      %v5911 = vld [vmem:[#allocation3 + $0x53] sm:$0xff]
      %v5912 = vpack.c.bf16 %v5903, %v5902
      %v5913 = vpack.c.bf16 %v5905, %v5904
      %v5914 = vpack.c.bf16 %v5907, %v5906
      %v5915 = vpack.c.bf16 %v5909, %v5908
      %v5916 = vpack.c.bf16 %v5911, %v5910
      %s5917 = scalar_lea.vmem %s9, 64
      %v5918 = vld [vmem:[%s5917] sm:$0xf]
      %v5919 = vld [vmem:[%s5917 + $0x4] sm:$0xf]
      %v5920 = vld [vmem:[%s5917 + $0x8] sm:$0xf]
      %v5921 = vld [vmem:[%s5917 + $0xc] sm:$0xf]
      %v5926 = vunpack.c.l.b16 %v5918
      %v5927 = vunpack.c.l.b16 %v5919
      %v5928 = vunpack.c.l.b16 %v5920
      %v5929 = vunpack.c.l.b16 %v5921
      %v5930 = vpack.c.b16 %v5927, %v5926
      %v5931 = vpack.c.b16 %v5929, %v5928
      %v5935 = vsel %vm388, %v5912, 0
      %v5938 = vsel %vm388, %v5913, 0
      %v5941 = vsel %vm388, %v5914, 0
      %v5944 = vsel %vm388, %v5915, 0
      %v5947 = vsel %vm388, %v5916, 0
      %5949 = vmatprep.subr.bf16.mxu0 0
      %5950 = vmatpush1.bf16.msra.mxu0 %v5930
      %5951 = vmatprep.subr.bf16.mxu0 0
      %5952 = vmatpush1.bf16.msra.mxu0 %v5931
      %5953 = vmatprep.subr.bf16.mxu0 0
      %5954 = vmatpush1.bf16.msra.mxu0 0
      %5955 = vmatprep.subr.bf16.mxu0 0
      %5956 = vmatpush1.bf16.msra.mxu0 0
      %5957 = vmatprep.subr.bf16.mxu0 0
      %5958 = vmatpush1.bf16.msra.mxu0 0
      %5959 = vmatprep.subr.bf16.mxu0 0
      %5960 = vmatpush1.bf16.msra.mxu0 0
      %5961 = vmatprep.subr.bf16.mxu0 0
      %5962 = vmatpush1.bf16.msra.mxu0 0
      %5963 = vmatprep.subr.bf16.mxu0 0
      %5964 = vmatpush1.bf16.msra.mxu0 0
      %5965 = vmatprep.subr.bf16.mxu0 0
      %5966 = vmatpush1.bf16.msra.mxu0 0
      %5967 = vmatprep.subr.bf16.mxu0 0
      %5968 = vmatpush1.bf16.msra.mxu0 0
      %5969 = vmatprep.subr.bf16.mxu0 0
      %5970 = vmatpush1.bf16.msra.mxu0 0
      %5971 = vmatprep.subr.bf16.mxu0 0
      %5972 = vmatpush1.bf16.msra.mxu0 0
      %5973 = vmatprep.subr.bf16.mxu0 0
      %5974 = vmatpush1.bf16.msra.mxu0 0
      %5975 = vmatprep.subr.bf16.mxu0 0
      %5976 = vmatpush1.bf16.msra.mxu0 0
      %5977 = vmatprep.subr.bf16.mxu0 0
      %5978 = vmatpush1.bf16.msra.mxu0 0
      %5979 = vmatprep.subr.bf16.mxu0 0
      %5980 = vmatpush1.bf16.msra.mxu0 0
      %5981 = vmatprep.mubr.bf16.mxu0 0
      %5982 = vmatmul.mubr.bf16.gmra.mrb[0].mxu0 %v5935
      %v5983 = vpop.f32.mrb[0].mxu0
      %v5984 = vadd.f32 0.0, %v5983
      %v5985 = vpop.f32.mrb[0].mxu0
      %v5986 = vpop.f32.mrb[0].mxu0
      %v5987 = vadd.f32 0.0, %v5986
      %v5988 = vpop.f32.mrb[0].mxu0
      %5989 = vmatprep.mubr.bf16.mxu0 0
      %5990 = vmatmul.mubr.bf16.gmra.mrb[0].mxu0 %v5938
      %v5991 = vpop.f32.mrb[0].mxu0
      %v5992 = vadd.f32 0.0, %v5991
      %v5993 = vpop.f32.mrb[0].mxu0
      %v5994 = vpop.f32.mrb[0].mxu0
      %v5995 = vadd.f32 0.0, %v5994
      %v5996 = vpop.f32.mrb[0].mxu0
      %5997 = vmatprep.mubr.bf16.mxu0 0
      %5998 = vmatmul.mubr.bf16.gmra.mrb[0].mxu0 %v5941
      %v5999 = vpop.f32.mrb[0].mxu0
      %v6000 = vadd.f32 0.0, %v5999
      %v6001 = vpop.f32.mrb[0].mxu0
      %v6002 = vpop.f32.mrb[0].mxu0
      %v6003 = vadd.f32 0.0, %v6002
      %v6004 = vpop.f32.mrb[0].mxu0
      %6005 = vmatprep.mubr.bf16.mxu0 0
      %6006 = vmatmul.mubr.bf16.gmra.mrb[0].mxu0 %v5944
      %v6007 = vpop.f32.mrb[0].mxu0
      %v6008 = vadd.f32 0.0, %v6007
      %v6009 = vpop.f32.mrb[0].mxu0
      %v6010 = vpop.f32.mrb[0].mxu0
      %v6011 = vadd.f32 0.0, %v6010
      %v6012 = vpop.f32.mrb[0].mxu0
      %6013 = vmatprep.mubr.bf16.mxu0 0
      %6014 = vmatmul.mubr.bf16.gmra.mrb[0].mxu0 %v5947
      %v6015 = vpop.f32.mrb[0].mxu0
      %v6016 = vadd.f32 0.0, %v6015
      %v6017 = vpop.f32.mrb[0].mxu0
      %v6018 = vpop.f32.mrb[0].mxu0
      %v6019 = vadd.f32 0.0, %v6018
      %v6020 = vpop.f32.mrb[0].mxu0
      %6021 = vdwg.mxu0
      %v6022 = vadd.f32 %v5892, %v5984
      %v6023 = vadd.f32 %v5893, %v5987
      %v6024 = vadd.f32 %v5894, %v5992
      %v6025 = vadd.f32 %v5895, %v5995
      %v6026 = vadd.f32 %v5896, %v6000
      %v6027 = vadd.f32 %v5897, %v6003
      %v6028 = vadd.f32 %v5898, %v6008
      %v6029 = vadd.f32 %v5899, %v6011
      %v6030 = vadd.f32 %v5900, %v6016
      %v6031 = vadd.f32 %v5901, %v6019
      %v6032 = vld [vmem:[#allocation3 + $0xc] sm:$0xff]
      %v6033 = vld [vmem:[#allocation3 + $0x14] sm:$0xff]
      %v6034 = vld [vmem:[#allocation3 + $0x1c] sm:$0xff]
      %v6035 = vld [vmem:[#allocation3 + $0x24] sm:$0xff]
      %v6036 = vld [vmem:[#allocation3 + $0x2c] sm:$0xff]
      %v6037 = vld [vmem:[#allocation3 + $0x34] sm:$0xff]
      %v6038 = vld [vmem:[#allocation3 + $0x3c] sm:$0xff]
      %v6039 = vld [vmem:[#allocation3 + $0x44] sm:$0xff]
      %v6040 = vld [vmem:[#allocation3 + $0x4c] sm:$0xff]
      %v6041 = vld [vmem:[#allocation3 + $0x54] sm:$0xff]
      %v6042 = vpack.c.bf16 %v6033, %v6032
      %v6043 = vpack.c.bf16 %v6035, %v6034
      %v6044 = vpack.c.bf16 %v6037, %v6036
      %v6045 = vpack.c.bf16 %v6039, %v6038
      %v6046 = vpack.c.bf16 %v6041, %v6040
      %s6047 = scalar_lea.vmem %s9, 80
      %v6048 = vld [vmem:[%s6047] sm:$0xf]
      %v6049 = vld [vmem:[%s6047 + $0x4] sm:$0xf]
      %v6050 = vld [vmem:[%s6047 + $0x8] sm:$0xf]
      %v6051 = vld [vmem:[%s6047 + $0xc] sm:$0xf]
      %v6056 = vunpack.c.l.b16 %v6048
      %v6057 = vunpack.c.l.b16 %v6049
      %v6058 = vunpack.c.l.b16 %v6050
      %v6059 = vunpack.c.l.b16 %v6051
      %v6060 = vpack.c.b16 %v6057, %v6056
      %v6061 = vpack.c.b16 %v6059, %v6058
      %v6065 = vsel %vm388, %v6042, 0
      %v6068 = vsel %vm388, %v6043, 0
      %v6071 = vsel %vm388, %v6044, 0
      %v6074 = vsel %vm388, %v6045, 0
      %v6077 = vsel %vm388, %v6046, 0
      %6079 = vmatprep.subr.bf16.mxu0 0
      %6080 = vmatpush1.bf16.msra.mxu0 %v6060
      %6081 = vmatprep.subr.bf16.mxu0 0
      %6082 = vmatpush1.bf16.msra.mxu0 %v6061
      %6083 = vmatprep.subr.bf16.mxu0 0
      %6084 = vmatpush1.bf16.msra.mxu0 0
      %6085 = vmatprep.subr.bf16.mxu0 0
      %6086 = vmatpush1.bf16.msra.mxu0 0
      %6087 = vmatprep.subr.bf16.mxu0 0
      %6088 = vmatpush1.bf16.msra.mxu0 0
      %6089 = vmatprep.subr.bf16.mxu0 0
      %6090 = vmatpush1.bf16.msra.mxu0 0
      %6091 = vmatprep.subr.bf16.mxu0 0
      %6092 = vmatpush1.bf16.msra.mxu0 0
      %6093 = vmatprep.subr.bf16.mxu0 0
      %6094 = vmatpush1.bf16.msra.mxu0 0
      %6095 = vmatprep.subr.bf16.mxu0 0
      %6096 = vmatpush1.bf16.msra.mxu0 0
      %6097 = vmatprep.subr.bf16.mxu0 0
      %6098 = vmatpush1.bf16.msra.mxu0 0
      %6099 = vmatprep.subr.bf16.mxu0 0
      %6100 = vmatpush1.bf16.msra.mxu0 0
      %6101 = vmatprep.subr.bf16.mxu0 0
      %6102 = vmatpush1.bf16.msra.mxu0 0
      %6103 = vmatprep.subr.bf16.mxu0 0
      %6104 = vmatpush1.bf16.msra.mxu0 0
      %6105 = vmatprep.subr.bf16.mxu0 0
      %6106 = vmatpush1.bf16.msra.mxu0 0
      %6107 = vmatprep.subr.bf16.mxu0 0
      %6108 = vmatpush1.bf16.msra.mxu0 0
      %6109 = vmatprep.subr.bf16.mxu0 0
      %6110 = vmatpush1.bf16.msra.mxu0 0
      %6111 = vmatprep.mubr.bf16.mxu0 0
      %6112 = vmatmul.mubr.bf16.gmra.mrb[0].mxu0 %v6065
      %v6113 = vpop.f32.mrb[0].mxu0
      %v6114 = vadd.f32 0.0, %v6113
      %v6115 = vpop.f32.mrb[0].mxu0
      %v6116 = vpop.f32.mrb[0].mxu0
      %v6117 = vadd.f32 0.0, %v6116
      %v6118 = vpop.f32.mrb[0].mxu0
      %6119 = vmatprep.mubr.bf16.mxu0 0
      %6120 = vmatmul.mubr.bf16.gmra.mrb[0].mxu0 %v6068
      %v6121 = vpop.f32.mrb[0].mxu0
      %v6122 = vadd.f32 0.0, %v6121
      %v6123 = vpop.f32.mrb[0].mxu0
      %v6124 = vpop.f32.mrb[0].mxu0
      %v6125 = vadd.f32 0.0, %v6124
      %v6126 = vpop.f32.mrb[0].mxu0
      %6127 = vmatprep.mubr.bf16.mxu0 0
      %6128 = vmatmul.mubr.bf16.gmra.mrb[0].mxu0 %v6071
      %v6129 = vpop.f32.mrb[0].mxu0
      %v6130 = vadd.f32 0.0, %v6129
      %v6131 = vpop.f32.mrb[0].mxu0
      %v6132 = vpop.f32.mrb[0].mxu0
      %v6133 = vadd.f32 0.0, %v6132
      %v6134 = vpop.f32.mrb[0].mxu0
      %6135 = vmatprep.mubr.bf16.mxu0 0
      %6136 = vmatmul.mubr.bf16.gmra.mrb[0].mxu0 %v6074
      %v6137 = vpop.f32.mrb[0].mxu0
      %v6138 = vadd.f32 0.0, %v6137
      %v6139 = vpop.f32.mrb[0].mxu0
      %v6140 = vpop.f32.mrb[0].mxu0
      %v6141 = vadd.f32 0.0, %v6140
      %v6142 = vpop.f32.mrb[0].mxu0
      %6143 = vmatprep.mubr.bf16.mxu0 0
      %6144 = vmatmul.mubr.bf16.gmra.mrb[0].mxu0 %v6077
      %v6145 = vpop.f32.mrb[0].mxu0
      %v6146 = vadd.f32 0.0, %v6145
      %v6147 = vpop.f32.mrb[0].mxu0
      %v6148 = vpop.f32.mrb[0].mxu0
      %v6149 = vadd.f32 0.0, %v6148
      %v6150 = vpop.f32.mrb[0].mxu0
      %6151 = vdwg.mxu0
      %v6152 = vadd.f32 %v6022, %v6114
      %v6153 = vadd.f32 %v6023, %v6117
      %v6154 = vadd.f32 %v6024, %v6122
      %v6155 = vadd.f32 %v6025, %v6125
      %v6156 = vadd.f32 %v6026, %v6130
      %v6157 = vadd.f32 %v6027, %v6133
      %v6158 = vadd.f32 %v6028, %v6138
      %v6159 = vadd.f32 %v6029, %v6141
      %v6160 = vadd.f32 %v6030, %v6146
      %v6161 = vadd.f32 %v6031, %v6149
      %v6162 = vld [vmem:[#allocation3 + $0x14] sm:$0xff]
      %v6163 = vld [vmem:[#allocation3 + $0x1c] sm:$0xff]
      %v6164 = vld [vmem:[#allocation3 + $0x24] sm:$0xff]
      %v6165 = vld [vmem:[#allocation3 + $0x2c] sm:$0xff]
      %v6166 = vld [vmem:[#allocation3 + $0x34] sm:$0xff]
      %v6167 = vld [vmem:[#allocation3 + $0x3c] sm:$0xff]
      %v6168 = vld [vmem:[#allocation3 + $0x44] sm:$0xff]
      %v6169 = vld [vmem:[#allocation3 + $0x4c] sm:$0xff]
      %v6170 = vld [vmem:[#allocation3 + $0x54] sm:$0xff]
      %v6171 = vld [vmem:[#allocation3 + $0x5c] sm:$0xff]
      %v6172 = vpack.c.bf16 %v6163, %v6162
      %v6173 = vpack.c.bf16 %v6165, %v6164
      %v6174 = vpack.c.bf16 %v6167, %v6166
      %v6175 = vpack.c.bf16 %v6169, %v6168
      %v6176 = vpack.c.bf16 %v6171, %v6170
      %s6177 = scalar_lea.vmem %s9, 96
      %v6178 = vld [vmem:[%s6177] sm:$0xf]
      %v6179 = vld [vmem:[%s6177 + $0x4] sm:$0xf]
      %v6180 = vld [vmem:[%s6177 + $0x8] sm:$0xf]
      %v6181 = vld [vmem:[%s6177 + $0xc] sm:$0xf]
      %v6186 = vunpack.c.l.b16 %v6178
      %v6187 = vunpack.c.l.b16 %v6179
      %v6188 = vunpack.c.l.b16 %v6180
      %v6189 = vunpack.c.l.b16 %v6181
      %v6190 = vpack.c.b16 %v6187, %v6186
      %v6191 = vpack.c.b16 %v6189, %v6188
      %v6195 = vsel %vm388, %v6172, 0
      %v6198 = vsel %vm388, %v6173, 0
      %v6201 = vsel %vm388, %v6174, 0
      %v6204 = vsel %vm388, %v6175, 0
      %v6207 = vsel %vm388, %v6176, 0
      %6209 = vmatprep.subr.bf16.mxu0 0
      %6210 = vmatpush1.bf16.msra.mxu0 %v6190
      %6211 = vmatprep.subr.bf16.mxu0 0
      %6212 = vmatpush1.bf16.msra.mxu0 %v6191
      %6213 = vmatprep.subr.bf16.mxu0 0
      %6214 = vmatpush1.bf16.msra.mxu0 0
      %6215 = vmatprep.subr.bf16.mxu0 0
      %6216 = vmatpush1.bf16.msra.mxu0 0
      %6217 = vmatprep.subr.bf16.mxu0 0
      %6218 = vmatpush1.bf16.msra.mxu0 0
      %6219 = vmatprep.subr.bf16.mxu0 0
      %6220 = vmatpush1.bf16.msra.mxu0 0
      %6221 = vmatprep.subr.bf16.mxu0 0
      %6222 = vmatpush1.bf16.msra.mxu0 0
      %6223 = vmatprep.subr.bf16.mxu0 0
      %6224 = vmatpush1.bf16.msra.mxu0 0
      %6225 = vmatprep.subr.bf16.mxu0 0
      %6226 = vmatpush1.bf16.msra.mxu0 0
      %6227 = vmatprep.subr.bf16.mxu0 0
      %6228 = vmatpush1.bf16.msra.mxu0 0
      %6229 = vmatprep.subr.bf16.mxu0 0
      %6230 = vmatpush1.bf16.msra.mxu0 0
      %6231 = vmatprep.subr.bf16.mxu0 0
      %6232 = vmatpush1.bf16.msra.mxu0 0
      %6233 = vmatprep.subr.bf16.mxu0 0
      %6234 = vmatpush1.bf16.msra.mxu0 0
      %6235 = vmatprep.subr.bf16.mxu0 0
      %6236 = vmatpush1.bf16.msra.mxu0 0
      %6237 = vmatprep.subr.bf16.mxu0 0
      %6238 = vmatpush1.bf16.msra.mxu0 0
      %6239 = vmatprep.subr.bf16.mxu0 0
      %6240 = vmatpush1.bf16.msra.mxu0 0
      %6241 = vmatprep.mubr.bf16.mxu0 0
      %6242 = vmatmul.mubr.bf16.gmra.mrb[0].mxu0 %v6195
      %v6243 = vpop.f32.mrb[0].mxu0
      %v6244 = vadd.f32 0.0, %v6243
      %v6245 = vpop.f32.mrb[0].mxu0
      %v6246 = vpop.f32.mrb[0].mxu0
      %v6247 = vadd.f32 0.0, %v6246
      %v6248 = vpop.f32.mrb[0].mxu0
      %6249 = vmatprep.mubr.bf16.mxu0 0
      %6250 = vmatmul.mubr.bf16.gmra.mrb[0].mxu0 %v6198
      %v6251 = vpop.f32.mrb[0].mxu0
      %v6252 = vadd.f32 0.0, %v6251
      %v6253 = vpop.f32.mrb[0].mxu0
      %v6254 = vpop.f32.mrb[0].mxu0
      %v6255 = vadd.f32 0.0, %v6254
      %v6256 = vpop.f32.mrb[0].mxu0
      %6257 = vmatprep.mubr.bf16.mxu0 0
      %6258 = vmatmul.mubr.bf16.gmra.mrb[0].mxu0 %v6201
      %v6259 = vpop.f32.mrb[0].mxu0
      %v6260 = vadd.f32 0.0, %v6259
      %v6261 = vpop.f32.mrb[0].mxu0
      %v6262 = vpop.f32.mrb[0].mxu0
      %v6263 = vadd.f32 0.0, %v6262
      %v6264 = vpop.f32.mrb[0].mxu0
      %6265 = vmatprep.mubr.bf16.mxu0 0
      %6266 = vmatmul.mubr.bf16.gmra.mrb[0].mxu0 %v6204
      %v6267 = vpop.f32.mrb[0].mxu0
      %v6268 = vadd.f32 0.0, %v6267
      %v6269 = vpop.f32.mrb[0].mxu0
      %v6270 = vpop.f32.mrb[0].mxu0
      %v6271 = vadd.f32 0.0, %v6270
      %v6272 = vpop.f32.mrb[0].mxu0
      %6273 = vmatprep.mubr.bf16.mxu0 0
      %6274 = vmatmul.mubr.bf16.gmra.mrb[0].mxu0 %v6207
      %v6275 = vpop.f32.mrb[0].mxu0
      %v6276 = vadd.f32 0.0, %v6275
      %v6277 = vpop.f32.mrb[0].mxu0
      %v6278 = vpop.f32.mrb[0].mxu0
      %v6279 = vadd.f32 0.0, %v6278
      %v6280 = vpop.f32.mrb[0].mxu0
      %6281 = vdwg.mxu0
      %v6282 = vadd.f32 %v6152, %v6244
      %v6283 = vadd.f32 %v6153, %v6247
      %v6284 = vadd.f32 %v6154, %v6252
      %v6285 = vadd.f32 %v6155, %v6255
      %v6286 = vadd.f32 %v6156, %v6260
      %v6287 = vadd.f32 %v6157, %v6263
      %v6288 = vadd.f32 %v6158, %v6268
      %v6289 = vadd.f32 %v6159, %v6271
      %v6290 = vadd.f32 %v6160, %v6276
      %v6291 = vadd.f32 %v6161, %v6279
      %v6292 = vld [vmem:[#allocation3 + $0x15] sm:$0xff]
      %v6293 = vld [vmem:[#allocation3 + $0x1d] sm:$0xff]
      %v6294 = vld [vmem:[#allocation3 + $0x25] sm:$0xff]
      %v6295 = vld [vmem:[#allocation3 + $0x2d] sm:$0xff]
      %v6296 = vld [vmem:[#allocation3 + $0x35] sm:$0xff]
      %v6297 = vld [vmem:[#allocation3 + $0x3d] sm:$0xff]
      %v6298 = vld [vmem:[#allocation3 + $0x45] sm:$0xff]
      %v6299 = vld [vmem:[#allocation3 + $0x4d] sm:$0xff]
      %v6300 = vld [vmem:[#allocation3 + $0x55] sm:$0xff]
      %v6301 = vld [vmem:[#allocation3 + $0x5d] sm:$0xff]
      %v6302 = vpack.c.bf16 %v6293, %v6292
      %v6303 = vpack.c.bf16 %v6295, %v6294
      %v6304 = vpack.c.bf16 %v6297, %v6296
      %v6305 = vpack.c.bf16 %v6299, %v6298
      %v6306 = vpack.c.bf16 %v6301, %v6300
      %s6307 = scalar_lea.vmem %s9, 112
      %v6308 = vld [vmem:[%s6307] sm:$0xf]
      %v6309 = vld [vmem:[%s6307 + $0x4] sm:$0xf]
      %v6310 = vld [vmem:[%s6307 + $0x8] sm:$0xf]
      %v6311 = vld [vmem:[%s6307 + $0xc] sm:$0xf]
      %v6316 = vunpack.c.l.b16 %v6308
      %v6317 = vunpack.c.l.b16 %v6309
      %v6318 = vunpack.c.l.b16 %v6310
      %v6319 = vunpack.c.l.b16 %v6311
      %v6320 = vpack.c.b16 %v6317, %v6316
      %v6321 = vpack.c.b16 %v6319, %v6318
      %v6325 = vsel %vm388, %v6302, 0
      %v6328 = vsel %vm388, %v6303, 0
      %v6331 = vsel %vm388, %v6304, 0
      %v6334 = vsel %vm388, %v6305, 0
      %v6337 = vsel %vm388, %v6306, 0
      %6339 = vmatprep.subr.bf16.mxu0 0
      %6340 = vmatpush1.bf16.msra.mxu0 %v6320
      %6341 = vmatprep.subr.bf16.mxu0 0
      %6342 = vmatpush1.bf16.msra.mxu0 %v6321
      %6343 = vmatprep.subr.bf16.mxu0 0
      %6344 = vmatpush1.bf16.msra.mxu0 0
      %6345 = vmatprep.subr.bf16.mxu0 0
      %6346 = vmatpush1.bf16.msra.mxu0 0
      %6347 = vmatprep.subr.bf16.mxu0 0
      %6348 = vmatpush1.bf16.msra.mxu0 0
      %6349 = vmatprep.subr.bf16.mxu0 0
      %6350 = vmatpush1.bf16.msra.mxu0 0
      %6351 = vmatprep.subr.bf16.mxu0 0
      %6352 = vmatpush1.bf16.msra.mxu0 0
      %6353 = vmatprep.subr.bf16.mxu0 0
      %6354 = vmatpush1.bf16.msra.mxu0 0
      %6355 = vmatprep.subr.bf16.mxu0 0
      %6356 = vmatpush1.bf16.msra.mxu0 0
      %6357 = vmatprep.subr.bf16.mxu0 0
      %6358 = vmatpush1.bf16.msra.mxu0 0
      %6359 = vmatprep.subr.bf16.mxu0 0
      %6360 = vmatpush1.bf16.msra.mxu0 0
      %6361 = vmatprep.subr.bf16.mxu0 0
      %6362 = vmatpush1.bf16.msra.mxu0 0
      %6363 = vmatprep.subr.bf16.mxu0 0
      %6364 = vmatpush1.bf16.msra.mxu0 0
      %6365 = vmatprep.subr.bf16.mxu0 0
      %6366 = vmatpush1.bf16.msra.mxu0 0
      %6367 = vmatprep.subr.bf16.mxu0 0
      %6368 = vmatpush1.bf16.msra.mxu0 0
      %6369 = vmatprep.subr.bf16.mxu0 0
      %6370 = vmatpush1.bf16.msra.mxu0 0
      %6371 = vmatprep.mubr.bf16.mxu0 0
      %6372 = vmatmul.mubr.bf16.gmra.mrb[0].mxu0 %v6325
      %v6373 = vpop.f32.mrb[0].mxu0
      %v6374 = vadd.f32 0.0, %v6373
      %v6375 = vpop.f32.mrb[0].mxu0
      %v6376 = vpop.f32.mrb[0].mxu0
      %v6377 = vadd.f32 0.0, %v6376
      %v6378 = vpop.f32.mrb[0].mxu0
      %6379 = vmatprep.mubr.bf16.mxu0 0
      %6380 = vmatmul.mubr.bf16.gmra.mrb[0].mxu0 %v6328
      %v6381 = vpop.f32.mrb[0].mxu0
      %v6382 = vadd.f32 0.0, %v6381
      %v6383 = vpop.f32.mrb[0].mxu0
      %v6384 = vpop.f32.mrb[0].mxu0
      %v6385 = vadd.f32 0.0, %v6384
      %v6386 = vpop.f32.mrb[0].mxu0
      %6387 = vmatprep.mubr.bf16.mxu0 0
      %6388 = vmatmul.mubr.bf16.gmra.mrb[0].mxu0 %v6331
      %v6389 = vpop.f32.mrb[0].mxu0
      %v6390 = vadd.f32 0.0, %v6389
      %v6391 = vpop.f32.mrb[0].mxu0
      %v6392 = vpop.f32.mrb[0].mxu0
      %v6393 = vadd.f32 0.0, %v6392
      %v6394 = vpop.f32.mrb[0].mxu0
      %6395 = vmatprep.mubr.bf16.mxu0 0
      %6396 = vmatmul.mubr.bf16.gmra.mrb[0].mxu0 %v6334
      %v6397 = vpop.f32.mrb[0].mxu0
      %v6398 = vadd.f32 0.0, %v6397
      %v6399 = vpop.f32.mrb[0].mxu0
      %v6400 = vpop.f32.mrb[0].mxu0
      %v6401 = vadd.f32 0.0, %v6400
      %v6402 = vpop.f32.mrb[0].mxu0
      %6403 = vmatprep.mubr.bf16.mxu0 0
      %6404 = vmatmul.mubr.bf16.gmra.mrb[0].mxu0 %v6337
      %v6405 = vpop.f32.mrb[0].mxu0
      %v6406 = vadd.f32 0.0, %v6405
      %v6407 = vpop.f32.mrb[0].mxu0
      %v6408 = vpop.f32.mrb[0].mxu0
      %v6409 = vadd.f32 0.0, %v6408
      %v6410 = vpop.f32.mrb[0].mxu0
      %6411 = vdwg.mxu0
      %v6412 = vadd.f32 %v6282, %v6374
      %v6413 = vadd.f32 %v6283, %v6377
      %v6414 = vadd.f32 %v6284, %v6382
      %v6415 = vadd.f32 %v6285, %v6385
      %v6416 = vadd.f32 %v6286, %v6390
      %v6417 = vadd.f32 %v6287, %v6393
      %v6418 = vadd.f32 %v6288, %v6398
      %v6419 = vadd.f32 %v6289, %v6401
      %v6420 = vadd.f32 %v6290, %v6406
      %v6421 = vadd.f32 %v6291, %v6409
      %v6422 = vld [vmem:[#allocation3 + $0x16] sm:$0xff]
      %v6423 = vld [vmem:[#allocation3 + $0x1e] sm:$0xff]
      %v6424 = vld [vmem:[#allocation3 + $0x26] sm:$0xff]
      %v6425 = vld [vmem:[#allocation3 + $0x2e] sm:$0xff]
      %v6426 = vld [vmem:[#allocation3 + $0x36] sm:$0xff]
      %v6427 = vld [vmem:[#allocation3 + $0x3e] sm:$0xff]
      %v6428 = vld [vmem:[#allocation3 + $0x46] sm:$0xff]
      %v6429 = vld [vmem:[#allocation3 + $0x4e] sm:$0xff]
      %v6430 = vld [vmem:[#allocation3 + $0x56] sm:$0xff]
      %v6431 = vld [vmem:[#allocation3 + $0x5e] sm:$0xff]
      %v6432 = vpack.c.bf16 %v6423, %v6422
      %v6433 = vpack.c.bf16 %v6425, %v6424
      %v6434 = vpack.c.bf16 %v6427, %v6426
      %v6435 = vpack.c.bf16 %v6429, %v6428
      %v6436 = vpack.c.bf16 %v6431, %v6430
      %s6437 = scalar_lea.vmem %s9, 128
      %v6438 = vld [vmem:[%s6437] sm:$0xf]
      %v6439 = vld [vmem:[%s6437 + $0x4] sm:$0xf]
      %v6440 = vld [vmem:[%s6437 + $0x8] sm:$0xf]
      %v6441 = vld [vmem:[%s6437 + $0xc] sm:$0xf]
      %v6446 = vunpack.c.l.b16 %v6438
      %v6447 = vunpack.c.l.b16 %v6439
      %v6448 = vunpack.c.l.b16 %v6440
      %v6449 = vunpack.c.l.b16 %v6441
      %v6450 = vpack.c.b16 %v6447, %v6446
      %v6451 = vpack.c.b16 %v6449, %v6448
      %v6455 = vsel %vm388, %v6432, 0
      %v6458 = vsel %vm388, %v6433, 0
      %v6461 = vsel %vm388, %v6434, 0
      %v6464 = vsel %vm388, %v6435, 0
      %v6467 = vsel %vm388, %v6436, 0
      %6469 = vmatprep.subr.bf16.mxu0 0
      %6470 = vmatpush1.bf16.msra.mxu0 %v6450
      %6471 = vmatprep.subr.bf16.mxu0 0
      %6472 = vmatpush1.bf16.msra.mxu0 %v6451
      %6473 = vmatprep.subr.bf16.mxu0 0
      %6474 = vmatpush1.bf16.msra.mxu0 0
      %6475 = vmatprep.subr.bf16.mxu0 0
      %6476 = vmatpush1.bf16.msra.mxu0 0
      %6477 = vmatprep.subr.bf16.mxu0 0
      %6478 = vmatpush1.bf16.msra.mxu0 0
      %6479 = vmatprep.subr.bf16.mxu0 0
      %6480 = vmatpush1.bf16.msra.mxu0 0
      %6481 = vmatprep.subr.bf16.mxu0 0
      %6482 = vmatpush1.bf16.msra.mxu0 0
      %6483 = vmatprep.subr.bf16.mxu0 0
      %6484 = vmatpush1.bf16.msra.mxu0 0
      %6485 = vmatprep.subr.bf16.mxu0 0
      %6486 = vmatpush1.bf16.msra.mxu0 0
      %6487 = vmatprep.subr.bf16.mxu0 0
      %6488 = vmatpush1.bf16.msra.mxu0 0
      %6489 = vmatprep.subr.bf16.mxu0 0
      %6490 = vmatpush1.bf16.msra.mxu0 0
      %6491 = vmatprep.subr.bf16.mxu0 0
      %6492 = vmatpush1.bf16.msra.mxu0 0
      %6493 = vmatprep.subr.bf16.mxu0 0
      %6494 = vmatpush1.bf16.msra.mxu0 0
      %6495 = vmatprep.subr.bf16.mxu0 0
      %6496 = vmatpush1.bf16.msra.mxu0 0
      %6497 = vmatprep.subr.bf16.mxu0 0
      %6498 = vmatpush1.bf16.msra.mxu0 0
      %6499 = vmatprep.subr.bf16.mxu0 0
      %6500 = vmatpush1.bf16.msra.mxu0 0
      %6501 = vmatprep.mubr.bf16.mxu0 0
      %6502 = vmatmul.mubr.bf16.gmra.mrb[0].mxu0 %v6455
      %v6503 = vpop.f32.mrb[0].mxu0
      %v6504 = vadd.f32 0.0, %v6503
      %v6505 = vpop.f32.mrb[0].mxu0
      %v6506 = vpop.f32.mrb[0].mxu0
      %v6507 = vadd.f32 0.0, %v6506
      %v6508 = vpop.f32.mrb[0].mxu0
      %6509 = vmatprep.mubr.bf16.mxu0 0
      %6510 = vmatmul.mubr.bf16.gmra.mrb[0].mxu0 %v6458
      %v6511 = vpop.f32.mrb[0].mxu0
      %v6512 = vadd.f32 0.0, %v6511
      %v6513 = vpop.f32.mrb[0].mxu0
      %v6514 = vpop.f32.mrb[0].mxu0
      %v6515 = vadd.f32 0.0, %v6514
      %v6516 = vpop.f32.mrb[0].mxu0
      %6517 = vmatprep.mubr.bf16.mxu0 0
      %6518 = vmatmul.mubr.bf16.gmra.mrb[0].mxu0 %v6461
      %v6519 = vpop.f32.mrb[0].mxu0
      %v6520 = vadd.f32 0.0, %v6519
      %v6521 = vpop.f32.mrb[0].mxu0
      %v6522 = vpop.f32.mrb[0].mxu0
      %v6523 = vadd.f32 0.0, %v6522
      %v6524 = vpop.f32.mrb[0].mxu0
      %6525 = vmatprep.mubr.bf16.mxu0 0
      %6526 = vmatmul.mubr.bf16.gmra.mrb[0].mxu0 %v6464
      %v6527 = vpop.f32.mrb[0].mxu0
      %v6528 = vadd.f32 0.0, %v6527
      %v6529 = vpop.f32.mrb[0].mxu0
      %v6530 = vpop.f32.mrb[0].mxu0
      %v6531 = vadd.f32 0.0, %v6530
      %v6532 = vpop.f32.mrb[0].mxu0
      %6533 = vmatprep.mubr.bf16.mxu0 0
      %6534 = vmatmul.mubr.bf16.gmra.mrb[0].mxu0 %v6467
      %v6535 = vpop.f32.mrb[0].mxu0
      %v6536 = vadd.f32 0.0, %v6535
      %v6537 = vpop.f32.mrb[0].mxu0
      %v6538 = vpop.f32.mrb[0].mxu0
      %v6539 = vadd.f32 0.0, %v6538
      %v6540 = vpop.f32.mrb[0].mxu0
      %6541 = vdwg.mxu0
      %v6542 = vadd.f32 %v6412, %v6504
      %v6543 = vadd.f32 %v6413, %v6507
      %v6544 = vadd.f32 %v6414, %v6512
      %v6545 = vadd.f32 %v6415, %v6515
      %v6546 = vadd.f32 %v6416, %v6520
      %v6547 = vadd.f32 %v6417, %v6523
      %v6548 = vadd.f32 %v6418, %v6528
      %v6549 = vadd.f32 %v6419, %v6531
      %v6550 = vadd.f32 %v6420, %v6536
      %v6551 = vadd.f32 %v6421, %v6539
      %v6552 = vld [vmem:[%s10] sm:$0x1]
      %v6554 = vlaneseq
      %v6555 = vshrl.u32 %v6554, 7
      %v6556 = vsub.s32 0, %v6555
      %v6557 = vrot.slane %v6552, %v6556
      %v6559 = vadd.f32 %v6542, %v6557
      %v6560 = vadd.f32 %v6543, %v6557
      %v6561 = vadd.f32 %v6544, %v6557
      %v6562 = vadd.f32 %v6545, %v6557
      %v6563 = vadd.f32 %v6546, %v6557
      %v6564 = vadd.f32 %v6547, %v6557
      %v6565 = vadd.f32 %v6548, %v6557
      %v6566 = vadd.f32 %v6549, %v6557
      %v6567 = vadd.f32 %v6550, %v6557
      %v6568 = vadd.f32 %v6551, %v6557
      %v6569 = vxor.u32 %v6559, 2147483648
      %v6570 = vxor.u32 %v6560, 2147483648
      %v6571 = vxor.u32 %v6561, 2147483648
      %v6572 = vxor.u32 %v6562, 2147483648
      %v6573 = vxor.u32 %v6563, 2147483648
      %v6574 = vxor.u32 %v6564, 2147483648
      %v6575 = vxor.u32 %v6565, 2147483648
      %v6576 = vxor.u32 %v6566, 2147483648
      %v6577 = vxor.u32 %v6567, 2147483648
      %v6578 = vxor.u32 %v6568, 2147483648
      %v6579 = vmul.f32 %v6569, 1.442695
      %v6580 = vpow.pop %v6579
      %v6581 = vmul.f32 %v6570, 1.442695
      %v6582 = vpow.pop %v6581
      %v6583 = vmul.f32 %v6571, 1.442695
      %v6584 = vpow.pop %v6583
      %v6585 = vmul.f32 %v6572, 1.442695
      %v6586 = vpow.pop %v6585
      %v6587 = vmul.f32 %v6573, 1.442695
      %v6588 = vpow.pop %v6587
      %v6589 = vmul.f32 %v6574, 1.442695
      %v6590 = vpow.pop %v6589
      %v6591 = vmul.f32 %v6575, 1.442695
      %v6592 = vpow.pop %v6591
      %v6593 = vmul.f32 %v6576, 1.442695
      %v6594 = vpow.pop %v6593
      %v6595 = vmul.f32 %v6577, 1.442695
      %v6596 = vpow.pop %v6595
      %v6597 = vmul.f32 %v6578, 1.442695
      %v6598 = vpow.pop %v6597
      %v6599 = vadd.f32 %v6580, 1.0
      %v6600 = vadd.f32 %v6582, 1.0
      %v6601 = vadd.f32 %v6584, 1.0
      %v6602 = vadd.f32 %v6586, 1.0
      %v6603 = vadd.f32 %v6588, 1.0
      %v6604 = vadd.f32 %v6590, 1.0
      %v6605 = vadd.f32 %v6592, 1.0
      %v6606 = vadd.f32 %v6594, 1.0
      %v6607 = vadd.f32 %v6596, 1.0
      %v6608 = vadd.f32 %v6598, 1.0
      %v6609 = vrcp.pop %v6599
      %v6610 = vmul.f32 1.0, %v6609
      %v6611 = vrcp.pop %v6600
      %v6612 = vmul.f32 1.0, %v6611
      %v6613 = vrcp.pop %v6601
      %v6614 = vmul.f32 1.0, %v6613
      %v6615 = vrcp.pop %v6602
      %v6616 = vmul.f32 1.0, %v6615
      %v6617 = vrcp.pop %v6603
      %v6618 = vmul.f32 1.0, %v6617
      %v6619 = vrcp.pop %v6604
      %v6620 = vmul.f32 1.0, %v6619
      %v6621 = vrcp.pop %v6605
      %v6622 = vmul.f32 1.0, %v6621
      %v6623 = vrcp.pop %v6606
      %v6624 = vmul.f32 1.0, %v6623
      %v6625 = vrcp.pop %v6607
      %v6626 = vmul.f32 1.0, %v6625
      %v6627 = vrcp.pop %v6608
      %v6628 = vmul.f32 1.0, %v6627
      %vm6629 = vcmask 392192
      %6630 = vst.msk [vmem:[%s386] sm:$0xff] %vm6629, %v6610
      %6631 = vst.msk [vmem:[%s386 + $0x8] sm:$0xff] %vm6629, %v6612
      %6632 = vst.msk [vmem:[%s386 + $0x10] sm:$0xff] %vm6629, %v6614
      %6633 = vst.msk [vmem:[%s386 + $0x18] sm:$0xff] %vm6629, %v6616
      %6634 = vst.msk [vmem:[%s386 + $0x20] sm:$0xff] %vm6629, %v6618
      %6635 = vst.msk [vmem:[%s386 + $0x28] sm:$0xff] %vm6629, %v6620
      %6636 = vst.msk [vmem:[%s386 + $0x30] sm:$0xff] %vm6629, %v6622
      %6637 = vst.msk [vmem:[%s386 + $0x38] sm:$0xff] %vm6629, %v6624
      %6638 = vst.msk [vmem:[%s386 + $0x40] sm:$0xff] %vm6629, %v6626
      %6639 = vst.msk [vmem:[%s386 + $0x48] sm:$0xff] %vm6629, %v6628
      %p6640 = scmp.lt.s32.totalorder %s22, 1
      %s6641 = scalar_select %p6640, %s22, 1
      %s6642 = smul.addr %s6641, 10
      %s6643 = smul.addr %s6642, 8
      %s6644 = scalar_lea.vmem %s11, %s6643
      // Predicated region
      $region65: #{classification_forward.1} parent=63 // pred_check
        %p6645 = pneg %p276
      $region66: #{classification_forward.1} parent=63 // pred_check_branch
        %6647 = sbr.rel (%p6645) target = $region68
      $region67: #{classification_forward.1} parent=63 // pred_region
        _
      $region68: #{classification_forward.1} parent=63 // pred_fallthru
        _
    $region64: #{classification_forward.1} parent=5 // pred_fallthru
      _
    %p6648 = scmp.le.s32.totalorder 2, %s17
    // Predicated region
    $region69: #{classification_forward.1} parent=5 // pred_check
      %p6649 = pneg %p6648
    $region70: #{classification_forward.1} parent=5 // pred_check_branch
      %6651 = sbr.rel (%p6649) target = $region72
    $region71: #{classification_forward.1} parent=5 // pred_region
      %s6652 = ssub.s32 %s17, 2
      // Predicated region
      $region73: #{classification_forward.1} parent=71 // pred_check
        %p6653 = pneg %p282
      $region74: #{classification_forward.1} parent=71 // pred_check_branch
        %6655 = sbr.rel (%p6653) target = $region76
      $region75: #{classification_forward.1} parent=71 // pred_region
        %p6656 = scmp.lt.s32.totalorder %s23, 1
        %s6657 = scalar_select %p6656, %s23, 1
        %s6658 = smul.addr %s6657, 10
        %s6659 = smul.addr %s6658, 8
        %s6660 = scalar_lea.vmem %s11, %s6659
      $region76: #{classification_forward.1} parent=71 // pred_fallthru
        _
    $region72: #{classification_forward.1} parent=5 // pred_fallthru
      _
  $region6: #{classification_forward.1} parent=0 // loop_footer
    %s21 = sadd.s32 1, %s17
  $region7: #{classification_forward.1} parent=0 // loop_footer_branch
    %16 = sbr.rel target = $region3
  $region8: #{classification_forward.1} parent=0 // loop_exit
    _

</llo_original>
